<compile_context>
chip_gen: v6e
topology: v6e:2x2x1
jax: 0.10.0
libtpu: 0.0.40
codegen_flags: <defaults>
</compile_context>

<pallas_src>
import math
from functools import partial

import numpy as np
import jax
import jax.numpy as jnp
from jax.experimental import pallas as pl
from jax.experimental.pallas import tpu as pltpu


# --------------------------------------------------------------------------
# Fused decoder-stack Pallas kernel
# --------------------------------------------------------------------------

def _decoder_stack_kernel(x_ref, mem_ref,
                          wqkv_s_ref, bqkv_s_ref, wo_s_ref, bo_s_ref,
                          wq_c_ref, bq_c_ref, wkv_c_ref, bkv_c_ref,
                          wo_c_ref, bo_c_ref,
                          w1_ref, b1_ref, w2_ref, b2_ref, ln_ref,
                          o_ref, *, num_layers, nhead, eps):
    """One grid step processes one batch element through all decoder layers."""
    d = x_ref.shape[-1]
    hd = d // nhead
    scale = 1.0 / math.sqrt(hd)
    bf16 = jnp.bfloat16

    x = x_ref[0]                         # (Lq, d)  f32
    mem_bf = mem_ref[0].astype(bf16)     # (Lk, d)  bf16 (MXU operand only)

    def layer_norm(y, gamma, beta):      # biased variance, matches torch LN
        mu = jnp.mean(y, axis=-1, keepdims=True)
        yc = y - mu
        var = jnp.mean(yc * yc, axis=-1, keepdims=True)
        return yc * jax.lax.rsqrt(var + eps) * gamma + beta

    def mha(q, k, v, wo, bo):
        # q:(Lq,d) k,v:(Lk,d) f32; wo:(d,d) f32, bo:(1,d) f32.
        # Per-head softmax(QK^T/sqrt(hd))V with the output projection
        # accumulated head-by-head (fuses concat+out_proj, stays f32 — these
        # matmuls are tiny and f32 keeps v5e's VPU happy).
        out = bo
        for h in range(nhead):
            sl = slice(h * hd, (h + 1) * hd)
            qh, kh, vh = q[:, sl], k[:, sl], v[:, sl]
            s = jax.lax.dot_general(qh, kh, (((1,), (1,)), ((), ())),
                                    preferred_element_type=jnp.float32) * scale
            s = s - jnp.max(s, axis=-1, keepdims=True)
            p = jnp.exp(s)
            p = p / jnp.sum(p, axis=-1, keepdims=True)
            oh = jnp.dot(p, vh, preferred_element_type=jnp.float32)     # (Lq,hd)
            out = out + jnp.dot(oh, wo[sl, :],
                                preferred_element_type=jnp.float32)      # (Lq,d)
        return out

    for l in range(num_layers):          # static unroll (small num_layers)
        ln_l = ln_ref[l]                 # (8, d): rows [g1,b1,g2,b2,g3,b3,_,_]

        # ---- self-attention (fused Q|K|V projection, bf16 operands) ----
        qkv = jnp.dot(x.astype(bf16), wqkv_s_ref[l],
                      preferred_element_type=jnp.float32) + bqkv_s_ref[l]
        sa = mha(qkv[:, :d], qkv[:, d:2 * d], qkv[:, 2 * d:],
                 wo_s_ref[l], bo_s_ref[l])
        x = layer_norm(x + sa, ln_l[0:1], ln_l[1:2])

        # ---- cross-attention (fused K|V projection of memory) ----
        qc = jnp.dot(x.astype(bf16), wq_c_ref[l],
                     preferred_element_type=jnp.float32) + bq_c_ref[l]
        kv = jnp.dot(mem_bf, wkv_c_ref[l],
                     preferred_element_type=jnp.float32) + bkv_c_ref[l]
        ca = mha(qc, kv[:, :d], kv[:, d:], wo_c_ref[l], bo_c_ref[l])
        x = layer_norm(x + ca, ln_l[2:3], ln_l[3:4])

        # ---- feed-forward (relu), add+LN epilogue ----
        h1 = jnp.maximum(
            jnp.dot(x.astype(bf16), w1_ref[l],
                    preferred_element_type=jnp.float32) + b1_ref[l], 0.0)
        ff = jnp.dot(h1.astype(bf16), w2_ref[l],
                     preferred_element_type=jnp.float32) + b2_ref[l]
        x = layer_norm(x + ff, ln_l[4:5], ln_l[5:6])

    o_ref[0] = x


def decoder_stack(trans_in, memory, p, *, nhead):
    """trans_in:(B,Lq,d) f32, memory:(B,Lk,d) f32 -> (B,Lq,d) f32."""
    B, Lq, d = trans_in.shape
    _, Lk, _ = memory.shape
    num_layers = p["wqkv_self"].shape[0]

    weight_args = (p["wqkv_self"], p["bqkv_self"], p["wo_self"], p["bo_self"],
                   p["wq_cross"], p["bq_cross"], p["wkv_cross"], p["bkv_cross"],
                   p["wo_cross"], p["bo_cross"],
                   p["ffn_w1"], p["ffn_b1"], p["ffn_w2"], p["ffn_b2"],
                   p["ln"])
    # Whole-array blocks with a constant index map: weights stay VMEM-resident
    # across grid steps (no re-DMA between iterations).
    weight_specs = [pl.BlockSpec(a.shape, lambda b: (0, 0, 0))
                    for a in weight_args]

    return pl.pallas_call(
        partial(_decoder_stack_kernel, num_layers=num_layers, nhead=nhead,
                eps=1e-5),
        out_shape=jax.ShapeDtypeStruct((B, Lq, d), jnp.float32),
        grid=(B,),
        in_specs=[pl.BlockSpec((1, Lq, d), lambda b: (b, 0, 0)),
                  pl.BlockSpec((1, Lk, d), lambda b: (b, 0, 0))] + weight_specs,
        out_specs=pl.BlockSpec((1, Lq, d), lambda b: (b, 0, 0)),
        compiler_params=pltpu.CompilerParams(
            dimension_semantics=("parallel",)),   # v7x: both TCs get a batch
    )(trans_in, memory, *weight_args)


# --------------------------------------------------------------------------
# Model glue (embeddings, positional encoding, degenerate-shape linears)
# --------------------------------------------------------------------------

def make_pos_encoding(max_len, d_model):
    pe = np.zeros((max_len, d_model), dtype=np.float32)
    pos = np.arange(max_len, dtype=np.float32)[:, None]
    div = np.exp(np.arange(0, d_model, 2, dtype=np.float32) *
                 (-math.log(10000.0) / d_model))
    pe[:, 0::2] = np.sin(pos * div)
    pe[:, 1::2] = np.cos(pos * div)
    return jnp.asarray(pe)               # (max_len, d_model)


def positional_encode(emb, pe):
    # The torch buffer is (max_len, 1, d); with batch_first embeddings the
    # forward adds the b-th positional vector to EVERY token of batch b.
    # We reproduce that broadcasting quirk exactly (requires B <= max_len).
    B = emb.shape[0]
    return emb + pe[:B][:, None, :]      # dropout (p=0.1) is identity in eval


def init_params(key, *, output_dim, vocab, inputsize_H, d_model, nhead,
                num_layers, dff):
    keys = iter(jax.random.split(key, 32))
    d, NL = d_model, num_layers
    bf16 = jnp.bfloat16

    def rnd(shape, dtype=jnp.float32, scale=0.05):
        return (jax.random.normal(next(keys), shape, jnp.float32)
                * scale).astype(dtype)

    # LayerNorm params packed as (NL, 8, d): rows [g1,b1,g2,b2,g3,b3,pad,pad]
    ln = jnp.zeros((NL, 8, d), jnp.float32)
    ln = ln.at[:, 0].set(1.0).at[:, 2].set(1.0).at[:, 4].set(1.0)

    return {
        "emb":   rnd((vocab, d)),
        "data_w": rnd((3, d)), "data_b": rnd((d,)),
        "out_w": rnd((d * (inputsize_H + 1), output_dim)),
        "out_b": rnd((output_dim,)),
        # fused Q|K|V projection (self) and Q / K|V (cross); big matmul
        # weights stored in bf16, biases and LN params in f32.
        "wqkv_self": rnd((NL, d, 3 * d), bf16), "bqkv_self": rnd((NL, 1, 3 * d)),
        "wo_self":   rnd((NL, d, d)),           "bo_self":   rnd((NL, 1, d)),
        "wq_cross":  rnd((NL, d, d), bf16),     "bq_cross":  rnd((NL, 1, d)),
        "wkv_cross": rnd((NL, d, 2 * d), bf16), "bkv_cross": rnd((NL, 1, 2 * d)),
        "wo_cross":  rnd((NL, d, d)),           "bo_cross":  rnd((NL, 1, d)),
        "ffn_w1":    rnd((NL, d, dff), bf16),   "ffn_b1":    rnd((NL, 1, dff)),
        "ffn_w2":    rnd((NL, dff, d), bf16),   "ffn_b2":    rnd((NL, 1, d)),
        "ln": ln,
    }


@partial(jax.jit, static_argnames=("nhead",))
def fn_generator_forward(params, src_h, src_o, tgt, pe, *, nhead):
    B = src_h.shape[0]
    # Degenerate-shape ops kept in plain XLA (perf review: launch overhead and
    # masked partial stores would dominate for K=3 / N=16 blocks).
    lin = jax.nn.relu(src_o @ params["data_w"] + params["data_b"])[:, None, :]
    headline = positional_encode(params["emb"][src_h], pe)           # (B,H,d)
    short_description = positional_encode(params["emb"][tgt], pe)    # (B,S,d)
    trans_in = jnp.concatenate([headline, lin], axis=1)              # (B,H+1,d)

    x = decoder_stack(trans_in, short_description, params, nhead=nhead)

    logits = x.reshape(B, -1) @ params["out_w"] + params["out_b"]
    return jax.nn.softmax(logits, axis=-1)


# --------------------------------------------------------------------------
# Pure-JAX reference (same math, f32, for a loose correctness check)
# --------------------------------------------------------------------------

def reference_forward(params, src_h, src_o, tgt, pe, *, nhead):
    hi = jax.lax.Precision.HIGHEST
    f32 = jnp.float32
    B = src_h.shape[0]
    d = params["emb"].shape[1]
    hd = d // nhead
    NL = params["wqkv_self"].shape[0]

    def mm(a, w):
        return jnp.dot(a, w.astype(f32), precision=hi)

    def layer_norm(y, g, b, eps=1e-5):
        mu = y.mean(-1, keepdims=True)
        yc = y - mu
        return yc / jnp.sqrt((yc * yc).mean(-1, keepdims=True) + eps) * g + b

    def attn(q, k, v, wo, bo):
        Bq, Lq, _ = q.shape
        Lk = k.shape[1]
        qh = q.reshape(Bq, Lq, nhead, hd).transpose(0, 2, 1, 3)
        kh = k.reshape(Bq, Lk, nhead, hd).transpose(0, 2, 1, 3)
        vh = v.reshape(Bq, Lk, nhead, hd).transpose(0, 2, 1, 3)
        s = jnp.einsum("bhqd,bhkd->bhqk", qh, kh, precision=hi) / math.sqrt(hd)
        p = jax.nn.softmax(s, axis=-1)
        o = jnp.einsum("bhqk,bhkd->bhqd", p, vh, precision=hi)
        o = o.transpose(0, 2, 1, 3).reshape(Bq, Lq, d)
        return mm(o, wo) + bo

    lin = jax.nn.relu(src_o @ params["data_w"] + params["data_b"])[:, None, :]
    headline = positional_encode(params["emb"][src_h], pe)
    memory = positional_encode(params["emb"][tgt], pe)
    x = jnp.concatenate([headline, lin], axis=1)
    for l in range(NL):
        g = params["ln"][l]
        qkv = mm(x, params["wqkv_self"][l]) + params["bqkv_self"][l]
        sa = attn(qkv[..., :d], qkv[..., d:2 * d], qkv[..., 2 * d:],
                  params["wo_self"][l], params["bo_self"][l])
        x = layer_norm(x + sa, g[0], g[1])
        qc = mm(x, params["wq_cross"][l]) + params["bq_cross"][l]
        kv = mm(memory, params["wkv_cross"][l]) + params["bkv_cross"][l]
        ca = attn(qc, kv[..., :d], kv[..., d:],
                  params["wo_cross"][l], params["bo_cross"][l])
        x = layer_norm(x + ca, g[2], g[3])
        h1 = jax.nn.relu(mm(x, params["ffn_w1"][l]) + params["ffn_b1"][l])
        ff = mm(h1, params["ffn_w2"][l]) + params["ffn_b2"][l]
        x = layer_norm(x + ff, g[4], g[5])
    logits = x.reshape(B, -1) @ params["out_w"] + params["out_b"]
    return jax.nn.softmax(logits, axis=-1)


# --------------------------------------------------------------------------
# Main
# --------------------------------------------------------------------------

if __name__ == "__main__":
    B = 2
    inputsize_H = 8            # headline length  -> decoder tgt length H+1
    S = 8                      # short_description (memory) length
    d_model = 128
    nhead = 4
    num_decoder_layers = 2
    dim_feedforward = 256      # (PyTorch default 2048, scaled down for test)
    headline_vocabsize = 50
    output_dim = 16

    key = jax.random.PRNGKey(0)
    kp, kh, ko, kt = jax.random.split(key, 4)

    params = init_params(kp, output_dim=output_dim, vocab=headline_vocabsize,
                         inputsize_H=inputsize_H, d_model=d_model, nhead=nhead,
                         num_layers=num_decoder_layers, dff=dim_feedforward)
    pe = make_pos_encoding(inputsize_H, d_model)

    src_h = jax.random.randint(kh, (B, inputsize_H), 0, headline_vocabsize,
                               dtype=jnp.int32)
    tgt = jax.random.randint(kt, (B, S), 0, headline_vocabsize, dtype=jnp.int32)
    src_o = jax.random.normal(ko, (B, 3), jnp.float32)

    out = fn_generator_forward(params, src_h, src_o, tgt, pe, nhead=nhead)
    out = jax.block_until_ready(out)

    assert out.shape == (B, output_dim)
    assert bool(jnp.all(jnp.isfinite(out)))
    assert bool(jnp.allclose(jnp.sum(out, axis=1), 1.0, atol=1e-5))

    # Loose check vs the pure-JAX f32 reference (bf16 MXU operands introduce
    # small rounding differences; a logic bug would be O(0.1-1)).
    ref = reference_forward(params, src_h, src_o, tgt, pe, nhead=nhead)
    assert bool(jnp.allclose(out, ref, atol=5e-2))

    print("KERNEL_OK")
</pallas_src>

<mosaic_0001>
module attributes {stable_mosaic.version = 11 : i64} {
  func.func @_decoder_stack_kernel(%arg0: i32, %arg1: memref<1x9x128xf32, #tpu.memory_space<vmem>>, %arg2: memref<1x8x128xf32, #tpu.memory_space<vmem>>, %arg3: memref<2x128x384xbf16, #tpu.memory_space<vmem>>, %arg4: memref<2x1x384xf32, #tpu.memory_space<vmem>>, %arg5: memref<2x128x128xf32, #tpu.memory_space<vmem>>, %arg6: memref<2x1x128xf32, #tpu.memory_space<vmem>>, %arg7: memref<2x128x128xbf16, #tpu.memory_space<vmem>>, %arg8: memref<2x1x128xf32, #tpu.memory_space<vmem>>, %arg9: memref<2x128x256xbf16, #tpu.memory_space<vmem>>, %arg10: memref<2x1x256xf32, #tpu.memory_space<vmem>>, %arg11: memref<2x128x128xf32, #tpu.memory_space<vmem>>, %arg12: memref<2x1x128xf32, #tpu.memory_space<vmem>>, %arg13: memref<2x128x256xbf16, #tpu.memory_space<vmem>>, %arg14: memref<2x1x256xf32, #tpu.memory_space<vmem>>, %arg15: memref<2x256x128xbf16, #tpu.memory_space<vmem>>, %arg16: memref<2x1x128xf32, #tpu.memory_space<vmem>>, %arg17: memref<2x8x128xf32, #tpu.memory_space<vmem>>, %arg18: memref<1x9x128xf32, #tpu.memory_space<vmem>>) attributes {dimension_semantics = [#tpu.dimension_semantics<parallel>], iteration_bounds = array<i64: 2>, scalar_prefetch = 0 : i64, scratch_operands = 0 : i64, tpu.core_type = #tpu.core_type<tc>, window_params = [{transform_indices = @transform_0, window_bounds = array<i64: 1, 9, 128>}, {transform_indices = @transform_1, window_bounds = array<i64: 1, 8, 128>}, {pipeline_mode = #tpu.pipeline_mode<synchronous>, transform_indices = @transform_2, window_bounds = array<i64: 2, 128, 384>}, {pipeline_mode = #tpu.pipeline_mode<synchronous>, transform_indices = @transform_3, window_bounds = array<i64: 2, 1, 384>}, {pipeline_mode = #tpu.pipeline_mode<synchronous>, transform_indices = @transform_4, window_bounds = array<i64: 2, 128, 128>}, {pipeline_mode = #tpu.pipeline_mode<synchronous>, transform_indices = @transform_5, window_bounds = array<i64: 2, 1, 128>}, {pipeline_mode = #tpu.pipeline_mode<synchronous>, transform_indices = @transform_6, window_bounds = array<i64: 2, 128, 128>}, {pipeline_mode = #tpu.pipeline_mode<synchronous>, transform_indices = @transform_7, window_bounds = array<i64: 2, 1, 128>}, {pipeline_mode = #tpu.pipeline_mode<synchronous>, transform_indices = @transform_8, window_bounds = array<i64: 2, 128, 256>}, {pipeline_mode = #tpu.pipeline_mode<synchronous>, transform_indices = @transform_9, window_bounds = array<i64: 2, 1, 256>}, {pipeline_mode = #tpu.pipeline_mode<synchronous>, transform_indices = @transform_10, window_bounds = array<i64: 2, 128, 128>}, {pipeline_mode = #tpu.pipeline_mode<synchronous>, transform_indices = @transform_11, window_bounds = array<i64: 2, 1, 128>}, {pipeline_mode = #tpu.pipeline_mode<synchronous>, transform_indices = @transform_12, window_bounds = array<i64: 2, 128, 256>}, {pipeline_mode = #tpu.pipeline_mode<synchronous>, transform_indices = @transform_13, window_bounds = array<i64: 2, 1, 256>}, {pipeline_mode = #tpu.pipeline_mode<synchronous>, transform_indices = @transform_14, window_bounds = array<i64: 2, 256, 128>}, {pipeline_mode = #tpu.pipeline_mode<synchronous>, transform_indices = @transform_15, window_bounds = array<i64: 2, 1, 128>}, {pipeline_mode = #tpu.pipeline_mode<synchronous>, transform_indices = @transform_16, window_bounds = array<i64: 2, 8, 128>}, {transform_indices = @transform_17, window_bounds = array<i64: 1, 9, 128>}]} {
    %c0 = arith.constant 0 : index
    %c0_0 = arith.constant 0 : index
    %c0_1 = arith.constant 0 : index
    %0 = vector.load %arg1[%c0, %c0_0, %c0_1] : memref<1x9x128xf32, #tpu.memory_space<vmem>>, vector<1x9x128xf32>
    %1 = vector.shape_cast %0 : vector<1x9x128xf32> to vector<9x128xf32>
    %c0_2 = arith.constant 0 : index
    %c0_3 = arith.constant 0 : index
    %c0_4 = arith.constant 0 : index
    %2 = vector.load %arg2[%c0_2, %c0_3, %c0_4] : memref<1x8x128xf32, #tpu.memory_space<vmem>>, vector<1x8x128xf32>
    %3 = vector.shape_cast %2 : vector<1x8x128xf32> to vector<8x128xf32>
    %4 = arith.truncf %3 : vector<8x128xf32> to vector<8x128xbf16>
    %c0_5 = arith.constant 0 : index
    %c0_6 = arith.constant 0 : index
    %c0_7 = arith.constant 0 : index
    %5 = vector.load %arg17[%c0_5, %c0_6, %c0_7] : memref<2x8x128xf32, #tpu.memory_space<vmem>>, vector<1x8x128xf32>
    %6 = vector.shape_cast %5 : vector<1x8x128xf32> to vector<8x128xf32>
    %7 = arith.truncf %1 : vector<9x128xf32> to vector<9x128xbf16>
    %c0_8 = arith.constant 0 : index
    %c0_9 = arith.constant 0 : index
    %c0_10 = arith.constant 0 : index
    %8 = vector.load %arg3[%c0_8, %c0_9, %c0_10] : memref<2x128x384xbf16, #tpu.memory_space<vmem>>, vector<1x128x384xbf16>
    %9 = vector.shape_cast %8 : vector<1x128x384xbf16> to vector<128x384xbf16>
    %cst = arith.constant dense<0.000000e+00> : vector<9x384xf32>
    %10 = tpu.matmul %7, %9, %cst {dimension_numbers = #tpu.dot_dimension_numbers<[1], [0], [0], [1], [0, 0, 1, 1], [], []>} : vector<9x128xbf16>, vector<128x384xbf16>, vector<9x384xf32> -> vector<9x384xf32>
    %c0_11 = arith.constant 0 : index
    %c0_12 = arith.constant 0 : index
    %c0_13 = arith.constant 0 : index
    %11 = vector.load %arg4[%c0_11, %c0_12, %c0_13] : memref<2x1x384xf32, #tpu.memory_space<vmem>>, vector<1x1x384xf32>
    %12 = vector.shape_cast %11 : vector<1x1x384xf32> to vector<1x384xf32>
    %13 = vector.broadcast %12 : vector<1x384xf32> to vector<9x384xf32>
    %14 = arith.addf %10, %13 : vector<9x384xf32>
    %15 = vector.extract_strided_slice %14 {offsets = [0, 0], sizes = [9, 128], strides = [1, 1]} : vector<9x384xf32> to vector<9x128xf32>
    %16 = vector.extract_strided_slice %14 {offsets = [0, 128], sizes = [9, 128], strides = [1, 1]} : vector<9x384xf32> to vector<9x128xf32>
    %17 = vector.extract_strided_slice %14 {offsets = [0, 256], sizes = [9, 128], strides = [1, 1]} : vector<9x384xf32> to vector<9x128xf32>
    %c0_14 = arith.constant 0 : index
    %c0_15 = arith.constant 0 : index
    %c0_16 = arith.constant 0 : index
    %18 = vector.load %arg5[%c0_14, %c0_15, %c0_16] : memref<2x128x128xf32, #tpu.memory_space<vmem>>, vector<1x128x128xf32>
    %19 = vector.shape_cast %18 : vector<1x128x128xf32> to vector<128x128xf32>
    %c0_17 = arith.constant 0 : index
    %c0_18 = arith.constant 0 : index
    %c0_19 = arith.constant 0 : index
    %20 = vector.load %arg6[%c0_17, %c0_18, %c0_19] : memref<2x1x128xf32, #tpu.memory_space<vmem>>, vector<1x1x128xf32>
    %21 = vector.shape_cast %20 : vector<1x1x128xf32> to vector<1x128xf32>
    %22 = vector.extract_strided_slice %15 {offsets = [0, 0], sizes = [9, 32], strides = [1, 1]} : vector<9x128xf32> to vector<9x32xf32>
    %23 = vector.extract_strided_slice %16 {offsets = [0, 0], sizes = [9, 32], strides = [1, 1]} : vector<9x128xf32> to vector<9x32xf32>
    %24 = vector.extract_strided_slice %17 {offsets = [0, 0], sizes = [9, 32], strides = [1, 1]} : vector<9x128xf32> to vector<9x32xf32>
    %cst_20 = arith.constant dense<0.000000e+00> : vector<9x9xf32>
    %25 = tpu.matmul %22, %23, %cst_20 {dimension_numbers = #tpu.dot_dimension_numbers<[1], [1], [0], [0], [0, 0, 1, 0], [], []>} : vector<9x32xf32>, vector<9x32xf32>, vector<9x9xf32> -> vector<9x9xf32>
    %cst_21 = arith.constant 0.176776692 : f32
    %26 = vector.broadcast %cst_21 : f32 to vector<9x9xf32>
    %27 = arith.mulf %25, %26 : vector<9x9xf32>
    %cst_22 = arith.constant dense<0xFF800000> : vector<9xf32>
    %28 = vector.multi_reduction <maximumf>, %27, %cst_22 [1] : vector<9x9xf32> to vector<9xf32>
    %29 = vector.shape_cast %28 : vector<9xf32> to vector<9x1xf32>
    %30 = vector.broadcast %29 : vector<9x1xf32> to vector<9x9xf32>
    %31 = arith.subf %27, %30 : vector<9x9xf32>
    %32 = math.exp %31 : vector<9x9xf32>
    %cst_23 = arith.constant dense<0.000000e+00> : vector<9xf32>
    %33 = vector.multi_reduction <add>, %32, %cst_23 [1] : vector<9x9xf32> to vector<9xf32>
    %34 = vector.shape_cast %33 : vector<9xf32> to vector<9x1xf32>
    %35 = vector.broadcast %34 : vector<9x1xf32> to vector<9x9xf32>
    %36 = arith.divf %32, %35 : vector<9x9xf32>
    %cst_24 = arith.constant dense<0.000000e+00> : vector<9x32xf32>
    %37 = tpu.matmul %36, %24, %cst_24 {dimension_numbers = #tpu.dot_dimension_numbers<[1], [0], [0], [1], [0, 0, 1, 1], [], []>} : vector<9x9xf32>, vector<9x32xf32>, vector<9x32xf32> -> vector<9x32xf32>
    %38 = vector.extract_strided_slice %19 {offsets = [0, 0], sizes = [32, 128], strides = [1, 1]} : vector<128x128xf32> to vector<32x128xf32>
    %cst_25 = arith.constant dense<0.000000e+00> : vector<9x128xf32>
    %39 = tpu.matmul %37, %38, %cst_25 {dimension_numbers = #tpu.dot_dimension_numbers<[1], [0], [0], [1], [0, 0, 1, 1], [], []>} : vector<9x32xf32>, vector<32x128xf32>, vector<9x128xf32> -> vector<9x128xf32>
    %40 = vector.broadcast %21 : vector<1x128xf32> to vector<9x128xf32>
    %41 = arith.addf %40, %39 : vector<9x128xf32>
    %42 = vector.extract_strided_slice %15 {offsets = [0, 32], sizes = [9, 32], strides = [1, 1]} : vector<9x128xf32> to vector<9x32xf32>
    %43 = vector.extract_strided_slice %16 {offsets = [0, 32], sizes = [9, 32], strides = [1, 1]} : vector<9x128xf32> to vector<9x32xf32>
    %44 = vector.extract_strided_slice %17 {offsets = [0, 32], sizes = [9, 32], strides = [1, 1]} : vector<9x128xf32> to vector<9x32xf32>
    %cst_26 = arith.constant dense<0.000000e+00> : vector<9x9xf32>
    %45 = tpu.matmul %42, %43, %cst_26 {dimension_numbers = #tpu.dot_dimension_numbers<[1], [1], [0], [0], [0, 0, 1, 0], [], []>} : vector<9x32xf32>, vector<9x32xf32>, vector<9x9xf32> -> vector<9x9xf32>
    %cst_27 = arith.constant 0.176776692 : f32
    %46 = vector.broadcast %cst_27 : f32 to vector<9x9xf32>
    %47 = arith.mulf %45, %46 : vector<9x9xf32>
    %cst_28 = arith.constant dense<0xFF800000> : vector<9xf32>
    %48 = vector.multi_reduction <maximumf>, %47, %cst_28 [1] : vector<9x9xf32> to vector<9xf32>
    %49 = vector.shape_cast %48 : vector<9xf32> to vector<9x1xf32>
    %50 = vector.broadcast %49 : vector<9x1xf32> to vector<9x9xf32>
    %51 = arith.subf %47, %50 : vector<9x9xf32>
    %52 = math.exp %51 : vector<9x9xf32>
    %cst_29 = arith.constant dense<0.000000e+00> : vector<9xf32>
    %53 = vector.multi_reduction <add>, %52, %cst_29 [1] : vector<9x9xf32> to vector<9xf32>
    %54 = vector.shape_cast %53 : vector<9xf32> to vector<9x1xf32>
    %55 = vector.broadcast %54 : vector<9x1xf32> to vector<9x9xf32>
    %56 = arith.divf %52, %55 : vector<9x9xf32>
    %cst_30 = arith.constant dense<0.000000e+00> : vector<9x32xf32>
    %57 = tpu.matmul %56, %44, %cst_30 {dimension_numbers = #tpu.dot_dimension_numbers<[1], [0], [0], [1], [0, 0, 1, 1], [], []>} : vector<9x9xf32>, vector<9x32xf32>, vector<9x32xf32> -> vector<9x32xf32>
    %58 = vector.extract_strided_slice %19 {offsets = [32, 0], sizes = [32, 128], strides = [1, 1]} : vector<128x128xf32> to vector<32x128xf32>
    %cst_31 = arith.constant dense<0.000000e+00> : vector<9x128xf32>
    %59 = tpu.matmul %57, %58, %cst_31 {dimension_numbers = #tpu.dot_dimension_numbers<[1], [0], [0], [1], [0, 0, 1, 1], [], []>} : vector<9x32xf32>, vector<32x128xf32>, vector<9x128xf32> -> vector<9x128xf32>
    %60 = arith.addf %41, %59 : vector<9x128xf32>
    %61 = vector.extract_strided_slice %15 {offsets = [0, 64], sizes = [9, 32], strides = [1, 1]} : vector<9x128xf32> to vector<9x32xf32>
    %62 = vector.extract_strided_slice %16 {offsets = [0, 64], sizes = [9, 32], strides = [1, 1]} : vector<9x128xf32> to vector<9x32xf32>
    %63 = vector.extract_strided_slice %17 {offsets = [0, 64], sizes = [9, 32], strides = [1, 1]} : vector<9x128xf32> to vector<9x32xf32>
    %cst_32 = arith.constant dense<0.000000e+00> : vector<9x9xf32>
    %64 = tpu.matmul %61, %62, %cst_32 {dimension_numbers = #tpu.dot_dimension_numbers<[1], [1], [0], [0], [0, 0, 1, 0], [], []>} : vector<9x32xf32>, vector<9x32xf32>, vector<9x9xf32> -> vector<9x9xf32>
    %cst_33 = arith.constant 0.176776692 : f32
    %65 = vector.broadcast %cst_33 : f32 to vector<9x9xf32>
    %66 = arith.mulf %64, %65 : vector<9x9xf32>
    %cst_34 = arith.constant dense<0xFF800000> : vector<9xf32>
    %67 = vector.multi_reduction <maximumf>, %66, %cst_34 [1] : vector<9x9xf32> to vector<9xf32>
    %68 = vector.shape_cast %67 : vector<9xf32> to vector<9x1xf32>
    %69 = vector.broadcast %68 : vector<9x1xf32> to vector<9x9xf32>
    %70 = arith.subf %66, %69 : vector<9x9xf32>
    %71 = math.exp %70 : vector<9x9xf32>
    %cst_35 = arith.constant dense<0.000000e+00> : vector<9xf32>
    %72 = vector.multi_reduction <add>, %71, %cst_35 [1] : vector<9x9xf32> to vector<9xf32>
    %73 = vector.shape_cast %72 : vector<9xf32> to vector<9x1xf32>
    %74 = vector.broadcast %73 : vector<9x1xf32> to vector<9x9xf32>
    %75 = arith.divf %71, %74 : vector<9x9xf32>
    %cst_36 = arith.constant dense<0.000000e+00> : vector<9x32xf32>
    %76 = tpu.matmul %75, %63, %cst_36 {dimension_numbers = #tpu.dot_dimension_numbers<[1], [0], [0], [1], [0, 0, 1, 1], [], []>} : vector<9x9xf32>, vector<9x32xf32>, vector<9x32xf32> -> vector<9x32xf32>
    %77 = vector.extract_strided_slice %19 {offsets = [64, 0], sizes = [32, 128], strides = [1, 1]} : vector<128x128xf32> to vector<32x128xf32>
    %cst_37 = arith.constant dense<0.000000e+00> : vector<9x128xf32>
    %78 = tpu.matmul %76, %77, %cst_37 {dimension_numbers = #tpu.dot_dimension_numbers<[1], [0], [0], [1], [0, 0, 1, 1], [], []>} : vector<9x32xf32>, vector<32x128xf32>, vector<9x128xf32> -> vector<9x128xf32>
    %79 = arith.addf %60, %78 : vector<9x128xf32>
    %80 = vector.extract_strided_slice %15 {offsets = [0, 96], sizes = [9, 32], strides = [1, 1]} : vector<9x128xf32> to vector<9x32xf32>
    %81 = vector.extract_strided_slice %16 {offsets = [0, 96], sizes = [9, 32], strides = [1, 1]} : vector<9x128xf32> to vector<9x32xf32>
    %82 = vector.extract_strided_slice %17 {offsets = [0, 96], sizes = [9, 32], strides = [1, 1]} : vector<9x128xf32> to vector<9x32xf32>
    %cst_38 = arith.constant dense<0.000000e+00> : vector<9x9xf32>
    %83 = tpu.matmul %80, %81, %cst_38 {dimension_numbers = #tpu.dot_dimension_numbers<[1], [1], [0], [0], [0, 0, 1, 0], [], []>} : vector<9x32xf32>, vector<9x32xf32>, vector<9x9xf32> -> vector<9x9xf32>
    %cst_39 = arith.constant 0.176776692 : f32
    %84 = vector.broadcast %cst_39 : f32 to vector<9x9xf32>
    %85 = arith.mulf %83, %84 : vector<9x9xf32>
    %cst_40 = arith.constant dense<0xFF800000> : vector<9xf32>
    %86 = vector.multi_reduction <maximumf>, %85, %cst_40 [1] : vector<9x9xf32> to vector<9xf32>
    %87 = vector.shape_cast %86 : vector<9xf32> to vector<9x1xf32>
    %88 = vector.broadcast %87 : vector<9x1xf32> to vector<9x9xf32>
    %89 = arith.subf %85, %88 : vector<9x9xf32>
    %90 = math.exp %89 : vector<9x9xf32>
    %cst_41 = arith.constant dense<0.000000e+00> : vector<9xf32>
    %91 = vector.multi_reduction <add>, %90, %cst_41 [1] : vector<9x9xf32> to vector<9xf32>
    %92 = vector.shape_cast %91 : vector<9xf32> to vector<9x1xf32>
    %93 = vector.broadcast %92 : vector<9x1xf32> to vector<9x9xf32>
    %94 = arith.divf %90, %93 : vector<9x9xf32>
    %cst_42 = arith.constant dense<0.000000e+00> : vector<9x32xf32>
    %95 = tpu.matmul %94, %82, %cst_42 {dimension_numbers = #tpu.dot_dimension_numbers<[1], [0], [0], [1], [0, 0, 1, 1], [], []>} : vector<9x9xf32>, vector<9x32xf32>, vector<9x32xf32> -> vector<9x32xf32>
    %96 = vector.extract_strided_slice %19 {offsets = [96, 0], sizes = [32, 128], strides = [1, 1]} : vector<128x128xf32> to vector<32x128xf32>
    %cst_43 = arith.constant dense<0.000000e+00> : vector<9x128xf32>
    %97 = tpu.matmul %95, %96, %cst_43 {dimension_numbers = #tpu.dot_dimension_numbers<[1], [0], [0], [1], [0, 0, 1, 1], [], []>} : vector<9x32xf32>, vector<32x128xf32>, vector<9x128xf32> -> vector<9x128xf32>
    %98 = arith.addf %79, %97 : vector<9x128xf32>
    %99 = arith.addf %1, %98 : vector<9x128xf32>
    %100 = vector.extract_strided_slice %6 {offsets = [0, 0], sizes = [1, 128], strides = [1, 1]} : vector<8x128xf32> to vector<1x128xf32>
    %101 = vector.extract_strided_slice %6 {offsets = [1, 0], sizes = [1, 128], strides = [1, 1]} : vector<8x128xf32> to vector<1x128xf32>
    %cst_44 = arith.constant dense<0.000000e+00> : vector<9xf32>
    %102 = vector.multi_reduction <add>, %99, %cst_44 [1] : vector<9x128xf32> to vector<9xf32>
    %103 = vector.shape_cast %102 : vector<9xf32> to vector<9x1xf32>
    %cst_45 = arith.constant 1.280000e+02 : f32
    %104 = vector.broadcast %cst_45 : f32 to vector<9x1xf32>
    %105 = arith.divf %103, %104 : vector<9x1xf32>
    %106 = vector.broadcast %105 : vector<9x1xf32> to vector<9x128xf32>
    %107 = arith.subf %99, %106 : vector<9x128xf32>
    %108 = arith.mulf %107, %107 : vector<9x128xf32>
    %cst_46 = arith.constant dense<0.000000e+00> : vector<9xf32>
    %109 = vector.multi_reduction <add>, %108, %cst_46 [1] : vector<9x128xf32> to vector<9xf32>
    %110 = vector.shape_cast %109 : vector<9xf32> to vector<9x1xf32>
    %cst_47 = arith.constant 1.280000e+02 : f32
    %111 = vector.broadcast %cst_47 : f32 to vector<9x1xf32>
    %112 = arith.divf %110, %111 : vector<9x1xf32>
    %cst_48 = arith.constant 9.99999974E-6 : f32
    %113 = vector.broadcast %cst_48 : f32 to vector<9x1xf32>
    %114 = arith.addf %112, %113 : vector<9x1xf32>
    %115 = math.rsqrt %114 : vector<9x1xf32>
    %116 = vector.broadcast %115 : vector<9x1xf32> to vector<9x128xf32>
    %117 = arith.mulf %107, %116 : vector<9x128xf32>
    %118 = vector.broadcast %100 : vector<1x128xf32> to vector<9x128xf32>
    %119 = arith.mulf %117, %118 : vector<9x128xf32>
    %120 = vector.broadcast %101 : vector<1x128xf32> to vector<9x128xf32>
    %121 = arith.addf %119, %120 : vector<9x128xf32>
    %122 = arith.truncf %121 : vector<9x128xf32> to vector<9x128xbf16>
    %c0_49 = arith.constant 0 : index
    %c0_50 = arith.constant 0 : index
    %c0_51 = arith.constant 0 : index
    %123 = vector.load %arg7[%c0_49, %c0_50, %c0_51] : memref<2x128x128xbf16, #tpu.memory_space<vmem>>, vector<1x128x128xbf16>
    %124 = vector.shape_cast %123 : vector<1x128x128xbf16> to vector<128x128xbf16>
    %cst_52 = arith.constant dense<0.000000e+00> : vector<9x128xf32>
    %125 = tpu.matmul %122, %124, %cst_52 {dimension_numbers = #tpu.dot_dimension_numbers<[1], [0], [0], [1], [0, 0, 1, 1], [], []>} : vector<9x128xbf16>, vector<128x128xbf16>, vector<9x128xf32> -> vector<9x128xf32>
    %c0_53 = arith.constant 0 : index
    %c0_54 = arith.constant 0 : index
    %c0_55 = arith.constant 0 : index
    %126 = vector.load %arg8[%c0_53, %c0_54, %c0_55] : memref<2x1x128xf32, #tpu.memory_space<vmem>>, vector<1x1x128xf32>
    %127 = vector.shape_cast %126 : vector<1x1x128xf32> to vector<1x128xf32>
    %128 = vector.broadcast %127 : vector<1x128xf32> to vector<9x128xf32>
    %129 = arith.addf %125, %128 : vector<9x128xf32>
    %c0_56 = arith.constant 0 : index
    %c0_57 = arith.constant 0 : index
    %c0_58 = arith.constant 0 : index
    %130 = vector.load %arg9[%c0_56, %c0_57, %c0_58] : memref<2x128x256xbf16, #tpu.memory_space<vmem>>, vector<1x128x256xbf16>
    %131 = vector.shape_cast %130 : vector<1x128x256xbf16> to vector<128x256xbf16>
    %cst_59 = arith.constant dense<0.000000e+00> : vector<8x256xf32>
    %132 = tpu.matmul %4, %131, %cst_59 {dimension_numbers = #tpu.dot_dimension_numbers<[1], [0], [0], [1], [0, 0, 1, 1], [], []>} : vector<8x128xbf16>, vector<128x256xbf16>, vector<8x256xf32> -> vector<8x256xf32>
    %c0_60 = arith.constant 0 : index
    %c0_61 = arith.constant 0 : index
    %c0_62 = arith.constant 0 : index
    %133 = vector.load %arg10[%c0_60, %c0_61, %c0_62] : memref<2x1x256xf32, #tpu.memory_space<vmem>>, vector<1x1x256xf32>
    %134 = vector.shape_cast %133 : vector<1x1x256xf32> to vector<1x256xf32>
    %135 = vector.broadcast %134 : vector<1x256xf32> to vector<8x256xf32>
    %136 = arith.addf %132, %135 : vector<8x256xf32>
    %137 = vector.extract_strided_slice %136 {offsets = [0, 0], sizes = [8, 128], strides = [1, 1]} : vector<8x256xf32> to vector<8x128xf32>
    %138 = vector.extract_strided_slice %136 {offsets = [0, 128], sizes = [8, 128], strides = [1, 1]} : vector<8x256xf32> to vector<8x128xf32>
    %c0_63 = arith.constant 0 : index
    %c0_64 = arith.constant 0 : index
    %c0_65 = arith.constant 0 : index
    %139 = vector.load %arg11[%c0_63, %c0_64, %c0_65] : memref<2x128x128xf32, #tpu.memory_space<vmem>>, vector<1x128x128xf32>
    %140 = vector.shape_cast %139 : vector<1x128x128xf32> to vector<128x128xf32>
    %c0_66 = arith.constant 0 : index
    %c0_67 = arith.constant 0 : index
    %c0_68 = arith.constant 0 : index
    %141 = vector.load %arg12[%c0_66, %c0_67, %c0_68] : memref<2x1x128xf32, #tpu.memory_space<vmem>>, vector<1x1x128xf32>
    %142 = vector.shape_cast %141 : vector<1x1x128xf32> to vector<1x128xf32>
    %143 = vector.extract_strided_slice %129 {offsets = [0, 0], sizes = [9, 32], strides = [1, 1]} : vector<9x128xf32> to vector<9x32xf32>
    %144 = vector.extract_strided_slice %137 {offsets = [0, 0], sizes = [8, 32], strides = [1, 1]} : vector<8x128xf32> to vector<8x32xf32>
    %145 = vector.extract_strided_slice %138 {offsets = [0, 0], sizes = [8, 32], strides = [1, 1]} : vector<8x128xf32> to vector<8x32xf32>
    %cst_69 = arith.constant dense<0.000000e+00> : vector<9x8xf32>
    %146 = tpu.matmul %143, %144, %cst_69 {dimension_numbers = #tpu.dot_dimension_numbers<[1], [1], [0], [0], [0, 0, 1, 0], [], []>} : vector<9x32xf32>, vector<8x32xf32>, vector<9x8xf32> -> vector<9x8xf32>
    %cst_70 = arith.constant 0.176776692 : f32
    %147 = vector.broadcast %cst_70 : f32 to vector<9x8xf32>
    %148 = arith.mulf %146, %147 : vector<9x8xf32>
    %cst_71 = arith.constant dense<0xFF800000> : vector<9xf32>
    %149 = vector.multi_reduction <maximumf>, %148, %cst_71 [1] : vector<9x8xf32> to vector<9xf32>
    %150 = vector.shape_cast %149 : vector<9xf32> to vector<9x1xf32>
    %151 = vector.broadcast %150 : vector<9x1xf32> to vector<9x8xf32>
    %152 = arith.subf %148, %151 : vector<9x8xf32>
    %153 = math.exp %152 : vector<9x8xf32>
    %cst_72 = arith.constant dense<0.000000e+00> : vector<9xf32>
    %154 = vector.multi_reduction <add>, %153, %cst_72 [1] : vector<9x8xf32> to vector<9xf32>
    %155 = vector.shape_cast %154 : vector<9xf32> to vector<9x1xf32>
    %156 = vector.broadcast %155 : vector<9x1xf32> to vector<9x8xf32>
    %157 = arith.divf %153, %156 : vector<9x8xf32>
    %cst_73 = arith.constant dense<0.000000e+00> : vector<9x32xf32>
    %158 = tpu.matmul %157, %145, %cst_73 {dimension_numbers = #tpu.dot_dimension_numbers<[1], [0], [0], [1], [0, 0, 1, 1], [], []>} : vector<9x8xf32>, vector<8x32xf32>, vector<9x32xf32> -> vector<9x32xf32>
    %159 = vector.extract_strided_slice %140 {offsets = [0, 0], sizes = [32, 128], strides = [1, 1]} : vector<128x128xf32> to vector<32x128xf32>
    %cst_74 = arith.constant dense<0.000000e+00> : vector<9x128xf32>
    %160 = tpu.matmul %158, %159, %cst_74 {dimension_numbers = #tpu.dot_dimension_numbers<[1], [0], [0], [1], [0, 0, 1, 1], [], []>} : vector<9x32xf32>, vector<32x128xf32>, vector<9x128xf32> -> vector<9x128xf32>
    %161 = vector.broadcast %142 : vector<1x128xf32> to vector<9x128xf32>
    %162 = arith.addf %161, %160 : vector<9x128xf32>
    %163 = vector.extract_strided_slice %129 {offsets = [0, 32], sizes = [9, 32], strides = [1, 1]} : vector<9x128xf32> to vector<9x32xf32>
    %164 = vector.extract_strided_slice %137 {offsets = [0, 32], sizes = [8, 32], strides = [1, 1]} : vector<8x128xf32> to vector<8x32xf32>
    %165 = vector.extract_strided_slice %138 {offsets = [0, 32], sizes = [8, 32], strides = [1, 1]} : vector<8x128xf32> to vector<8x32xf32>
    %cst_75 = arith.constant dense<0.000000e+00> : vector<9x8xf32>
    %166 = tpu.matmul %163, %164, %cst_75 {dimension_numbers = #tpu.dot_dimension_numbers<[1], [1], [0], [0], [0, 0, 1, 0], [], []>} : vector<9x32xf32>, vector<8x32xf32>, vector<9x8xf32> -> vector<9x8xf32>
    %cst_76 = arith.constant 0.176776692 : f32
    %167 = vector.broadcast %cst_76 : f32 to vector<9x8xf32>
    %168 = arith.mulf %166, %167 : vector<9x8xf32>
    %cst_77 = arith.constant dense<0xFF800000> : vector<9xf32>
    %169 = vector.multi_reduction <maximumf>, %168, %cst_77 [1] : vector<9x8xf32> to vector<9xf32>
    %170 = vector.shape_cast %169 : vector<9xf32> to vector<9x1xf32>
    %171 = vector.broadcast %170 : vector<9x1xf32> to vector<9x8xf32>
    %172 = arith.subf %168, %171 : vector<9x8xf32>
    %173 = math.exp %172 : vector<9x8xf32>
    %cst_78 = arith.constant dense<0.000000e+00> : vector<9xf32>
    %174 = vector.multi_reduction <add>, %173, %cst_78 [1] : vector<9x8xf32> to vector<9xf32>
    %175 = vector.shape_cast %174 : vector<9xf32> to vector<9x1xf32>
    %176 = vector.broadcast %175 : vector<9x1xf32> to vector<9x8xf32>
    %177 = arith.divf %173, %176 : vector<9x8xf32>
    %cst_79 = arith.constant dense<0.000000e+00> : vector<9x32xf32>
    %178 = tpu.matmul %177, %165, %cst_79 {dimension_numbers = #tpu.dot_dimension_numbers<[1], [0], [0], [1], [0, 0, 1, 1], [], []>} : vector<9x8xf32>, vector<8x32xf32>, vector<9x32xf32> -> vector<9x32xf32>
    %179 = vector.extract_strided_slice %140 {offsets = [32, 0], sizes = [32, 128], strides = [1, 1]} : vector<128x128xf32> to vector<32x128xf32>
    %cst_80 = arith.constant dense<0.000000e+00> : vector<9x128xf32>
    %180 = tpu.matmul %178, %179, %cst_80 {dimension_numbers = #tpu.dot_dimension_numbers<[1], [0], [0], [1], [0, 0, 1, 1], [], []>} : vector<9x32xf32>, vector<32x128xf32>, vector<9x128xf32> -> vector<9x128xf32>
    %181 = arith.addf %162, %180 : vector<9x128xf32>
    %182 = vector.extract_strided_slice %129 {offsets = [0, 64], sizes = [9, 32], strides = [1, 1]} : vector<9x128xf32> to vector<9x32xf32>
    %183 = vector.extract_strided_slice %137 {offsets = [0, 64], sizes = [8, 32], strides = [1, 1]} : vector<8x128xf32> to vector<8x32xf32>
    %184 = vector.extract_strided_slice %138 {offsets = [0, 64], sizes = [8, 32], strides = [1, 1]} : vector<8x128xf32> to vector<8x32xf32>
    %cst_81 = arith.constant dense<0.000000e+00> : vector<9x8xf32>
    %185 = tpu.matmul %182, %183, %cst_81 {dimension_numbers = #tpu.dot_dimension_numbers<[1], [1], [0], [0], [0, 0, 1, 0], [], []>} : vector<9x32xf32>, vector<8x32xf32>, vector<9x8xf32> -> vector<9x8xf32>
    %cst_82 = arith.constant 0.176776692 : f32
    %186 = vector.broadcast %cst_82 : f32 to vector<9x8xf32>
    %187 = arith.mulf %185, %186 : vector<9x8xf32>
    %cst_83 = arith.constant dense<0xFF800000> : vector<9xf32>
    %188 = vector.multi_reduction <maximumf>, %187, %cst_83 [1] : vector<9x8xf32> to vector<9xf32>
    %189 = vector.shape_cast %188 : vector<9xf32> to vector<9x1xf32>
    %190 = vector.broadcast %189 : vector<9x1xf32> to vector<9x8xf32>
    %191 = arith.subf %187, %190 : vector<9x8xf32>
    %192 = math.exp %191 : vector<9x8xf32>
    %cst_84 = arith.constant dense<0.000000e+00> : vector<9xf32>
    %193 = vector.multi_reduction <add>, %192, %cst_84 [1] : vector<9x8xf32> to vector<9xf32>
    %194 = vector.shape_cast %193 : vector<9xf32> to vector<9x1xf32>
    %195 = vector.broadcast %194 : vector<9x1xf32> to vector<9x8xf32>
    %196 = arith.divf %192, %195 : vector<9x8xf32>
    %cst_85 = arith.constant dense<0.000000e+00> : vector<9x32xf32>
    %197 = tpu.matmul %196, %184, %cst_85 {dimension_numbers = #tpu.dot_dimension_numbers<[1], [0], [0], [1], [0, 0, 1, 1], [], []>} : vector<9x8xf32>, vector<8x32xf32>, vector<9x32xf32> -> vector<9x32xf32>
    %198 = vector.extract_strided_slice %140 {offsets = [64, 0], sizes = [32, 128], strides = [1, 1]} : vector<128x128xf32> to vector<32x128xf32>
    %cst_86 = arith.constant dense<0.000000e+00> : vector<9x128xf32>
    %199 = tpu.matmul %197, %198, %cst_86 {dimension_numbers = #tpu.dot_dimension_numbers<[1], [0], [0], [1], [0, 0, 1, 1], [], []>} : vector<9x32xf32>, vector<32x128xf32>, vector<9x128xf32> -> vector<9x128xf32>
    %200 = arith.addf %181, %199 : vector<9x128xf32>
    %201 = vector.extract_strided_slice %129 {offsets = [0, 96], sizes = [9, 32], strides = [1, 1]} : vector<9x128xf32> to vector<9x32xf32>
    %202 = vector.extract_strided_slice %137 {offsets = [0, 96], sizes = [8, 32], strides = [1, 1]} : vector<8x128xf32> to vector<8x32xf32>
    %203 = vector.extract_strided_slice %138 {offsets = [0, 96], sizes = [8, 32], strides = [1, 1]} : vector<8x128xf32> to vector<8x32xf32>
    %cst_87 = arith.constant dense<0.000000e+00> : vector<9x8xf32>
    %204 = tpu.matmul %201, %202, %cst_87 {dimension_numbers = #tpu.dot_dimension_numbers<[1], [1], [0], [0], [0, 0, 1, 0], [], []>} : vector<9x32xf32>, vector<8x32xf32>, vector<9x8xf32> -> vector<9x8xf32>
    %cst_88 = arith.constant 0.176776692 : f32
    %205 = vector.broadcast %cst_88 : f32 to vector<9x8xf32>
    %206 = arith.mulf %204, %205 : vector<9x8xf32>
    %cst_89 = arith.constant dense<0xFF800000> : vector<9xf32>
    %207 = vector.multi_reduction <maximumf>, %206, %cst_89 [1] : vector<9x8xf32> to vector<9xf32>
    %208 = vector.shape_cast %207 : vector<9xf32> to vector<9x1xf32>
    %209 = vector.broadcast %208 : vector<9x1xf32> to vector<9x8xf32>
    %210 = arith.subf %206, %209 : vector<9x8xf32>
    %211 = math.exp %210 : vector<9x8xf32>
    %cst_90 = arith.constant dense<0.000000e+00> : vector<9xf32>
    %212 = vector.multi_reduction <add>, %211, %cst_90 [1] : vector<9x8xf32> to vector<9xf32>
    %213 = vector.shape_cast %212 : vector<9xf32> to vector<9x1xf32>
    %214 = vector.broadcast %213 : vector<9x1xf32> to vector<9x8xf32>
    %215 = arith.divf %211, %214 : vector<9x8xf32>
    %cst_91 = arith.constant dense<0.000000e+00> : vector<9x32xf32>
    %216 = tpu.matmul %215, %203, %cst_91 {dimension_numbers = #tpu.dot_dimension_numbers<[1], [0], [0], [1], [0, 0, 1, 1], [], []>} : vector<9x8xf32>, vector<8x32xf32>, vector<9x32xf32> -> vector<9x32xf32>
    %217 = vector.extract_strided_slice %140 {offsets = [96, 0], sizes = [32, 128], strides = [1, 1]} : vector<128x128xf32> to vector<32x128xf32>
    %cst_92 = arith.constant dense<0.000000e+00> : vector<9x128xf32>
    %218 = tpu.matmul %216, %217, %cst_92 {dimension_numbers = #tpu.dot_dimension_numbers<[1], [0], [0], [1], [0, 0, 1, 1], [], []>} : vector<9x32xf32>, vector<32x128xf32>, vector<9x128xf32> -> vector<9x128xf32>
    %219 = arith.addf %200, %218 : vector<9x128xf32>
    %220 = arith.addf %121, %219 : vector<9x128xf32>
    %221 = vector.extract_strided_slice %6 {offsets = [2, 0], sizes = [1, 128], strides = [1, 1]} : vector<8x128xf32> to vector<1x128xf32>
    %222 = vector.extract_strided_slice %6 {offsets = [3, 0], sizes = [1, 128], strides = [1, 1]} : vector<8x128xf32> to vector<1x128xf32>
    %cst_93 = arith.constant dense<0.000000e+00> : vector<9xf32>
    %223 = vector.multi_reduction <add>, %220, %cst_93 [1] : vector<9x128xf32> to vector<9xf32>
    %224 = vector.shape_cast %223 : vector<9xf32> to vector<9x1xf32>
    %cst_94 = arith.constant 1.280000e+02 : f32
    %225 = vector.broadcast %cst_94 : f32 to vector<9x1xf32>
    %226 = arith.divf %224, %225 : vector<9x1xf32>
    %227 = vector.broadcast %226 : vector<9x1xf32> to vector<9x128xf32>
    %228 = arith.subf %220, %227 : vector<9x128xf32>
    %229 = arith.mulf %228, %228 : vector<9x128xf32>
    %cst_95 = arith.constant dense<0.000000e+00> : vector<9xf32>
    %230 = vector.multi_reduction <add>, %229, %cst_95 [1] : vector<9x128xf32> to vector<9xf32>
    %231 = vector.shape_cast %230 : vector<9xf32> to vector<9x1xf32>
    %cst_96 = arith.constant 1.280000e+02 : f32
    %232 = vector.broadcast %cst_96 : f32 to vector<9x1xf32>
    %233 = arith.divf %231, %232 : vector<9x1xf32>
    %cst_97 = arith.constant 9.99999974E-6 : f32
    %234 = vector.broadcast %cst_97 : f32 to vector<9x1xf32>
    %235 = arith.addf %233, %234 : vector<9x1xf32>
    %236 = math.rsqrt %235 : vector<9x1xf32>
    %237 = vector.broadcast %236 : vector<9x1xf32> to vector<9x128xf32>
    %238 = arith.mulf %228, %237 : vector<9x128xf32>
    %239 = vector.broadcast %221 : vector<1x128xf32> to vector<9x128xf32>
    %240 = arith.mulf %238, %239 : vector<9x128xf32>
    %241 = vector.broadcast %222 : vector<1x128xf32> to vector<9x128xf32>
    %242 = arith.addf %240, %241 : vector<9x128xf32>
    %243 = arith.truncf %242 : vector<9x128xf32> to vector<9x128xbf16>
    %c0_98 = arith.constant 0 : index
    %c0_99 = arith.constant 0 : index
    %c0_100 = arith.constant 0 : index
    %244 = vector.load %arg13[%c0_98, %c0_99, %c0_100] : memref<2x128x256xbf16, #tpu.memory_space<vmem>>, vector<1x128x256xbf16>
    %245 = vector.shape_cast %244 : vector<1x128x256xbf16> to vector<128x256xbf16>
    %cst_101 = arith.constant dense<0.000000e+00> : vector<9x256xf32>
    %246 = tpu.matmul %243, %245, %cst_101 {dimension_numbers = #tpu.dot_dimension_numbers<[1], [0], [0], [1], [0, 0, 1, 1], [], []>} : vector<9x128xbf16>, vector<128x256xbf16>, vector<9x256xf32> -> vector<9x256xf32>
    %c0_102 = arith.constant 0 : index
    %c0_103 = arith.constant 0 : index
    %c0_104 = arith.constant 0 : index
    %247 = vector.load %arg14[%c0_102, %c0_103, %c0_104] : memref<2x1x256xf32, #tpu.memory_space<vmem>>, vector<1x1x256xf32>
    %248 = vector.shape_cast %247 : vector<1x1x256xf32> to vector<1x256xf32>
    %249 = vector.broadcast %248 : vector<1x256xf32> to vector<9x256xf32>
    %250 = arith.addf %246, %249 : vector<9x256xf32>
    %cst_105 = arith.constant 0.000000e+00 : f32
    %251 = vector.broadcast %cst_105 : f32 to vector<9x256xf32>
    %252 = arith.maximumf %250, %251 : vector<9x256xf32>
    %253 = arith.truncf %252 : vector<9x256xf32> to vector<9x256xbf16>
    %c0_106 = arith.constant 0 : index
    %c0_107 = arith.constant 0 : index
    %c0_108 = arith.constant 0 : index
    %254 = vector.load %arg15[%c0_106, %c0_107, %c0_108] : memref<2x256x128xbf16, #tpu.memory_space<vmem>>, vector<1x256x128xbf16>
    %255 = vector.shape_cast %254 : vector<1x256x128xbf16> to vector<256x128xbf16>
    %cst_109 = arith.constant dense<0.000000e+00> : vector<9x128xf32>
    %256 = tpu.matmul %253, %255, %cst_109 {dimension_numbers = #tpu.dot_dimension_numbers<[1], [0], [0], [1], [0, 0, 1, 1], [], []>} : vector<9x256xbf16>, vector<256x128xbf16>, vector<9x128xf32> -> vector<9x128xf32>
    %c0_110 = arith.constant 0 : index
    %c0_111 = arith.constant 0 : index
    %c0_112 = arith.constant 0 : index
    %257 = vector.load %arg16[%c0_110, %c0_111, %c0_112] : memref<2x1x128xf32, #tpu.memory_space<vmem>>, vector<1x1x128xf32>
    %258 = vector.shape_cast %257 : vector<1x1x128xf32> to vector<1x128xf32>
    %259 = vector.broadcast %258 : vector<1x128xf32> to vector<9x128xf32>
    %260 = arith.addf %256, %259 : vector<9x128xf32>
    %261 = arith.addf %242, %260 : vector<9x128xf32>
    %262 = vector.extract_strided_slice %6 {offsets = [4, 0], sizes = [1, 128], strides = [1, 1]} : vector<8x128xf32> to vector<1x128xf32>
    %263 = vector.extract_strided_slice %6 {offsets = [5, 0], sizes = [1, 128], strides = [1, 1]} : vector<8x128xf32> to vector<1x128xf32>
    %cst_113 = arith.constant dense<0.000000e+00> : vector<9xf32>
    %264 = vector.multi_reduction <add>, %261, %cst_113 [1] : vector<9x128xf32> to vector<9xf32>
    %265 = vector.shape_cast %264 : vector<9xf32> to vector<9x1xf32>
    %cst_114 = arith.constant 1.280000e+02 : f32
    %266 = vector.broadcast %cst_114 : f32 to vector<9x1xf32>
    %267 = arith.divf %265, %266 : vector<9x1xf32>
    %268 = vector.broadcast %267 : vector<9x1xf32> to vector<9x128xf32>
    %269 = arith.subf %261, %268 : vector<9x128xf32>
    %270 = arith.mulf %269, %269 : vector<9x128xf32>
    %cst_115 = arith.constant dense<0.000000e+00> : vector<9xf32>
    %271 = vector.multi_reduction <add>, %270, %cst_115 [1] : vector<9x128xf32> to vector<9xf32>
    %272 = vector.shape_cast %271 : vector<9xf32> to vector<9x1xf32>
    %cst_116 = arith.constant 1.280000e+02 : f32
    %273 = vector.broadcast %cst_116 : f32 to vector<9x1xf32>
    %274 = arith.divf %272, %273 : vector<9x1xf32>
    %cst_117 = arith.constant 9.99999974E-6 : f32
    %275 = vector.broadcast %cst_117 : f32 to vector<9x1xf32>
    %276 = arith.addf %274, %275 : vector<9x1xf32>
    %277 = math.rsqrt %276 : vector<9x1xf32>
    %278 = vector.broadcast %277 : vector<9x1xf32> to vector<9x128xf32>
    %279 = arith.mulf %269, %278 : vector<9x128xf32>
    %280 = vector.broadcast %262 : vector<1x128xf32> to vector<9x128xf32>
    %281 = arith.mulf %279, %280 : vector<9x128xf32>
    %282 = vector.broadcast %263 : vector<1x128xf32> to vector<9x128xf32>
    %283 = arith.addf %281, %282 : vector<9x128xf32>
    %c1 = arith.constant 1 : index
    %c0_118 = arith.constant 0 : index
    %c0_119 = arith.constant 0 : index
    %284 = vector.load %arg17[%c1, %c0_118, %c0_119] : memref<2x8x128xf32, #tpu.memory_space<vmem>>, vector<1x8x128xf32>
    %285 = vector.shape_cast %284 : vector<1x8x128xf32> to vector<8x128xf32>
    %286 = arith.truncf %283 : vector<9x128xf32> to vector<9x128xbf16>
    %c1_120 = arith.constant 1 : index
    %c0_121 = arith.constant 0 : index
    %c0_122 = arith.constant 0 : index
    %287 = vector.load %arg3[%c1_120, %c0_121, %c0_122] : memref<2x128x384xbf16, #tpu.memory_space<vmem>>, vector<1x128x384xbf16>
    %288 = vector.shape_cast %287 : vector<1x128x384xbf16> to vector<128x384xbf16>
    %cst_123 = arith.constant dense<0.000000e+00> : vector<9x384xf32>
    %289 = tpu.matmul %286, %288, %cst_123 {dimension_numbers = #tpu.dot_dimension_numbers<[1], [0], [0], [1], [0, 0, 1, 1], [], []>} : vector<9x128xbf16>, vector<128x384xbf16>, vector<9x384xf32> -> vector<9x384xf32>
    %c1_124 = arith.constant 1 : index
    %c0_125 = arith.constant 0 : index
    %c0_126 = arith.constant 0 : index
    %290 = vector.load %arg4[%c1_124, %c0_125, %c0_126] : memref<2x1x384xf32, #tpu.memory_space<vmem>>, vector<1x1x384xf32>
    %291 = vector.shape_cast %290 : vector<1x1x384xf32> to vector<1x384xf32>
    %292 = vector.broadcast %291 : vector<1x384xf32> to vector<9x384xf32>
    %293 = arith.addf %289, %292 : vector<9x384xf32>
    %294 = vector.extract_strided_slice %293 {offsets = [0, 0], sizes = [9, 128], strides = [1, 1]} : vector<9x384xf32> to vector<9x128xf32>
    %295 = vector.extract_strided_slice %293 {offsets = [0, 128], sizes = [9, 128], strides = [1, 1]} : vector<9x384xf32> to vector<9x128xf32>
    %296 = vector.extract_strided_slice %293 {offsets = [0, 256], sizes = [9, 128], strides = [1, 1]} : vector<9x384xf32> to vector<9x128xf32>
    %c1_127 = arith.constant 1 : index
    %c0_128 = arith.constant 0 : index
    %c0_129 = arith.constant 0 : index
    %297 = vector.load %arg5[%c1_127, %c0_128, %c0_129] : memref<2x128x128xf32, #tpu.memory_space<vmem>>, vector<1x128x128xf32>
    %298 = vector.shape_cast %297 : vector<1x128x128xf32> to vector<128x128xf32>
    %c1_130 = arith.constant 1 : index
    %c0_131 = arith.constant 0 : index
    %c0_132 = arith.constant 0 : index
    %299 = vector.load %arg6[%c1_130, %c0_131, %c0_132] : memref<2x1x128xf32, #tpu.memory_space<vmem>>, vector<1x1x128xf32>
    %300 = vector.shape_cast %299 : vector<1x1x128xf32> to vector<1x128xf32>
    %301 = vector.extract_strided_slice %294 {offsets = [0, 0], sizes = [9, 32], strides = [1, 1]} : vector<9x128xf32> to vector<9x32xf32>
    %302 = vector.extract_strided_slice %295 {offsets = [0, 0], sizes = [9, 32], strides = [1, 1]} : vector<9x128xf32> to vector<9x32xf32>
    %303 = vector.extract_strided_slice %296 {offsets = [0, 0], sizes = [9, 32], strides = [1, 1]} : vector<9x128xf32> to vector<9x32xf32>
    %cst_133 = arith.constant dense<0.000000e+00> : vector<9x9xf32>
    %304 = tpu.matmul %301, %302, %cst_133 {dimension_numbers = #tpu.dot_dimension_numbers<[1], [1], [0], [0], [0, 0, 1, 0], [], []>} : vector<9x32xf32>, vector<9x32xf32>, vector<9x9xf32> -> vector<9x9xf32>
    %cst_134 = arith.constant 0.176776692 : f32
    %305 = vector.broadcast %cst_134 : f32 to vector<9x9xf32>
    %306 = arith.mulf %304, %305 : vector<9x9xf32>
    %cst_135 = arith.constant dense<0xFF800000> : vector<9xf32>
    %307 = vector.multi_reduction <maximumf>, %306, %cst_135 [1] : vector<9x9xf32> to vector<9xf32>
    %308 = vector.shape_cast %307 : vector<9xf32> to vector<9x1xf32>
    %309 = vector.broadcast %308 : vector<9x1xf32> to vector<9x9xf32>
    %310 = arith.subf %306, %309 : vector<9x9xf32>
    %311 = math.exp %310 : vector<9x9xf32>
    %cst_136 = arith.constant dense<0.000000e+00> : vector<9xf32>
    %312 = vector.multi_reduction <add>, %311, %cst_136 [1] : vector<9x9xf32> to vector<9xf32>
    %313 = vector.shape_cast %312 : vector<9xf32> to vector<9x1xf32>
    %314 = vector.broadcast %313 : vector<9x1xf32> to vector<9x9xf32>
    %315 = arith.divf %311, %314 : vector<9x9xf32>
    %cst_137 = arith.constant dense<0.000000e+00> : vector<9x32xf32>
    %316 = tpu.matmul %315, %303, %cst_137 {dimension_numbers = #tpu.dot_dimension_numbers<[1], [0], [0], [1], [0, 0, 1, 1], [], []>} : vector<9x9xf32>, vector<9x32xf32>, vector<9x32xf32> -> vector<9x32xf32>
    %317 = vector.extract_strided_slice %298 {offsets = [0, 0], sizes = [32, 128], strides = [1, 1]} : vector<128x128xf32> to vector<32x128xf32>
    %cst_138 = arith.constant dense<0.000000e+00> : vector<9x128xf32>
    %318 = tpu.matmul %316, %317, %cst_138 {dimension_numbers = #tpu.dot_dimension_numbers<[1], [0], [0], [1], [0, 0, 1, 1], [], []>} : vector<9x32xf32>, vector<32x128xf32>, vector<9x128xf32> -> vector<9x128xf32>
    %319 = vector.broadcast %300 : vector<1x128xf32> to vector<9x128xf32>
    %320 = arith.addf %319, %318 : vector<9x128xf32>
    %321 = vector.extract_strided_slice %294 {offsets = [0, 32], sizes = [9, 32], strides = [1, 1]} : vector<9x128xf32> to vector<9x32xf32>
    %322 = vector.extract_strided_slice %295 {offsets = [0, 32], sizes = [9, 32], strides = [1, 1]} : vector<9x128xf32> to vector<9x32xf32>
    %323 = vector.extract_strided_slice %296 {offsets = [0, 32], sizes = [9, 32], strides = [1, 1]} : vector<9x128xf32> to vector<9x32xf32>
    %cst_139 = arith.constant dense<0.000000e+00> : vector<9x9xf32>
    %324 = tpu.matmul %321, %322, %cst_139 {dimension_numbers = #tpu.dot_dimension_numbers<[1], [1], [0], [0], [0, 0, 1, 0], [], []>} : vector<9x32xf32>, vector<9x32xf32>, vector<9x9xf32> -> vector<9x9xf32>
    %cst_140 = arith.constant 0.176776692 : f32
    %325 = vector.broadcast %cst_140 : f32 to vector<9x9xf32>
    %326 = arith.mulf %324, %325 : vector<9x9xf32>
    %cst_141 = arith.constant dense<0xFF800000> : vector<9xf32>
    %327 = vector.multi_reduction <maximumf>, %326, %cst_141 [1] : vector<9x9xf32> to vector<9xf32>
    %328 = vector.shape_cast %327 : vector<9xf32> to vector<9x1xf32>
    %329 = vector.broadcast %328 : vector<9x1xf32> to vector<9x9xf32>
    %330 = arith.subf %326, %329 : vector<9x9xf32>
    %331 = math.exp %330 : vector<9x9xf32>
    %cst_142 = arith.constant dense<0.000000e+00> : vector<9xf32>
    %332 = vector.multi_reduction <add>, %331, %cst_142 [1] : vector<9x9xf32> to vector<9xf32>
    %333 = vector.shape_cast %332 : vector<9xf32> to vector<9x1xf32>
    %334 = vector.broadcast %333 : vector<9x1xf32> to vector<9x9xf32>
    %335 = arith.divf %331, %334 : vector<9x9xf32>
    %cst_143 = arith.constant dense<0.000000e+00> : vector<9x32xf32>
    %336 = tpu.matmul %335, %323, %cst_143 {dimension_numbers = #tpu.dot_dimension_numbers<[1], [0], [0], [1], [0, 0, 1, 1], [], []>} : vector<9x9xf32>, vector<9x32xf32>, vector<9x32xf32> -> vector<9x32xf32>
    %337 = vector.extract_strided_slice %298 {offsets = [32, 0], sizes = [32, 128], strides = [1, 1]} : vector<128x128xf32> to vector<32x128xf32>
    %cst_144 = arith.constant dense<0.000000e+00> : vector<9x128xf32>
    %338 = tpu.matmul %336, %337, %cst_144 {dimension_numbers = #tpu.dot_dimension_numbers<[1], [0], [0], [1], [0, 0, 1, 1], [], []>} : vector<9x32xf32>, vector<32x128xf32>, vector<9x128xf32> -> vector<9x128xf32>
    %339 = arith.addf %320, %338 : vector<9x128xf32>
    %340 = vector.extract_strided_slice %294 {offsets = [0, 64], sizes = [9, 32], strides = [1, 1]} : vector<9x128xf32> to vector<9x32xf32>
    %341 = vector.extract_strided_slice %295 {offsets = [0, 64], sizes = [9, 32], strides = [1, 1]} : vector<9x128xf32> to vector<9x32xf32>
    %342 = vector.extract_strided_slice %296 {offsets = [0, 64], sizes = [9, 32], strides = [1, 1]} : vector<9x128xf32> to vector<9x32xf32>
    %cst_145 = arith.constant dense<0.000000e+00> : vector<9x9xf32>
    %343 = tpu.matmul %340, %341, %cst_145 {dimension_numbers = #tpu.dot_dimension_numbers<[1], [1], [0], [0], [0, 0, 1, 0], [], []>} : vector<9x32xf32>, vector<9x32xf32>, vector<9x9xf32> -> vector<9x9xf32>
    %cst_146 = arith.constant 0.176776692 : f32
    %344 = vector.broadcast %cst_146 : f32 to vector<9x9xf32>
    %345 = arith.mulf %343, %344 : vector<9x9xf32>
    %cst_147 = arith.constant dense<0xFF800000> : vector<9xf32>
    %346 = vector.multi_reduction <maximumf>, %345, %cst_147 [1] : vector<9x9xf32> to vector<9xf32>
    %347 = vector.shape_cast %346 : vector<9xf32> to vector<9x1xf32>
    %348 = vector.broadcast %347 : vector<9x1xf32> to vector<9x9xf32>
    %349 = arith.subf %345, %348 : vector<9x9xf32>
    %350 = math.exp %349 : vector<9x9xf32>
    %cst_148 = arith.constant dense<0.000000e+00> : vector<9xf32>
    %351 = vector.multi_reduction <add>, %350, %cst_148 [1] : vector<9x9xf32> to vector<9xf32>
    %352 = vector.shape_cast %351 : vector<9xf32> to vector<9x1xf32>
    %353 = vector.broadcast %352 : vector<9x1xf32> to vector<9x9xf32>
    %354 = arith.divf %350, %353 : vector<9x9xf32>
    %cst_149 = arith.constant dense<0.000000e+00> : vector<9x32xf32>
    %355 = tpu.matmul %354, %342, %cst_149 {dimension_numbers = #tpu.dot_dimension_numbers<[1], [0], [0], [1], [0, 0, 1, 1], [], []>} : vector<9x9xf32>, vector<9x32xf32>, vector<9x32xf32> -> vector<9x32xf32>
    %356 = vector.extract_strided_slice %298 {offsets = [64, 0], sizes = [32, 128], strides = [1, 1]} : vector<128x128xf32> to vector<32x128xf32>
    %cst_150 = arith.constant dense<0.000000e+00> : vector<9x128xf32>
    %357 = tpu.matmul %355, %356, %cst_150 {dimension_numbers = #tpu.dot_dimension_numbers<[1], [0], [0], [1], [0, 0, 1, 1], [], []>} : vector<9x32xf32>, vector<32x128xf32>, vector<9x128xf32> -> vector<9x128xf32>
    %358 = arith.addf %339, %357 : vector<9x128xf32>
    %359 = vector.extract_strided_slice %294 {offsets = [0, 96], sizes = [9, 32], strides = [1, 1]} : vector<9x128xf32> to vector<9x32xf32>
    %360 = vector.extract_strided_slice %295 {offsets = [0, 96], sizes = [9, 32], strides = [1, 1]} : vector<9x128xf32> to vector<9x32xf32>
    %361 = vector.extract_strided_slice %296 {offsets = [0, 96], sizes = [9, 32], strides = [1, 1]} : vector<9x128xf32> to vector<9x32xf32>
    %cst_151 = arith.constant dense<0.000000e+00> : vector<9x9xf32>
    %362 = tpu.matmul %359, %360, %cst_151 {dimension_numbers = #tpu.dot_dimension_numbers<[1], [1], [0], [0], [0, 0, 1, 0], [], []>} : vector<9x32xf32>, vector<9x32xf32>, vector<9x9xf32> -> vector<9x9xf32>
    %cst_152 = arith.constant 0.176776692 : f32
    %363 = vector.broadcast %cst_152 : f32 to vector<9x9xf32>
    %364 = arith.mulf %362, %363 : vector<9x9xf32>
    %cst_153 = arith.constant dense<0xFF800000> : vector<9xf32>
    %365 = vector.multi_reduction <maximumf>, %364, %cst_153 [1] : vector<9x9xf32> to vector<9xf32>
    %366 = vector.shape_cast %365 : vector<9xf32> to vector<9x1xf32>
    %367 = vector.broadcast %366 : vector<9x1xf32> to vector<9x9xf32>
    %368 = arith.subf %364, %367 : vector<9x9xf32>
    %369 = math.exp %368 : vector<9x9xf32>
    %cst_154 = arith.constant dense<0.000000e+00> : vector<9xf32>
    %370 = vector.multi_reduction <add>, %369, %cst_154 [1] : vector<9x9xf32> to vector<9xf32>
    %371 = vector.shape_cast %370 : vector<9xf32> to vector<9x1xf32>
    %372 = vector.broadcast %371 : vector<9x1xf32> to vector<9x9xf32>
    %373 = arith.divf %369, %372 : vector<9x9xf32>
    %cst_155 = arith.constant dense<0.000000e+00> : vector<9x32xf32>
    %374 = tpu.matmul %373, %361, %cst_155 {dimension_numbers = #tpu.dot_dimension_numbers<[1], [0], [0], [1], [0, 0, 1, 1], [], []>} : vector<9x9xf32>, vector<9x32xf32>, vector<9x32xf32> -> vector<9x32xf32>
    %375 = vector.extract_strided_slice %298 {offsets = [96, 0], sizes = [32, 128], strides = [1, 1]} : vector<128x128xf32> to vector<32x128xf32>
    %cst_156 = arith.constant dense<0.000000e+00> : vector<9x128xf32>
    %376 = tpu.matmul %374, %375, %cst_156 {dimension_numbers = #tpu.dot_dimension_numbers<[1], [0], [0], [1], [0, 0, 1, 1], [], []>} : vector<9x32xf32>, vector<32x128xf32>, vector<9x128xf32> -> vector<9x128xf32>
    %377 = arith.addf %358, %376 : vector<9x128xf32>
    %378 = arith.addf %283, %377 : vector<9x128xf32>
    %379 = vector.extract_strided_slice %285 {offsets = [0, 0], sizes = [1, 128], strides = [1, 1]} : vector<8x128xf32> to vector<1x128xf32>
    %380 = vector.extract_strided_slice %285 {offsets = [1, 0], sizes = [1, 128], strides = [1, 1]} : vector<8x128xf32> to vector<1x128xf32>
    %cst_157 = arith.constant dense<0.000000e+00> : vector<9xf32>
    %381 = vector.multi_reduction <add>, %378, %cst_157 [1] : vector<9x128xf32> to vector<9xf32>
    %382 = vector.shape_cast %381 : vector<9xf32> to vector<9x1xf32>
    %cst_158 = arith.constant 1.280000e+02 : f32
    %383 = vector.broadcast %cst_158 : f32 to vector<9x1xf32>
    %384 = arith.divf %382, %383 : vector<9x1xf32>
    %385 = vector.broadcast %384 : vector<9x1xf32> to vector<9x128xf32>
    %386 = arith.subf %378, %385 : vector<9x128xf32>
    %387 = arith.mulf %386, %386 : vector<9x128xf32>
    %cst_159 = arith.constant dense<0.000000e+00> : vector<9xf32>
    %388 = vector.multi_reduction <add>, %387, %cst_159 [1] : vector<9x128xf32> to vector<9xf32>
    %389 = vector.shape_cast %388 : vector<9xf32> to vector<9x1xf32>
    %cst_160 = arith.constant 1.280000e+02 : f32
    %390 = vector.broadcast %cst_160 : f32 to vector<9x1xf32>
    %391 = arith.divf %389, %390 : vector<9x1xf32>
    %cst_161 = arith.constant 9.99999974E-6 : f32
    %392 = vector.broadcast %cst_161 : f32 to vector<9x1xf32>
    %393 = arith.addf %391, %392 : vector<9x1xf32>
    %394 = math.rsqrt %393 : vector<9x1xf32>
    %395 = vector.broadcast %394 : vector<9x1xf32> to vector<9x128xf32>
    %396 = arith.mulf %386, %395 : vector<9x128xf32>
    %397 = vector.broadcast %379 : vector<1x128xf32> to vector<9x128xf32>
    %398 = arith.mulf %396, %397 : vector<9x128xf32>
    %399 = vector.broadcast %380 : vector<1x128xf32> to vector<9x128xf32>
    %400 = arith.addf %398, %399 : vector<9x128xf32>
    %401 = arith.truncf %400 : vector<9x128xf32> to vector<9x128xbf16>
    %c1_162 = arith.constant 1 : index
    %c0_163 = arith.constant 0 : index
    %c0_164 = arith.constant 0 : index
    %402 = vector.load %arg7[%c1_162, %c0_163, %c0_164] : memref<2x128x128xbf16, #tpu.memory_space<vmem>>, vector<1x128x128xbf16>
    %403 = vector.shape_cast %402 : vector<1x128x128xbf16> to vector<128x128xbf16>
    %cst_165 = arith.constant dense<0.000000e+00> : vector<9x128xf32>
    %404 = tpu.matmul %401, %403, %cst_165 {dimension_numbers = #tpu.dot_dimension_numbers<[1], [0], [0], [1], [0, 0, 1, 1], [], []>} : vector<9x128xbf16>, vector<128x128xbf16>, vector<9x128xf32> -> vector<9x128xf32>
    %c1_166 = arith.constant 1 : index
    %c0_167 = arith.constant 0 : index
    %c0_168 = arith.constant 0 : index
    %405 = vector.load %arg8[%c1_166, %c0_167, %c0_168] : memref<2x1x128xf32, #tpu.memory_space<vmem>>, vector<1x1x128xf32>
    %406 = vector.shape_cast %405 : vector<1x1x128xf32> to vector<1x128xf32>
    %407 = vector.broadcast %406 : vector<1x128xf32> to vector<9x128xf32>
    %408 = arith.addf %404, %407 : vector<9x128xf32>
    %c1_169 = arith.constant 1 : index
    %c0_170 = arith.constant 0 : index
    %c0_171 = arith.constant 0 : index
    %409 = vector.load %arg9[%c1_169, %c0_170, %c0_171] : memref<2x128x256xbf16, #tpu.memory_space<vmem>>, vector<1x128x256xbf16>
    %410 = vector.shape_cast %409 : vector<1x128x256xbf16> to vector<128x256xbf16>
    %cst_172 = arith.constant dense<0.000000e+00> : vector<8x256xf32>
    %411 = tpu.matmul %4, %410, %cst_172 {dimension_numbers = #tpu.dot_dimension_numbers<[1], [0], [0], [1], [0, 0, 1, 1], [], []>} : vector<8x128xbf16>, vector<128x256xbf16>, vector<8x256xf32> -> vector<8x256xf32>
    %c1_173 = arith.constant 1 : index
    %c0_174 = arith.constant 0 : index
    %c0_175 = arith.constant 0 : index
    %412 = vector.load %arg10[%c1_173, %c0_174, %c0_175] : memref<2x1x256xf32, #tpu.memory_space<vmem>>, vector<1x1x256xf32>
    %413 = vector.shape_cast %412 : vector<1x1x256xf32> to vector<1x256xf32>
    %414 = vector.broadcast %413 : vector<1x256xf32> to vector<8x256xf32>
    %415 = arith.addf %411, %414 : vector<8x256xf32>
    %416 = vector.extract_strided_slice %415 {offsets = [0, 0], sizes = [8, 128], strides = [1, 1]} : vector<8x256xf32> to vector<8x128xf32>
    %417 = vector.extract_strided_slice %415 {offsets = [0, 128], sizes = [8, 128], strides = [1, 1]} : vector<8x256xf32> to vector<8x128xf32>
    %c1_176 = arith.constant 1 : index
    %c0_177 = arith.constant 0 : index
    %c0_178 = arith.constant 0 : index
    %418 = vector.load %arg11[%c1_176, %c0_177, %c0_178] : memref<2x128x128xf32, #tpu.memory_space<vmem>>, vector<1x128x128xf32>
    %419 = vector.shape_cast %418 : vector<1x128x128xf32> to vector<128x128xf32>
    %c1_179 = arith.constant 1 : index
    %c0_180 = arith.constant 0 : index
    %c0_181 = arith.constant 0 : index
    %420 = vector.load %arg12[%c1_179, %c0_180, %c0_181] : memref<2x1x128xf32, #tpu.memory_space<vmem>>, vector<1x1x128xf32>
    %421 = vector.shape_cast %420 : vector<1x1x128xf32> to vector<1x128xf32>
    %422 = vector.extract_strided_slice %408 {offsets = [0, 0], sizes = [9, 32], strides = [1, 1]} : vector<9x128xf32> to vector<9x32xf32>
    %423 = vector.extract_strided_slice %416 {offsets = [0, 0], sizes = [8, 32], strides = [1, 1]} : vector<8x128xf32> to vector<8x32xf32>
    %424 = vector.extract_strided_slice %417 {offsets = [0, 0], sizes = [8, 32], strides = [1, 1]} : vector<8x128xf32> to vector<8x32xf32>
    %cst_182 = arith.constant dense<0.000000e+00> : vector<9x8xf32>
    %425 = tpu.matmul %422, %423, %cst_182 {dimension_numbers = #tpu.dot_dimension_numbers<[1], [1], [0], [0], [0, 0, 1, 0], [], []>} : vector<9x32xf32>, vector<8x32xf32>, vector<9x8xf32> -> vector<9x8xf32>
    %cst_183 = arith.constant 0.176776692 : f32
    %426 = vector.broadcast %cst_183 : f32 to vector<9x8xf32>
    %427 = arith.mulf %425, %426 : vector<9x8xf32>
    %cst_184 = arith.constant dense<0xFF800000> : vector<9xf32>
    %428 = vector.multi_reduction <maximumf>, %427, %cst_184 [1] : vector<9x8xf32> to vector<9xf32>
    %429 = vector.shape_cast %428 : vector<9xf32> to vector<9x1xf32>
    %430 = vector.broadcast %429 : vector<9x1xf32> to vector<9x8xf32>
    %431 = arith.subf %427, %430 : vector<9x8xf32>
    %432 = math.exp %431 : vector<9x8xf32>
    %cst_185 = arith.constant dense<0.000000e+00> : vector<9xf32>
    %433 = vector.multi_reduction <add>, %432, %cst_185 [1] : vector<9x8xf32> to vector<9xf32>
    %434 = vector.shape_cast %433 : vector<9xf32> to vector<9x1xf32>
    %435 = vector.broadcast %434 : vector<9x1xf32> to vector<9x8xf32>
    %436 = arith.divf %432, %435 : vector<9x8xf32>
    %cst_186 = arith.constant dense<0.000000e+00> : vector<9x32xf32>
    %437 = tpu.matmul %436, %424, %cst_186 {dimension_numbers = #tpu.dot_dimension_numbers<[1], [0], [0], [1], [0, 0, 1, 1], [], []>} : vector<9x8xf32>, vector<8x32xf32>, vector<9x32xf32> -> vector<9x32xf32>
    %438 = vector.extract_strided_slice %419 {offsets = [0, 0], sizes = [32, 128], strides = [1, 1]} : vector<128x128xf32> to vector<32x128xf32>
    %cst_187 = arith.constant dense<0.000000e+00> : vector<9x128xf32>
    %439 = tpu.matmul %437, %438, %cst_187 {dimension_numbers = #tpu.dot_dimension_numbers<[1], [0], [0], [1], [0, 0, 1, 1], [], []>} : vector<9x32xf32>, vector<32x128xf32>, vector<9x128xf32> -> vector<9x128xf32>
    %440 = vector.broadcast %421 : vector<1x128xf32> to vector<9x128xf32>
    %441 = arith.addf %440, %439 : vector<9x128xf32>
    %442 = vector.extract_strided_slice %408 {offsets = [0, 32], sizes = [9, 32], strides = [1, 1]} : vector<9x128xf32> to vector<9x32xf32>
    %443 = vector.extract_strided_slice %416 {offsets = [0, 32], sizes = [8, 32], strides = [1, 1]} : vector<8x128xf32> to vector<8x32xf32>
    %444 = vector.extract_strided_slice %417 {offsets = [0, 32], sizes = [8, 32], strides = [1, 1]} : vector<8x128xf32> to vector<8x32xf32>
    %cst_188 = arith.constant dense<0.000000e+00> : vector<9x8xf32>
    %445 = tpu.matmul %442, %443, %cst_188 {dimension_numbers = #tpu.dot_dimension_numbers<[1], [1], [0], [0], [0, 0, 1, 0], [], []>} : vector<9x32xf32>, vector<8x32xf32>, vector<9x8xf32> -> vector<9x8xf32>
    %cst_189 = arith.constant 0.176776692 : f32
    %446 = vector.broadcast %cst_189 : f32 to vector<9x8xf32>
    %447 = arith.mulf %445, %446 : vector<9x8xf32>
    %cst_190 = arith.constant dense<0xFF800000> : vector<9xf32>
    %448 = vector.multi_reduction <maximumf>, %447, %cst_190 [1] : vector<9x8xf32> to vector<9xf32>
    %449 = vector.shape_cast %448 : vector<9xf32> to vector<9x1xf32>
    %450 = vector.broadcast %449 : vector<9x1xf32> to vector<9x8xf32>
    %451 = arith.subf %447, %450 : vector<9x8xf32>
    %452 = math.exp %451 : vector<9x8xf32>
    %cst_191 = arith.constant dense<0.000000e+00> : vector<9xf32>
    %453 = vector.multi_reduction <add>, %452, %cst_191 [1] : vector<9x8xf32> to vector<9xf32>
    %454 = vector.shape_cast %453 : vector<9xf32> to vector<9x1xf32>
    %455 = vector.broadcast %454 : vector<9x1xf32> to vector<9x8xf32>
    %456 = arith.divf %452, %455 : vector<9x8xf32>
    %cst_192 = arith.constant dense<0.000000e+00> : vector<9x32xf32>
    %457 = tpu.matmul %456, %444, %cst_192 {dimension_numbers = #tpu.dot_dimension_numbers<[1], [0], [0], [1], [0, 0, 1, 1], [], []>} : vector<9x8xf32>, vector<8x32xf32>, vector<9x32xf32> -> vector<9x32xf32>
    %458 = vector.extract_strided_slice %419 {offsets = [32, 0], sizes = [32, 128], strides = [1, 1]} : vector<128x128xf32> to vector<32x128xf32>
    %cst_193 = arith.constant dense<0.000000e+00> : vector<9x128xf32>
    %459 = tpu.matmul %457, %458, %cst_193 {dimension_numbers = #tpu.dot_dimension_numbers<[1], [0], [0], [1], [0, 0, 1, 1], [], []>} : vector<9x32xf32>, vector<32x128xf32>, vector<9x128xf32> -> vector<9x128xf32>
    %460 = arith.addf %441, %459 : vector<9x128xf32>
    %461 = vector.extract_strided_slice %408 {offsets = [0, 64], sizes = [9, 32], strides = [1, 1]} : vector<9x128xf32> to vector<9x32xf32>
    %462 = vector.extract_strided_slice %416 {offsets = [0, 64], sizes = [8, 32], strides = [1, 1]} : vector<8x128xf32> to vector<8x32xf32>
    %463 = vector.extract_strided_slice %417 {offsets = [0, 64], sizes = [8, 32], strides = [1, 1]} : vector<8x128xf32> to vector<8x32xf32>
    %cst_194 = arith.constant dense<0.000000e+00> : vector<9x8xf32>
    %464 = tpu.matmul %461, %462, %cst_194 {dimension_numbers = #tpu.dot_dimension_numbers<[1], [1], [0], [0], [0, 0, 1, 0], [], []>} : vector<9x32xf32>, vector<8x32xf32>, vector<9x8xf32> -> vector<9x8xf32>
    %cst_195 = arith.constant 0.176776692 : f32
    %465 = vector.broadcast %cst_195 : f32 to vector<9x8xf32>
    %466 = arith.mulf %464, %465 : vector<9x8xf32>
    %cst_196 = arith.constant dense<0xFF800000> : vector<9xf32>
    %467 = vector.multi_reduction <maximumf>, %466, %cst_196 [1] : vector<9x8xf32> to vector<9xf32>
    %468 = vector.shape_cast %467 : vector<9xf32> to vector<9x1xf32>
    %469 = vector.broadcast %468 : vector<9x1xf32> to vector<9x8xf32>
    %470 = arith.subf %466, %469 : vector<9x8xf32>
    %471 = math.exp %470 : vector<9x8xf32>
    %cst_197 = arith.constant dense<0.000000e+00> : vector<9xf32>
    %472 = vector.multi_reduction <add>, %471, %cst_197 [1] : vector<9x8xf32> to vector<9xf32>
    %473 = vector.shape_cast %472 : vector<9xf32> to vector<9x1xf32>
    %474 = vector.broadcast %473 : vector<9x1xf32> to vector<9x8xf32>
    %475 = arith.divf %471, %474 : vector<9x8xf32>
    %cst_198 = arith.constant dense<0.000000e+00> : vector<9x32xf32>
    %476 = tpu.matmul %475, %463, %cst_198 {dimension_numbers = #tpu.dot_dimension_numbers<[1], [0], [0], [1], [0, 0, 1, 1], [], []>} : vector<9x8xf32>, vector<8x32xf32>, vector<9x32xf32> -> vector<9x32xf32>
    %477 = vector.extract_strided_slice %419 {offsets = [64, 0], sizes = [32, 128], strides = [1, 1]} : vector<128x128xf32> to vector<32x128xf32>
    %cst_199 = arith.constant dense<0.000000e+00> : vector<9x128xf32>
    %478 = tpu.matmul %476, %477, %cst_199 {dimension_numbers = #tpu.dot_dimension_numbers<[1], [0], [0], [1], [0, 0, 1, 1], [], []>} : vector<9x32xf32>, vector<32x128xf32>, vector<9x128xf32> -> vector<9x128xf32>
    %479 = arith.addf %460, %478 : vector<9x128xf32>
    %480 = vector.extract_strided_slice %408 {offsets = [0, 96], sizes = [9, 32], strides = [1, 1]} : vector<9x128xf32> to vector<9x32xf32>
    %481 = vector.extract_strided_slice %416 {offsets = [0, 96], sizes = [8, 32], strides = [1, 1]} : vector<8x128xf32> to vector<8x32xf32>
    %482 = vector.extract_strided_slice %417 {offsets = [0, 96], sizes = [8, 32], strides = [1, 1]} : vector<8x128xf32> to vector<8x32xf32>
    %cst_200 = arith.constant dense<0.000000e+00> : vector<9x8xf32>
    %483 = tpu.matmul %480, %481, %cst_200 {dimension_numbers = #tpu.dot_dimension_numbers<[1], [1], [0], [0], [0, 0, 1, 0], [], []>} : vector<9x32xf32>, vector<8x32xf32>, vector<9x8xf32> -> vector<9x8xf32>
    %cst_201 = arith.constant 0.176776692 : f32
    %484 = vector.broadcast %cst_201 : f32 to vector<9x8xf32>
    %485 = arith.mulf %483, %484 : vector<9x8xf32>
    %cst_202 = arith.constant dense<0xFF800000> : vector<9xf32>
    %486 = vector.multi_reduction <maximumf>, %485, %cst_202 [1] : vector<9x8xf32> to vector<9xf32>
    %487 = vector.shape_cast %486 : vector<9xf32> to vector<9x1xf32>
    %488 = vector.broadcast %487 : vector<9x1xf32> to vector<9x8xf32>
    %489 = arith.subf %485, %488 : vector<9x8xf32>
    %490 = math.exp %489 : vector<9x8xf32>
    %cst_203 = arith.constant dense<0.000000e+00> : vector<9xf32>
    %491 = vector.multi_reduction <add>, %490, %cst_203 [1] : vector<9x8xf32> to vector<9xf32>
    %492 = vector.shape_cast %491 : vector<9xf32> to vector<9x1xf32>
    %493 = vector.broadcast %492 : vector<9x1xf32> to vector<9x8xf32>
    %494 = arith.divf %490, %493 : vector<9x8xf32>
    %cst_204 = arith.constant dense<0.000000e+00> : vector<9x32xf32>
    %495 = tpu.matmul %494, %482, %cst_204 {dimension_numbers = #tpu.dot_dimension_numbers<[1], [0], [0], [1], [0, 0, 1, 1], [], []>} : vector<9x8xf32>, vector<8x32xf32>, vector<9x32xf32> -> vector<9x32xf32>
    %496 = vector.extract_strided_slice %419 {offsets = [96, 0], sizes = [32, 128], strides = [1, 1]} : vector<128x128xf32> to vector<32x128xf32>
    %cst_205 = arith.constant dense<0.000000e+00> : vector<9x128xf32>
    %497 = tpu.matmul %495, %496, %cst_205 {dimension_numbers = #tpu.dot_dimension_numbers<[1], [0], [0], [1], [0, 0, 1, 1], [], []>} : vector<9x32xf32>, vector<32x128xf32>, vector<9x128xf32> -> vector<9x128xf32>
    %498 = arith.addf %479, %497 : vector<9x128xf32>
    %499 = arith.addf %400, %498 : vector<9x128xf32>
    %500 = vector.extract_strided_slice %285 {offsets = [2, 0], sizes = [1, 128], strides = [1, 1]} : vector<8x128xf32> to vector<1x128xf32>
    %501 = vector.extract_strided_slice %285 {offsets = [3, 0], sizes = [1, 128], strides = [1, 1]} : vector<8x128xf32> to vector<1x128xf32>
    %cst_206 = arith.constant dense<0.000000e+00> : vector<9xf32>
    %502 = vector.multi_reduction <add>, %499, %cst_206 [1] : vector<9x128xf32> to vector<9xf32>
    %503 = vector.shape_cast %502 : vector<9xf32> to vector<9x1xf32>
    %cst_207 = arith.constant 1.280000e+02 : f32
    %504 = vector.broadcast %cst_207 : f32 to vector<9x1xf32>
    %505 = arith.divf %503, %504 : vector<9x1xf32>
    %506 = vector.broadcast %505 : vector<9x1xf32> to vector<9x128xf32>
    %507 = arith.subf %499, %506 : vector<9x128xf32>
    %508 = arith.mulf %507, %507 : vector<9x128xf32>
    %cst_208 = arith.constant dense<0.000000e+00> : vector<9xf32>
    %509 = vector.multi_reduction <add>, %508, %cst_208 [1] : vector<9x128xf32> to vector<9xf32>
    %510 = vector.shape_cast %509 : vector<9xf32> to vector<9x1xf32>
    %cst_209 = arith.constant 1.280000e+02 : f32
    %511 = vector.broadcast %cst_209 : f32 to vector<9x1xf32>
    %512 = arith.divf %510, %511 : vector<9x1xf32>
    %cst_210 = arith.constant 9.99999974E-6 : f32
    %513 = vector.broadcast %cst_210 : f32 to vector<9x1xf32>
    %514 = arith.addf %512, %513 : vector<9x1xf32>
    %515 = math.rsqrt %514 : vector<9x1xf32>
    %516 = vector.broadcast %515 : vector<9x1xf32> to vector<9x128xf32>
    %517 = arith.mulf %507, %516 : vector<9x128xf32>
    %518 = vector.broadcast %500 : vector<1x128xf32> to vector<9x128xf32>
    %519 = arith.mulf %517, %518 : vector<9x128xf32>
    %520 = vector.broadcast %501 : vector<1x128xf32> to vector<9x128xf32>
    %521 = arith.addf %519, %520 : vector<9x128xf32>
    %522 = arith.truncf %521 : vector<9x128xf32> to vector<9x128xbf16>
    %c1_211 = arith.constant 1 : index
    %c0_212 = arith.constant 0 : index
    %c0_213 = arith.constant 0 : index
    %523 = vector.load %arg13[%c1_211, %c0_212, %c0_213] : memref<2x128x256xbf16, #tpu.memory_space<vmem>>, vector<1x128x256xbf16>
    %524 = vector.shape_cast %523 : vector<1x128x256xbf16> to vector<128x256xbf16>
    %cst_214 = arith.constant dense<0.000000e+00> : vector<9x256xf32>
    %525 = tpu.matmul %522, %524, %cst_214 {dimension_numbers = #tpu.dot_dimension_numbers<[1], [0], [0], [1], [0, 0, 1, 1], [], []>} : vector<9x128xbf16>, vector<128x256xbf16>, vector<9x256xf32> -> vector<9x256xf32>
    %c1_215 = arith.constant 1 : index
    %c0_216 = arith.constant 0 : index
    %c0_217 = arith.constant 0 : index
    %526 = vector.load %arg14[%c1_215, %c0_216, %c0_217] : memref<2x1x256xf32, #tpu.memory_space<vmem>>, vector<1x1x256xf32>
    %527 = vector.shape_cast %526 : vector<1x1x256xf32> to vector<1x256xf32>
    %528 = vector.broadcast %527 : vector<1x256xf32> to vector<9x256xf32>
    %529 = arith.addf %525, %528 : vector<9x256xf32>
    %cst_218 = arith.constant 0.000000e+00 : f32
    %530 = vector.broadcast %cst_218 : f32 to vector<9x256xf32>
    %531 = arith.maximumf %529, %530 : vector<9x256xf32>
    %532 = arith.truncf %531 : vector<9x256xf32> to vector<9x256xbf16>
    %c1_219 = arith.constant 1 : index
    %c0_220 = arith.constant 0 : index
    %c0_221 = arith.constant 0 : index
    %533 = vector.load %arg15[%c1_219, %c0_220, %c0_221] : memref<2x256x128xbf16, #tpu.memory_space<vmem>>, vector<1x256x128xbf16>
    %534 = vector.shape_cast %533 : vector<1x256x128xbf16> to vector<256x128xbf16>
    %cst_222 = arith.constant dense<0.000000e+00> : vector<9x128xf32>
    %535 = tpu.matmul %532, %534, %cst_222 {dimension_numbers = #tpu.dot_dimension_numbers<[1], [0], [0], [1], [0, 0, 1, 1], [], []>} : vector<9x256xbf16>, vector<256x128xbf16>, vector<9x128xf32> -> vector<9x128xf32>
    %c1_223 = arith.constant 1 : index
    %c0_224 = arith.constant 0 : index
    %c0_225 = arith.constant 0 : index
    %536 = vector.load %arg16[%c1_223, %c0_224, %c0_225] : memref<2x1x128xf32, #tpu.memory_space<vmem>>, vector<1x1x128xf32>
    %537 = vector.shape_cast %536 : vector<1x1x128xf32> to vector<1x128xf32>
    %538 = vector.broadcast %537 : vector<1x128xf32> to vector<9x128xf32>
    %539 = arith.addf %535, %538 : vector<9x128xf32>
    %540 = arith.addf %521, %539 : vector<9x128xf32>
    %541 = vector.extract_strided_slice %285 {offsets = [4, 0], sizes = [1, 128], strides = [1, 1]} : vector<8x128xf32> to vector<1x128xf32>
    %542 = vector.extract_strided_slice %285 {offsets = [5, 0], sizes = [1, 128], strides = [1, 1]} : vector<8x128xf32> to vector<1x128xf32>
    %cst_226 = arith.constant dense<0.000000e+00> : vector<9xf32>
    %543 = vector.multi_reduction <add>, %540, %cst_226 [1] : vector<9x128xf32> to vector<9xf32>
    %544 = vector.shape_cast %543 : vector<9xf32> to vector<9x1xf32>
    %cst_227 = arith.constant 1.280000e+02 : f32
    %545 = vector.broadcast %cst_227 : f32 to vector<9x1xf32>
    %546 = arith.divf %544, %545 : vector<9x1xf32>
    %547 = vector.broadcast %546 : vector<9x1xf32> to vector<9x128xf32>
    %548 = arith.subf %540, %547 : vector<9x128xf32>
    %549 = arith.mulf %548, %548 : vector<9x128xf32>
    %cst_228 = arith.constant dense<0.000000e+00> : vector<9xf32>
    %550 = vector.multi_reduction <add>, %549, %cst_228 [1] : vector<9x128xf32> to vector<9xf32>
    %551 = vector.shape_cast %550 : vector<9xf32> to vector<9x1xf32>
    %cst_229 = arith.constant 1.280000e+02 : f32
    %552 = vector.broadcast %cst_229 : f32 to vector<9x1xf32>
    %553 = arith.divf %551, %552 : vector<9x1xf32>
    %cst_230 = arith.constant 9.99999974E-6 : f32
    %554 = vector.broadcast %cst_230 : f32 to vector<9x1xf32>
    %555 = arith.addf %553, %554 : vector<9x1xf32>
    %556 = math.rsqrt %555 : vector<9x1xf32>
    %557 = vector.broadcast %556 : vector<9x1xf32> to vector<9x128xf32>
    %558 = arith.mulf %548, %557 : vector<9x128xf32>
    %559 = vector.broadcast %541 : vector<1x128xf32> to vector<9x128xf32>
    %560 = arith.mulf %558, %559 : vector<9x128xf32>
    %561 = vector.broadcast %542 : vector<1x128xf32> to vector<9x128xf32>
    %562 = arith.addf %560, %561 : vector<9x128xf32>
    %c0_231 = arith.constant 0 : index
    %c0_232 = arith.constant 0 : index
    %c0_233 = arith.constant 0 : index
    %563 = vector.load %arg18[%c0_231, %c0_232, %c0_233] : memref<1x9x128xf32, #tpu.memory_space<vmem>>, vector<1x9x128xf32>
    %564 = vector.shape_cast %563 : vector<1x9x128xf32> to vector<9x128xf32>
    %565 = vector.shape_cast %562 : vector<9x128xf32> to vector<1x9x128xf32>
    tpu.vector_store %arg18[%c0_231, %c0_232, %c0_233], %565 {strides = array<i32>} : memref<1x9x128xf32, #tpu.memory_space<vmem>>, vector<1x9x128xf32>,
    return
  }
  func.func @transform_0(%arg0: i32) -> (i32, i32, i32) {
    %c0_i32 = arith.constant 0 : i32
    %c0_i32_0 = arith.constant 0 : i32
    %c0_i32_1 = arith.constant 0 : i32
    return %arg0, %c0_i32, %c0_i32_0 : i32, i32, i32
  }
  func.func @transform_1(%arg0: i32) -> (i32, i32, i32) {
    %c0_i32 = arith.constant 0 : i32
    %c0_i32_0 = arith.constant 0 : i32
    %c0_i32_1 = arith.constant 0 : i32
    return %arg0, %c0_i32, %c0_i32_0 : i32, i32, i32
  }
  func.func @transform_2(%arg0: i32) -> (i32, i32, i32) {
    %c0_i32 = arith.constant 0 : i32
    %c0_i32_0 = arith.constant 0 : i32
    %c0_i32_1 = arith.constant 0 : i32
    %c0_i32_2 = arith.constant 0 : i32
    return %c0_i32, %c0_i32_0, %c0_i32_1 : i32, i32, i32
  }
  func.func @transform_3(%arg0: i32) -> (i32, i32, i32) {
    %c0_i32 = arith.constant 0 : i32
    %c0_i32_0 = arith.constant 0 : i32
    %c0_i32_1 = arith.constant 0 : i32
    %c0_i32_2 = arith.constant 0 : i32
    return %c0_i32, %c0_i32_0, %c0_i32_1 : i32, i32, i32
  }
  func.func @transform_4(%arg0: i32) -> (i32, i32, i32) {
    %c0_i32 = arith.constant 0 : i32
    %c0_i32_0 = arith.constant 0 : i32
    %c0_i32_1 = arith.constant 0 : i32
    %c0_i32_2 = arith.constant 0 : i32
    return %c0_i32, %c0_i32_0, %c0_i32_1 : i32, i32, i32
  }
  func.func @transform_5(%arg0: i32) -> (i32, i32, i32) {
    %c0_i32 = arith.constant 0 : i32
    %c0_i32_0 = arith.constant 0 : i32
    %c0_i32_1 = arith.constant 0 : i32
    %c0_i32_2 = arith.constant 0 : i32
    return %c0_i32, %c0_i32_0, %c0_i32_1 : i32, i32, i32
  }
  func.func @transform_6(%arg0: i32) -> (i32, i32, i32) {
    %c0_i32 = arith.constant 0 : i32
    %c0_i32_0 = arith.constant 0 : i32
    %c0_i32_1 = arith.constant 0 : i32
    %c0_i32_2 = arith.constant 0 : i32
    return %c0_i32, %c0_i32_0, %c0_i32_1 : i32, i32, i32
  }
  func.func @transform_7(%arg0: i32) -> (i32, i32, i32) {
    %c0_i32 = arith.constant 0 : i32
    %c0_i32_0 = arith.constant 0 : i32
    %c0_i32_1 = arith.constant 0 : i32
    %c0_i32_2 = arith.constant 0 : i32
    return %c0_i32, %c0_i32_0, %c0_i32_1 : i32, i32, i32
  }
  func.func @transform_8(%arg0: i32) -> (i32, i32, i32) {
    %c0_i32 = arith.constant 0 : i32
    %c0_i32_0 = arith.constant 0 : i32
    %c0_i32_1 = arith.constant 0 : i32
    %c0_i32_2 = arith.constant 0 : i32
    return %c0_i32, %c0_i32_0, %c0_i32_1 : i32, i32, i32
  }
  func.func @transform_9(%arg0: i32) -> (i32, i32, i32) {
    %c0_i32 = arith.constant 0 : i32
    %c0_i32_0 = arith.constant 0 : i32
    %c0_i32_1 = arith.constant 0 : i32
    %c0_i32_2 = arith.constant 0 : i32
    return %c0_i32, %c0_i32_0, %c0_i32_1 : i32, i32, i32
  }
  func.func @transform_10(%arg0: i32) -> (i32, i32, i32) {
    %c0_i32 = arith.constant 0 : i32
    %c0_i32_0 = arith.constant 0 : i32
    %c0_i32_1 = arith.constant 0 : i32
    %c0_i32_2 = arith.constant 0 : i32
    return %c0_i32, %c0_i32_0, %c0_i32_1 : i32, i32, i32
  }
  func.func @transform_11(%arg0: i32) -> (i32, i32, i32) {
    %c0_i32 = arith.constant 0 : i32
    %c0_i32_0 = arith.constant 0 : i32
    %c0_i32_1 = arith.constant 0 : i32
    %c0_i32_2 = arith.constant 0 : i32
    return %c0_i32, %c0_i32_0, %c0_i32_1 : i32, i32, i32
  }
  func.func @transform_12(%arg0: i32) -> (i32, i32, i32) {
    %c0_i32 = arith.constant 0 : i32
    %c0_i32_0 = arith.constant 0 : i32
    %c0_i32_1 = arith.constant 0 : i32
    %c0_i32_2 = arith.constant 0 : i32
    return %c0_i32, %c0_i32_0, %c0_i32_1 : i32, i32, i32
  }
  func.func @transform_13(%arg0: i32) -> (i32, i32, i32) {
    %c0_i32 = arith.constant 0 : i32
    %c0_i32_0 = arith.constant 0 : i32
    %c0_i32_1 = arith.constant 0 : i32
    %c0_i32_2 = arith.constant 0 : i32
    return %c0_i32, %c0_i32_0, %c0_i32_1 : i32, i32, i32
  }
  func.func @transform_14(%arg0: i32) -> (i32, i32, i32) {
    %c0_i32 = arith.constant 0 : i32
    %c0_i32_0 = arith.constant 0 : i32
    %c0_i32_1 = arith.constant 0 : i32
    %c0_i32_2 = arith.constant 0 : i32
    return %c0_i32, %c0_i32_0, %c0_i32_1 : i32, i32, i32
  }
  func.func @transform_15(%arg0: i32) -> (i32, i32, i32) {
    %c0_i32 = arith.constant 0 : i32
    %c0_i32_0 = arith.constant 0 : i32
    %c0_i32_1 = arith.constant 0 : i32
    %c0_i32_2 = arith.constant 0 : i32
    return %c0_i32, %c0_i32_0, %c0_i32_1 : i32, i32, i32
  }
  func.func @transform_16(%arg0: i32) -> (i32, i32, i32) {
    %c0_i32 = arith.constant 0 : i32
    %c0_i32_0 = arith.constant 0 : i32
    %c0_i32_1 = arith.constant 0 : i32
    %c0_i32_2 = arith.constant 0 : i32
    return %c0_i32, %c0_i32_0, %c0_i32_1 : i32, i32, i32
  }
  func.func @transform_17(%arg0: i32) -> (i32, i32, i32) {
    %c0_i32 = arith.constant 0 : i32
    %c0_i32_0 = arith.constant 0 : i32
    %c0_i32_1 = arith.constant 0 : i32
    return %arg0, %c0_i32, %c0_i32_0 : i32, i32, i32
  }
}

</mosaic_0001>

<llo_original>
// kernel: fn_generator_forward.1
$region0: #{fn_generator_forward.1}
  #allocation0 [shape = 'u32[]', space=smem, size = 0x4, offset = 0x4, fixed_abs, tag = 'smem constant byte address 0x4 - core index']
  #allocation1 [shape = 'u32[144,128]{1,0:T(1,128)}', space=vmem, size = 0x12000, scoped, tag = 'internal scratch']
  %s0 = inlined_call_operand.vmem [shape: f32[2,9,128], index: 0, kind: input, shape index: {}]
  %s1 = inlined_call_operand.vmem [shape: f32[2,8,128], index: 1, kind: input, shape index: {}]
  %s2 = inlined_call_operand.vmem [shape: bf16[2,128,384], index: 2, kind: input, shape index: {}]
  %s3 = inlined_call_operand.vmem [shape: f32[2,1,384], index: 3, kind: input, shape index: {}]
  %s4 = inlined_call_operand.hbm [shape: f32[2,128,128], index: 4, kind: input, shape index: {}]
  %s5 = inlined_call_operand.vmem [shape: f32[2,1,128], index: 5, kind: input, shape index: {}]
  %s6 = inlined_call_operand.hbm [shape: bf16[2,128,128], index: 6, kind: input, shape index: {}]
  %s7 = inlined_call_operand.vmem [shape: f32[2,1,128], index: 7, kind: input, shape index: {}]
  %s8 = inlined_call_operand.hbm [shape: bf16[2,128,256], index: 8, kind: input, shape index: {}]
  %s9 = inlined_call_operand.vmem [shape: f32[2,1,256], index: 9, kind: input, shape index: {}]
  %s10 = inlined_call_operand.hbm [shape: f32[2,128,128], index: 10, kind: input, shape index: {}]
  %s11 = inlined_call_operand.vmem [shape: f32[2,1,128], index: 11, kind: input, shape index: {}]
  %s12 = inlined_call_operand.hbm [shape: bf16[2,128,256], index: 12, kind: input, shape index: {}]
  %s13 = inlined_call_operand.vmem [shape: f32[2,1,256], index: 13, kind: input, shape index: {}]
  %s14 = inlined_call_operand.hbm [shape: bf16[2,256,128], index: 14, kind: input, shape index: {}]
  %s15 = inlined_call_operand.vmem [shape: f32[2,1,128], index: 15, kind: input, shape index: {}]
  %s16 = inlined_call_operand.vmem [shape: f32[2,8,128], index: 16, kind: input, shape index: {}]
  %s17 = inlined_call_operand.vmem [shape: f32[2,9,128], index: 17, kind: output, shape index: {}]
  %s18 = sld [smem:[#allocation0]]
  $region125: #{fn_generator_forward.1} parent=0
    _
  %s20 = ssub.s32 1, %s18
  %s21 = scalar_select 0, %s20, %s18
  $region1: #{fn_generator_forward.1} parent=0
    #allocation2 [shape = 'u8[131072]{0}', space=vmem, size = 0x20000, scoped, tag = 'input window, operand 4, single buffered']
    #allocation3 [shape = 's32[2]{0}', space=sflag, size = 0x8, scoped, tag = 'scoped memory for fn_generator_forward.1']
    #allocation4 [shape = 'u8[65536]{0}', space=vmem, size = 0x10000, scoped, tag = 'input window, operand 6, single buffered']
    #allocation5 [shape = 's32[1]{0}', space=sflag, size = 0x4, scoped, tag = 'scoped memory for fn_generator_forward.1']
    #allocation6 [shape = 'u8[131072]{0}', space=vmem, size = 0x20000, scoped, tag = 'input window, operand 8, single buffered']
    #allocation7 [shape = 'u8[131072]{0}', space=vmem, size = 0x20000, scoped, tag = 'input window, operand 10, single buffered']
    #allocation8 [shape = 's32[1]{0}', space=sflag, size = 0x4, scoped, tag = 'scoped memory for fn_generator_forward.1']
    #allocation9 [shape = 'u8[131072]{0}', space=vmem, size = 0x20000, scoped, tag = 'input window, operand 12, single buffered']
    #allocation10 [shape = 'u8[131072]{0}', space=vmem, size = 0x20000, scoped, tag = 'input window, operand 14, single buffered']
    #allocation11 [shape = 's32[1]{0}', space=sflag, size = 0x4, scoped, tag = 'scoped memory for fn_generator_forward.1']
    %22 = vsyncpa [#allocation3], 0
    %23 = vsyncpa [#allocation5], 0
    %24 = vsyncpa [#allocation8], 0
    %25 = vsyncpa [#allocation11], 0
    loop: start=0, step=1, limit=4
    $region2: #{fn_generator_forward.1} parent=1 // loop_pre_header
      _
    $region3: #{fn_generator_forward.1} parent=1 // loop_header
      %s27 = sphi 0, %s31
      %p28 = scmp.ge.s32.totalorder %s27, 4
      %s37 = sphi 0, %s39
      %s40 = sphi 0, %s37
      %s41 = sphi 0, %s40
      %s57 = sphi 0, %s41
      %s63 = sphi 0, %s65
      %s66 = sphi 0, %s63
      %s67 = sphi 0, %s66
      %s83 = sphi 0, %s67
      %s87 = sphi 0, %s87
      %s89 = sphi 0, %s87
      %s90 = sphi 0, %s89
      %s104 = sphi 0, %s90
      %s108 = sphi 0, %s108
      %s110 = sphi 0, %s108
      %s111 = sphi 0, %s110
      %s125 = sphi 0, %s111
      %s129 = sphi 0, %s129
      %s131 = sphi 0, %s129
      %s132 = sphi 0, %s131
      %s146 = sphi 0, %s132
      %s150 = sphi 0, %s150
      %s152 = sphi 0, %s150
      %s153 = sphi 0, %s152
      %s167 = sphi 0, %s153
      %s171 = sphi 0, %s171
      %s173 = sphi 0, %s171
      %s174 = sphi 0, %s173
      %s188 = sphi 0, %s174
      %s192 = sphi 0, %s192
      %s194 = sphi 0, %s192
      %s195 = sphi 0, %s194
      %s209 = sphi 0, %s195
      %s213 = sphi 0, %s213
      %s215 = sphi 0, %s213
      %s216 = sphi 0, %s215
      %s230 = sphi 0, %s216
      %s234 = sphi 0, %s234
      %s236 = sphi 0, %s234
      %s237 = sphi 0, %s236
      %s251 = sphi 0, %s237
      %s255 = sphi 0, %s255
      %s257 = sphi 0, %s255
      %s258 = sphi 0, %s257
      %s272 = sphi 0, %s258
      %s276 = sphi 0, %s276
      %s278 = sphi 0, %s276
      %s279 = sphi 0, %s278
      %s293 = sphi 0, %s279
      %s297 = sphi 0, %s297
      %s299 = sphi 0, %s297
      %s300 = sphi 0, %s299
      %s314 = sphi 0, %s300
      %s318 = sphi 0, %s318
      %s320 = sphi 0, %s318
      %s321 = sphi 0, %s320
      %s335 = sphi 0, %s321
      %s339 = sphi 0, %s339
      %s341 = sphi 0, %s339
      %s342 = sphi 0, %s341
      %s356 = sphi 0, %s342
      %s360 = sphi 0, %s360
      %s362 = sphi 0, %s360
      %s363 = sphi 0, %s362
      %s377 = sphi 0, %s363
      %s381 = sphi 0, %s381
      %s383 = sphi 0, %s381
      %s384 = sphi 0, %s383
      %s398 = sphi 0, %s384
      %s404 = sphi 0, %s406
      %s407 = sphi 0, %s404
      %s408 = sphi 0, %s407
      %s424 = sphi 0, %s408
    $region4: #{fn_generator_forward.1} parent=1 // loop_header_branch
      %30 = sbr.rel (%p28) target = $region8
    $region5: #{fn_generator_forward.1} parent=1 // loop_body
      %s32 = ssub.s32 %s27, 1
      %s33 = ssub.s32 %s27, 2
      %s34 = sadd.s32 %s27, 1
      %s35 = ssub.s32 %s27, %s34
      %p36 = scmp.eq.s32.totalorder %s35, 0
      %s38 = sadd.s32 %s37, 1
      %s39 = scalar_select %p36, %s37, %s38
      %p42 = pneg %p36
      %p43 = scmp.eq.s32.totalorder %s27, 1
      %p44 = por %p42, %p43
      %p45 = scmp.ne.s32.totalorder %s37, %s40
      %p46 = scmp.eq.s32.totalorder %s27, 0
      %p47 = por %p45, %p46
      %p48 = scmp.ne.s32.totalorder %s37, %s40
      %p49 = scmp.eq.s32.totalorder %s32, 1
      %p50 = por %p48, %p49
      %p51 = scmp.ne.s32.totalorder %s40, %s41
      %p52 = scmp.eq.s32.totalorder %s32, 0
      %p53 = por %p51, %p52
      %p54 = scmp.ne.s32.totalorder %s40, %s41
      %p55 = scmp.eq.s32.totalorder %s33, 1
      %p56 = por %p54, %p55
      %p58 = scmp.ne.s32.totalorder %s41, %s57
      %p59 = scmp.eq.s32.totalorder %s33, 0
      %p60 = por %p58, %p59
      %s61 = ssub.s32 %s27, %s34
      %p62 = scmp.eq.s32.totalorder %s61, 0
      %s64 = sadd.s32 %s63, 1
      %s65 = scalar_select %p62, %s63, %s64
      %p68 = pneg %p62
      %p69 = scmp.eq.s32.totalorder %s27, 1
      %p70 = por %p68, %p69
      %p71 = scmp.ne.s32.totalorder %s63, %s66
      %p72 = scmp.eq.s32.totalorder %s27, 0
      %p73 = por %p71, %p72
      %p74 = scmp.ne.s32.totalorder %s63, %s66
      %p75 = scmp.eq.s32.totalorder %s32, 1
      %p76 = por %p74, %p75
      %p77 = scmp.ne.s32.totalorder %s66, %s67
      %p78 = scmp.eq.s32.totalorder %s32, 0
      %p79 = por %p77, %p78
      %p80 = scmp.ne.s32.totalorder %s66, %s67
      %p81 = scmp.eq.s32.totalorder %s33, 1
      %p82 = por %p80, %p81
      %p84 = scmp.ne.s32.totalorder %s67, %s83
      %p85 = scmp.eq.s32.totalorder %s33, 0
      %p86 = por %p84, %p85
      %s88 = sadd.s32 %s87, 1
      %p91 = scmp.eq.s32.totalorder %s27, 1
      %p92 = scmp.ne.s32.totalorder %s87, %s89
      %p93 = scmp.eq.s32.totalorder %s27, 0
      %p94 = por %p92, %p93
      %p95 = scmp.ne.s32.totalorder %s87, %s89
      %p96 = scmp.eq.s32.totalorder %s32, 1
      %p97 = por %p95, %p96
      %p98 = scmp.ne.s32.totalorder %s89, %s90
      %p99 = scmp.eq.s32.totalorder %s32, 0
      %p100 = por %p98, %p99
      %p101 = scmp.ne.s32.totalorder %s89, %s90
      %p102 = scmp.eq.s32.totalorder %s33, 1
      %p103 = por %p101, %p102
      %p105 = scmp.ne.s32.totalorder %s90, %s104
      %p106 = scmp.eq.s32.totalorder %s33, 0
      %p107 = por %p105, %p106
      %s109 = sadd.s32 %s108, 1
      %p112 = scmp.eq.s32.totalorder %s27, 1
      %p113 = scmp.ne.s32.totalorder %s108, %s110
      %p114 = scmp.eq.s32.totalorder %s27, 0
      %p115 = por %p113, %p114
      %p116 = scmp.ne.s32.totalorder %s108, %s110
      %p117 = scmp.eq.s32.totalorder %s32, 1
      %p118 = por %p116, %p117
      %p119 = scmp.ne.s32.totalorder %s110, %s111
      %p120 = scmp.eq.s32.totalorder %s32, 0
      %p121 = por %p119, %p120
      %p122 = scmp.ne.s32.totalorder %s110, %s111
      %p123 = scmp.eq.s32.totalorder %s33, 1
      %p124 = por %p122, %p123
      %p126 = scmp.ne.s32.totalorder %s111, %s125
      %p127 = scmp.eq.s32.totalorder %s33, 0
      %p128 = por %p126, %p127
      %s130 = sadd.s32 %s129, 1
      %p133 = scmp.eq.s32.totalorder %s27, 1
      %p134 = scmp.ne.s32.totalorder %s129, %s131
      %p135 = scmp.eq.s32.totalorder %s27, 0
      %p136 = por %p134, %p135
      %p137 = scmp.ne.s32.totalorder %s129, %s131
      %p138 = scmp.eq.s32.totalorder %s32, 1
      %p139 = por %p137, %p138
      %p140 = scmp.ne.s32.totalorder %s131, %s132
      %p141 = scmp.eq.s32.totalorder %s32, 0
      %p142 = por %p140, %p141
      %p143 = scmp.ne.s32.totalorder %s131, %s132
      %p144 = scmp.eq.s32.totalorder %s33, 1
      %p145 = por %p143, %p144
      %p147 = scmp.ne.s32.totalorder %s132, %s146
      %p148 = scmp.eq.s32.totalorder %s33, 0
      %p149 = por %p147, %p148
      %s151 = sadd.s32 %s150, 1
      %p154 = scmp.eq.s32.totalorder %s27, 1
      %p155 = scmp.ne.s32.totalorder %s150, %s152
      %p156 = scmp.eq.s32.totalorder %s27, 0
      %p157 = por %p155, %p156
      %p158 = scmp.ne.s32.totalorder %s150, %s152
      %p159 = scmp.eq.s32.totalorder %s32, 1
      %p160 = por %p158, %p159
      %p161 = scmp.ne.s32.totalorder %s152, %s153
      %p162 = scmp.eq.s32.totalorder %s32, 0
      %p163 = por %p161, %p162
      %p164 = scmp.ne.s32.totalorder %s152, %s153
      %p165 = scmp.eq.s32.totalorder %s33, 1
      %p166 = por %p164, %p165
      %p168 = scmp.ne.s32.totalorder %s153, %s167
      %p169 = scmp.eq.s32.totalorder %s33, 0
      %p170 = por %p168, %p169
      %s172 = sadd.s32 %s171, 1
      %p175 = scmp.eq.s32.totalorder %s27, 1
      %p176 = scmp.ne.s32.totalorder %s171, %s173
      %p177 = scmp.eq.s32.totalorder %s27, 0
      %p178 = por %p176, %p177
      %p179 = scmp.ne.s32.totalorder %s171, %s173
      %p180 = scmp.eq.s32.totalorder %s32, 1
      %p181 = por %p179, %p180
      %p182 = scmp.ne.s32.totalorder %s173, %s174
      %p183 = scmp.eq.s32.totalorder %s32, 0
      %p184 = por %p182, %p183
      %p185 = scmp.ne.s32.totalorder %s173, %s174
      %p186 = scmp.eq.s32.totalorder %s33, 1
      %p187 = por %p185, %p186
      %p189 = scmp.ne.s32.totalorder %s174, %s188
      %p190 = scmp.eq.s32.totalorder %s33, 0
      %p191 = por %p189, %p190
      %s193 = sadd.s32 %s192, 1
      %p196 = scmp.eq.s32.totalorder %s27, 1
      %p197 = scmp.ne.s32.totalorder %s192, %s194
      %p198 = scmp.eq.s32.totalorder %s27, 0
      %p199 = por %p197, %p198
      %p200 = scmp.ne.s32.totalorder %s192, %s194
      %p201 = scmp.eq.s32.totalorder %s32, 1
      %p202 = por %p200, %p201
      %p203 = scmp.ne.s32.totalorder %s194, %s195
      %p204 = scmp.eq.s32.totalorder %s32, 0
      %p205 = por %p203, %p204
      %p206 = scmp.ne.s32.totalorder %s194, %s195
      %p207 = scmp.eq.s32.totalorder %s33, 1
      %p208 = por %p206, %p207
      %p210 = scmp.ne.s32.totalorder %s195, %s209
      %p211 = scmp.eq.s32.totalorder %s33, 0
      %p212 = por %p210, %p211
      %s214 = sadd.s32 %s213, 1
      %p217 = scmp.eq.s32.totalorder %s27, 1
      %p218 = scmp.ne.s32.totalorder %s213, %s215
      %p219 = scmp.eq.s32.totalorder %s27, 0
      %p220 = por %p218, %p219
      %p221 = scmp.ne.s32.totalorder %s213, %s215
      %p222 = scmp.eq.s32.totalorder %s32, 1
      %p223 = por %p221, %p222
      %p224 = scmp.ne.s32.totalorder %s215, %s216
      %p225 = scmp.eq.s32.totalorder %s32, 0
      %p226 = por %p224, %p225
      %p227 = scmp.ne.s32.totalorder %s215, %s216
      %p228 = scmp.eq.s32.totalorder %s33, 1
      %p229 = por %p227, %p228
      %p231 = scmp.ne.s32.totalorder %s216, %s230
      %p232 = scmp.eq.s32.totalorder %s33, 0
      %p233 = por %p231, %p232
      %s235 = sadd.s32 %s234, 1
      %p238 = scmp.eq.s32.totalorder %s27, 1
      %p239 = scmp.ne.s32.totalorder %s234, %s236
      %p240 = scmp.eq.s32.totalorder %s27, 0
      %p241 = por %p239, %p240
      %p242 = scmp.ne.s32.totalorder %s234, %s236
      %p243 = scmp.eq.s32.totalorder %s32, 1
      %p244 = por %p242, %p243
      %p245 = scmp.ne.s32.totalorder %s236, %s237
      %p246 = scmp.eq.s32.totalorder %s32, 0
      %p247 = por %p245, %p246
      %p248 = scmp.ne.s32.totalorder %s236, %s237
      %p249 = scmp.eq.s32.totalorder %s33, 1
      %p250 = por %p248, %p249
      %p252 = scmp.ne.s32.totalorder %s237, %s251
      %p253 = scmp.eq.s32.totalorder %s33, 0
      %p254 = por %p252, %p253
      %s256 = sadd.s32 %s255, 1
      %p259 = scmp.eq.s32.totalorder %s27, 1
      %p260 = scmp.ne.s32.totalorder %s255, %s257
      %p261 = scmp.eq.s32.totalorder %s27, 0
      %p262 = por %p260, %p261
      %p263 = scmp.ne.s32.totalorder %s255, %s257
      %p264 = scmp.eq.s32.totalorder %s32, 1
      %p265 = por %p263, %p264
      %p266 = scmp.ne.s32.totalorder %s257, %s258
      %p267 = scmp.eq.s32.totalorder %s32, 0
      %p268 = por %p266, %p267
      %p269 = scmp.ne.s32.totalorder %s257, %s258
      %p270 = scmp.eq.s32.totalorder %s33, 1
      %p271 = por %p269, %p270
      %p273 = scmp.ne.s32.totalorder %s258, %s272
      %p274 = scmp.eq.s32.totalorder %s33, 0
      %p275 = por %p273, %p274
      %s277 = sadd.s32 %s276, 1
      %p280 = scmp.eq.s32.totalorder %s27, 1
      %p281 = scmp.ne.s32.totalorder %s276, %s278
      %p282 = scmp.eq.s32.totalorder %s27, 0
      %p283 = por %p281, %p282
      %p284 = scmp.ne.s32.totalorder %s276, %s278
      %p285 = scmp.eq.s32.totalorder %s32, 1
      %p286 = por %p284, %p285
      %p287 = scmp.ne.s32.totalorder %s278, %s279
      %p288 = scmp.eq.s32.totalorder %s32, 0
      %p289 = por %p287, %p288
      %p290 = scmp.ne.s32.totalorder %s278, %s279
      %p291 = scmp.eq.s32.totalorder %s33, 1
      %p292 = por %p290, %p291
      %p294 = scmp.ne.s32.totalorder %s279, %s293
      %p295 = scmp.eq.s32.totalorder %s33, 0
      %p296 = por %p294, %p295
      %s298 = sadd.s32 %s297, 1
      %p301 = scmp.eq.s32.totalorder %s27, 1
      %p302 = scmp.ne.s32.totalorder %s297, %s299
      %p303 = scmp.eq.s32.totalorder %s27, 0
      %p304 = por %p302, %p303
      %p305 = scmp.ne.s32.totalorder %s297, %s299
      %p306 = scmp.eq.s32.totalorder %s32, 1
      %p307 = por %p305, %p306
      %p308 = scmp.ne.s32.totalorder %s299, %s300
      %p309 = scmp.eq.s32.totalorder %s32, 0
      %p310 = por %p308, %p309
      %p311 = scmp.ne.s32.totalorder %s299, %s300
      %p312 = scmp.eq.s32.totalorder %s33, 1
      %p313 = por %p311, %p312
      %p315 = scmp.ne.s32.totalorder %s300, %s314
      %p316 = scmp.eq.s32.totalorder %s33, 0
      %p317 = por %p315, %p316
      %s319 = sadd.s32 %s318, 1
      %p322 = scmp.eq.s32.totalorder %s27, 1
      %p323 = scmp.ne.s32.totalorder %s318, %s320
      %p324 = scmp.eq.s32.totalorder %s27, 0
      %p325 = por %p323, %p324
      %p326 = scmp.ne.s32.totalorder %s318, %s320
      %p327 = scmp.eq.s32.totalorder %s32, 1
      %p328 = por %p326, %p327
      %p329 = scmp.ne.s32.totalorder %s320, %s321
      %p330 = scmp.eq.s32.totalorder %s32, 0
      %p331 = por %p329, %p330
      %p332 = scmp.ne.s32.totalorder %s320, %s321
      %p333 = scmp.eq.s32.totalorder %s33, 1
      %p334 = por %p332, %p333
      %p336 = scmp.ne.s32.totalorder %s321, %s335
      %p337 = scmp.eq.s32.totalorder %s33, 0
      %p338 = por %p336, %p337
      %s340 = sadd.s32 %s339, 1
      %p343 = scmp.eq.s32.totalorder %s27, 1
      %p344 = scmp.ne.s32.totalorder %s339, %s341
      %p345 = scmp.eq.s32.totalorder %s27, 0
      %p346 = por %p344, %p345
      %p347 = scmp.ne.s32.totalorder %s339, %s341
      %p348 = scmp.eq.s32.totalorder %s32, 1
      %p349 = por %p347, %p348
      %p350 = scmp.ne.s32.totalorder %s341, %s342
      %p351 = scmp.eq.s32.totalorder %s32, 0
      %p352 = por %p350, %p351
      %p353 = scmp.ne.s32.totalorder %s341, %s342
      %p354 = scmp.eq.s32.totalorder %s33, 1
      %p355 = por %p353, %p354
      %p357 = scmp.ne.s32.totalorder %s342, %s356
      %p358 = scmp.eq.s32.totalorder %s33, 0
      %p359 = por %p357, %p358
      %s361 = sadd.s32 %s360, 1
      %p364 = scmp.eq.s32.totalorder %s27, 1
      %p365 = scmp.ne.s32.totalorder %s360, %s362
      %p366 = scmp.eq.s32.totalorder %s27, 0
      %p367 = por %p365, %p366
      %p368 = scmp.ne.s32.totalorder %s360, %s362
      %p369 = scmp.eq.s32.totalorder %s32, 1
      %p370 = por %p368, %p369
      %p371 = scmp.ne.s32.totalorder %s362, %s363
      %p372 = scmp.eq.s32.totalorder %s32, 0
      %p373 = por %p371, %p372
      %p374 = scmp.ne.s32.totalorder %s362, %s363
      %p375 = scmp.eq.s32.totalorder %s33, 1
      %p376 = por %p374, %p375
      %p378 = scmp.ne.s32.totalorder %s363, %s377
      %p379 = scmp.eq.s32.totalorder %s33, 0
      %p380 = por %p378, %p379
      %s382 = sadd.s32 %s381, 1
      %p385 = scmp.eq.s32.totalorder %s27, 1
      %p386 = scmp.ne.s32.totalorder %s381, %s383
      %p387 = scmp.eq.s32.totalorder %s27, 0
      %p388 = por %p386, %p387
      %p389 = scmp.ne.s32.totalorder %s381, %s383
      %p390 = scmp.eq.s32.totalorder %s32, 1
      %p391 = por %p389, %p390
      %p392 = scmp.ne.s32.totalorder %s383, %s384
      %p393 = scmp.eq.s32.totalorder %s32, 0
      %p394 = por %p392, %p393
      %p395 = scmp.ne.s32.totalorder %s383, %s384
      %p396 = scmp.eq.s32.totalorder %s33, 1
      %p397 = por %p395, %p396
      %p399 = scmp.ne.s32.totalorder %s384, %s398
      %p400 = scmp.eq.s32.totalorder %s33, 0
      %p401 = por %p399, %p400
      %s402 = ssub.s32 %s27, %s34
      %p403 = scmp.eq.s32.totalorder %s402, 0
      %s405 = sadd.s32 %s404, 1
      %s406 = scalar_select %p403, %s404, %s405
      %p409 = pneg %p403
      %p410 = scmp.eq.s32.totalorder %s27, 1
      %p411 = por %p409, %p410
      %p412 = scmp.ne.s32.totalorder %s404, %s407
      %p413 = scmp.eq.s32.totalorder %s27, 0
      %p414 = por %p412, %p413
      %p415 = scmp.ne.s32.totalorder %s404, %s407
      %p416 = scmp.eq.s32.totalorder %s32, 1
      %p417 = por %p415, %p416
      %p418 = scmp.ne.s32.totalorder %s407, %s408
      %p419 = scmp.eq.s32.totalorder %s32, 0
      %p420 = por %p418, %p419
      %p421 = scmp.ne.s32.totalorder %s407, %s408
      %p422 = scmp.eq.s32.totalorder %s33, 1
      %p423 = por %p421, %p422
      %p425 = scmp.ne.s32.totalorder %s408, %s424
      %p426 = scmp.eq.s32.totalorder %s33, 0
      %p427 = por %p425, %p426
      %p428 = scmp.le.s32.totalorder 1, %s27
      %p429 = scmp.lt.s32.totalorder %s27, 3
      %p430 = pnand %p428, %p429
      %p431 = pneg %p430
      // Predicated region
      $region9: #{fn_generator_forward.1} parent=5 // pred_check
        _
      $region10: #{fn_generator_forward.1} parent=5 // pred_check_branch
        %433 = sbr.rel (%p430) target = $region12
      $region11: #{fn_generator_forward.1} parent=5 // pred_region
        %s434 = ssub.s32 %s27, 1
        // Predicated region
        $region13: #{fn_generator_forward.1} parent=11 // pred_check
          %p435 = pneg %p100
        $region14: #{fn_generator_forward.1} parent=11 // pred_check_branch
          %437 = sbr.rel (%p435) target = $region16
        $region15: #{fn_generator_forward.1} parent=11 // pred_region
          _
        $region16: #{fn_generator_forward.1} parent=11 // pred_fallthru
          _
        // Predicated region
        $region17: #{fn_generator_forward.1} parent=11 // pred_check
          %p438 = pneg %p121
        $region18: #{fn_generator_forward.1} parent=11 // pred_check_branch
          %440 = sbr.rel (%p438) target = $region20
        $region19: #{fn_generator_forward.1} parent=11 // pred_region
          _
        $region20: #{fn_generator_forward.1} parent=11 // pred_fallthru
          _
        // Predicated region
        $region21: #{fn_generator_forward.1} parent=11 // pred_check
          %p441 = pneg %p142
        $region22: #{fn_generator_forward.1} parent=11 // pred_check_branch
          %443 = sbr.rel (%p441) target = $region24
        $region23: #{fn_generator_forward.1} parent=11 // pred_region
          %s445 = ssub.s32 4096, 4096
          %446 = vsyncadd [#allocation3], %s445
          %s447 = sshll.u32 [#allocation2], 4
          %s448 = int_to_ptr.vmem [resolvable:$true] %s447
          %453 = dma.hbm_to_vmem [thread:$0]  %s4, 4096, %s448, [#allocation3], 128, 128, 8
        $region24: #{fn_generator_forward.1} parent=11 // pred_fallthru
          _
        // Predicated region
        $region25: #{fn_generator_forward.1} parent=11 // pred_check
          %p454 = pneg %p163
        $region26: #{fn_generator_forward.1} parent=11 // pred_check_branch
          %456 = sbr.rel (%p454) target = $region28
        $region27: #{fn_generator_forward.1} parent=11 // pred_region
          _
        $region28: #{fn_generator_forward.1} parent=11 // pred_fallthru
          _
        // Predicated region
        $region29: #{fn_generator_forward.1} parent=11 // pred_check
          %p457 = pneg %p184
        $region30: #{fn_generator_forward.1} parent=11 // pred_check_branch
          %459 = sbr.rel (%p457) target = $region32
        $region31: #{fn_generator_forward.1} parent=11 // pred_region
          %s461 = ssub.s32 2048, 2048
          %462 = vsyncadd [#allocation5], %s461
          %s463 = sshll.u32 [#allocation4], 4
          %s464 = int_to_ptr.vmem [resolvable:$true] %s463
          %469 = dma.hbm_to_vmem [thread:$0]  %s6, 2048, %s464, [#allocation5], 64, 64, 4
        $region32: #{fn_generator_forward.1} parent=11 // pred_fallthru
          _
        // Predicated region
        $region33: #{fn_generator_forward.1} parent=11 // pred_check
          %p470 = pneg %p205
        $region34: #{fn_generator_forward.1} parent=11 // pred_check_branch
          %472 = sbr.rel (%p470) target = $region36
        $region35: #{fn_generator_forward.1} parent=11 // pred_region
          _
        $region36: #{fn_generator_forward.1} parent=11 // pred_fallthru
          _
        // Predicated region
        $region37: #{fn_generator_forward.1} parent=11 // pred_check
          %p473 = pneg %p226
        $region38: #{fn_generator_forward.1} parent=11 // pred_check_branch
          %475 = sbr.rel (%p473) target = $region40
        $region39: #{fn_generator_forward.1} parent=11 // pred_region
          %s477 = ssub.s32 4096, 4096
          %478 = vsyncadd [#allocation5], %s477
          %s479 = sshll.u32 [#allocation6], 4
          %s480 = int_to_ptr.vmem [resolvable:$true] %s479
          %485 = dma.hbm_to_vmem [thread:$0]  %s8, 4096, %s480, [#allocation5], 128, 128, 8
        $region40: #{fn_generator_forward.1} parent=11 // pred_fallthru
          _
        // Predicated region
        $region41: #{fn_generator_forward.1} parent=11 // pred_check
          %p486 = pneg %p247
        $region42: #{fn_generator_forward.1} parent=11 // pred_check_branch
          %488 = sbr.rel (%p486) target = $region44
        $region43: #{fn_generator_forward.1} parent=11 // pred_region
          _
        $region44: #{fn_generator_forward.1} parent=11 // pred_fallthru
          _
        // Predicated region
        $region45: #{fn_generator_forward.1} parent=11 // pred_check
          %p489 = pneg %p268
        $region46: #{fn_generator_forward.1} parent=11 // pred_check_branch
          %491 = sbr.rel (%p489) target = $region48
        $region47: #{fn_generator_forward.1} parent=11 // pred_region
          %s493 = ssub.s32 4096, 4096
          %494 = vsyncadd [#allocation8], %s493
          %s495 = sshll.u32 [#allocation7], 4
          %s496 = int_to_ptr.vmem [resolvable:$true] %s495
          %501 = dma.hbm_to_vmem [thread:$0]  %s10, 4096, %s496, [#allocation8], 128, 128, 8
        $region48: #{fn_generator_forward.1} parent=11 // pred_fallthru
          _
        // Predicated region
        $region49: #{fn_generator_forward.1} parent=11 // pred_check
          %p502 = pneg %p289
        $region50: #{fn_generator_forward.1} parent=11 // pred_check_branch
          %504 = sbr.rel (%p502) target = $region52
        $region51: #{fn_generator_forward.1} parent=11 // pred_region
          _
        $region52: #{fn_generator_forward.1} parent=11 // pred_fallthru
          _
        // Predicated region
        $region53: #{fn_generator_forward.1} parent=11 // pred_check
          %p505 = pneg %p310
        $region54: #{fn_generator_forward.1} parent=11 // pred_check_branch
          %507 = sbr.rel (%p505) target = $region56
        $region55: #{fn_generator_forward.1} parent=11 // pred_region
          %s509 = ssub.s32 4096, 4096
          %510 = vsyncadd [#allocation8], %s509
          %s511 = sshll.u32 [#allocation9], 4
          %s512 = int_to_ptr.vmem [resolvable:$true] %s511
          %517 = dma.hbm_to_vmem [thread:$0]  %s12, 4096, %s512, [#allocation8], 128, 128, 8
        $region56: #{fn_generator_forward.1} parent=11 // pred_fallthru
          _
        // Predicated region
        $region57: #{fn_generator_forward.1} parent=11 // pred_check
          %p518 = pneg %p331
        $region58: #{fn_generator_forward.1} parent=11 // pred_check_branch
          %520 = sbr.rel (%p518) target = $region60
        $region59: #{fn_generator_forward.1} parent=11 // pred_region
          _
        $region60: #{fn_generator_forward.1} parent=11 // pred_fallthru
          _
        // Predicated region
        $region61: #{fn_generator_forward.1} parent=11 // pred_check
          %p521 = pneg %p352
        $region62: #{fn_generator_forward.1} parent=11 // pred_check_branch
          %523 = sbr.rel (%p521) target = $region64
        $region63: #{fn_generator_forward.1} parent=11 // pred_region
          %s525 = ssub.s32 4096, 4096
          %526 = vsyncadd [#allocation11], %s525
          %s527 = sshll.u32 [#allocation10], 4
          %s528 = int_to_ptr.vmem [resolvable:$true] %s527
          %533 = dma.hbm_to_vmem [thread:$0]  %s14, 4096, %s528, [#allocation11], 64, 64, 4
        $region64: #{fn_generator_forward.1} parent=11 // pred_fallthru
          _
        // Predicated region
        $region65: #{fn_generator_forward.1} parent=11 // pred_check
          %p534 = pneg %p373
        $region66: #{fn_generator_forward.1} parent=11 // pred_check_branch
          %536 = sbr.rel (%p534) target = $region68
        $region67: #{fn_generator_forward.1} parent=11 // pred_region
          _
        $region68: #{fn_generator_forward.1} parent=11 // pred_fallthru
          _
        // Predicated region
        $region69: #{fn_generator_forward.1} parent=11 // pred_check
          %p537 = pneg %p394
        $region70: #{fn_generator_forward.1} parent=11 // pred_check_branch
          %539 = sbr.rel (%p537) target = $region72
        $region71: #{fn_generator_forward.1} parent=11 // pred_region
          _
        $region72: #{fn_generator_forward.1} parent=11 // pred_fallthru
          _
      $region12: #{fn_generator_forward.1} parent=5 // pred_fallthru
        _
      %p540 = scmp.lt.s32.totalorder %s27, 2
      // Predicated region
      $region73: #{fn_generator_forward.1} parent=5 // pred_check
        %p541 = pneg %p540
      $region74: #{fn_generator_forward.1} parent=5 // pred_check_branch
        %543 = sbr.rel (%p541) target = $region76
      $region75: #{fn_generator_forward.1} parent=5 // pred_region
        // Predicated region
        $region77: #{fn_generator_forward.1} parent=75 // pred_check
          %p544 = pneg %p47
        $region78: #{fn_generator_forward.1} parent=75 // pred_check_branch
          %546 = sbr.rel (%p544) target = $region80
        $region79: #{fn_generator_forward.1} parent=75 // pred_region
          %p547 = scmp.lt.s32.totalorder %s27, 1
          %s548 = scalar_select %p547, %s27, 1
          %s549 = smul.addr %s548, 2
          %s550 = smul.addr %s549, 8
          %s551 = scalar_lea.vmem %s0, %s550
        $region80: #{fn_generator_forward.1} parent=75 // pred_fallthru
          _
        // Predicated region
        $region81: #{fn_generator_forward.1} parent=75 // pred_check
          %p552 = pneg %p73
        $region82: #{fn_generator_forward.1} parent=75 // pred_check_branch
          %554 = sbr.rel (%p552) target = $region84
        $region83: #{fn_generator_forward.1} parent=75 // pred_region
          %p555 = scmp.lt.s32.totalorder %s27, 1
          %s556 = scalar_select %p555, %s27, 1
          %s557 = smul.addr %s556, 8
          %s558 = scalar_lea.vmem %s1, %s557
        $region84: #{fn_generator_forward.1} parent=75 // pred_fallthru
          _
      $region76: #{fn_generator_forward.1} parent=5 // pred_fallthru
        _
      %p559 = scmp.le.s32.totalorder 1, %s27
      %p560 = scmp.lt.s32.totalorder %s27, 3
      %p561 = pnand %p559, %p560
      %p562 = pneg %p561
      // Predicated region
      $region85: #{fn_generator_forward.1} parent=5 // pred_check
        _
      $region86: #{fn_generator_forward.1} parent=5 // pred_check_branch
        %564 = sbr.rel (%p561) target = $region88
      $region87: #{fn_generator_forward.1} parent=5 // pred_region
        %s565 = ssub.s32 %s27, 1
        // Predicated region
        $region89: #{fn_generator_forward.1} parent=87 // pred_check
          %p566 = pneg %p142
        $region90: #{fn_generator_forward.1} parent=87 // pred_check_branch
          %568 = sbr.rel (%p566) target = $region92
        $region91: #{fn_generator_forward.1} parent=87 // pred_region
          %569 = dma.done [#allocation3], 4096
        $region92: #{fn_generator_forward.1} parent=87 // pred_fallthru
          _
        // Predicated region
        $region93: #{fn_generator_forward.1} parent=87 // pred_check
          %p570 = pneg %p184
        $region94: #{fn_generator_forward.1} parent=87 // pred_check_branch
          %572 = sbr.rel (%p570) target = $region96
        $region95: #{fn_generator_forward.1} parent=87 // pred_region
          %573 = dma.done [#allocation5], 2048
        $region96: #{fn_generator_forward.1} parent=87 // pred_fallthru
          _
        // Predicated region
        $region97: #{fn_generator_forward.1} parent=87 // pred_check
          %p574 = pneg %p226
        $region98: #{fn_generator_forward.1} parent=87 // pred_check_branch
          %576 = sbr.rel (%p574) target = $region100
        $region99: #{fn_generator_forward.1} parent=87 // pred_region
          %577 = dma.done [#allocation5], 4096
        $region100: #{fn_generator_forward.1} parent=87 // pred_fallthru
          _
        // Predicated region
        $region101: #{fn_generator_forward.1} parent=87 // pred_check
          %p578 = pneg %p268
        $region102: #{fn_generator_forward.1} parent=87 // pred_check_branch
          %580 = sbr.rel (%p578) target = $region104
        $region103: #{fn_generator_forward.1} parent=87 // pred_region
          %581 = dma.done [#allocation8], 4096
        $region104: #{fn_generator_forward.1} parent=87 // pred_fallthru
          _
        // Predicated region
        $region105: #{fn_generator_forward.1} parent=87 // pred_check
          %p582 = pneg %p310
        $region106: #{fn_generator_forward.1} parent=87 // pred_check_branch
          %584 = sbr.rel (%p582) target = $region108
        $region107: #{fn_generator_forward.1} parent=87 // pred_region
          %585 = dma.done [#allocation8], 4096
        $region108: #{fn_generator_forward.1} parent=87 // pred_fallthru
          _
        // Predicated region
        $region109: #{fn_generator_forward.1} parent=87 // pred_check
          %p586 = pneg %p352
        $region110: #{fn_generator_forward.1} parent=87 // pred_check_branch
          %588 = sbr.rel (%p586) target = $region112
        $region111: #{fn_generator_forward.1} parent=87 // pred_region
          %589 = dma.done [#allocation11], 4096
        $region112: #{fn_generator_forward.1} parent=87 // pred_fallthru
          _
        %p590 = scmp.lt.s32.totalorder %s32, 1
        %s591 = scalar_select %p590, %s32, 1
        %s592 = smul.addr %s591, 2
        %s593 = smul.addr %s592, 8
        %s594 = scalar_lea.vmem %s0, %s593
        %p595 = pneg %p53
        %p596 = pneg %p50
        %p597 = scmp.lt.s32.totalorder %s32, 1
        %s598 = scalar_select %p597, %s32, 1
        %s599 = smul.addr %s598, 8
        %s600 = scalar_lea.vmem %s1, %s599
        %p601 = pneg %p79
        %p602 = pneg %p76
        %p603 = pneg %p100
        %p604 = pneg %p97
        %p605 = pneg %p121
        %p606 = pneg %p118
        %p607 = pneg %p142
        %p608 = pneg %p139
        %p609 = pneg %p163
        %p610 = pneg %p160
        %p611 = pneg %p184
        %p612 = pneg %p181
        %p613 = pneg %p205
        %p614 = pneg %p202
        %p615 = pneg %p226
        %p616 = pneg %p223
        %p617 = pneg %p247
        %p618 = pneg %p244
        %p619 = pneg %p268
        %p620 = pneg %p265
        %p621 = pneg %p289
        %p622 = pneg %p286
        %p623 = pneg %p310
        %p624 = pneg %p307
        %p625 = pneg %p331
        %p626 = pneg %p328
        %p627 = pneg %p352
        %p628 = pneg %p349
        %p629 = pneg %p373
        %p630 = pneg %p370
        %p631 = pneg %p394
        %p632 = pneg %p391
        %p633 = pneg %p420
        %p634 = pneg %p417
        %p635 = scmp.lt.s32.totalorder %s32, 1
        %s636 = scalar_select %p635, %s32, 1
        %s637 = smul.addr %s636, 2
        %s638 = smul.addr %s637, 8
        %s639 = scalar_lea.vmem %s17, %s638
        %p640 = scmp.lt.s32.totalorder %s32, 1
        %s641 = scalar_select %p640, %s32, 1
        %s642 = smul.addr %s641, 2
        %s643 = smul.addr %s642, 8
        %s644 = scalar_lea.vmem %s0, %s643
        %p645 = scmp.lt.s32.totalorder %s32, 1
        %s646 = scalar_select %p645, %s32, 1
        %s647 = smul.addr %s646, 8
        %s648 = scalar_lea.vmem %s1, %s647
        %p649 = scmp.lt.s32.totalorder %s32, 1
        %s650 = scalar_select %p649, %s32, 1
        %s651 = smul.addr %s650, 2
        %s652 = smul.addr %s651, 8
        %s653 = scalar_lea.vmem %s17, %s652
        %v655 = vld [vmem:[%s644] sm:$0xff]
        %v656 = vld [vmem:[%s644 + $0x8] sm:$0x1]
        %v657 = vld [vmem:[%s648] sm:$0xff]
        %v658 = vpack.c.bf16 %v657, %v657
        %v659 = vld [vmem:[%s16] sm:$0xff]
        %v660 = vpack.c.bf16 %v656, %v655
        %v661 = vld [vmem:[%s2] sm:$0xff]
        %v662 = vld [vmem:[%s2 + $0x8] sm:$0xf]
        %v663 = vld [vmem:[%s2 + $0xc] sm:$0xff]
        %v664 = vld [vmem:[%s2 + $0x14] sm:$0xf]
        %v665 = vld [vmem:[%s2 + $0x18] sm:$0xff]
        %v666 = vld [vmem:[%s2 + $0x20] sm:$0xf]
        %v667 = vld [vmem:[%s2 + $0x24] sm:$0xff]
        %v668 = vld [vmem:[%s2 + $0x2c] sm:$0xf]
        %v669 = vld [vmem:[%s2 + $0x30] sm:$0xff]
        %v670 = vld [vmem:[%s2 + $0x38] sm:$0xf]
        %v671 = vld [vmem:[%s2 + $0x3c] sm:$0xff]
        %v672 = vld [vmem:[%s2 + $0x44] sm:$0xf]
        %v673 = vld [vmem:[%s2 + $0x48] sm:$0xff]
        %v674 = vld [vmem:[%s2 + $0x50] sm:$0xf]
        %v675 = vld [vmem:[%s2 + $0x54] sm:$0xff]
        %v676 = vld [vmem:[%s2 + $0x5c] sm:$0xf]
        %v677 = vld [vmem:[%s2 + $0x60] sm:$0xff]
        %v678 = vld [vmem:[%s2 + $0x68] sm:$0xf]
        %v679 = vld [vmem:[%s2 + $0x6c] sm:$0xff]
        %v680 = vld [vmem:[%s2 + $0x74] sm:$0xf]
        %v681 = vld [vmem:[%s2 + $0x78] sm:$0xff]
        %v682 = vld [vmem:[%s2 + $0x80] sm:$0xf]
        %v683 = vld [vmem:[%s2 + $0x84] sm:$0xff]
        %v684 = vld [vmem:[%s2 + $0x8c] sm:$0xf]
        %v685 = vld [vmem:[%s2 + $0x90] sm:$0xff]
        %v686 = vld [vmem:[%s2 + $0x98] sm:$0xf]
        %v687 = vld [vmem:[%s2 + $0x9c] sm:$0xff]
        %v688 = vld [vmem:[%s2 + $0xa4] sm:$0xf]
        %v689 = vld [vmem:[%s2 + $0xa8] sm:$0xff]
        %v690 = vld [vmem:[%s2 + $0xb0] sm:$0xf]
        %v691 = vld [vmem:[%s2 + $0xb4] sm:$0xff]
        %v692 = vld [vmem:[%s2 + $0xbc] sm:$0xf]
        %v693 = vld [vmem:[%s3] sm:$0x7]
        %v695 = vlaneseq
        %v696 = vshrl.u32 %v695, 7
        %v697 = vsub.s32 0, %v696
        %v698 = vrot.slane %v693, %v697
        %v699 = vlaneseq
        %v700 = vshrl.u32 %v699, 7
        %v701 = vsub.s32 1, %v700
        %v702 = vrot.slane %v693, %v701
        %v703 = vlaneseq
        %v704 = vshrl.u32 %v703, 7
        %v705 = vsub.s32 2, %v704
        %v706 = vrot.slane %v693, %v705
        %v742 = vunpack.c.l.b16 %v661
        %v743 = vunpack.c.h.b16 %v661
        %v744 = vunpack.c.l.b16 %v662
        %v745 = vunpack.c.l.b16 %v663
        %v746 = vunpack.c.h.b16 %v663
        %v747 = vunpack.c.l.b16 %v664
        %v748 = vunpack.c.l.b16 %v665
        %v749 = vunpack.c.h.b16 %v665
        %v750 = vunpack.c.l.b16 %v666
        %v751 = vunpack.c.l.b16 %v667
        %v752 = vunpack.c.h.b16 %v667
        %v753 = vunpack.c.l.b16 %v668
        %v754 = vunpack.c.l.b16 %v669
        %v755 = vunpack.c.h.b16 %v669
        %v756 = vunpack.c.l.b16 %v670
        %v757 = vunpack.c.l.b16 %v671
        %v758 = vunpack.c.h.b16 %v671
        %v759 = vunpack.c.l.b16 %v672
        %v760 = vunpack.c.l.b16 %v673
        %v761 = vunpack.c.h.b16 %v673
        %v762 = vunpack.c.l.b16 %v674
        %v763 = vunpack.c.l.b16 %v675
        %v764 = vunpack.c.h.b16 %v675
        %v765 = vunpack.c.l.b16 %v676
        %v766 = vunpack.c.l.b16 %v677
        %v767 = vunpack.c.h.b16 %v677
        %v768 = vunpack.c.l.b16 %v678
        %v769 = vunpack.c.l.b16 %v679
        %v770 = vunpack.c.h.b16 %v679
        %v771 = vunpack.c.l.b16 %v680
        %v772 = vunpack.c.l.b16 %v681
        %v773 = vunpack.c.h.b16 %v681
        %v774 = vunpack.c.l.b16 %v682
        %v775 = vunpack.c.l.b16 %v683
        %v776 = vunpack.c.h.b16 %v683
        %v777 = vunpack.c.l.b16 %v684
        %v778 = vunpack.c.l.b16 %v685
        %v779 = vunpack.c.h.b16 %v685
        %v780 = vunpack.c.l.b16 %v686
        %v781 = vunpack.c.l.b16 %v687
        %v782 = vunpack.c.h.b16 %v687
        %v783 = vunpack.c.l.b16 %v688
        %v784 = vunpack.c.l.b16 %v689
        %v785 = vunpack.c.h.b16 %v689
        %v786 = vunpack.c.l.b16 %v690
        %v787 = vunpack.c.l.b16 %v691
        %v788 = vunpack.c.h.b16 %v691
        %v789 = vunpack.c.l.b16 %v692
        %v790 = vpack.c.b16 %v745, %v742
        %v791 = vpack.c.b16 %v746, %v743
        %v792 = vpack.c.b16 %v747, %v744
        %v793 = vpack.c.b16 %v751, %v748
        %v794 = vpack.c.b16 %v752, %v749
        %v795 = vpack.c.b16 %v753, %v750
        %v796 = vpack.c.b16 %v757, %v754
        %v797 = vpack.c.b16 %v758, %v755
        %v798 = vpack.c.b16 %v759, %v756
        %v799 = vpack.c.b16 %v763, %v760
        %v800 = vpack.c.b16 %v764, %v761
        %v801 = vpack.c.b16 %v765, %v762
        %v802 = vpack.c.b16 %v769, %v766
        %v803 = vpack.c.b16 %v770, %v767
        %v804 = vpack.c.b16 %v771, %v768
        %v805 = vpack.c.b16 %v775, %v772
        %v806 = vpack.c.b16 %v776, %v773
        %v807 = vpack.c.b16 %v777, %v774
        %v808 = vpack.c.b16 %v781, %v778
        %v809 = vpack.c.b16 %v782, %v779
        %v810 = vpack.c.b16 %v783, %v780
        %v811 = vpack.c.b16 %v787, %v784
        %v812 = vpack.c.b16 %v788, %v785
        %v813 = vpack.c.b16 %v789, %v786
        %838 = vmatprep.subr.bf16.mxu0 %v812
        %839 = vmatpush1.bf16.msra.mxu0 %v811
        %840 = vmatprep.subr.bf16.mxu0 %v809
        %841 = vmatpush1.bf16.msra.mxu0 %v808
        %842 = vmatprep.subr.bf16.mxu0 %v806
        %843 = vmatpush1.bf16.msra.mxu0 %v805
        %844 = vmatprep.subr.bf16.mxu0 %v803
        %845 = vmatpush1.bf16.msra.mxu0 %v802
        %846 = vmatprep.subr.bf16.mxu0 %v800
        %847 = vmatpush1.bf16.msra.mxu0 %v799
        %848 = vmatprep.subr.bf16.mxu0 %v797
        %849 = vmatpush1.bf16.msra.mxu0 %v796
        %850 = vmatprep.subr.bf16.mxu0 %v794
        %851 = vmatpush1.bf16.msra.mxu0 %v793
        %852 = vmatprep.subr.bf16.mxu0 %v791
        %853 = vmatpush1.bf16.msra.mxu0 %v790
        %854 = vmatprep.subr.bf16.mxu0 0
        %855 = vmatpush2.bf16.msra.mxu0 0
        %856 = vmatprep.subr.bf16.mxu0 0
        %857 = vmatpush2.bf16.msra.mxu0 0
        %858 = vmatprep.subr.bf16.mxu0 0
        %859 = vmatpush2.bf16.msra.mxu0 0
        %860 = vmatprep.subr.bf16.mxu0 0
        %861 = vmatpush2.bf16.msra.mxu0 0
        %862 = vmatprep.subr.bf16.mxu0 0
        %863 = vmatpush2.bf16.msra.mxu0 0
        %864 = vmatprep.subr.bf16.mxu0 0
        %865 = vmatpush2.bf16.msra.mxu0 0
        %866 = vmatprep.subr.bf16.mxu0 0
        %867 = vmatpush2.bf16.msra.mxu0 0
        %868 = vmatprep.subr.bf16.mxu0 0
        %869 = vmatpush2.bf16.msra.mxu0 0
        %870 = vmatprep.mubr.bf16.mxu0 0
        %871 = vmatmul.mubr.bf16.gmra.mxu0 %v660
        %v872 = vpop.f32.mrf.mxu0
        %v873 = vadd.f32 %v698, %v872
        %v874 = vpop.f32.mrf.mxu0
        %v875 = vadd.f32 %v702, %v874
        %v876 = vpop.f32.mrf.mxu0
        %v877 = vadd.f32 %v698, %v876
        %v878 = vpop.f32.mrf.mxu0
        %v879 = vadd.f32 %v702, %v878
        %880 = vdwg.mxu0
        %881 = vmatprep.subr.bf16.mxu0 0
        %882 = vmatpush1.bf16.msra.mxu0 %v813
        %883 = vmatprep.subr.bf16.mxu0 0
        %884 = vmatpush1.bf16.msra.mxu0 %v810
        %885 = vmatprep.subr.bf16.mxu0 0
        %886 = vmatpush1.bf16.msra.mxu0 %v807
        %887 = vmatprep.subr.bf16.mxu0 0
        %888 = vmatpush1.bf16.msra.mxu0 %v804
        %889 = vmatprep.subr.bf16.mxu0 0
        %890 = vmatpush1.bf16.msra.mxu0 %v801
        %891 = vmatprep.subr.bf16.mxu0 0
        %892 = vmatpush1.bf16.msra.mxu0 %v798
        %893 = vmatprep.subr.bf16.mxu0 0
        %894 = vmatpush1.bf16.msra.mxu0 %v795
        %895 = vmatprep.subr.bf16.mxu0 0
        %896 = vmatpush1.bf16.msra.mxu0 %v792
        %897 = vmatprep.subr.bf16.mxu0 0
        %898 = vmatpush2.bf16.msra.mxu0 0
        %899 = vmatprep.subr.bf16.mxu0 0
        %900 = vmatpush2.bf16.msra.mxu0 0
        %901 = vmatprep.subr.bf16.mxu0 0
        %902 = vmatpush2.bf16.msra.mxu0 0
        %903 = vmatprep.subr.bf16.mxu0 0
        %904 = vmatpush2.bf16.msra.mxu0 0
        %905 = vmatprep.subr.bf16.mxu0 0
        %906 = vmatpush2.bf16.msra.mxu0 0
        %907 = vmatprep.subr.bf16.mxu0 0
        %908 = vmatpush2.bf16.msra.mxu0 0
        %909 = vmatprep.subr.bf16.mxu0 0
        %910 = vmatpush2.bf16.msra.mxu0 0
        %911 = vmatprep.subr.bf16.mxu0 0
        %912 = vmatpush2.bf16.msra.mxu0 0
        %913 = vmatprep.mubr.bf16.mxu0 0
        %914 = vmatmul.mubr.bf16.gmra.mxu0 %v660
        %v915 = vpop.f32.mrf.mxu0
        %v916 = vadd.f32 %v706, %v915
        %v917 = vpop.f32.mrf.mxu0
        %v918 = vpop.f32.mrf.mxu0
        %v919 = vadd.f32 %v706, %v918
        %v920 = vpop.f32.mrf.mxu0
        %921 = vdwg.mxu0
        %v922 = vld [vmem:[#allocation2] sm:$0xff]
        %v923 = vld [vmem:[#allocation2 + $0x8] sm:$0xff]
        %v924 = vld [vmem:[#allocation2 + $0x10] sm:$0xff]
        %v925 = vld [vmem:[#allocation2 + $0x18] sm:$0xff]
        %v926 = vld [vmem:[#allocation2 + $0x20] sm:$0xff]
        %v927 = vld [vmem:[#allocation2 + $0x28] sm:$0xff]
        %v928 = vld [vmem:[#allocation2 + $0x30] sm:$0xff]
        %v929 = vld [vmem:[#allocation2 + $0x38] sm:$0xff]
        %v930 = vld [vmem:[#allocation2 + $0x40] sm:$0xff]
        %v931 = vld [vmem:[#allocation2 + $0x48] sm:$0xff]
        %v932 = vld [vmem:[#allocation2 + $0x50] sm:$0xff]
        %v933 = vld [vmem:[#allocation2 + $0x58] sm:$0xff]
        %v934 = vld [vmem:[#allocation2 + $0x60] sm:$0xff]
        %v935 = vld [vmem:[#allocation2 + $0x68] sm:$0xff]
        %v936 = vld [vmem:[#allocation2 + $0x70] sm:$0xff]
        %v937 = vld [vmem:[#allocation2 + $0x78] sm:$0xff]
        %v938 = vld [vmem:[%s5] sm:$0x1]
        %vm939 = vcmask 261120
        %v941 = vsel %vm939, %v873, 0
        %v944 = vsel %vm939, %v877, 0
        %v947 = vsel %vm939, %v875, 0
        %v950 = vsel %vm939, %v879, 0
        %952 = vmatprep.subr.mxu0 0.0
        %953 = vmatpush1.xpose.msra.mxu0 0.0
        %954 = vmatprep.subr.mxu0 0.0
        %955 = vmatpush1.xpose.msra.mxu0 0.0
        %956 = vmatprep.subr.mxu0 0.0
        %957 = vmatpush1.xpose.msra.mxu0 0.0
        %958 = vmatprep.subr.mxu0 0.0
        %959 = vmatpush1.xpose.msra.mxu0 0.0
        %960 = vmatprep.subr.mxu0 0.0
        %961 = vmatpush1.xpose.msra.mxu0 0.0
        %962 = vmatprep.subr.mxu0 0.0
        %963 = vmatpush1.xpose.msra.mxu0 0.0
        %964 = vmatprep.subr.mxu0 0.0
        %965 = vmatpush1.xpose.msra.mxu0 0.0
        %966 = vmatprep.subr.mxu0 0.0
        %967 = vmatpush1.xpose.msra.mxu0 0.0
        %968 = vmatprep.subr.mxu0 0.0
        %969 = vmatpush1.xpose.msra.mxu0 0.0
        %970 = vmatprep.subr.mxu0 0.0
        %971 = vmatpush1.xpose.msra.mxu0 0.0
        %972 = vmatprep.subr.mxu0 0.0
        %973 = vmatpush1.xpose.msra.mxu0 0.0
        %974 = vmatprep.subr.mxu0 0.0
        %975 = vmatpush1.xpose.msra.mxu0 0.0
        %976 = vmatprep.subr.mxu0 0.0
        %977 = vmatpush1.xpose.msra.mxu0 0.0
        %978 = vmatprep.subr.mxu0 0.0
        %979 = vmatpush1.xpose.msra.mxu0 0.0
        %980 = vmatprep.subr.mxu0 0.0
        %981 = vmatpush1.xpose.msra.mxu0 %v950
        %982 = vmatprep.subr.mxu0 0.0
        %983 = vmatpush1.xpose.msra.mxu0 %v947
        %984 = vmatprep.subr.mxu0 0.0
        %985 = vmatpush2.xpose.msra.mxu0 0.0
        %986 = vmatprep.subr.mxu0 0.0
        %987 = vmatpush2.xpose.msra.mxu0 0.0
        %988 = vmatprep.subr.mxu0 0.0
        %989 = vmatpush2.xpose.msra.mxu0 0.0
        %990 = vmatprep.subr.mxu0 0.0
        %991 = vmatpush2.xpose.msra.mxu0 0.0
        %992 = vmatprep.subr.mxu0 0.0
        %993 = vmatpush2.xpose.msra.mxu0 0.0
        %994 = vmatprep.subr.mxu0 0.0
        %995 = vmatpush2.xpose.msra.mxu0 0.0
        %996 = vmatprep.subr.mxu0 0.0
        %997 = vmatpush2.xpose.msra.mxu0 0.0
        %998 = vmatprep.subr.mxu0 0.0
        %999 = vmatpush2.xpose.msra.mxu0 0.0
        %1000 = vmatprep.subr.mxu0 0.0
        %1001 = vmatpush2.xpose.msra.mxu0 0.0
        %1002 = vmatprep.subr.mxu0 0.0
        %1003 = vmatpush2.xpose.msra.mxu0 0.0
        %1004 = vmatprep.subr.mxu0 0.0
        %1005 = vmatpush2.xpose.msra.mxu0 0.0
        %1006 = vmatprep.subr.mxu0 0.0
        %1007 = vmatpush2.xpose.msra.mxu0 0.0
        %1008 = vmatprep.subr.mxu0 0.0
        %1009 = vmatpush2.xpose.msra.mxu0 0.0
        %1010 = vmatprep.subr.mxu0 0.0
        %1011 = vmatpush2.xpose.msra.mxu0 0.0
        %1012 = vmatprep.subr.mxu0 0.0
        %1013 = vmatpush2.xpose.msra.mxu0 0.0
        %1014 = vmatprep.subr.mxu0 0.0
        %1015 = vmatpush2.xpose.msra.mxu0 0.0
        %1016 = vmatprep.mubr.f32.mxu0 0.0
        %1017 = vmatmul.mubr.f32.gmra.mxu0 %v941
        %v1018 = vpop.f32.mrf.mxu0
        %v1019 = vadd.f32 0.0, %v1018
        %v1020 = vpop.f32.mrf.mxu0
        %1021 = vmatprep.mubr.f32.mxu0 0.0
        %1022 = vmatmul.mubr.f32.gmra.mxu0 %v944
        %v1023 = vpop.f32.mrf.mxu0
        %v1024 = vadd.f32 0.0, %v1023
        %v1025 = vpop.f32.mrf.mxu0
        %1026 = vdwg.mxu0
        %v1027 = vmul.f32 %v1019, 0.17677669
        %v1028 = vmul.f32 %v1024, 0.17677669
        %vm1029 = vcmask 72704
        %v1030 = vsel %vm1029, %v1027, -inf
        %1031 = vmax.xlane.f32.xlu0 %v1030
        %v1032 = vpop.xlane.xlu0 %1031
        %vm1033 = vcmask 65536
        %v1034 = vsel %vm1033, %v1028, -inf
        %1035 = vmax.xlane.f32.xlu0 %v1034
        %v1036 = vpop.xlane.xlu0 %1035
        %v1037 = vsub.f32 %v1027, %v1032
        %v1038 = vsub.f32 %v1028, %v1036
        %v1039 = vmul.f32 %v1037, 1.442695
        %v1040 = vpow.pop %v1039
        %v1041 = vmul.f32 %v1038, 1.442695
        %v1042 = vpow.pop %v1041
        %v1043 = vsel %vm1029, %v1040, 0.0
        %1044 = vadd.xlane.f32.xlu0 %v1043
        %v1045 = vpop.xlane.xlu0 %1044
        %v1046 = vsel %vm1033, %v1042, 0.0
        %1047 = vadd.xlane.f32.xlu0 %v1046
        %v1048 = vpop.xlane.xlu0 %1047
        %v1049 = vrcp.pop %v1045
        %v1050 = vmul.f32 %v1040, %v1049
        %v1051 = vrcp.pop %v1048
        %v1052 = vmul.f32 %v1042, %v1051
        %v1054 = vsel %vm1029, %v1050, 0
        %v1057 = vsel %vm1029, %v1052, 0
        %vm1059 = vcmask 1040384
        %v1061 = vsel %vm1059, %v919, 0
        %1063 = vmatprep.subr.mxu0 0.0
        %1064 = vmatpush1.msra.mxu0 0.0
        %1065 = vmatprep.subr.mxu0 0.0
        %1066 = vmatpush1.msra.mxu0 0.0
        %1067 = vmatprep.subr.mxu0 0.0
        %1068 = vmatpush1.msra.mxu0 0.0
        %1069 = vmatprep.subr.mxu0 0.0
        %1070 = vmatpush1.msra.mxu0 0.0
        %1071 = vmatprep.subr.mxu0 0.0
        %1072 = vmatpush1.msra.mxu0 0.0
        %1073 = vmatprep.subr.mxu0 0.0
        %1074 = vmatpush1.msra.mxu0 0.0
        %1075 = vmatprep.subr.mxu0 0.0
        %1076 = vmatpush1.msra.mxu0 0.0
        %1077 = vmatprep.subr.mxu0 0.0
        %1078 = vmatpush1.msra.mxu0 0.0
        %1079 = vmatprep.subr.mxu0 0.0
        %1080 = vmatpush1.msra.mxu0 0.0
        %1081 = vmatprep.subr.mxu0 0.0
        %1082 = vmatpush1.msra.mxu0 0.0
        %1083 = vmatprep.subr.mxu0 0.0
        %1084 = vmatpush1.msra.mxu0 0.0
        %1085 = vmatprep.subr.mxu0 0.0
        %1086 = vmatpush1.msra.mxu0 0.0
        %1087 = vmatprep.subr.mxu0 0.0
        %1088 = vmatpush1.msra.mxu0 0.0
        %1089 = vmatprep.subr.mxu0 0.0
        %1090 = vmatpush1.msra.mxu0 0.0
        %1091 = vmatprep.subr.mxu0 0.0
        %1092 = vmatpush1.msra.mxu0 %v1061
        %1093 = vmatprep.subr.mxu0 0.0
        %1094 = vmatpush1.msra.mxu0 %v916
        %1095 = vmatprep.subr.mxu0 0.0
        %1096 = vmatpush2.msra.mxu0 0.0
        %1097 = vmatprep.subr.mxu0 0.0
        %1098 = vmatpush2.msra.mxu0 0.0
        %1099 = vmatprep.subr.mxu0 0.0
        %1100 = vmatpush2.msra.mxu0 0.0
        %1101 = vmatprep.subr.mxu0 0.0
        %1102 = vmatpush2.msra.mxu0 0.0
        %1103 = vmatprep.subr.mxu0 0.0
        %1104 = vmatpush2.msra.mxu0 0.0
        %1105 = vmatprep.subr.mxu0 0.0
        %1106 = vmatpush2.msra.mxu0 0.0
        %1107 = vmatprep.subr.mxu0 0.0
        %1108 = vmatpush2.msra.mxu0 0.0
        %1109 = vmatprep.subr.mxu0 0.0
        %1110 = vmatpush2.msra.mxu0 0.0
        %1111 = vmatprep.subr.mxu0 0.0
        %1112 = vmatpush2.msra.mxu0 0.0
        %1113 = vmatprep.subr.mxu0 0.0
        %1114 = vmatpush2.msra.mxu0 0.0
        %1115 = vmatprep.subr.mxu0 0.0
        %1116 = vmatpush2.msra.mxu0 0.0
        %1117 = vmatprep.subr.mxu0 0.0
        %1118 = vmatpush2.msra.mxu0 0.0
        %1119 = vmatprep.subr.mxu0 0.0
        %1120 = vmatpush2.msra.mxu0 0.0
        %1121 = vmatprep.subr.mxu0 0.0
        %1122 = vmatpush2.msra.mxu0 0.0
        %1123 = vmatprep.subr.mxu0 0.0
        %1124 = vmatpush2.msra.mxu0 0.0
        %1125 = vmatprep.subr.mxu0 0.0
        %1126 = vmatpush2.msra.mxu0 0.0
        %1127 = vmatprep.mubr.f32.mxu0 0.0
        %1128 = vmatmul.mubr.f32.gmra.mxu0 %v1054
        %v1129 = vpop.f32.mrf.mxu0
        %v1130 = vadd.f32 0.0, %v1129
        %v1131 = vpop.f32.mrf.mxu0
        %1132 = vmatprep.mubr.f32.mxu0 0.0
        %1133 = vmatmul.mubr.f32.gmra.mxu0 %v1057
        %v1134 = vpop.f32.mrf.mxu0
        %v1135 = vadd.f32 0.0, %v1134
        %v1136 = vpop.f32.mrf.mxu0
        %1137 = vdwg.mxu0
        %v1139 = vsel %vm939, %v1130, 0
        %v1142 = vsel %vm939, %v1135, 0
        %1144 = vmatprep.subr.mxu0 0.0
        %1145 = vmatpush1.msra.mxu0 0.0
        %1146 = vmatprep.subr.mxu0 0.0
        %1147 = vmatpush1.msra.mxu0 0.0
        %1148 = vmatprep.subr.mxu0 0.0
        %1149 = vmatpush1.msra.mxu0 0.0
        %1150 = vmatprep.subr.mxu0 0.0
        %1151 = vmatpush1.msra.mxu0 0.0
        %1152 = vmatprep.subr.mxu0 0.0
        %1153 = vmatpush1.msra.mxu0 0.0
        %1154 = vmatprep.subr.mxu0 0.0
        %1155 = vmatpush1.msra.mxu0 0.0
        %1156 = vmatprep.subr.mxu0 0.0
        %1157 = vmatpush1.msra.mxu0 0.0
        %1158 = vmatprep.subr.mxu0 0.0
        %1159 = vmatpush1.msra.mxu0 0.0
        %1160 = vmatprep.subr.mxu0 0.0
        %1161 = vmatpush1.msra.mxu0 0.0
        %1162 = vmatprep.subr.mxu0 0.0
        %1163 = vmatpush1.msra.mxu0 0.0
        %1164 = vmatprep.subr.mxu0 0.0
        %1165 = vmatpush1.msra.mxu0 0.0
        %1166 = vmatprep.subr.mxu0 0.0
        %1167 = vmatpush1.msra.mxu0 0.0
        %1168 = vmatprep.subr.mxu0 0.0
        %1169 = vmatpush1.msra.mxu0 %v925
        %1170 = vmatprep.subr.mxu0 0.0
        %1171 = vmatpush1.msra.mxu0 %v924
        %1172 = vmatprep.subr.mxu0 0.0
        %1173 = vmatpush1.msra.mxu0 %v923
        %1174 = vmatprep.subr.mxu0 0.0
        %1175 = vmatpush1.msra.mxu0 %v922
        %1176 = vmatprep.subr.mxu0 0.0
        %1177 = vmatpush2.msra.mxu0 0.0
        %1178 = vmatprep.subr.mxu0 0.0
        %1179 = vmatpush2.msra.mxu0 0.0
        %1180 = vmatprep.subr.mxu0 0.0
        %1181 = vmatpush2.msra.mxu0 0.0
        %1182 = vmatprep.subr.mxu0 0.0
        %1183 = vmatpush2.msra.mxu0 0.0
        %1184 = vmatprep.subr.mxu0 0.0
        %1185 = vmatpush2.msra.mxu0 0.0
        %1186 = vmatprep.subr.mxu0 0.0
        %1187 = vmatpush2.msra.mxu0 0.0
        %1188 = vmatprep.subr.mxu0 0.0
        %1189 = vmatpush2.msra.mxu0 0.0
        %1190 = vmatprep.subr.mxu0 0.0
        %1191 = vmatpush2.msra.mxu0 0.0
        %1192 = vmatprep.subr.mxu0 0.0
        %1193 = vmatpush2.msra.mxu0 0.0
        %1194 = vmatprep.subr.mxu0 0.0
        %1195 = vmatpush2.msra.mxu0 0.0
        %1196 = vmatprep.subr.mxu0 0.0
        %1197 = vmatpush2.msra.mxu0 0.0
        %1198 = vmatprep.subr.mxu0 0.0
        %1199 = vmatpush2.msra.mxu0 0.0
        %1200 = vmatprep.subr.mxu0 0.0
        %1201 = vmatpush2.msra.mxu0 0.0
        %1202 = vmatprep.subr.mxu0 0.0
        %1203 = vmatpush2.msra.mxu0 0.0
        %1204 = vmatprep.subr.mxu0 0.0
        %1205 = vmatpush2.msra.mxu0 0.0
        %1206 = vmatprep.subr.mxu0 0.0
        %1207 = vmatpush2.msra.mxu0 0.0
        %1208 = vmatprep.mubr.f32.mxu0 0.0
        %1209 = vmatmul.mubr.f32.gmra.mxu0 %v1139
        %v1210 = vpop.f32.mrf.mxu0
        %v1211 = vadd.f32 0.0, %v1210
        %v1212 = vpop.f32.mrf.mxu0
        %1213 = vmatprep.mubr.f32.mxu0 0.0
        %1214 = vmatmul.mubr.f32.gmra.mxu0 %v1142
        %v1215 = vpop.f32.mrf.mxu0
        %v1216 = vadd.f32 0.0, %v1215
        %v1217 = vpop.f32.mrf.mxu0
        %1218 = vdwg.mxu0
        %v1220 = vlaneseq
        %v1221 = vshrl.u32 %v1220, 7
        %v1222 = vsub.s32 0, %v1221
        %v1223 = vrot.slane %v938, %v1222
        %v1225 = vadd.f32 %v1223, %v1211
        %v1226 = vadd.f32 %v1223, %v1216
        %1227 = vrot.lane.b32.xlu0 %v873, 96
        %v1228 = vpop.permute.xlu0 %1227
        %1229 = vrot.lane.b32.xlu0 %v877, 96
        %v1230 = vpop.permute.xlu0 %1229
        %1231 = vrot.lane.b32.xlu0 %v875, 96
        %v1232 = vpop.permute.xlu0 %1231
        %1233 = vrot.lane.b32.xlu0 %v879, 96
        %v1234 = vpop.permute.xlu0 %1233
        %v1235 = vsel %vm939, %v1228, 0
        %v1237 = vsel %vm939, %v1230, 0
        %v1239 = vsel %vm939, %v1232, 0
        %v1241 = vsel %vm939, %v1234, 0
        %1243 = vmatprep.subr.mxu0 0.0
        %1244 = vmatpush1.xpose.msra.mxu0 0.0
        %1245 = vmatprep.subr.mxu0 0.0
        %1246 = vmatpush1.xpose.msra.mxu0 0.0
        %1247 = vmatprep.subr.mxu0 0.0
        %1248 = vmatpush1.xpose.msra.mxu0 0.0
        %1249 = vmatprep.subr.mxu0 0.0
        %1250 = vmatpush1.xpose.msra.mxu0 0.0
        %1251 = vmatprep.subr.mxu0 0.0
        %1252 = vmatpush1.xpose.msra.mxu0 0.0
        %1253 = vmatprep.subr.mxu0 0.0
        %1254 = vmatpush1.xpose.msra.mxu0 0.0
        %1255 = vmatprep.subr.mxu0 0.0
        %1256 = vmatpush1.xpose.msra.mxu0 0.0
        %1257 = vmatprep.subr.mxu0 0.0
        %1258 = vmatpush1.xpose.msra.mxu0 0.0
        %1259 = vmatprep.subr.mxu0 0.0
        %1260 = vmatpush1.xpose.msra.mxu0 0.0
        %1261 = vmatprep.subr.mxu0 0.0
        %1262 = vmatpush1.xpose.msra.mxu0 0.0
        %1263 = vmatprep.subr.mxu0 0.0
        %1264 = vmatpush1.xpose.msra.mxu0 0.0
        %1265 = vmatprep.subr.mxu0 0.0
        %1266 = vmatpush1.xpose.msra.mxu0 0.0
        %1267 = vmatprep.subr.mxu0 0.0
        %1268 = vmatpush1.xpose.msra.mxu0 0.0
        %1269 = vmatprep.subr.mxu0 0.0
        %1270 = vmatpush1.xpose.msra.mxu0 0.0
        %1271 = vmatprep.subr.mxu0 0.0
        %1272 = vmatpush1.xpose.msra.mxu0 %v1241
        %1273 = vmatprep.subr.mxu0 0.0
        %1274 = vmatpush1.xpose.msra.mxu0 %v1239
        %1275 = vmatprep.subr.mxu0 0.0
        %1276 = vmatpush2.xpose.msra.mxu0 0.0
        %1277 = vmatprep.subr.mxu0 0.0
        %1278 = vmatpush2.xpose.msra.mxu0 0.0
        %1279 = vmatprep.subr.mxu0 0.0
        %1280 = vmatpush2.xpose.msra.mxu0 0.0
        %1281 = vmatprep.subr.mxu0 0.0
        %1282 = vmatpush2.xpose.msra.mxu0 0.0
        %1283 = vmatprep.subr.mxu0 0.0
        %1284 = vmatpush2.xpose.msra.mxu0 0.0
        %1285 = vmatprep.subr.mxu0 0.0
        %1286 = vmatpush2.xpose.msra.mxu0 0.0
        %1287 = vmatprep.subr.mxu0 0.0
        %1288 = vmatpush2.xpose.msra.mxu0 0.0
        %1289 = vmatprep.subr.mxu0 0.0
        %1290 = vmatpush2.xpose.msra.mxu0 0.0
        %1291 = vmatprep.subr.mxu0 0.0
        %1292 = vmatpush2.xpose.msra.mxu0 0.0
        %1293 = vmatprep.subr.mxu0 0.0
        %1294 = vmatpush2.xpose.msra.mxu0 0.0
        %1295 = vmatprep.subr.mxu0 0.0
        %1296 = vmatpush2.xpose.msra.mxu0 0.0
        %1297 = vmatprep.subr.mxu0 0.0
        %1298 = vmatpush2.xpose.msra.mxu0 0.0
        %1299 = vmatprep.subr.mxu0 0.0
        %1300 = vmatpush2.xpose.msra.mxu0 0.0
        %1301 = vmatprep.subr.mxu0 0.0
        %1302 = vmatpush2.xpose.msra.mxu0 0.0
        %1303 = vmatprep.subr.mxu0 0.0
        %1304 = vmatpush2.xpose.msra.mxu0 0.0
        %1305 = vmatprep.subr.mxu0 0.0
        %1306 = vmatpush2.xpose.msra.mxu0 0.0
        %1307 = vmatprep.mubr.f32.mxu0 0.0
        %1308 = vmatmul.mubr.f32.gmra.mxu0 %v1235
        %v1309 = vpop.f32.mrf.mxu0
        %v1310 = vadd.f32 0.0, %v1309
        %v1311 = vpop.f32.mrf.mxu0
        %1312 = vmatprep.mubr.f32.mxu0 0.0
        %1313 = vmatmul.mubr.f32.gmra.mxu0 %v1237
        %v1314 = vpop.f32.mrf.mxu0
        %v1315 = vadd.f32 0.0, %v1314
        %v1316 = vpop.f32.mrf.mxu0
        %1317 = vdwg.mxu0
        %v1318 = vmul.f32 %v1310, 0.17677669
        %v1319 = vmul.f32 %v1315, 0.17677669
        %v1320 = vsel %vm1029, %v1318, -inf
        %1321 = vmax.xlane.f32.xlu0 %v1320
        %v1322 = vpop.xlane.xlu0 %1321
        %v1323 = vsel %vm1033, %v1319, -inf
        %1324 = vmax.xlane.f32.xlu0 %v1323
        %v1325 = vpop.xlane.xlu0 %1324
        %v1326 = vsub.f32 %v1318, %v1322
        %v1327 = vsub.f32 %v1319, %v1325
        %v1328 = vmul.f32 %v1326, 1.442695
        %v1329 = vpow.pop %v1328
        %v1330 = vmul.f32 %v1327, 1.442695
        %v1331 = vpow.pop %v1330
        %v1332 = vsel %vm1029, %v1329, 0.0
        %1333 = vadd.xlane.f32.xlu0 %v1332
        %v1334 = vpop.xlane.xlu0 %1333
        %v1335 = vsel %vm1033, %v1331, 0.0
        %1336 = vadd.xlane.f32.xlu0 %v1335
        %v1337 = vpop.xlane.xlu0 %1336
        %v1338 = vrcp.pop %v1334
        %v1339 = vmul.f32 %v1329, %v1338
        %v1340 = vrcp.pop %v1337
        %v1341 = vmul.f32 %v1331, %v1340
        %1343 = vrot.lane.b32.xlu0 %v916, 96
        %v1344 = vpop.permute.xlu0 %1343
        %1345 = vrot.lane.b32.xlu0 %v919, 96
        %v1346 = vpop.permute.xlu0 %1345
        %v1349 = vsel %vm1029, %v1339, 0
        %v1352 = vsel %vm1029, %v1341, 0
        %v1354 = vsel %vm1059, %v1346, 0
        %1356 = vmatprep.subr.mxu0 0.0
        %1357 = vmatpush1.msra.mxu0 0.0
        %1358 = vmatprep.subr.mxu0 0.0
        %1359 = vmatpush1.msra.mxu0 0.0
        %1360 = vmatprep.subr.mxu0 0.0
        %1361 = vmatpush1.msra.mxu0 0.0
        %1362 = vmatprep.subr.mxu0 0.0
        %1363 = vmatpush1.msra.mxu0 0.0
        %1364 = vmatprep.subr.mxu0 0.0
        %1365 = vmatpush1.msra.mxu0 0.0
        %1366 = vmatprep.subr.mxu0 0.0
        %1367 = vmatpush1.msra.mxu0 0.0
        %1368 = vmatprep.subr.mxu0 0.0
        %1369 = vmatpush1.msra.mxu0 0.0
        %1370 = vmatprep.subr.mxu0 0.0
        %1371 = vmatpush1.msra.mxu0 0.0
        %1372 = vmatprep.subr.mxu0 0.0
        %1373 = vmatpush1.msra.mxu0 0.0
        %1374 = vmatprep.subr.mxu0 0.0
        %1375 = vmatpush1.msra.mxu0 0.0
        %1376 = vmatprep.subr.mxu0 0.0
        %1377 = vmatpush1.msra.mxu0 0.0
        %1378 = vmatprep.subr.mxu0 0.0
        %1379 = vmatpush1.msra.mxu0 0.0
        %1380 = vmatprep.subr.mxu0 0.0
        %1381 = vmatpush1.msra.mxu0 0.0
        %1382 = vmatprep.subr.mxu0 0.0
        %1383 = vmatpush1.msra.mxu0 0.0
        %1384 = vmatprep.subr.mxu0 0.0
        %1385 = vmatpush1.msra.mxu0 %v1354
        %1386 = vmatprep.subr.mxu0 0.0
        %1387 = vmatpush1.msra.mxu0 %v1344
        %1388 = vmatprep.subr.mxu0 0.0
        %1389 = vmatpush2.msra.mxu0 0.0
        %1390 = vmatprep.subr.mxu0 0.0
        %1391 = vmatpush2.msra.mxu0 0.0
        %1392 = vmatprep.subr.mxu0 0.0
        %1393 = vmatpush2.msra.mxu0 0.0
        %1394 = vmatprep.subr.mxu0 0.0
        %1395 = vmatpush2.msra.mxu0 0.0
        %1396 = vmatprep.subr.mxu0 0.0
        %1397 = vmatpush2.msra.mxu0 0.0
        %1398 = vmatprep.subr.mxu0 0.0
        %1399 = vmatpush2.msra.mxu0 0.0
        %1400 = vmatprep.subr.mxu0 0.0
        %1401 = vmatpush2.msra.mxu0 0.0
        %1402 = vmatprep.subr.mxu0 0.0
        %1403 = vmatpush2.msra.mxu0 0.0
        %1404 = vmatprep.subr.mxu0 0.0
        %1405 = vmatpush2.msra.mxu0 0.0
        %1406 = vmatprep.subr.mxu0 0.0
        %1407 = vmatpush2.msra.mxu0 0.0
        %1408 = vmatprep.subr.mxu0 0.0
        %1409 = vmatpush2.msra.mxu0 0.0
        %1410 = vmatprep.subr.mxu0 0.0
        %1411 = vmatpush2.msra.mxu0 0.0
        %1412 = vmatprep.subr.mxu0 0.0
        %1413 = vmatpush2.msra.mxu0 0.0
        %1414 = vmatprep.subr.mxu0 0.0
        %1415 = vmatpush2.msra.mxu0 0.0
        %1416 = vmatprep.subr.mxu0 0.0
        %1417 = vmatpush2.msra.mxu0 0.0
        %1418 = vmatprep.subr.mxu0 0.0
        %1419 = vmatpush2.msra.mxu0 0.0
        %1420 = vmatprep.mubr.f32.mxu0 0.0
        %1421 = vmatmul.mubr.f32.gmra.mxu0 %v1349
        %v1422 = vpop.f32.mrf.mxu0
        %v1423 = vadd.f32 0.0, %v1422
        %v1424 = vpop.f32.mrf.mxu0
        %1425 = vmatprep.mubr.f32.mxu0 0.0
        %1426 = vmatmul.mubr.f32.gmra.mxu0 %v1352
        %v1427 = vpop.f32.mrf.mxu0
        %v1428 = vadd.f32 0.0, %v1427
        %v1429 = vpop.f32.mrf.mxu0
        %1430 = vdwg.mxu0
        %v1432 = vsel %vm939, %v1423, 0
        %v1435 = vsel %vm939, %v1428, 0
        %1437 = vmatprep.subr.mxu0 0.0
        %1438 = vmatpush1.msra.mxu0 0.0
        %1439 = vmatprep.subr.mxu0 0.0
        %1440 = vmatpush1.msra.mxu0 0.0
        %1441 = vmatprep.subr.mxu0 0.0
        %1442 = vmatpush1.msra.mxu0 0.0
        %1443 = vmatprep.subr.mxu0 0.0
        %1444 = vmatpush1.msra.mxu0 0.0
        %1445 = vmatprep.subr.mxu0 0.0
        %1446 = vmatpush1.msra.mxu0 0.0
        %1447 = vmatprep.subr.mxu0 0.0
        %1448 = vmatpush1.msra.mxu0 0.0
        %1449 = vmatprep.subr.mxu0 0.0
        %1450 = vmatpush1.msra.mxu0 0.0
        %1451 = vmatprep.subr.mxu0 0.0
        %1452 = vmatpush1.msra.mxu0 0.0
        %1453 = vmatprep.subr.mxu0 0.0
        %1454 = vmatpush1.msra.mxu0 0.0
        %1455 = vmatprep.subr.mxu0 0.0
        %1456 = vmatpush1.msra.mxu0 0.0
        %1457 = vmatprep.subr.mxu0 0.0
        %1458 = vmatpush1.msra.mxu0 0.0
        %1459 = vmatprep.subr.mxu0 0.0
        %1460 = vmatpush1.msra.mxu0 0.0
        %1461 = vmatprep.subr.mxu0 0.0
        %1462 = vmatpush1.msra.mxu0 %v929
        %1463 = vmatprep.subr.mxu0 0.0
        %1464 = vmatpush1.msra.mxu0 %v928
        %1465 = vmatprep.subr.mxu0 0.0
        %1466 = vmatpush1.msra.mxu0 %v927
        %1467 = vmatprep.subr.mxu0 0.0
        %1468 = vmatpush1.msra.mxu0 %v926
        %1469 = vmatprep.subr.mxu0 0.0
        %1470 = vmatpush2.msra.mxu0 0.0
        %1471 = vmatprep.subr.mxu0 0.0
        %1472 = vmatpush2.msra.mxu0 0.0
        %1473 = vmatprep.subr.mxu0 0.0
        %1474 = vmatpush2.msra.mxu0 0.0
        %1475 = vmatprep.subr.mxu0 0.0
        %1476 = vmatpush2.msra.mxu0 0.0
        %1477 = vmatprep.subr.mxu0 0.0
        %1478 = vmatpush2.msra.mxu0 0.0
        %1479 = vmatprep.subr.mxu0 0.0
        %1480 = vmatpush2.msra.mxu0 0.0
        %1481 = vmatprep.subr.mxu0 0.0
        %1482 = vmatpush2.msra.mxu0 0.0
        %1483 = vmatprep.subr.mxu0 0.0
        %1484 = vmatpush2.msra.mxu0 0.0
        %1485 = vmatprep.subr.mxu0 0.0
        %1486 = vmatpush2.msra.mxu0 0.0
        %1487 = vmatprep.subr.mxu0 0.0
        %1488 = vmatpush2.msra.mxu0 0.0
        %1489 = vmatprep.subr.mxu0 0.0
        %1490 = vmatpush2.msra.mxu0 0.0
        %1491 = vmatprep.subr.mxu0 0.0
        %1492 = vmatpush2.msra.mxu0 0.0
        %1493 = vmatprep.subr.mxu0 0.0
        %1494 = vmatpush2.msra.mxu0 0.0
        %1495 = vmatprep.subr.mxu0 0.0
        %1496 = vmatpush2.msra.mxu0 0.0
        %1497 = vmatprep.subr.mxu0 0.0
        %1498 = vmatpush2.msra.mxu0 0.0
        %1499 = vmatprep.subr.mxu0 0.0
        %1500 = vmatpush2.msra.mxu0 0.0
        %1501 = vmatprep.mubr.f32.mxu0 0.0
        %1502 = vmatmul.mubr.f32.gmra.mxu0 %v1432
        %v1503 = vpop.f32.mrf.mxu0
        %v1504 = vadd.f32 0.0, %v1503
        %v1505 = vpop.f32.mrf.mxu0
        %1506 = vmatprep.mubr.f32.mxu0 0.0
        %1507 = vmatmul.mubr.f32.gmra.mxu0 %v1435
        %v1508 = vpop.f32.mrf.mxu0
        %v1509 = vadd.f32 0.0, %v1508
        %v1510 = vpop.f32.mrf.mxu0
        %1511 = vdwg.mxu0
        %v1512 = vadd.f32 %v1225, %v1504
        %v1513 = vadd.f32 %v1226, %v1509
        %1514 = vrot.lane.b32.xlu0 %v873, 64
        %v1515 = vpop.permute.xlu0 %1514
        %1516 = vrot.lane.b32.xlu0 %v877, 64
        %v1517 = vpop.permute.xlu0 %1516
        %1518 = vrot.lane.b32.xlu0 %v875, 64
        %v1519 = vpop.permute.xlu0 %1518
        %1520 = vrot.lane.b32.xlu0 %v879, 64
        %v1521 = vpop.permute.xlu0 %1520
        %v1522 = vsel %vm939, %v1515, 0
        %v1524 = vsel %vm939, %v1517, 0
        %v1526 = vsel %vm939, %v1519, 0
        %v1528 = vsel %vm939, %v1521, 0
        %1530 = vmatprep.subr.mxu0 0.0
        %1531 = vmatpush1.xpose.msra.mxu0 0.0
        %1532 = vmatprep.subr.mxu0 0.0
        %1533 = vmatpush1.xpose.msra.mxu0 0.0
        %1534 = vmatprep.subr.mxu0 0.0
        %1535 = vmatpush1.xpose.msra.mxu0 0.0
        %1536 = vmatprep.subr.mxu0 0.0
        %1537 = vmatpush1.xpose.msra.mxu0 0.0
        %1538 = vmatprep.subr.mxu0 0.0
        %1539 = vmatpush1.xpose.msra.mxu0 0.0
        %1540 = vmatprep.subr.mxu0 0.0
        %1541 = vmatpush1.xpose.msra.mxu0 0.0
        %1542 = vmatprep.subr.mxu0 0.0
        %1543 = vmatpush1.xpose.msra.mxu0 0.0
        %1544 = vmatprep.subr.mxu0 0.0
        %1545 = vmatpush1.xpose.msra.mxu0 0.0
        %1546 = vmatprep.subr.mxu0 0.0
        %1547 = vmatpush1.xpose.msra.mxu0 0.0
        %1548 = vmatprep.subr.mxu0 0.0
        %1549 = vmatpush1.xpose.msra.mxu0 0.0
        %1550 = vmatprep.subr.mxu0 0.0
        %1551 = vmatpush1.xpose.msra.mxu0 0.0
        %1552 = vmatprep.subr.mxu0 0.0
        %1553 = vmatpush1.xpose.msra.mxu0 0.0
        %1554 = vmatprep.subr.mxu0 0.0
        %1555 = vmatpush1.xpose.msra.mxu0 0.0
        %1556 = vmatprep.subr.mxu0 0.0
        %1557 = vmatpush1.xpose.msra.mxu0 0.0
        %1558 = vmatprep.subr.mxu0 0.0
        %1559 = vmatpush1.xpose.msra.mxu0 %v1528
        %1560 = vmatprep.subr.mxu0 0.0
        %1561 = vmatpush1.xpose.msra.mxu0 %v1526
        %1562 = vmatprep.subr.mxu0 0.0
        %1563 = vmatpush2.xpose.msra.mxu0 0.0
        %1564 = vmatprep.subr.mxu0 0.0
        %1565 = vmatpush2.xpose.msra.mxu0 0.0
        %1566 = vmatprep.subr.mxu0 0.0
        %1567 = vmatpush2.xpose.msra.mxu0 0.0
        %1568 = vmatprep.subr.mxu0 0.0
        %1569 = vmatpush2.xpose.msra.mxu0 0.0
        %1570 = vmatprep.subr.mxu0 0.0
        %1571 = vmatpush2.xpose.msra.mxu0 0.0
        %1572 = vmatprep.subr.mxu0 0.0
        %1573 = vmatpush2.xpose.msra.mxu0 0.0
        %1574 = vmatprep.subr.mxu0 0.0
        %1575 = vmatpush2.xpose.msra.mxu0 0.0
        %1576 = vmatprep.subr.mxu0 0.0
        %1577 = vmatpush2.xpose.msra.mxu0 0.0
        %1578 = vmatprep.subr.mxu0 0.0
        %1579 = vmatpush2.xpose.msra.mxu0 0.0
        %1580 = vmatprep.subr.mxu0 0.0
        %1581 = vmatpush2.xpose.msra.mxu0 0.0
        %1582 = vmatprep.subr.mxu0 0.0
        %1583 = vmatpush2.xpose.msra.mxu0 0.0
        %1584 = vmatprep.subr.mxu0 0.0
        %1585 = vmatpush2.xpose.msra.mxu0 0.0
        %1586 = vmatprep.subr.mxu0 0.0
        %1587 = vmatpush2.xpose.msra.mxu0 0.0
        %1588 = vmatprep.subr.mxu0 0.0
        %1589 = vmatpush2.xpose.msra.mxu0 0.0
        %1590 = vmatprep.subr.mxu0 0.0
        %1591 = vmatpush2.xpose.msra.mxu0 0.0
        %1592 = vmatprep.subr.mxu0 0.0
        %1593 = vmatpush2.xpose.msra.mxu0 0.0
        %1594 = vmatprep.mubr.f32.mxu0 0.0
        %1595 = vmatmul.mubr.f32.gmra.mxu0 %v1522
        %v1596 = vpop.f32.mrf.mxu0
        %v1597 = vadd.f32 0.0, %v1596
        %v1598 = vpop.f32.mrf.mxu0
        %1599 = vmatprep.mubr.f32.mxu0 0.0
        %1600 = vmatmul.mubr.f32.gmra.mxu0 %v1524
        %v1601 = vpop.f32.mrf.mxu0
        %v1602 = vadd.f32 0.0, %v1601
        %v1603 = vpop.f32.mrf.mxu0
        %1604 = vdwg.mxu0
        %v1605 = vmul.f32 %v1597, 0.17677669
        %v1606 = vmul.f32 %v1602, 0.17677669
        %v1607 = vsel %vm1029, %v1605, -inf
        %1608 = vmax.xlane.f32.xlu0 %v1607
        %v1609 = vpop.xlane.xlu0 %1608
        %v1610 = vsel %vm1033, %v1606, -inf
        %1611 = vmax.xlane.f32.xlu0 %v1610
        %v1612 = vpop.xlane.xlu0 %1611
        %v1613 = vsub.f32 %v1605, %v1609
        %v1614 = vsub.f32 %v1606, %v1612
        %v1615 = vmul.f32 %v1613, 1.442695
        %v1616 = vpow.pop %v1615
        %v1617 = vmul.f32 %v1614, 1.442695
        %v1618 = vpow.pop %v1617
        %v1619 = vsel %vm1029, %v1616, 0.0
        %1620 = vadd.xlane.f32.xlu0 %v1619
        %v1621 = vpop.xlane.xlu0 %1620
        %v1622 = vsel %vm1033, %v1618, 0.0
        %1623 = vadd.xlane.f32.xlu0 %v1622
        %v1624 = vpop.xlane.xlu0 %1623
        %v1625 = vrcp.pop %v1621
        %v1626 = vmul.f32 %v1616, %v1625
        %v1627 = vrcp.pop %v1624
        %v1628 = vmul.f32 %v1618, %v1627
        %1629 = vrot.lane.b32.xlu0 %v916, 64
        %v1630 = vpop.permute.xlu0 %1629
        %1631 = vrot.lane.b32.xlu0 %v919, 64
        %v1632 = vpop.permute.xlu0 %1631
        %v1635 = vsel %vm1029, %v1626, 0
        %v1638 = vsel %vm1029, %v1628, 0
        %v1640 = vsel %vm1059, %v1632, 0
        %1642 = vmatprep.subr.mxu0 0.0
        %1643 = vmatpush1.msra.mxu0 0.0
        %1644 = vmatprep.subr.mxu0 0.0
        %1645 = vmatpush1.msra.mxu0 0.0
        %1646 = vmatprep.subr.mxu0 0.0
        %1647 = vmatpush1.msra.mxu0 0.0
        %1648 = vmatprep.subr.mxu0 0.0
        %1649 = vmatpush1.msra.mxu0 0.0
        %1650 = vmatprep.subr.mxu0 0.0
        %1651 = vmatpush1.msra.mxu0 0.0
        %1652 = vmatprep.subr.mxu0 0.0
        %1653 = vmatpush1.msra.mxu0 0.0
        %1654 = vmatprep.subr.mxu0 0.0
        %1655 = vmatpush1.msra.mxu0 0.0
        %1656 = vmatprep.subr.mxu0 0.0
        %1657 = vmatpush1.msra.mxu0 0.0
        %1658 = vmatprep.subr.mxu0 0.0
        %1659 = vmatpush1.msra.mxu0 0.0
        %1660 = vmatprep.subr.mxu0 0.0
        %1661 = vmatpush1.msra.mxu0 0.0
        %1662 = vmatprep.subr.mxu0 0.0
        %1663 = vmatpush1.msra.mxu0 0.0
        %1664 = vmatprep.subr.mxu0 0.0
        %1665 = vmatpush1.msra.mxu0 0.0
        %1666 = vmatprep.subr.mxu0 0.0
        %1667 = vmatpush1.msra.mxu0 0.0
        %1668 = vmatprep.subr.mxu0 0.0
        %1669 = vmatpush1.msra.mxu0 0.0
        %1670 = vmatprep.subr.mxu0 0.0
        %1671 = vmatpush1.msra.mxu0 %v1640
        %1672 = vmatprep.subr.mxu0 0.0
        %1673 = vmatpush1.msra.mxu0 %v1630
        %1674 = vmatprep.subr.mxu0 0.0
        %1675 = vmatpush2.msra.mxu0 0.0
        %1676 = vmatprep.subr.mxu0 0.0
        %1677 = vmatpush2.msra.mxu0 0.0
        %1678 = vmatprep.subr.mxu0 0.0
        %1679 = vmatpush2.msra.mxu0 0.0
        %1680 = vmatprep.subr.mxu0 0.0
        %1681 = vmatpush2.msra.mxu0 0.0
        %1682 = vmatprep.subr.mxu0 0.0
        %1683 = vmatpush2.msra.mxu0 0.0
        %1684 = vmatprep.subr.mxu0 0.0
        %1685 = vmatpush2.msra.mxu0 0.0
        %1686 = vmatprep.subr.mxu0 0.0
        %1687 = vmatpush2.msra.mxu0 0.0
        %1688 = vmatprep.subr.mxu0 0.0
        %1689 = vmatpush2.msra.mxu0 0.0
        %1690 = vmatprep.subr.mxu0 0.0
        %1691 = vmatpush2.msra.mxu0 0.0
        %1692 = vmatprep.subr.mxu0 0.0
        %1693 = vmatpush2.msra.mxu0 0.0
        %1694 = vmatprep.subr.mxu0 0.0
        %1695 = vmatpush2.msra.mxu0 0.0
        %1696 = vmatprep.subr.mxu0 0.0
        %1697 = vmatpush2.msra.mxu0 0.0
        %1698 = vmatprep.subr.mxu0 0.0
        %1699 = vmatpush2.msra.mxu0 0.0
        %1700 = vmatprep.subr.mxu0 0.0
        %1701 = vmatpush2.msra.mxu0 0.0
        %1702 = vmatprep.subr.mxu0 0.0
        %1703 = vmatpush2.msra.mxu0 0.0
        %1704 = vmatprep.subr.mxu0 0.0
        %1705 = vmatpush2.msra.mxu0 0.0
        %1706 = vmatprep.mubr.f32.mxu0 0.0
        %1707 = vmatmul.mubr.f32.gmra.mxu0 %v1635
        %v1708 = vpop.f32.mrf.mxu0
        %v1709 = vadd.f32 0.0, %v1708
        %v1710 = vpop.f32.mrf.mxu0
        %1711 = vmatprep.mubr.f32.mxu0 0.0
        %1712 = vmatmul.mubr.f32.gmra.mxu0 %v1638
        %v1713 = vpop.f32.mrf.mxu0
        %v1714 = vadd.f32 0.0, %v1713
        %v1715 = vpop.f32.mrf.mxu0
        %1716 = vdwg.mxu0
        %v1718 = vsel %vm939, %v1709, 0
        %v1721 = vsel %vm939, %v1714, 0
        %1723 = vmatprep.subr.mxu0 0.0
        %1724 = vmatpush1.msra.mxu0 0.0
        %1725 = vmatprep.subr.mxu0 0.0
        %1726 = vmatpush1.msra.mxu0 0.0
        %1727 = vmatprep.subr.mxu0 0.0
        %1728 = vmatpush1.msra.mxu0 0.0
        %1729 = vmatprep.subr.mxu0 0.0
        %1730 = vmatpush1.msra.mxu0 0.0
        %1731 = vmatprep.subr.mxu0 0.0
        %1732 = vmatpush1.msra.mxu0 0.0
        %1733 = vmatprep.subr.mxu0 0.0
        %1734 = vmatpush1.msra.mxu0 0.0
        %1735 = vmatprep.subr.mxu0 0.0
        %1736 = vmatpush1.msra.mxu0 0.0
        %1737 = vmatprep.subr.mxu0 0.0
        %1738 = vmatpush1.msra.mxu0 0.0
        %1739 = vmatprep.subr.mxu0 0.0
        %1740 = vmatpush1.msra.mxu0 0.0
        %1741 = vmatprep.subr.mxu0 0.0
        %1742 = vmatpush1.msra.mxu0 0.0
        %1743 = vmatprep.subr.mxu0 0.0
        %1744 = vmatpush1.msra.mxu0 0.0
        %1745 = vmatprep.subr.mxu0 0.0
        %1746 = vmatpush1.msra.mxu0 0.0
        %1747 = vmatprep.subr.mxu0 0.0
        %1748 = vmatpush1.msra.mxu0 %v933
        %1749 = vmatprep.subr.mxu0 0.0
        %1750 = vmatpush1.msra.mxu0 %v932
        %1751 = vmatprep.subr.mxu0 0.0
        %1752 = vmatpush1.msra.mxu0 %v931
        %1753 = vmatprep.subr.mxu0 0.0
        %1754 = vmatpush1.msra.mxu0 %v930
        %1755 = vmatprep.subr.mxu0 0.0
        %1756 = vmatpush2.msra.mxu0 0.0
        %1757 = vmatprep.subr.mxu0 0.0
        %1758 = vmatpush2.msra.mxu0 0.0
        %1759 = vmatprep.subr.mxu0 0.0
        %1760 = vmatpush2.msra.mxu0 0.0
        %1761 = vmatprep.subr.mxu0 0.0
        %1762 = vmatpush2.msra.mxu0 0.0
        %1763 = vmatprep.subr.mxu0 0.0
        %1764 = vmatpush2.msra.mxu0 0.0
        %1765 = vmatprep.subr.mxu0 0.0
        %1766 = vmatpush2.msra.mxu0 0.0
        %1767 = vmatprep.subr.mxu0 0.0
        %1768 = vmatpush2.msra.mxu0 0.0
        %1769 = vmatprep.subr.mxu0 0.0
        %1770 = vmatpush2.msra.mxu0 0.0
        %1771 = vmatprep.subr.mxu0 0.0
        %1772 = vmatpush2.msra.mxu0 0.0
        %1773 = vmatprep.subr.mxu0 0.0
        %1774 = vmatpush2.msra.mxu0 0.0
        %1775 = vmatprep.subr.mxu0 0.0
        %1776 = vmatpush2.msra.mxu0 0.0
        %1777 = vmatprep.subr.mxu0 0.0
        %1778 = vmatpush2.msra.mxu0 0.0
        %1779 = vmatprep.subr.mxu0 0.0
        %1780 = vmatpush2.msra.mxu0 0.0
        %1781 = vmatprep.subr.mxu0 0.0
        %1782 = vmatpush2.msra.mxu0 0.0
        %1783 = vmatprep.subr.mxu0 0.0
        %1784 = vmatpush2.msra.mxu0 0.0
        %1785 = vmatprep.subr.mxu0 0.0
        %1786 = vmatpush2.msra.mxu0 0.0
        %1787 = vmatprep.mubr.f32.mxu0 0.0
        %1788 = vmatmul.mubr.f32.gmra.mxu0 %v1718
        %v1789 = vpop.f32.mrf.mxu0
        %v1790 = vadd.f32 0.0, %v1789
        %v1791 = vpop.f32.mrf.mxu0
        %1792 = vmatprep.mubr.f32.mxu0 0.0
        %1793 = vmatmul.mubr.f32.gmra.mxu0 %v1721
        %v1794 = vpop.f32.mrf.mxu0
        %v1795 = vadd.f32 0.0, %v1794
        %v1796 = vpop.f32.mrf.mxu0
        %1797 = vdwg.mxu0
        %v1798 = vadd.f32 %v1512, %v1790
        %v1799 = vadd.f32 %v1513, %v1795
        %1800 = vrot.lane.b32.xlu0 %v873, 32
        %v1801 = vpop.permute.xlu0 %1800
        %1802 = vrot.lane.b32.xlu0 %v877, 32
        %v1803 = vpop.permute.xlu0 %1802
        %1804 = vrot.lane.b32.xlu0 %v875, 32
        %v1805 = vpop.permute.xlu0 %1804
        %1806 = vrot.lane.b32.xlu0 %v879, 32
        %v1807 = vpop.permute.xlu0 %1806
        %v1808 = vsel %vm939, %v1801, 0
        %v1810 = vsel %vm939, %v1803, 0
        %v1812 = vsel %vm939, %v1805, 0
        %v1814 = vsel %vm939, %v1807, 0
        %1816 = vmatprep.subr.mxu0 0.0
        %1817 = vmatpush1.xpose.msra.mxu0 0.0
        %1818 = vmatprep.subr.mxu0 0.0
        %1819 = vmatpush1.xpose.msra.mxu0 0.0
        %1820 = vmatprep.subr.mxu0 0.0
        %1821 = vmatpush1.xpose.msra.mxu0 0.0
        %1822 = vmatprep.subr.mxu0 0.0
        %1823 = vmatpush1.xpose.msra.mxu0 0.0
        %1824 = vmatprep.subr.mxu0 0.0
        %1825 = vmatpush1.xpose.msra.mxu0 0.0
        %1826 = vmatprep.subr.mxu0 0.0
        %1827 = vmatpush1.xpose.msra.mxu0 0.0
        %1828 = vmatprep.subr.mxu0 0.0
        %1829 = vmatpush1.xpose.msra.mxu0 0.0
        %1830 = vmatprep.subr.mxu0 0.0
        %1831 = vmatpush1.xpose.msra.mxu0 0.0
        %1832 = vmatprep.subr.mxu0 0.0
        %1833 = vmatpush1.xpose.msra.mxu0 0.0
        %1834 = vmatprep.subr.mxu0 0.0
        %1835 = vmatpush1.xpose.msra.mxu0 0.0
        %1836 = vmatprep.subr.mxu0 0.0
        %1837 = vmatpush1.xpose.msra.mxu0 0.0
        %1838 = vmatprep.subr.mxu0 0.0
        %1839 = vmatpush1.xpose.msra.mxu0 0.0
        %1840 = vmatprep.subr.mxu0 0.0
        %1841 = vmatpush1.xpose.msra.mxu0 0.0
        %1842 = vmatprep.subr.mxu0 0.0
        %1843 = vmatpush1.xpose.msra.mxu0 0.0
        %1844 = vmatprep.subr.mxu0 0.0
        %1845 = vmatpush1.xpose.msra.mxu0 %v1814
        %1846 = vmatprep.subr.mxu0 0.0
        %1847 = vmatpush1.xpose.msra.mxu0 %v1812
        %1848 = vmatprep.subr.mxu0 0.0
        %1849 = vmatpush2.xpose.msra.mxu0 0.0
        %1850 = vmatprep.subr.mxu0 0.0
        %1851 = vmatpush2.xpose.msra.mxu0 0.0
        %1852 = vmatprep.subr.mxu0 0.0
        %1853 = vmatpush2.xpose.msra.mxu0 0.0
        %1854 = vmatprep.subr.mxu0 0.0
        %1855 = vmatpush2.xpose.msra.mxu0 0.0
        %1856 = vmatprep.subr.mxu0 0.0
        %1857 = vmatpush2.xpose.msra.mxu0 0.0
        %1858 = vmatprep.subr.mxu0 0.0
        %1859 = vmatpush2.xpose.msra.mxu0 0.0
        %1860 = vmatprep.subr.mxu0 0.0
        %1861 = vmatpush2.xpose.msra.mxu0 0.0
        %1862 = vmatprep.subr.mxu0 0.0
        %1863 = vmatpush2.xpose.msra.mxu0 0.0
        %1864 = vmatprep.subr.mxu0 0.0
        %1865 = vmatpush2.xpose.msra.mxu0 0.0
        %1866 = vmatprep.subr.mxu0 0.0
        %1867 = vmatpush2.xpose.msra.mxu0 0.0
        %1868 = vmatprep.subr.mxu0 0.0
        %1869 = vmatpush2.xpose.msra.mxu0 0.0
        %1870 = vmatprep.subr.mxu0 0.0
        %1871 = vmatpush2.xpose.msra.mxu0 0.0
        %1872 = vmatprep.subr.mxu0 0.0
        %1873 = vmatpush2.xpose.msra.mxu0 0.0
        %1874 = vmatprep.subr.mxu0 0.0
        %1875 = vmatpush2.xpose.msra.mxu0 0.0
        %1876 = vmatprep.subr.mxu0 0.0
        %1877 = vmatpush2.xpose.msra.mxu0 0.0
        %1878 = vmatprep.subr.mxu0 0.0
        %1879 = vmatpush2.xpose.msra.mxu0 0.0
        %1880 = vmatprep.mubr.f32.mxu0 0.0
        %1881 = vmatmul.mubr.f32.gmra.mxu0 %v1808
        %v1882 = vpop.f32.mrf.mxu0
        %v1883 = vadd.f32 0.0, %v1882
        %v1884 = vpop.f32.mrf.mxu0
        %1885 = vmatprep.mubr.f32.mxu0 0.0
        %1886 = vmatmul.mubr.f32.gmra.mxu0 %v1810
        %v1887 = vpop.f32.mrf.mxu0
        %v1888 = vadd.f32 0.0, %v1887
        %v1889 = vpop.f32.mrf.mxu0
        %1890 = vdwg.mxu0
        %v1891 = vmul.f32 %v1883, 0.17677669
        %v1892 = vmul.f32 %v1888, 0.17677669
        %v1893 = vsel %vm1029, %v1891, -inf
        %1894 = vmax.xlane.f32.xlu0 %v1893
        %v1895 = vpop.xlane.xlu0 %1894
        %v1896 = vsel %vm1033, %v1892, -inf
        %1897 = vmax.xlane.f32.xlu0 %v1896
        %v1898 = vpop.xlane.xlu0 %1897
        %v1899 = vsub.f32 %v1891, %v1895
        %v1900 = vsub.f32 %v1892, %v1898
        %v1901 = vmul.f32 %v1899, 1.442695
        %v1902 = vpow.pop %v1901
        %v1903 = vmul.f32 %v1900, 1.442695
        %v1904 = vpow.pop %v1903
        %v1905 = vsel %vm1029, %v1902, 0.0
        %1906 = vadd.xlane.f32.xlu0 %v1905
        %v1907 = vpop.xlane.xlu0 %1906
        %v1908 = vsel %vm1033, %v1904, 0.0
        %1909 = vadd.xlane.f32.xlu0 %v1908
        %v1910 = vpop.xlane.xlu0 %1909
        %v1911 = vrcp.pop %v1907
        %v1912 = vmul.f32 %v1902, %v1911
        %v1913 = vrcp.pop %v1910
        %v1914 = vmul.f32 %v1904, %v1913
        %1915 = vrot.lane.b32.xlu0 %v916, 32
        %v1916 = vpop.permute.xlu0 %1915
        %1917 = vrot.lane.b32.xlu0 %v919, 32
        %v1918 = vpop.permute.xlu0 %1917
        %v1921 = vsel %vm1029, %v1912, 0
        %v1924 = vsel %vm1029, %v1914, 0
        %v1926 = vsel %vm1059, %v1918, 0
        %1928 = vmatprep.subr.mxu0 0.0
        %1929 = vmatpush1.msra.mxu0 0.0
        %1930 = vmatprep.subr.mxu0 0.0
        %1931 = vmatpush1.msra.mxu0 0.0
        %1932 = vmatprep.subr.mxu0 0.0
        %1933 = vmatpush1.msra.mxu0 0.0
        %1934 = vmatprep.subr.mxu0 0.0
        %1935 = vmatpush1.msra.mxu0 0.0
        %1936 = vmatprep.subr.mxu0 0.0
        %1937 = vmatpush1.msra.mxu0 0.0
        %1938 = vmatprep.subr.mxu0 0.0
        %1939 = vmatpush1.msra.mxu0 0.0
        %1940 = vmatprep.subr.mxu0 0.0
        %1941 = vmatpush1.msra.mxu0 0.0
        %1942 = vmatprep.subr.mxu0 0.0
        %1943 = vmatpush1.msra.mxu0 0.0
        %1944 = vmatprep.subr.mxu0 0.0
        %1945 = vmatpush1.msra.mxu0 0.0
        %1946 = vmatprep.subr.mxu0 0.0
        %1947 = vmatpush1.msra.mxu0 0.0
        %1948 = vmatprep.subr.mxu0 0.0
        %1949 = vmatpush1.msra.mxu0 0.0
        %1950 = vmatprep.subr.mxu0 0.0
        %1951 = vmatpush1.msra.mxu0 0.0
        %1952 = vmatprep.subr.mxu0 0.0
        %1953 = vmatpush1.msra.mxu0 0.0
        %1954 = vmatprep.subr.mxu0 0.0
        %1955 = vmatpush1.msra.mxu0 0.0
        %1956 = vmatprep.subr.mxu0 0.0
        %1957 = vmatpush1.msra.mxu0 %v1926
        %1958 = vmatprep.subr.mxu0 0.0
        %1959 = vmatpush1.msra.mxu0 %v1916
        %1960 = vmatprep.subr.mxu0 0.0
        %1961 = vmatpush2.msra.mxu0 0.0
        %1962 = vmatprep.subr.mxu0 0.0
        %1963 = vmatpush2.msra.mxu0 0.0
        %1964 = vmatprep.subr.mxu0 0.0
        %1965 = vmatpush2.msra.mxu0 0.0
        %1966 = vmatprep.subr.mxu0 0.0
        %1967 = vmatpush2.msra.mxu0 0.0
        %1968 = vmatprep.subr.mxu0 0.0
        %1969 = vmatpush2.msra.mxu0 0.0
        %1970 = vmatprep.subr.mxu0 0.0
        %1971 = vmatpush2.msra.mxu0 0.0
        %1972 = vmatprep.subr.mxu0 0.0
        %1973 = vmatpush2.msra.mxu0 0.0
        %1974 = vmatprep.subr.mxu0 0.0
        %1975 = vmatpush2.msra.mxu0 0.0
        %1976 = vmatprep.subr.mxu0 0.0
        %1977 = vmatpush2.msra.mxu0 0.0
        %1978 = vmatprep.subr.mxu0 0.0
        %1979 = vmatpush2.msra.mxu0 0.0
        %1980 = vmatprep.subr.mxu0 0.0
        %1981 = vmatpush2.msra.mxu0 0.0
        %1982 = vmatprep.subr.mxu0 0.0
        %1983 = vmatpush2.msra.mxu0 0.0
        %1984 = vmatprep.subr.mxu0 0.0
        %1985 = vmatpush2.msra.mxu0 0.0
        %1986 = vmatprep.subr.mxu0 0.0
        %1987 = vmatpush2.msra.mxu0 0.0
        %1988 = vmatprep.subr.mxu0 0.0
        %1989 = vmatpush2.msra.mxu0 0.0
        %1990 = vmatprep.subr.mxu0 0.0
        %1991 = vmatpush2.msra.mxu0 0.0
        %1992 = vmatprep.mubr.f32.mxu0 0.0
        %1993 = vmatmul.mubr.f32.gmra.mxu0 %v1921
        %v1994 = vpop.f32.mrf.mxu0
        %v1995 = vadd.f32 0.0, %v1994
        %v1996 = vpop.f32.mrf.mxu0
        %1997 = vmatprep.mubr.f32.mxu0 0.0
        %1998 = vmatmul.mubr.f32.gmra.mxu0 %v1924
        %v1999 = vpop.f32.mrf.mxu0
        %v2000 = vadd.f32 0.0, %v1999
        %v2001 = vpop.f32.mrf.mxu0
        %2002 = vdwg.mxu0
        %v2004 = vsel %vm939, %v1995, 0
        %v2007 = vsel %vm939, %v2000, 0
        %2009 = vmatprep.subr.mxu0 0.0
        %2010 = vmatpush1.msra.mxu0 0.0
        %2011 = vmatprep.subr.mxu0 0.0
        %2012 = vmatpush1.msra.mxu0 0.0
        %2013 = vmatprep.subr.mxu0 0.0
        %2014 = vmatpush1.msra.mxu0 0.0
        %2015 = vmatprep.subr.mxu0 0.0
        %2016 = vmatpush1.msra.mxu0 0.0
        %2017 = vmatprep.subr.mxu0 0.0
        %2018 = vmatpush1.msra.mxu0 0.0
        %2019 = vmatprep.subr.mxu0 0.0
        %2020 = vmatpush1.msra.mxu0 0.0
        %2021 = vmatprep.subr.mxu0 0.0
        %2022 = vmatpush1.msra.mxu0 0.0
        %2023 = vmatprep.subr.mxu0 0.0
        %2024 = vmatpush1.msra.mxu0 0.0
        %2025 = vmatprep.subr.mxu0 0.0
        %2026 = vmatpush1.msra.mxu0 0.0
        %2027 = vmatprep.subr.mxu0 0.0
        %2028 = vmatpush1.msra.mxu0 0.0
        %2029 = vmatprep.subr.mxu0 0.0
        %2030 = vmatpush1.msra.mxu0 0.0
        %2031 = vmatprep.subr.mxu0 0.0
        %2032 = vmatpush1.msra.mxu0 0.0
        %2033 = vmatprep.subr.mxu0 0.0
        %2034 = vmatpush1.msra.mxu0 %v937
        %2035 = vmatprep.subr.mxu0 0.0
        %2036 = vmatpush1.msra.mxu0 %v936
        %2037 = vmatprep.subr.mxu0 0.0
        %2038 = vmatpush1.msra.mxu0 %v935
        %2039 = vmatprep.subr.mxu0 0.0
        %2040 = vmatpush1.msra.mxu0 %v934
        %2041 = vmatprep.subr.mxu0 0.0
        %2042 = vmatpush2.msra.mxu0 0.0
        %2043 = vmatprep.subr.mxu0 0.0
        %2044 = vmatpush2.msra.mxu0 0.0
        %2045 = vmatprep.subr.mxu0 0.0
        %2046 = vmatpush2.msra.mxu0 0.0
        %2047 = vmatprep.subr.mxu0 0.0
        %2048 = vmatpush2.msra.mxu0 0.0
        %2049 = vmatprep.subr.mxu0 0.0
        %2050 = vmatpush2.msra.mxu0 0.0
        %2051 = vmatprep.subr.mxu0 0.0
        %2052 = vmatpush2.msra.mxu0 0.0
        %2053 = vmatprep.subr.mxu0 0.0
        %2054 = vmatpush2.msra.mxu0 0.0
        %2055 = vmatprep.subr.mxu0 0.0
        %2056 = vmatpush2.msra.mxu0 0.0
        %2057 = vmatprep.subr.mxu0 0.0
        %2058 = vmatpush2.msra.mxu0 0.0
        %2059 = vmatprep.subr.mxu0 0.0
        %2060 = vmatpush2.msra.mxu0 0.0
        %2061 = vmatprep.subr.mxu0 0.0
        %2062 = vmatpush2.msra.mxu0 0.0
        %2063 = vmatprep.subr.mxu0 0.0
        %2064 = vmatpush2.msra.mxu0 0.0
        %2065 = vmatprep.subr.mxu0 0.0
        %2066 = vmatpush2.msra.mxu0 0.0
        %2067 = vmatprep.subr.mxu0 0.0
        %2068 = vmatpush2.msra.mxu0 0.0
        %2069 = vmatprep.subr.mxu0 0.0
        %2070 = vmatpush2.msra.mxu0 0.0
        %2071 = vmatprep.subr.mxu0 0.0
        %2072 = vmatpush2.msra.mxu0 0.0
        %2073 = vmatprep.mubr.f32.mxu0 0.0
        %2074 = vmatmul.mubr.f32.gmra.mxu0 %v2004
        %v2075 = vpop.f32.mrf.mxu0
        %v2076 = vadd.f32 0.0, %v2075
        %v2077 = vpop.f32.mrf.mxu0
        %2078 = vmatprep.mubr.f32.mxu0 0.0
        %2079 = vmatmul.mubr.f32.gmra.mxu0 %v2007
        %v2080 = vpop.f32.mrf.mxu0
        %v2081 = vadd.f32 0.0, %v2080
        %v2082 = vpop.f32.mrf.mxu0
        %2083 = vdwg.mxu0
        %v2084 = vadd.f32 %v1798, %v2076
        %v2085 = vadd.f32 %v1799, %v2081
        %v2086 = vadd.f32 %v655, %v2084
        %v2087 = vadd.f32 %v656, %v2085
        %2088 = vadd.xlane.f32.xlu0 %v2086
        %v2089 = vpop.xlane.xlu0 %2088
        %v2090 = vsel %vm1059, %v2087, 0.0
        %2091 = vadd.xlane.f32.xlu0 %v2090
        %v2092 = vpop.xlane.xlu0 %2091
        %v2093 = vrcp.pop 128.0
        %v2094 = vmul.f32 %v2089, %v2093
        %v2095 = vmul.f32 %v2092, %v2093
        %v2096 = vsub.f32 %v2086, %v2094
        %v2097 = vsub.f32 %v2087, %v2095
        %v2098 = vmul.f32 %v2096, %v2096
        %v2099 = vmul.f32 %v2097, %v2097
        %2100 = vadd.xlane.f32.xlu0 %v2098
        %v2101 = vpop.xlane.xlu0 %2100
        %v2102 = vsel %vm1059, %v2099, 0.0
        %2103 = vadd.xlane.f32.xlu0 %v2102
        %v2104 = vpop.xlane.xlu0 %2103
        %v2105 = vmul.f32 %v2101, %v2093
        %v2106 = vmul.f32 %v2104, %v2093
        %v2107 = vadd.f32 %v2105, 1e-05
        %v2108 = vadd.f32 %v2106, 1e-05
        %v2109 = vrsqrt.pop %v2107
        %v2110 = vrsqrt.pop %v2108
        %v2111 = vmul.f32 %v2096, %v2109
        %v2112 = vmul.f32 %v2097, %v2110
        %v2113 = vlaneseq
        %v2114 = vshrl.u32 %v2113, 7
        %v2115 = vsub.s32 0, %v2114
        %v2116 = vrot.slane %v659, %v2115
        %v2117 = vmul.f32 %v2111, %v2116
        %v2118 = vmul.f32 %v2112, %v2116
        %v2119 = vlaneseq
        %v2120 = vshrl.u32 %v2119, 7
        %v2121 = vsub.s32 1, %v2120
        %v2122 = vrot.slane %v659, %v2121
        %v2123 = vadd.f32 %v2117, %v2122
        %v2124 = vadd.f32 %v2118, %v2122
        %v2125 = vpack.c.bf16 %v2124, %v2123
        %v2126 = vld [vmem:[#allocation4] sm:$0xf]
        %v2127 = vld [vmem:[#allocation4 + $0x4] sm:$0xf]
        %v2128 = vld [vmem:[#allocation4 + $0x8] sm:$0xf]
        %v2129 = vld [vmem:[#allocation4 + $0xc] sm:$0xf]
        %v2130 = vld [vmem:[#allocation4 + $0x10] sm:$0xf]
        %v2131 = vld [vmem:[#allocation4 + $0x14] sm:$0xf]
        %v2132 = vld [vmem:[#allocation4 + $0x18] sm:$0xf]
        %v2133 = vld [vmem:[#allocation4 + $0x1c] sm:$0xf]
        %v2134 = vld [vmem:[#allocation4 + $0x20] sm:$0xf]
        %v2135 = vld [vmem:[#allocation4 + $0x24] sm:$0xf]
        %v2136 = vld [vmem:[#allocation4 + $0x28] sm:$0xf]
        %v2137 = vld [vmem:[#allocation4 + $0x2c] sm:$0xf]
        %v2138 = vld [vmem:[#allocation4 + $0x30] sm:$0xf]
        %v2139 = vld [vmem:[#allocation4 + $0x34] sm:$0xf]
        %v2140 = vld [vmem:[#allocation4 + $0x38] sm:$0xf]
        %v2141 = vld [vmem:[#allocation4 + $0x3c] sm:$0xf]
        %v2142 = vld [vmem:[%s7] sm:$0x1]
        %v2144 = vlaneseq
        %v2145 = vshrl.u32 %v2144, 7
        %v2146 = vsub.s32 0, %v2145
        %v2147 = vrot.slane %v2142, %v2146
        %v2165 = vunpack.c.l.b16 %v2126
        %v2166 = vunpack.c.l.b16 %v2127
        %v2167 = vunpack.c.l.b16 %v2128
        %v2168 = vunpack.c.l.b16 %v2129
        %v2169 = vunpack.c.l.b16 %v2130
        %v2170 = vunpack.c.l.b16 %v2131
        %v2171 = vunpack.c.l.b16 %v2132
        %v2172 = vunpack.c.l.b16 %v2133
        %v2173 = vunpack.c.l.b16 %v2134
        %v2174 = vunpack.c.l.b16 %v2135
        %v2175 = vunpack.c.l.b16 %v2136
        %v2176 = vunpack.c.l.b16 %v2137
        %v2177 = vunpack.c.l.b16 %v2138
        %v2178 = vunpack.c.l.b16 %v2139
        %v2179 = vunpack.c.l.b16 %v2140
        %v2180 = vunpack.c.l.b16 %v2141
        %v2181 = vpack.c.b16 %v2166, %v2165
        %v2182 = vpack.c.b16 %v2168, %v2167
        %v2183 = vpack.c.b16 %v2170, %v2169
        %v2184 = vpack.c.b16 %v2172, %v2171
        %v2185 = vpack.c.b16 %v2174, %v2173
        %v2186 = vpack.c.b16 %v2176, %v2175
        %v2187 = vpack.c.b16 %v2178, %v2177
        %v2188 = vpack.c.b16 %v2180, %v2179
        %2197 = vmatprep.subr.bf16.mxu0 0
        %2198 = vmatpush1.bf16.msra.mxu0 %v2188
        %2199 = vmatprep.subr.bf16.mxu0 0
        %2200 = vmatpush1.bf16.msra.mxu0 %v2187
        %2201 = vmatprep.subr.bf16.mxu0 0
        %2202 = vmatpush1.bf16.msra.mxu0 %v2186
        %2203 = vmatprep.subr.bf16.mxu0 0
        %2204 = vmatpush1.bf16.msra.mxu0 %v2185
        %2205 = vmatprep.subr.bf16.mxu0 0
        %2206 = vmatpush1.bf16.msra.mxu0 %v2184
        %2207 = vmatprep.subr.bf16.mxu0 0
        %2208 = vmatpush1.bf16.msra.mxu0 %v2183
        %2209 = vmatprep.subr.bf16.mxu0 0
        %2210 = vmatpush1.bf16.msra.mxu0 %v2182
        %2211 = vmatprep.subr.bf16.mxu0 0
        %2212 = vmatpush1.bf16.msra.mxu0 %v2181
        %2213 = vmatprep.subr.bf16.mxu0 0
        %2214 = vmatpush2.bf16.msra.mxu0 0
        %2215 = vmatprep.subr.bf16.mxu0 0
        %2216 = vmatpush2.bf16.msra.mxu0 0
        %2217 = vmatprep.subr.bf16.mxu0 0
        %2218 = vmatpush2.bf16.msra.mxu0 0
        %2219 = vmatprep.subr.bf16.mxu0 0
        %2220 = vmatpush2.bf16.msra.mxu0 0
        %2221 = vmatprep.subr.bf16.mxu0 0
        %2222 = vmatpush2.bf16.msra.mxu0 0
        %2223 = vmatprep.subr.bf16.mxu0 0
        %2224 = vmatpush2.bf16.msra.mxu0 0
        %2225 = vmatprep.subr.bf16.mxu0 0
        %2226 = vmatpush2.bf16.msra.mxu0 0
        %2227 = vmatprep.subr.bf16.mxu0 0
        %2228 = vmatpush2.bf16.msra.mxu0 0
        %2229 = vmatprep.mubr.bf16.mxu0 0
        %2230 = vmatmul.mubr.bf16.gmra.mxu0 %v2125
        %v2231 = vpop.f32.mrf.mxu0
        %v2232 = vadd.f32 %v2147, %v2231
        %v2233 = vpop.f32.mrf.mxu0
        %v2234 = vpop.f32.mrf.mxu0
        %v2235 = vadd.f32 %v2147, %v2234
        %v2236 = vpop.f32.mrf.mxu0
        %2237 = vdwg.mxu0
        %v2238 = vld [vmem:[#allocation6] sm:$0xff]
        %v2239 = vld [vmem:[#allocation6 + $0x8] sm:$0xff]
        %v2240 = vld [vmem:[#allocation6 + $0x10] sm:$0xff]
        %v2241 = vld [vmem:[#allocation6 + $0x18] sm:$0xff]
        %v2242 = vld [vmem:[#allocation6 + $0x20] sm:$0xff]
        %v2243 = vld [vmem:[#allocation6 + $0x28] sm:$0xff]
        %v2244 = vld [vmem:[#allocation6 + $0x30] sm:$0xff]
        %v2245 = vld [vmem:[#allocation6 + $0x38] sm:$0xff]
        %v2246 = vld [vmem:[#allocation6 + $0x40] sm:$0xff]
        %v2247 = vld [vmem:[#allocation6 + $0x48] sm:$0xff]
        %v2248 = vld [vmem:[#allocation6 + $0x50] sm:$0xff]
        %v2249 = vld [vmem:[#allocation6 + $0x58] sm:$0xff]
        %v2250 = vld [vmem:[#allocation6 + $0x60] sm:$0xff]
        %v2251 = vld [vmem:[#allocation6 + $0x68] sm:$0xff]
        %v2252 = vld [vmem:[#allocation6 + $0x70] sm:$0xff]
        %v2253 = vld [vmem:[#allocation6 + $0x78] sm:$0xff]
        %v2254 = vld [vmem:[%s9] sm:$0x3]
        %v2256 = vlaneseq
        %v2257 = vshrl.u32 %v2256, 7
        %v2258 = vsub.s32 0, %v2257
        %v2259 = vrot.slane %v2254, %v2258
        %v2260 = vlaneseq
        %v2261 = vshrl.u32 %v2260, 7
        %v2262 = vsub.s32 1, %v2261
        %v2263 = vrot.slane %v2254, %v2262
        %v2282 = vunpack.c.l.b16 %v2238
        %v2283 = vunpack.c.h.b16 %v2238
        %v2284 = vunpack.c.l.b16 %v2239
        %v2285 = vunpack.c.h.b16 %v2239
        %v2286 = vunpack.c.l.b16 %v2240
        %v2287 = vunpack.c.h.b16 %v2240
        %v2288 = vunpack.c.l.b16 %v2241
        %v2289 = vunpack.c.h.b16 %v2241
        %v2290 = vunpack.c.l.b16 %v2242
        %v2291 = vunpack.c.h.b16 %v2242
        %v2292 = vunpack.c.l.b16 %v2243
        %v2293 = vunpack.c.h.b16 %v2243
        %v2294 = vunpack.c.l.b16 %v2244
        %v2295 = vunpack.c.h.b16 %v2244
        %v2296 = vunpack.c.l.b16 %v2245
        %v2297 = vunpack.c.h.b16 %v2245
        %v2298 = vunpack.c.l.b16 %v2246
        %v2299 = vunpack.c.h.b16 %v2246
        %v2300 = vunpack.c.l.b16 %v2247
        %v2301 = vunpack.c.h.b16 %v2247
        %v2302 = vunpack.c.l.b16 %v2248
        %v2303 = vunpack.c.h.b16 %v2248
        %v2304 = vunpack.c.l.b16 %v2249
        %v2305 = vunpack.c.h.b16 %v2249
        %v2306 = vunpack.c.l.b16 %v2250
        %v2307 = vunpack.c.h.b16 %v2250
        %v2308 = vunpack.c.l.b16 %v2251
        %v2309 = vunpack.c.h.b16 %v2251
        %v2310 = vunpack.c.l.b16 %v2252
        %v2311 = vunpack.c.h.b16 %v2252
        %v2312 = vunpack.c.l.b16 %v2253
        %v2313 = vunpack.c.h.b16 %v2253
        %v2314 = vpack.c.b16 %v2284, %v2282
        %v2315 = vpack.c.b16 %v2285, %v2283
        %v2316 = vpack.c.b16 %v2288, %v2286
        %v2317 = vpack.c.b16 %v2289, %v2287
        %v2318 = vpack.c.b16 %v2292, %v2290
        %v2319 = vpack.c.b16 %v2293, %v2291
        %v2320 = vpack.c.b16 %v2296, %v2294
        %v2321 = vpack.c.b16 %v2297, %v2295
        %v2322 = vpack.c.b16 %v2300, %v2298
        %v2323 = vpack.c.b16 %v2301, %v2299
        %v2324 = vpack.c.b16 %v2304, %v2302
        %v2325 = vpack.c.b16 %v2305, %v2303
        %v2326 = vpack.c.b16 %v2308, %v2306
        %v2327 = vpack.c.b16 %v2309, %v2307
        %v2328 = vpack.c.b16 %v2312, %v2310
        %v2329 = vpack.c.b16 %v2313, %v2311
        %2346 = vmatprep.subr.bf16.mxu0 %v2329
        %2347 = vmatpush1.bf16.msra.mxu0 %v2328
        %2348 = vmatprep.subr.bf16.mxu0 %v2327
        %2349 = vmatpush1.bf16.msra.mxu0 %v2326
        %2350 = vmatprep.subr.bf16.mxu0 %v2325
        %2351 = vmatpush1.bf16.msra.mxu0 %v2324
        %2352 = vmatprep.subr.bf16.mxu0 %v2323
        %2353 = vmatpush1.bf16.msra.mxu0 %v2322
        %2354 = vmatprep.subr.bf16.mxu0 %v2321
        %2355 = vmatpush1.bf16.msra.mxu0 %v2320
        %2356 = vmatprep.subr.bf16.mxu0 %v2319
        %2357 = vmatpush1.bf16.msra.mxu0 %v2318
        %2358 = vmatprep.subr.bf16.mxu0 %v2317
        %2359 = vmatpush1.bf16.msra.mxu0 %v2316
        %2360 = vmatprep.subr.bf16.mxu0 %v2315
        %2361 = vmatpush1.bf16.msra.mxu0 %v2314
        %2362 = vmatprep.subr.bf16.mxu0 0
        %2363 = vmatpush2.bf16.msra.mxu0 0
        %2364 = vmatprep.subr.bf16.mxu0 0
        %2365 = vmatpush2.bf16.msra.mxu0 0
        %2366 = vmatprep.subr.bf16.mxu0 0
        %2367 = vmatpush2.bf16.msra.mxu0 0
        %2368 = vmatprep.subr.bf16.mxu0 0
        %2369 = vmatpush2.bf16.msra.mxu0 0
        %2370 = vmatprep.subr.bf16.mxu0 0
        %2371 = vmatpush2.bf16.msra.mxu0 0
        %2372 = vmatprep.subr.bf16.mxu0 0
        %2373 = vmatpush2.bf16.msra.mxu0 0
        %2374 = vmatprep.subr.bf16.mxu0 0
        %2375 = vmatpush2.bf16.msra.mxu0 0
        %2376 = vmatprep.subr.bf16.mxu0 0
        %2377 = vmatpush2.bf16.msra.mxu0 0
        %2378 = vmatprep.mubr.bf16.mxu0 0
        %2379 = vmatmul.mubr.bf16.gmra.mxu0 %v658
        %v2380 = vpop.f32.mrf.mxu0
        %v2381 = vadd.f32 %v2259, %v2380
        %v2382 = vpop.f32.mrf.mxu0
        %v2383 = vadd.f32 %v2263, %v2382
        %v2384 = vpop.f32.mrf.mxu0
        %v2385 = vpop.f32.mrf.mxu0
        %2386 = vdwg.mxu0
        %v2387 = vld [vmem:[#allocation7] sm:$0xff]
        %v2388 = vld [vmem:[#allocation7 + $0x8] sm:$0xff]
        %v2389 = vld [vmem:[#allocation7 + $0x10] sm:$0xff]
        %v2390 = vld [vmem:[#allocation7 + $0x18] sm:$0xff]
        %v2391 = vld [vmem:[#allocation7 + $0x20] sm:$0xff]
        %v2392 = vld [vmem:[#allocation7 + $0x28] sm:$0xff]
        %v2393 = vld [vmem:[#allocation7 + $0x30] sm:$0xff]
        %v2394 = vld [vmem:[#allocation7 + $0x38] sm:$0xff]
        %v2395 = vld [vmem:[#allocation7 + $0x40] sm:$0xff]
        %v2396 = vld [vmem:[#allocation7 + $0x48] sm:$0xff]
        %v2397 = vld [vmem:[#allocation7 + $0x50] sm:$0xff]
        %v2398 = vld [vmem:[#allocation7 + $0x58] sm:$0xff]
        %v2399 = vld [vmem:[#allocation7 + $0x60] sm:$0xff]
        %v2400 = vld [vmem:[#allocation7 + $0x68] sm:$0xff]
        %v2401 = vld [vmem:[#allocation7 + $0x70] sm:$0xff]
        %v2402 = vld [vmem:[#allocation7 + $0x78] sm:$0xff]
        %v2403 = vld [vmem:[%s11] sm:$0x1]
        %v2405 = vsel %vm939, %v2232, 0
        %v2408 = vsel %vm939, %v2235, 0
        %v2411 = vsel %vm939, %v2381, 0
        %2413 = vmatprep.subr.mxu0 0.0
        %2414 = vmatpush1.xpose.msra.mxu0 0.0
        %2415 = vmatprep.subr.mxu0 0.0
        %2416 = vmatpush1.xpose.msra.mxu0 0.0
        %2417 = vmatprep.subr.mxu0 0.0
        %2418 = vmatpush1.xpose.msra.mxu0 0.0
        %2419 = vmatprep.subr.mxu0 0.0
        %2420 = vmatpush1.xpose.msra.mxu0 0.0
        %2421 = vmatprep.subr.mxu0 0.0
        %2422 = vmatpush1.xpose.msra.mxu0 0.0
        %2423 = vmatprep.subr.mxu0 0.0
        %2424 = vmatpush1.xpose.msra.mxu0 0.0
        %2425 = vmatprep.subr.mxu0 0.0
        %2426 = vmatpush1.xpose.msra.mxu0 0.0
        %2427 = vmatprep.subr.mxu0 0.0
        %2428 = vmatpush1.xpose.msra.mxu0 0.0
        %2429 = vmatprep.subr.mxu0 0.0
        %2430 = vmatpush1.xpose.msra.mxu0 0.0
        %2431 = vmatprep.subr.mxu0 0.0
        %2432 = vmatpush1.xpose.msra.mxu0 0.0
        %2433 = vmatprep.subr.mxu0 0.0
        %2434 = vmatpush1.xpose.msra.mxu0 0.0
        %2435 = vmatprep.subr.mxu0 0.0
        %2436 = vmatpush1.xpose.msra.mxu0 0.0
        %2437 = vmatprep.subr.mxu0 0.0
        %2438 = vmatpush1.xpose.msra.mxu0 0.0
        %2439 = vmatprep.subr.mxu0 0.0
        %2440 = vmatpush1.xpose.msra.mxu0 0.0
        %2441 = vmatprep.subr.mxu0 0.0
        %2442 = vmatpush1.xpose.msra.mxu0 0.0
        %2443 = vmatprep.subr.mxu0 0.0
        %2444 = vmatpush1.xpose.msra.mxu0 %v2411
        %2445 = vmatprep.subr.mxu0 0.0
        %2446 = vmatpush2.xpose.msra.mxu0 0.0
        %2447 = vmatprep.subr.mxu0 0.0
        %2448 = vmatpush2.xpose.msra.mxu0 0.0
        %2449 = vmatprep.subr.mxu0 0.0
        %2450 = vmatpush2.xpose.msra.mxu0 0.0
        %2451 = vmatprep.subr.mxu0 0.0
        %2452 = vmatpush2.xpose.msra.mxu0 0.0
        %2453 = vmatprep.subr.mxu0 0.0
        %2454 = vmatpush2.xpose.msra.mxu0 0.0
        %2455 = vmatprep.subr.mxu0 0.0
        %2456 = vmatpush2.xpose.msra.mxu0 0.0
        %2457 = vmatprep.subr.mxu0 0.0
        %2458 = vmatpush2.xpose.msra.mxu0 0.0
        %2459 = vmatprep.subr.mxu0 0.0
        %2460 = vmatpush2.xpose.msra.mxu0 0.0
        %2461 = vmatprep.subr.mxu0 0.0
        %2462 = vmatpush2.xpose.msra.mxu0 0.0
        %2463 = vmatprep.subr.mxu0 0.0
        %2464 = vmatpush2.xpose.msra.mxu0 0.0
        %2465 = vmatprep.subr.mxu0 0.0
        %2466 = vmatpush2.xpose.msra.mxu0 0.0
        %2467 = vmatprep.subr.mxu0 0.0
        %2468 = vmatpush2.xpose.msra.mxu0 0.0
        %2469 = vmatprep.subr.mxu0 0.0
        %2470 = vmatpush2.xpose.msra.mxu0 0.0
        %2471 = vmatprep.subr.mxu0 0.0
        %2472 = vmatpush2.xpose.msra.mxu0 0.0
        %2473 = vmatprep.subr.mxu0 0.0
        %2474 = vmatpush2.xpose.msra.mxu0 0.0
        %2475 = vmatprep.subr.mxu0 0.0
        %2476 = vmatpush2.xpose.msra.mxu0 0.0
        %2477 = vmatprep.mubr.f32.mxu0 0.0
        %2478 = vmatmul.mubr.f32.gmra.mxu0 %v2405
        %v2479 = vpop.f32.mrf.mxu0
        %v2480 = vadd.f32 0.0, %v2479
        %v2481 = vpop.f32.mrf.mxu0
        %2482 = vmatprep.mubr.f32.mxu0 0.0
        %2483 = vmatmul.mubr.f32.gmra.mxu0 %v2408
        %v2484 = vpop.f32.mrf.mxu0
        %v2485 = vadd.f32 0.0, %v2484
        %v2486 = vpop.f32.mrf.mxu0
        %2487 = vdwg.mxu0
        %v2488 = vmul.f32 %v2480, 0.17677669
        %v2489 = vmul.f32 %v2485, 0.17677669
        %vm2490 = vcmask 64512
        %v2491 = vsel %vm2490, %v2488, -inf
        %2492 = vmax.xlane.f32.xlu0 %v2491
        %v2493 = vpop.xlane.xlu0 %2492
        %vm2494 = vcmask 57344
        %v2495 = vsel %vm2494, %v2489, -inf
        %2496 = vmax.xlane.f32.xlu0 %v2495
        %v2497 = vpop.xlane.xlu0 %2496
        %v2498 = vsub.f32 %v2488, %v2493
        %v2499 = vsub.f32 %v2489, %v2497
        %v2500 = vmul.f32 %v2498, 1.442695
        %v2501 = vpow.pop %v2500
        %v2502 = vmul.f32 %v2499, 1.442695
        %v2503 = vpow.pop %v2502
        %v2504 = vsel %vm2490, %v2501, 0.0
        %2505 = vadd.xlane.f32.xlu0 %v2504
        %v2506 = vpop.xlane.xlu0 %2505
        %v2507 = vsel %vm2494, %v2503, 0.0
        %2508 = vadd.xlane.f32.xlu0 %v2507
        %v2509 = vpop.xlane.xlu0 %2508
        %v2510 = vrcp.pop %v2506
        %v2511 = vmul.f32 %v2501, %v2510
        %v2512 = vrcp.pop %v2509
        %v2513 = vmul.f32 %v2503, %v2512
        %v2515 = vsel %vm2490, %v2511, 0
        %v2518 = vsel %vm2490, %v2513, 0
        %2520 = vmatprep.subr.mxu0 0.0
        %2521 = vmatpush1.msra.mxu0 0.0
        %2522 = vmatprep.subr.mxu0 0.0
        %2523 = vmatpush1.msra.mxu0 0.0
        %2524 = vmatprep.subr.mxu0 0.0
        %2525 = vmatpush1.msra.mxu0 0.0
        %2526 = vmatprep.subr.mxu0 0.0
        %2527 = vmatpush1.msra.mxu0 0.0
        %2528 = vmatprep.subr.mxu0 0.0
        %2529 = vmatpush1.msra.mxu0 0.0
        %2530 = vmatprep.subr.mxu0 0.0
        %2531 = vmatpush1.msra.mxu0 0.0
        %2532 = vmatprep.subr.mxu0 0.0
        %2533 = vmatpush1.msra.mxu0 0.0
        %2534 = vmatprep.subr.mxu0 0.0
        %2535 = vmatpush1.msra.mxu0 0.0
        %2536 = vmatprep.subr.mxu0 0.0
        %2537 = vmatpush1.msra.mxu0 0.0
        %2538 = vmatprep.subr.mxu0 0.0
        %2539 = vmatpush1.msra.mxu0 0.0
        %2540 = vmatprep.subr.mxu0 0.0
        %2541 = vmatpush1.msra.mxu0 0.0
        %2542 = vmatprep.subr.mxu0 0.0
        %2543 = vmatpush1.msra.mxu0 0.0
        %2544 = vmatprep.subr.mxu0 0.0
        %2545 = vmatpush1.msra.mxu0 0.0
        %2546 = vmatprep.subr.mxu0 0.0
        %2547 = vmatpush1.msra.mxu0 0.0
        %2548 = vmatprep.subr.mxu0 0.0
        %2549 = vmatpush1.msra.mxu0 0.0
        %2550 = vmatprep.subr.mxu0 0.0
        %2551 = vmatpush1.msra.mxu0 %v2383
        %2552 = vmatprep.subr.mxu0 0.0
        %2553 = vmatpush2.msra.mxu0 0.0
        %2554 = vmatprep.subr.mxu0 0.0
        %2555 = vmatpush2.msra.mxu0 0.0
        %2556 = vmatprep.subr.mxu0 0.0
        %2557 = vmatpush2.msra.mxu0 0.0
        %2558 = vmatprep.subr.mxu0 0.0
        %2559 = vmatpush2.msra.mxu0 0.0
        %2560 = vmatprep.subr.mxu0 0.0
        %2561 = vmatpush2.msra.mxu0 0.0
        %2562 = vmatprep.subr.mxu0 0.0
        %2563 = vmatpush2.msra.mxu0 0.0
        %2564 = vmatprep.subr.mxu0 0.0
        %2565 = vmatpush2.msra.mxu0 0.0
        %2566 = vmatprep.subr.mxu0 0.0
        %2567 = vmatpush2.msra.mxu0 0.0
        %2568 = vmatprep.subr.mxu0 0.0
        %2569 = vmatpush2.msra.mxu0 0.0
        %2570 = vmatprep.subr.mxu0 0.0
        %2571 = vmatpush2.msra.mxu0 0.0
        %2572 = vmatprep.subr.mxu0 0.0
        %2573 = vmatpush2.msra.mxu0 0.0
        %2574 = vmatprep.subr.mxu0 0.0
        %2575 = vmatpush2.msra.mxu0 0.0
        %2576 = vmatprep.subr.mxu0 0.0
        %2577 = vmatpush2.msra.mxu0 0.0
        %2578 = vmatprep.subr.mxu0 0.0
        %2579 = vmatpush2.msra.mxu0 0.0
        %2580 = vmatprep.subr.mxu0 0.0
        %2581 = vmatpush2.msra.mxu0 0.0
        %2582 = vmatprep.subr.mxu0 0.0
        %2583 = vmatpush2.msra.mxu0 0.0
        %2584 = vmatprep.mubr.f32.mxu0 0.0
        %2585 = vmatmul.mubr.f32.gmra.mxu0 %v2515
        %v2586 = vpop.f32.mrf.mxu0
        %v2587 = vadd.f32 0.0, %v2586
        %v2588 = vpop.f32.mrf.mxu0
        %2589 = vmatprep.mubr.f32.mxu0 0.0
        %2590 = vmatmul.mubr.f32.gmra.mxu0 %v2518
        %v2591 = vpop.f32.mrf.mxu0
        %v2592 = vadd.f32 0.0, %v2591
        %v2593 = vpop.f32.mrf.mxu0
        %2594 = vdwg.mxu0
        %v2596 = vsel %vm939, %v2587, 0
        %v2599 = vsel %vm939, %v2592, 0
        %2601 = vmatprep.subr.mxu0 0.0
        %2602 = vmatpush1.msra.mxu0 0.0
        %2603 = vmatprep.subr.mxu0 0.0
        %2604 = vmatpush1.msra.mxu0 0.0
        %2605 = vmatprep.subr.mxu0 0.0
        %2606 = vmatpush1.msra.mxu0 0.0
        %2607 = vmatprep.subr.mxu0 0.0
        %2608 = vmatpush1.msra.mxu0 0.0
        %2609 = vmatprep.subr.mxu0 0.0
        %2610 = vmatpush1.msra.mxu0 0.0
        %2611 = vmatprep.subr.mxu0 0.0
        %2612 = vmatpush1.msra.mxu0 0.0
        %2613 = vmatprep.subr.mxu0 0.0
        %2614 = vmatpush1.msra.mxu0 0.0
        %2615 = vmatprep.subr.mxu0 0.0
        %2616 = vmatpush1.msra.mxu0 0.0
        %2617 = vmatprep.subr.mxu0 0.0
        %2618 = vmatpush1.msra.mxu0 0.0
        %2619 = vmatprep.subr.mxu0 0.0
        %2620 = vmatpush1.msra.mxu0 0.0
        %2621 = vmatprep.subr.mxu0 0.0
        %2622 = vmatpush1.msra.mxu0 0.0
        %2623 = vmatprep.subr.mxu0 0.0
        %2624 = vmatpush1.msra.mxu0 0.0
        %2625 = vmatprep.subr.mxu0 0.0
        %2626 = vmatpush1.msra.mxu0 %v2390
        %2627 = vmatprep.subr.mxu0 0.0
        %2628 = vmatpush1.msra.mxu0 %v2389
        %2629 = vmatprep.subr.mxu0 0.0
        %2630 = vmatpush1.msra.mxu0 %v2388
        %2631 = vmatprep.subr.mxu0 0.0
        %2632 = vmatpush1.msra.mxu0 %v2387
        %2633 = vmatprep.subr.mxu0 0.0
        %2634 = vmatpush2.msra.mxu0 0.0
        %2635 = vmatprep.subr.mxu0 0.0
        %2636 = vmatpush2.msra.mxu0 0.0
        %2637 = vmatprep.subr.mxu0 0.0
        %2638 = vmatpush2.msra.mxu0 0.0
        %2639 = vmatprep.subr.mxu0 0.0
        %2640 = vmatpush2.msra.mxu0 0.0
        %2641 = vmatprep.subr.mxu0 0.0
        %2642 = vmatpush2.msra.mxu0 0.0
        %2643 = vmatprep.subr.mxu0 0.0
        %2644 = vmatpush2.msra.mxu0 0.0
        %2645 = vmatprep.subr.mxu0 0.0
        %2646 = vmatpush2.msra.mxu0 0.0
        %2647 = vmatprep.subr.mxu0 0.0
        %2648 = vmatpush2.msra.mxu0 0.0
        %2649 = vmatprep.subr.mxu0 0.0
        %2650 = vmatpush2.msra.mxu0 0.0
        %2651 = vmatprep.subr.mxu0 0.0
        %2652 = vmatpush2.msra.mxu0 0.0
        %2653 = vmatprep.subr.mxu0 0.0
        %2654 = vmatpush2.msra.mxu0 0.0
        %2655 = vmatprep.subr.mxu0 0.0
        %2656 = vmatpush2.msra.mxu0 0.0
        %2657 = vmatprep.subr.mxu0 0.0
        %2658 = vmatpush2.msra.mxu0 0.0
        %2659 = vmatprep.subr.mxu0 0.0
        %2660 = vmatpush2.msra.mxu0 0.0
        %2661 = vmatprep.subr.mxu0 0.0
        %2662 = vmatpush2.msra.mxu0 0.0
        %2663 = vmatprep.subr.mxu0 0.0
        %2664 = vmatpush2.msra.mxu0 0.0
        %2665 = vmatprep.mubr.f32.mxu0 0.0
        %2666 = vmatmul.mubr.f32.gmra.mxu0 %v2596
        %v2667 = vpop.f32.mrf.mxu0
        %v2668 = vadd.f32 0.0, %v2667
        %v2669 = vpop.f32.mrf.mxu0
        %2670 = vmatprep.mubr.f32.mxu0 0.0
        %2671 = vmatmul.mubr.f32.gmra.mxu0 %v2599
        %v2672 = vpop.f32.mrf.mxu0
        %v2673 = vadd.f32 0.0, %v2672
        %v2674 = vpop.f32.mrf.mxu0
        %2675 = vdwg.mxu0
        %v2677 = vlaneseq
        %v2678 = vshrl.u32 %v2677, 7
        %v2679 = vsub.s32 0, %v2678
        %v2680 = vrot.slane %v2403, %v2679
        %v2682 = vadd.f32 %v2680, %v2668
        %v2683 = vadd.f32 %v2680, %v2673
        %2684 = vrot.lane.b32.xlu0 %v2232, 96
        %v2685 = vpop.permute.xlu0 %2684
        %2686 = vrot.lane.b32.xlu0 %v2235, 96
        %v2687 = vpop.permute.xlu0 %2686
        %2688 = vrot.lane.b32.xlu0 %v2381, 96
        %v2689 = vpop.permute.xlu0 %2688
        %v2690 = vsel %vm939, %v2685, 0
        %v2692 = vsel %vm939, %v2687, 0
        %v2694 = vsel %vm939, %v2689, 0
        %2696 = vmatprep.subr.mxu0 0.0
        %2697 = vmatpush1.xpose.msra.mxu0 0.0
        %2698 = vmatprep.subr.mxu0 0.0
        %2699 = vmatpush1.xpose.msra.mxu0 0.0
        %2700 = vmatprep.subr.mxu0 0.0
        %2701 = vmatpush1.xpose.msra.mxu0 0.0
        %2702 = vmatprep.subr.mxu0 0.0
        %2703 = vmatpush1.xpose.msra.mxu0 0.0
        %2704 = vmatprep.subr.mxu0 0.0
        %2705 = vmatpush1.xpose.msra.mxu0 0.0
        %2706 = vmatprep.subr.mxu0 0.0
        %2707 = vmatpush1.xpose.msra.mxu0 0.0
        %2708 = vmatprep.subr.mxu0 0.0
        %2709 = vmatpush1.xpose.msra.mxu0 0.0
        %2710 = vmatprep.subr.mxu0 0.0
        %2711 = vmatpush1.xpose.msra.mxu0 0.0
        %2712 = vmatprep.subr.mxu0 0.0
        %2713 = vmatpush1.xpose.msra.mxu0 0.0
        %2714 = vmatprep.subr.mxu0 0.0
        %2715 = vmatpush1.xpose.msra.mxu0 0.0
        %2716 = vmatprep.subr.mxu0 0.0
        %2717 = vmatpush1.xpose.msra.mxu0 0.0
        %2718 = vmatprep.subr.mxu0 0.0
        %2719 = vmatpush1.xpose.msra.mxu0 0.0
        %2720 = vmatprep.subr.mxu0 0.0
        %2721 = vmatpush1.xpose.msra.mxu0 0.0
        %2722 = vmatprep.subr.mxu0 0.0
        %2723 = vmatpush1.xpose.msra.mxu0 0.0
        %2724 = vmatprep.subr.mxu0 0.0
        %2725 = vmatpush1.xpose.msra.mxu0 0.0
        %2726 = vmatprep.subr.mxu0 0.0
        %2727 = vmatpush1.xpose.msra.mxu0 %v2694
        %2728 = vmatprep.subr.mxu0 0.0
        %2729 = vmatpush2.xpose.msra.mxu0 0.0
        %2730 = vmatprep.subr.mxu0 0.0
        %2731 = vmatpush2.xpose.msra.mxu0 0.0
        %2732 = vmatprep.subr.mxu0 0.0
        %2733 = vmatpush2.xpose.msra.mxu0 0.0
        %2734 = vmatprep.subr.mxu0 0.0
        %2735 = vmatpush2.xpose.msra.mxu0 0.0
        %2736 = vmatprep.subr.mxu0 0.0
        %2737 = vmatpush2.xpose.msra.mxu0 0.0
        %2738 = vmatprep.subr.mxu0 0.0
        %2739 = vmatpush2.xpose.msra.mxu0 0.0
        %2740 = vmatprep.subr.mxu0 0.0
        %2741 = vmatpush2.xpose.msra.mxu0 0.0
        %2742 = vmatprep.subr.mxu0 0.0
        %2743 = vmatpush2.xpose.msra.mxu0 0.0
        %2744 = vmatprep.subr.mxu0 0.0
        %2745 = vmatpush2.xpose.msra.mxu0 0.0
        %2746 = vmatprep.subr.mxu0 0.0
        %2747 = vmatpush2.xpose.msra.mxu0 0.0
        %2748 = vmatprep.subr.mxu0 0.0
        %2749 = vmatpush2.xpose.msra.mxu0 0.0
        %2750 = vmatprep.subr.mxu0 0.0
        %2751 = vmatpush2.xpose.msra.mxu0 0.0
        %2752 = vmatprep.subr.mxu0 0.0
        %2753 = vmatpush2.xpose.msra.mxu0 0.0
        %2754 = vmatprep.subr.mxu0 0.0
        %2755 = vmatpush2.xpose.msra.mxu0 0.0
        %2756 = vmatprep.subr.mxu0 0.0
        %2757 = vmatpush2.xpose.msra.mxu0 0.0
        %2758 = vmatprep.subr.mxu0 0.0
        %2759 = vmatpush2.xpose.msra.mxu0 0.0
        %2760 = vmatprep.mubr.f32.mxu0 0.0
        %2761 = vmatmul.mubr.f32.gmra.mxu0 %v2690
        %v2762 = vpop.f32.mrf.mxu0
        %v2763 = vadd.f32 0.0, %v2762
        %v2764 = vpop.f32.mrf.mxu0
        %2765 = vmatprep.mubr.f32.mxu0 0.0
        %2766 = vmatmul.mubr.f32.gmra.mxu0 %v2692
        %v2767 = vpop.f32.mrf.mxu0
        %v2768 = vadd.f32 0.0, %v2767
        %v2769 = vpop.f32.mrf.mxu0
        %2770 = vdwg.mxu0
        %v2771 = vmul.f32 %v2763, 0.17677669
        %v2772 = vmul.f32 %v2768, 0.17677669
        %v2773 = vsel %vm2490, %v2771, -inf
        %2774 = vmax.xlane.f32.xlu0 %v2773
        %v2775 = vpop.xlane.xlu0 %2774
        %v2776 = vsel %vm2494, %v2772, -inf
        %2777 = vmax.xlane.f32.xlu0 %v2776
        %v2778 = vpop.xlane.xlu0 %2777
        %v2779 = vsub.f32 %v2771, %v2775
        %v2780 = vsub.f32 %v2772, %v2778
        %v2781 = vmul.f32 %v2779, 1.442695
        %v2782 = vpow.pop %v2781
        %v2783 = vmul.f32 %v2780, 1.442695
        %v2784 = vpow.pop %v2783
        %v2785 = vsel %vm2490, %v2782, 0.0
        %2786 = vadd.xlane.f32.xlu0 %v2785
        %v2787 = vpop.xlane.xlu0 %2786
        %v2788 = vsel %vm2494, %v2784, 0.0
        %2789 = vadd.xlane.f32.xlu0 %v2788
        %v2790 = vpop.xlane.xlu0 %2789
        %v2791 = vrcp.pop %v2787
        %v2792 = vmul.f32 %v2782, %v2791
        %v2793 = vrcp.pop %v2790
        %v2794 = vmul.f32 %v2784, %v2793
        %2796 = vrot.lane.b32.xlu0 %v2383, 96
        %v2797 = vpop.permute.xlu0 %2796
        %v2800 = vsel %vm2490, %v2792, 0
        %v2803 = vsel %vm2490, %v2794, 0
        %2805 = vmatprep.subr.mxu0 0.0
        %2806 = vmatpush1.msra.mxu0 0.0
        %2807 = vmatprep.subr.mxu0 0.0
        %2808 = vmatpush1.msra.mxu0 0.0
        %2809 = vmatprep.subr.mxu0 0.0
        %2810 = vmatpush1.msra.mxu0 0.0
        %2811 = vmatprep.subr.mxu0 0.0
        %2812 = vmatpush1.msra.mxu0 0.0
        %2813 = vmatprep.subr.mxu0 0.0
        %2814 = vmatpush1.msra.mxu0 0.0
        %2815 = vmatprep.subr.mxu0 0.0
        %2816 = vmatpush1.msra.mxu0 0.0
        %2817 = vmatprep.subr.mxu0 0.0
        %2818 = vmatpush1.msra.mxu0 0.0
        %2819 = vmatprep.subr.mxu0 0.0
        %2820 = vmatpush1.msra.mxu0 0.0
        %2821 = vmatprep.subr.mxu0 0.0
        %2822 = vmatpush1.msra.mxu0 0.0
        %2823 = vmatprep.subr.mxu0 0.0
        %2824 = vmatpush1.msra.mxu0 0.0
        %2825 = vmatprep.subr.mxu0 0.0
        %2826 = vmatpush1.msra.mxu0 0.0
        %2827 = vmatprep.subr.mxu0 0.0
        %2828 = vmatpush1.msra.mxu0 0.0
        %2829 = vmatprep.subr.mxu0 0.0
        %2830 = vmatpush1.msra.mxu0 0.0
        %2831 = vmatprep.subr.mxu0 0.0
        %2832 = vmatpush1.msra.mxu0 0.0
        %2833 = vmatprep.subr.mxu0 0.0
        %2834 = vmatpush1.msra.mxu0 0.0
        %2835 = vmatprep.subr.mxu0 0.0
        %2836 = vmatpush1.msra.mxu0 %v2797
        %2837 = vmatprep.subr.mxu0 0.0
        %2838 = vmatpush2.msra.mxu0 0.0
        %2839 = vmatprep.subr.mxu0 0.0
        %2840 = vmatpush2.msra.mxu0 0.0
        %2841 = vmatprep.subr.mxu0 0.0
        %2842 = vmatpush2.msra.mxu0 0.0
        %2843 = vmatprep.subr.mxu0 0.0
        %2844 = vmatpush2.msra.mxu0 0.0
        %2845 = vmatprep.subr.mxu0 0.0
        %2846 = vmatpush2.msra.mxu0 0.0
        %2847 = vmatprep.subr.mxu0 0.0
        %2848 = vmatpush2.msra.mxu0 0.0
        %2849 = vmatprep.subr.mxu0 0.0
        %2850 = vmatpush2.msra.mxu0 0.0
        %2851 = vmatprep.subr.mxu0 0.0
        %2852 = vmatpush2.msra.mxu0 0.0
        %2853 = vmatprep.subr.mxu0 0.0
        %2854 = vmatpush2.msra.mxu0 0.0
        %2855 = vmatprep.subr.mxu0 0.0
        %2856 = vmatpush2.msra.mxu0 0.0
        %2857 = vmatprep.subr.mxu0 0.0
        %2858 = vmatpush2.msra.mxu0 0.0
        %2859 = vmatprep.subr.mxu0 0.0
        %2860 = vmatpush2.msra.mxu0 0.0
        %2861 = vmatprep.subr.mxu0 0.0
        %2862 = vmatpush2.msra.mxu0 0.0
        %2863 = vmatprep.subr.mxu0 0.0
        %2864 = vmatpush2.msra.mxu0 0.0
        %2865 = vmatprep.subr.mxu0 0.0
        %2866 = vmatpush2.msra.mxu0 0.0
        %2867 = vmatprep.subr.mxu0 0.0
        %2868 = vmatpush2.msra.mxu0 0.0
        %2869 = vmatprep.mubr.f32.mxu0 0.0
        %2870 = vmatmul.mubr.f32.gmra.mxu0 %v2800
        %v2871 = vpop.f32.mrf.mxu0
        %v2872 = vadd.f32 0.0, %v2871
        %v2873 = vpop.f32.mrf.mxu0
        %2874 = vmatprep.mubr.f32.mxu0 0.0
        %2875 = vmatmul.mubr.f32.gmra.mxu0 %v2803
        %v2876 = vpop.f32.mrf.mxu0
        %v2877 = vadd.f32 0.0, %v2876
        %v2878 = vpop.f32.mrf.mxu0
        %2879 = vdwg.mxu0
        %v2881 = vsel %vm939, %v2872, 0
        %v2884 = vsel %vm939, %v2877, 0
        %2886 = vmatprep.subr.mxu0 0.0
        %2887 = vmatpush1.msra.mxu0 0.0
        %2888 = vmatprep.subr.mxu0 0.0
        %2889 = vmatpush1.msra.mxu0 0.0
        %2890 = vmatprep.subr.mxu0 0.0
        %2891 = vmatpush1.msra.mxu0 0.0
        %2892 = vmatprep.subr.mxu0 0.0
        %2893 = vmatpush1.msra.mxu0 0.0
        %2894 = vmatprep.subr.mxu0 0.0
        %2895 = vmatpush1.msra.mxu0 0.0
        %2896 = vmatprep.subr.mxu0 0.0
        %2897 = vmatpush1.msra.mxu0 0.0
        %2898 = vmatprep.subr.mxu0 0.0
        %2899 = vmatpush1.msra.mxu0 0.0
        %2900 = vmatprep.subr.mxu0 0.0
        %2901 = vmatpush1.msra.mxu0 0.0
        %2902 = vmatprep.subr.mxu0 0.0
        %2903 = vmatpush1.msra.mxu0 0.0
        %2904 = vmatprep.subr.mxu0 0.0
        %2905 = vmatpush1.msra.mxu0 0.0
        %2906 = vmatprep.subr.mxu0 0.0
        %2907 = vmatpush1.msra.mxu0 0.0
        %2908 = vmatprep.subr.mxu0 0.0
        %2909 = vmatpush1.msra.mxu0 0.0
        %2910 = vmatprep.subr.mxu0 0.0
        %2911 = vmatpush1.msra.mxu0 %v2394
        %2912 = vmatprep.subr.mxu0 0.0
        %2913 = vmatpush1.msra.mxu0 %v2393
        %2914 = vmatprep.subr.mxu0 0.0
        %2915 = vmatpush1.msra.mxu0 %v2392
        %2916 = vmatprep.subr.mxu0 0.0
        %2917 = vmatpush1.msra.mxu0 %v2391
        %2918 = vmatprep.subr.mxu0 0.0
        %2919 = vmatpush2.msra.mxu0 0.0
        %2920 = vmatprep.subr.mxu0 0.0
        %2921 = vmatpush2.msra.mxu0 0.0
        %2922 = vmatprep.subr.mxu0 0.0
        %2923 = vmatpush2.msra.mxu0 0.0
        %2924 = vmatprep.subr.mxu0 0.0
        %2925 = vmatpush2.msra.mxu0 0.0
        %2926 = vmatprep.subr.mxu0 0.0
        %2927 = vmatpush2.msra.mxu0 0.0
        %2928 = vmatprep.subr.mxu0 0.0
        %2929 = vmatpush2.msra.mxu0 0.0
        %2930 = vmatprep.subr.mxu0 0.0
        %2931 = vmatpush2.msra.mxu0 0.0
        %2932 = vmatprep.subr.mxu0 0.0
        %2933 = vmatpush2.msra.mxu0 0.0
        %2934 = vmatprep.subr.mxu0 0.0
        %2935 = vmatpush2.msra.mxu0 0.0
        %2936 = vmatprep.subr.mxu0 0.0
        %2937 = vmatpush2.msra.mxu0 0.0
        %2938 = vmatprep.subr.mxu0 0.0
        %2939 = vmatpush2.msra.mxu0 0.0
        %2940 = vmatprep.subr.mxu0 0.0
        %2941 = vmatpush2.msra.mxu0 0.0
        %2942 = vmatprep.subr.mxu0 0.0
        %2943 = vmatpush2.msra.mxu0 0.0
        %2944 = vmatprep.subr.mxu0 0.0
        %2945 = vmatpush2.msra.mxu0 0.0
        %2946 = vmatprep.subr.mxu0 0.0
        %2947 = vmatpush2.msra.mxu0 0.0
        %2948 = vmatprep.subr.mxu0 0.0
        %2949 = vmatpush2.msra.mxu0 0.0
        %2950 = vmatprep.mubr.f32.mxu0 0.0
        %2951 = vmatmul.mubr.f32.gmra.mxu0 %v2881
        %v2952 = vpop.f32.mrf.mxu0
        %v2953 = vadd.f32 0.0, %v2952
        %v2954 = vpop.f32.mrf.mxu0
        %2955 = vmatprep.mubr.f32.mxu0 0.0
        %2956 = vmatmul.mubr.f32.gmra.mxu0 %v2884
        %v2957 = vpop.f32.mrf.mxu0
        %v2958 = vadd.f32 0.0, %v2957
        %v2959 = vpop.f32.mrf.mxu0
        %2960 = vdwg.mxu0
        %v2961 = vadd.f32 %v2682, %v2953
        %v2962 = vadd.f32 %v2683, %v2958
        %2963 = vrot.lane.b32.xlu0 %v2232, 64
        %v2964 = vpop.permute.xlu0 %2963
        %2965 = vrot.lane.b32.xlu0 %v2235, 64
        %v2966 = vpop.permute.xlu0 %2965
        %2967 = vrot.lane.b32.xlu0 %v2381, 64
        %v2968 = vpop.permute.xlu0 %2967
        %v2969 = vsel %vm939, %v2964, 0
        %v2971 = vsel %vm939, %v2966, 0
        %v2973 = vsel %vm939, %v2968, 0
        %2975 = vmatprep.subr.mxu0 0.0
        %2976 = vmatpush1.xpose.msra.mxu0 0.0
        %2977 = vmatprep.subr.mxu0 0.0
        %2978 = vmatpush1.xpose.msra.mxu0 0.0
        %2979 = vmatprep.subr.mxu0 0.0
        %2980 = vmatpush1.xpose.msra.mxu0 0.0
        %2981 = vmatprep.subr.mxu0 0.0
        %2982 = vmatpush1.xpose.msra.mxu0 0.0
        %2983 = vmatprep.subr.mxu0 0.0
        %2984 = vmatpush1.xpose.msra.mxu0 0.0
        %2985 = vmatprep.subr.mxu0 0.0
        %2986 = vmatpush1.xpose.msra.mxu0 0.0
        %2987 = vmatprep.subr.mxu0 0.0
        %2988 = vmatpush1.xpose.msra.mxu0 0.0
        %2989 = vmatprep.subr.mxu0 0.0
        %2990 = vmatpush1.xpose.msra.mxu0 0.0
        %2991 = vmatprep.subr.mxu0 0.0
        %2992 = vmatpush1.xpose.msra.mxu0 0.0
        %2993 = vmatprep.subr.mxu0 0.0
        %2994 = vmatpush1.xpose.msra.mxu0 0.0
        %2995 = vmatprep.subr.mxu0 0.0
        %2996 = vmatpush1.xpose.msra.mxu0 0.0
        %2997 = vmatprep.subr.mxu0 0.0
        %2998 = vmatpush1.xpose.msra.mxu0 0.0
        %2999 = vmatprep.subr.mxu0 0.0
        %3000 = vmatpush1.xpose.msra.mxu0 0.0
        %3001 = vmatprep.subr.mxu0 0.0
        %3002 = vmatpush1.xpose.msra.mxu0 0.0
        %3003 = vmatprep.subr.mxu0 0.0
        %3004 = vmatpush1.xpose.msra.mxu0 0.0
        %3005 = vmatprep.subr.mxu0 0.0
        %3006 = vmatpush1.xpose.msra.mxu0 %v2973
        %3007 = vmatprep.subr.mxu0 0.0
        %3008 = vmatpush2.xpose.msra.mxu0 0.0
        %3009 = vmatprep.subr.mxu0 0.0
        %3010 = vmatpush2.xpose.msra.mxu0 0.0
        %3011 = vmatprep.subr.mxu0 0.0
        %3012 = vmatpush2.xpose.msra.mxu0 0.0
        %3013 = vmatprep.subr.mxu0 0.0
        %3014 = vmatpush2.xpose.msra.mxu0 0.0
        %3015 = vmatprep.subr.mxu0 0.0
        %3016 = vmatpush2.xpose.msra.mxu0 0.0
        %3017 = vmatprep.subr.mxu0 0.0
        %3018 = vmatpush2.xpose.msra.mxu0 0.0
        %3019 = vmatprep.subr.mxu0 0.0
        %3020 = vmatpush2.xpose.msra.mxu0 0.0
        %3021 = vmatprep.subr.mxu0 0.0
        %3022 = vmatpush2.xpose.msra.mxu0 0.0
        %3023 = vmatprep.subr.mxu0 0.0
        %3024 = vmatpush2.xpose.msra.mxu0 0.0
        %3025 = vmatprep.subr.mxu0 0.0
        %3026 = vmatpush2.xpose.msra.mxu0 0.0
        %3027 = vmatprep.subr.mxu0 0.0
        %3028 = vmatpush2.xpose.msra.mxu0 0.0
        %3029 = vmatprep.subr.mxu0 0.0
        %3030 = vmatpush2.xpose.msra.mxu0 0.0
        %3031 = vmatprep.subr.mxu0 0.0
        %3032 = vmatpush2.xpose.msra.mxu0 0.0
        %3033 = vmatprep.subr.mxu0 0.0
        %3034 = vmatpush2.xpose.msra.mxu0 0.0
        %3035 = vmatprep.subr.mxu0 0.0
        %3036 = vmatpush2.xpose.msra.mxu0 0.0
        %3037 = vmatprep.subr.mxu0 0.0
        %3038 = vmatpush2.xpose.msra.mxu0 0.0
        %3039 = vmatprep.mubr.f32.mxu0 0.0
        %3040 = vmatmul.mubr.f32.gmra.mxu0 %v2969
        %v3041 = vpop.f32.mrf.mxu0
        %v3042 = vadd.f32 0.0, %v3041
        %v3043 = vpop.f32.mrf.mxu0
        %3044 = vmatprep.mubr.f32.mxu0 0.0
        %3045 = vmatmul.mubr.f32.gmra.mxu0 %v2971
        %v3046 = vpop.f32.mrf.mxu0
        %v3047 = vadd.f32 0.0, %v3046
        %v3048 = vpop.f32.mrf.mxu0
        %3049 = vdwg.mxu0
        %v3050 = vmul.f32 %v3042, 0.17677669
        %v3051 = vmul.f32 %v3047, 0.17677669
        %v3052 = vsel %vm2490, %v3050, -inf
        %3053 = vmax.xlane.f32.xlu0 %v3052
        %v3054 = vpop.xlane.xlu0 %3053
        %v3055 = vsel %vm2494, %v3051, -inf
        %3056 = vmax.xlane.f32.xlu0 %v3055
        %v3057 = vpop.xlane.xlu0 %3056
        %v3058 = vsub.f32 %v3050, %v3054
        %v3059 = vsub.f32 %v3051, %v3057
        %v3060 = vmul.f32 %v3058, 1.442695
        %v3061 = vpow.pop %v3060
        %v3062 = vmul.f32 %v3059, 1.442695
        %v3063 = vpow.pop %v3062
        %v3064 = vsel %vm2490, %v3061, 0.0
        %3065 = vadd.xlane.f32.xlu0 %v3064
        %v3066 = vpop.xlane.xlu0 %3065
        %v3067 = vsel %vm2494, %v3063, 0.0
        %3068 = vadd.xlane.f32.xlu0 %v3067
        %v3069 = vpop.xlane.xlu0 %3068
        %v3070 = vrcp.pop %v3066
        %v3071 = vmul.f32 %v3061, %v3070
        %v3072 = vrcp.pop %v3069
        %v3073 = vmul.f32 %v3063, %v3072
        %3074 = vrot.lane.b32.xlu0 %v2383, 64
        %v3075 = vpop.permute.xlu0 %3074
        %v3078 = vsel %vm2490, %v3071, 0
        %v3081 = vsel %vm2490, %v3073, 0
        %3083 = vmatprep.subr.mxu0 0.0
        %3084 = vmatpush1.msra.mxu0 0.0
        %3085 = vmatprep.subr.mxu0 0.0
        %3086 = vmatpush1.msra.mxu0 0.0
        %3087 = vmatprep.subr.mxu0 0.0
        %3088 = vmatpush1.msra.mxu0 0.0
        %3089 = vmatprep.subr.mxu0 0.0
        %3090 = vmatpush1.msra.mxu0 0.0
        %3091 = vmatprep.subr.mxu0 0.0
        %3092 = vmatpush1.msra.mxu0 0.0
        %3093 = vmatprep.subr.mxu0 0.0
        %3094 = vmatpush1.msra.mxu0 0.0
        %3095 = vmatprep.subr.mxu0 0.0
        %3096 = vmatpush1.msra.mxu0 0.0
        %3097 = vmatprep.subr.mxu0 0.0
        %3098 = vmatpush1.msra.mxu0 0.0
        %3099 = vmatprep.subr.mxu0 0.0
        %3100 = vmatpush1.msra.mxu0 0.0
        %3101 = vmatprep.subr.mxu0 0.0
        %3102 = vmatpush1.msra.mxu0 0.0
        %3103 = vmatprep.subr.mxu0 0.0
        %3104 = vmatpush1.msra.mxu0 0.0
        %3105 = vmatprep.subr.mxu0 0.0
        %3106 = vmatpush1.msra.mxu0 0.0
        %3107 = vmatprep.subr.mxu0 0.0
        %3108 = vmatpush1.msra.mxu0 0.0
        %3109 = vmatprep.subr.mxu0 0.0
        %3110 = vmatpush1.msra.mxu0 0.0
        %3111 = vmatprep.subr.mxu0 0.0
        %3112 = vmatpush1.msra.mxu0 0.0
        %3113 = vmatprep.subr.mxu0 0.0
        %3114 = vmatpush1.msra.mxu0 %v3075
        %3115 = vmatprep.subr.mxu0 0.0
        %3116 = vmatpush2.msra.mxu0 0.0
        %3117 = vmatprep.subr.mxu0 0.0
        %3118 = vmatpush2.msra.mxu0 0.0
        %3119 = vmatprep.subr.mxu0 0.0
        %3120 = vmatpush2.msra.mxu0 0.0
        %3121 = vmatprep.subr.mxu0 0.0
        %3122 = vmatpush2.msra.mxu0 0.0
        %3123 = vmatprep.subr.mxu0 0.0
        %3124 = vmatpush2.msra.mxu0 0.0
        %3125 = vmatprep.subr.mxu0 0.0
        %3126 = vmatpush2.msra.mxu0 0.0
        %3127 = vmatprep.subr.mxu0 0.0
        %3128 = vmatpush2.msra.mxu0 0.0
        %3129 = vmatprep.subr.mxu0 0.0
        %3130 = vmatpush2.msra.mxu0 0.0
        %3131 = vmatprep.subr.mxu0 0.0
        %3132 = vmatpush2.msra.mxu0 0.0
        %3133 = vmatprep.subr.mxu0 0.0
        %3134 = vmatpush2.msra.mxu0 0.0
        %3135 = vmatprep.subr.mxu0 0.0
        %3136 = vmatpush2.msra.mxu0 0.0
        %3137 = vmatprep.subr.mxu0 0.0
        %3138 = vmatpush2.msra.mxu0 0.0
        %3139 = vmatprep.subr.mxu0 0.0
        %3140 = vmatpush2.msra.mxu0 0.0
        %3141 = vmatprep.subr.mxu0 0.0
        %3142 = vmatpush2.msra.mxu0 0.0
        %3143 = vmatprep.subr.mxu0 0.0
        %3144 = vmatpush2.msra.mxu0 0.0
        %3145 = vmatprep.subr.mxu0 0.0
        %3146 = vmatpush2.msra.mxu0 0.0
        %3147 = vmatprep.mubr.f32.mxu0 0.0
        %3148 = vmatmul.mubr.f32.gmra.mxu0 %v3078
        %v3149 = vpop.f32.mrf.mxu0
        %v3150 = vadd.f32 0.0, %v3149
        %v3151 = vpop.f32.mrf.mxu0
        %3152 = vmatprep.mubr.f32.mxu0 0.0
        %3153 = vmatmul.mubr.f32.gmra.mxu0 %v3081
        %v3154 = vpop.f32.mrf.mxu0
        %v3155 = vadd.f32 0.0, %v3154
        %v3156 = vpop.f32.mrf.mxu0
        %3157 = vdwg.mxu0
        %v3159 = vsel %vm939, %v3150, 0
        %v3162 = vsel %vm939, %v3155, 0
        %3164 = vmatprep.subr.mxu0 0.0
        %3165 = vmatpush1.msra.mxu0 0.0
        %3166 = vmatprep.subr.mxu0 0.0
        %3167 = vmatpush1.msra.mxu0 0.0
        %3168 = vmatprep.subr.mxu0 0.0
        %3169 = vmatpush1.msra.mxu0 0.0
        %3170 = vmatprep.subr.mxu0 0.0
        %3171 = vmatpush1.msra.mxu0 0.0
        %3172 = vmatprep.subr.mxu0 0.0
        %3173 = vmatpush1.msra.mxu0 0.0
        %3174 = vmatprep.subr.mxu0 0.0
        %3175 = vmatpush1.msra.mxu0 0.0
        %3176 = vmatprep.subr.mxu0 0.0
        %3177 = vmatpush1.msra.mxu0 0.0
        %3178 = vmatprep.subr.mxu0 0.0
        %3179 = vmatpush1.msra.mxu0 0.0
        %3180 = vmatprep.subr.mxu0 0.0
        %3181 = vmatpush1.msra.mxu0 0.0
        %3182 = vmatprep.subr.mxu0 0.0
        %3183 = vmatpush1.msra.mxu0 0.0
        %3184 = vmatprep.subr.mxu0 0.0
        %3185 = vmatpush1.msra.mxu0 0.0
        %3186 = vmatprep.subr.mxu0 0.0
        %3187 = vmatpush1.msra.mxu0 0.0
        %3188 = vmatprep.subr.mxu0 0.0
        %3189 = vmatpush1.msra.mxu0 %v2398
        %3190 = vmatprep.subr.mxu0 0.0
        %3191 = vmatpush1.msra.mxu0 %v2397
        %3192 = vmatprep.subr.mxu0 0.0
        %3193 = vmatpush1.msra.mxu0 %v2396
        %3194 = vmatprep.subr.mxu0 0.0
        %3195 = vmatpush1.msra.mxu0 %v2395
        %3196 = vmatprep.subr.mxu0 0.0
        %3197 = vmatpush2.msra.mxu0 0.0
        %3198 = vmatprep.subr.mxu0 0.0
        %3199 = vmatpush2.msra.mxu0 0.0
        %3200 = vmatprep.subr.mxu0 0.0
        %3201 = vmatpush2.msra.mxu0 0.0
        %3202 = vmatprep.subr.mxu0 0.0
        %3203 = vmatpush2.msra.mxu0 0.0
        %3204 = vmatprep.subr.mxu0 0.0
        %3205 = vmatpush2.msra.mxu0 0.0
        %3206 = vmatprep.subr.mxu0 0.0
        %3207 = vmatpush2.msra.mxu0 0.0
        %3208 = vmatprep.subr.mxu0 0.0
        %3209 = vmatpush2.msra.mxu0 0.0
        %3210 = vmatprep.subr.mxu0 0.0
        %3211 = vmatpush2.msra.mxu0 0.0
        %3212 = vmatprep.subr.mxu0 0.0
        %3213 = vmatpush2.msra.mxu0 0.0
        %3214 = vmatprep.subr.mxu0 0.0
        %3215 = vmatpush2.msra.mxu0 0.0
        %3216 = vmatprep.subr.mxu0 0.0
        %3217 = vmatpush2.msra.mxu0 0.0
        %3218 = vmatprep.subr.mxu0 0.0
        %3219 = vmatpush2.msra.mxu0 0.0
        %3220 = vmatprep.subr.mxu0 0.0
        %3221 = vmatpush2.msra.mxu0 0.0
        %3222 = vmatprep.subr.mxu0 0.0
        %3223 = vmatpush2.msra.mxu0 0.0
        %3224 = vmatprep.subr.mxu0 0.0
        %3225 = vmatpush2.msra.mxu0 0.0
        %3226 = vmatprep.subr.mxu0 0.0
        %3227 = vmatpush2.msra.mxu0 0.0
        %3228 = vmatprep.mubr.f32.mxu0 0.0
        %3229 = vmatmul.mubr.f32.gmra.mxu0 %v3159
        %v3230 = vpop.f32.mrf.mxu0
        %v3231 = vadd.f32 0.0, %v3230
        %v3232 = vpop.f32.mrf.mxu0
        %3233 = vmatprep.mubr.f32.mxu0 0.0
        %3234 = vmatmul.mubr.f32.gmra.mxu0 %v3162
        %v3235 = vpop.f32.mrf.mxu0
        %v3236 = vadd.f32 0.0, %v3235
        %v3237 = vpop.f32.mrf.mxu0
        %3238 = vdwg.mxu0
        %v3239 = vadd.f32 %v2961, %v3231
        %v3240 = vadd.f32 %v2962, %v3236
        %3241 = vrot.lane.b32.xlu0 %v2232, 32
        %v3242 = vpop.permute.xlu0 %3241
        %3243 = vrot.lane.b32.xlu0 %v2235, 32
        %v3244 = vpop.permute.xlu0 %3243
        %3245 = vrot.lane.b32.xlu0 %v2381, 32
        %v3246 = vpop.permute.xlu0 %3245
        %v3247 = vsel %vm939, %v3242, 0
        %v3249 = vsel %vm939, %v3244, 0
        %v3251 = vsel %vm939, %v3246, 0
        %3253 = vmatprep.subr.mxu0 0.0
        %3254 = vmatpush1.xpose.msra.mxu0 0.0
        %3255 = vmatprep.subr.mxu0 0.0
        %3256 = vmatpush1.xpose.msra.mxu0 0.0
        %3257 = vmatprep.subr.mxu0 0.0
        %3258 = vmatpush1.xpose.msra.mxu0 0.0
        %3259 = vmatprep.subr.mxu0 0.0
        %3260 = vmatpush1.xpose.msra.mxu0 0.0
        %3261 = vmatprep.subr.mxu0 0.0
        %3262 = vmatpush1.xpose.msra.mxu0 0.0
        %3263 = vmatprep.subr.mxu0 0.0
        %3264 = vmatpush1.xpose.msra.mxu0 0.0
        %3265 = vmatprep.subr.mxu0 0.0
        %3266 = vmatpush1.xpose.msra.mxu0 0.0
        %3267 = vmatprep.subr.mxu0 0.0
        %3268 = vmatpush1.xpose.msra.mxu0 0.0
        %3269 = vmatprep.subr.mxu0 0.0
        %3270 = vmatpush1.xpose.msra.mxu0 0.0
        %3271 = vmatprep.subr.mxu0 0.0
        %3272 = vmatpush1.xpose.msra.mxu0 0.0
        %3273 = vmatprep.subr.mxu0 0.0
        %3274 = vmatpush1.xpose.msra.mxu0 0.0
        %3275 = vmatprep.subr.mxu0 0.0
        %3276 = vmatpush1.xpose.msra.mxu0 0.0
        %3277 = vmatprep.subr.mxu0 0.0
        %3278 = vmatpush1.xpose.msra.mxu0 0.0
        %3279 = vmatprep.subr.mxu0 0.0
        %3280 = vmatpush1.xpose.msra.mxu0 0.0
        %3281 = vmatprep.subr.mxu0 0.0
        %3282 = vmatpush1.xpose.msra.mxu0 0.0
        %3283 = vmatprep.subr.mxu0 0.0
        %3284 = vmatpush1.xpose.msra.mxu0 %v3251
        %3285 = vmatprep.subr.mxu0 0.0
        %3286 = vmatpush2.xpose.msra.mxu0 0.0
        %3287 = vmatprep.subr.mxu0 0.0
        %3288 = vmatpush2.xpose.msra.mxu0 0.0
        %3289 = vmatprep.subr.mxu0 0.0
        %3290 = vmatpush2.xpose.msra.mxu0 0.0
        %3291 = vmatprep.subr.mxu0 0.0
        %3292 = vmatpush2.xpose.msra.mxu0 0.0
        %3293 = vmatprep.subr.mxu0 0.0
        %3294 = vmatpush2.xpose.msra.mxu0 0.0
        %3295 = vmatprep.subr.mxu0 0.0
        %3296 = vmatpush2.xpose.msra.mxu0 0.0
        %3297 = vmatprep.subr.mxu0 0.0
        %3298 = vmatpush2.xpose.msra.mxu0 0.0
        %3299 = vmatprep.subr.mxu0 0.0
        %3300 = vmatpush2.xpose.msra.mxu0 0.0
        %3301 = vmatprep.subr.mxu0 0.0
        %3302 = vmatpush2.xpose.msra.mxu0 0.0
        %3303 = vmatprep.subr.mxu0 0.0
        %3304 = vmatpush2.xpose.msra.mxu0 0.0
        %3305 = vmatprep.subr.mxu0 0.0
        %3306 = vmatpush2.xpose.msra.mxu0 0.0
        %3307 = vmatprep.subr.mxu0 0.0
        %3308 = vmatpush2.xpose.msra.mxu0 0.0
        %3309 = vmatprep.subr.mxu0 0.0
        %3310 = vmatpush2.xpose.msra.mxu0 0.0
        %3311 = vmatprep.subr.mxu0 0.0
        %3312 = vmatpush2.xpose.msra.mxu0 0.0
        %3313 = vmatprep.subr.mxu0 0.0
        %3314 = vmatpush2.xpose.msra.mxu0 0.0
        %3315 = vmatprep.subr.mxu0 0.0
        %3316 = vmatpush2.xpose.msra.mxu0 0.0
        %3317 = vmatprep.mubr.f32.mxu0 0.0
        %3318 = vmatmul.mubr.f32.gmra.mxu0 %v3247
        %v3319 = vpop.f32.mrf.mxu0
        %v3320 = vadd.f32 0.0, %v3319
        %v3321 = vpop.f32.mrf.mxu0
        %3322 = vmatprep.mubr.f32.mxu0 0.0
        %3323 = vmatmul.mubr.f32.gmra.mxu0 %v3249
        %v3324 = vpop.f32.mrf.mxu0
        %v3325 = vadd.f32 0.0, %v3324
        %v3326 = vpop.f32.mrf.mxu0
        %3327 = vdwg.mxu0
        %v3328 = vmul.f32 %v3320, 0.17677669
        %v3329 = vmul.f32 %v3325, 0.17677669
        %v3330 = vsel %vm2490, %v3328, -inf
        %3331 = vmax.xlane.f32.xlu0 %v3330
        %v3332 = vpop.xlane.xlu0 %3331
        %v3333 = vsel %vm2494, %v3329, -inf
        %3334 = vmax.xlane.f32.xlu0 %v3333
        %v3335 = vpop.xlane.xlu0 %3334
        %v3336 = vsub.f32 %v3328, %v3332
        %v3337 = vsub.f32 %v3329, %v3335
        %v3338 = vmul.f32 %v3336, 1.442695
        %v3339 = vpow.pop %v3338
        %v3340 = vmul.f32 %v3337, 1.442695
        %v3341 = vpow.pop %v3340
        %v3342 = vsel %vm2490, %v3339, 0.0
        %3343 = vadd.xlane.f32.xlu0 %v3342
        %v3344 = vpop.xlane.xlu0 %3343
        %v3345 = vsel %vm2494, %v3341, 0.0
        %3346 = vadd.xlane.f32.xlu0 %v3345
        %v3347 = vpop.xlane.xlu0 %3346
        %v3348 = vrcp.pop %v3344
        %v3349 = vmul.f32 %v3339, %v3348
        %v3350 = vrcp.pop %v3347
        %v3351 = vmul.f32 %v3341, %v3350
        %3352 = vrot.lane.b32.xlu0 %v2383, 32
        %v3353 = vpop.permute.xlu0 %3352
        %v3356 = vsel %vm2490, %v3349, 0
        %v3359 = vsel %vm2490, %v3351, 0
        %3361 = vmatprep.subr.mxu0 0.0
        %3362 = vmatpush1.msra.mxu0 0.0
        %3363 = vmatprep.subr.mxu0 0.0
        %3364 = vmatpush1.msra.mxu0 0.0
        %3365 = vmatprep.subr.mxu0 0.0
        %3366 = vmatpush1.msra.mxu0 0.0
        %3367 = vmatprep.subr.mxu0 0.0
        %3368 = vmatpush1.msra.mxu0 0.0
        %3369 = vmatprep.subr.mxu0 0.0
        %3370 = vmatpush1.msra.mxu0 0.0
        %3371 = vmatprep.subr.mxu0 0.0
        %3372 = vmatpush1.msra.mxu0 0.0
        %3373 = vmatprep.subr.mxu0 0.0
        %3374 = vmatpush1.msra.mxu0 0.0
        %3375 = vmatprep.subr.mxu0 0.0
        %3376 = vmatpush1.msra.mxu0 0.0
        %3377 = vmatprep.subr.mxu0 0.0
        %3378 = vmatpush1.msra.mxu0 0.0
        %3379 = vmatprep.subr.mxu0 0.0
        %3380 = vmatpush1.msra.mxu0 0.0
        %3381 = vmatprep.subr.mxu0 0.0
        %3382 = vmatpush1.msra.mxu0 0.0
        %3383 = vmatprep.subr.mxu0 0.0
        %3384 = vmatpush1.msra.mxu0 0.0
        %3385 = vmatprep.subr.mxu0 0.0
        %3386 = vmatpush1.msra.mxu0 0.0
        %3387 = vmatprep.subr.mxu0 0.0
        %3388 = vmatpush1.msra.mxu0 0.0
        %3389 = vmatprep.subr.mxu0 0.0
        %3390 = vmatpush1.msra.mxu0 0.0
        %3391 = vmatprep.subr.mxu0 0.0
        %3392 = vmatpush1.msra.mxu0 %v3353
        %3393 = vmatprep.subr.mxu0 0.0
        %3394 = vmatpush2.msra.mxu0 0.0
        %3395 = vmatprep.subr.mxu0 0.0
        %3396 = vmatpush2.msra.mxu0 0.0
        %3397 = vmatprep.subr.mxu0 0.0
        %3398 = vmatpush2.msra.mxu0 0.0
        %3399 = vmatprep.subr.mxu0 0.0
        %3400 = vmatpush2.msra.mxu0 0.0
        %3401 = vmatprep.subr.mxu0 0.0
        %3402 = vmatpush2.msra.mxu0 0.0
        %3403 = vmatprep.subr.mxu0 0.0
        %3404 = vmatpush2.msra.mxu0 0.0
        %3405 = vmatprep.subr.mxu0 0.0
        %3406 = vmatpush2.msra.mxu0 0.0
        %3407 = vmatprep.subr.mxu0 0.0
        %3408 = vmatpush2.msra.mxu0 0.0
        %3409 = vmatprep.subr.mxu0 0.0
        %3410 = vmatpush2.msra.mxu0 0.0
        %3411 = vmatprep.subr.mxu0 0.0
        %3412 = vmatpush2.msra.mxu0 0.0
        %3413 = vmatprep.subr.mxu0 0.0
        %3414 = vmatpush2.msra.mxu0 0.0
        %3415 = vmatprep.subr.mxu0 0.0
        %3416 = vmatpush2.msra.mxu0 0.0
        %3417 = vmatprep.subr.mxu0 0.0
        %3418 = vmatpush2.msra.mxu0 0.0
        %3419 = vmatprep.subr.mxu0 0.0
        %3420 = vmatpush2.msra.mxu0 0.0
        %3421 = vmatprep.subr.mxu0 0.0
        %3422 = vmatpush2.msra.mxu0 0.0
        %3423 = vmatprep.subr.mxu0 0.0
        %3424 = vmatpush2.msra.mxu0 0.0
        %3425 = vmatprep.mubr.f32.mxu0 0.0
        %3426 = vmatmul.mubr.f32.gmra.mxu0 %v3356
        %v3427 = vpop.f32.mrf.mxu0
        %v3428 = vadd.f32 0.0, %v3427
        %v3429 = vpop.f32.mrf.mxu0
        %3430 = vmatprep.mubr.f32.mxu0 0.0
        %3431 = vmatmul.mubr.f32.gmra.mxu0 %v3359
        %v3432 = vpop.f32.mrf.mxu0
        %v3433 = vadd.f32 0.0, %v3432
        %v3434 = vpop.f32.mrf.mxu0
        %3435 = vdwg.mxu0
        %v3437 = vsel %vm939, %v3428, 0
        %v3440 = vsel %vm939, %v3433, 0
        %3442 = vmatprep.subr.mxu0 0.0
        %3443 = vmatpush1.msra.mxu0 0.0
        %3444 = vmatprep.subr.mxu0 0.0
        %3445 = vmatpush1.msra.mxu0 0.0
        %3446 = vmatprep.subr.mxu0 0.0
        %3447 = vmatpush1.msra.mxu0 0.0
        %3448 = vmatprep.subr.mxu0 0.0
        %3449 = vmatpush1.msra.mxu0 0.0
        %3450 = vmatprep.subr.mxu0 0.0
        %3451 = vmatpush1.msra.mxu0 0.0
        %3452 = vmatprep.subr.mxu0 0.0
        %3453 = vmatpush1.msra.mxu0 0.0
        %3454 = vmatprep.subr.mxu0 0.0
        %3455 = vmatpush1.msra.mxu0 0.0
        %3456 = vmatprep.subr.mxu0 0.0
        %3457 = vmatpush1.msra.mxu0 0.0
        %3458 = vmatprep.subr.mxu0 0.0
        %3459 = vmatpush1.msra.mxu0 0.0
        %3460 = vmatprep.subr.mxu0 0.0
        %3461 = vmatpush1.msra.mxu0 0.0
        %3462 = vmatprep.subr.mxu0 0.0
        %3463 = vmatpush1.msra.mxu0 0.0
        %3464 = vmatprep.subr.mxu0 0.0
        %3465 = vmatpush1.msra.mxu0 0.0
        %3466 = vmatprep.subr.mxu0 0.0
        %3467 = vmatpush1.msra.mxu0 %v2402
        %3468 = vmatprep.subr.mxu0 0.0
        %3469 = vmatpush1.msra.mxu0 %v2401
        %3470 = vmatprep.subr.mxu0 0.0
        %3471 = vmatpush1.msra.mxu0 %v2400
        %3472 = vmatprep.subr.mxu0 0.0
        %3473 = vmatpush1.msra.mxu0 %v2399
        %3474 = vmatprep.subr.mxu0 0.0
        %3475 = vmatpush2.msra.mxu0 0.0
        %3476 = vmatprep.subr.mxu0 0.0
        %3477 = vmatpush2.msra.mxu0 0.0
        %3478 = vmatprep.subr.mxu0 0.0
        %3479 = vmatpush2.msra.mxu0 0.0
        %3480 = vmatprep.subr.mxu0 0.0
        %3481 = vmatpush2.msra.mxu0 0.0
        %3482 = vmatprep.subr.mxu0 0.0
        %3483 = vmatpush2.msra.mxu0 0.0
        %3484 = vmatprep.subr.mxu0 0.0
        %3485 = vmatpush2.msra.mxu0 0.0
        %3486 = vmatprep.subr.mxu0 0.0
        %3487 = vmatpush2.msra.mxu0 0.0
        %3488 = vmatprep.subr.mxu0 0.0
        %3489 = vmatpush2.msra.mxu0 0.0
        %3490 = vmatprep.subr.mxu0 0.0
        %3491 = vmatpush2.msra.mxu0 0.0
        %3492 = vmatprep.subr.mxu0 0.0
        %3493 = vmatpush2.msra.mxu0 0.0
        %3494 = vmatprep.subr.mxu0 0.0
        %3495 = vmatpush2.msra.mxu0 0.0
        %3496 = vmatprep.subr.mxu0 0.0
        %3497 = vmatpush2.msra.mxu0 0.0
        %3498 = vmatprep.subr.mxu0 0.0
        %3499 = vmatpush2.msra.mxu0 0.0
        %3500 = vmatprep.subr.mxu0 0.0
        %3501 = vmatpush2.msra.mxu0 0.0
        %3502 = vmatprep.subr.mxu0 0.0
        %3503 = vmatpush2.msra.mxu0 0.0
        %3504 = vmatprep.subr.mxu0 0.0
        %3505 = vmatpush2.msra.mxu0 0.0
        %3506 = vmatprep.mubr.f32.mxu0 0.0
        %3507 = vmatmul.mubr.f32.gmra.mxu0 %v3437
        %v3508 = vpop.f32.mrf.mxu0
        %v3509 = vadd.f32 0.0, %v3508
        %v3510 = vpop.f32.mrf.mxu0
        %3511 = vmatprep.mubr.f32.mxu0 0.0
        %3512 = vmatmul.mubr.f32.gmra.mxu0 %v3440
        %v3513 = vpop.f32.mrf.mxu0
        %v3514 = vadd.f32 0.0, %v3513
        %v3515 = vpop.f32.mrf.mxu0
        %3516 = vdwg.mxu0
        %v3517 = vadd.f32 %v3239, %v3509
        %v3518 = vadd.f32 %v3240, %v3514
        %v3519 = vadd.f32 %v2123, %v3517
        %v3520 = vadd.f32 %v2124, %v3518
        %3521 = vadd.xlane.f32.xlu0 %v3519
        %v3522 = vpop.xlane.xlu0 %3521
        %v3523 = vsel %vm1059, %v3520, 0.0
        %3524 = vadd.xlane.f32.xlu0 %v3523
        %v3525 = vpop.xlane.xlu0 %3524
        %v3526 = vmul.f32 %v3522, %v2093
        %v3527 = vmul.f32 %v3525, %v2093
        %v3528 = vsub.f32 %v3519, %v3526
        %v3529 = vsub.f32 %v3520, %v3527
        %v3530 = vmul.f32 %v3528, %v3528
        %v3531 = vmul.f32 %v3529, %v3529
        %3532 = vadd.xlane.f32.xlu0 %v3530
        %v3533 = vpop.xlane.xlu0 %3532
        %v3534 = vsel %vm1059, %v3531, 0.0
        %3535 = vadd.xlane.f32.xlu0 %v3534
        %v3536 = vpop.xlane.xlu0 %3535
        %v3537 = vmul.f32 %v3533, %v2093
        %v3538 = vmul.f32 %v3536, %v2093
        %v3539 = vadd.f32 %v3537, 1e-05
        %v3540 = vadd.f32 %v3538, 1e-05
        %v3541 = vrsqrt.pop %v3539
        %v3542 = vrsqrt.pop %v3540
        %v3543 = vmul.f32 %v3528, %v3541
        %v3544 = vmul.f32 %v3529, %v3542
        %v3545 = vlaneseq
        %v3546 = vshrl.u32 %v3545, 7
        %v3547 = vsub.s32 2, %v3546
        %v3548 = vrot.slane %v659, %v3547
        %v3549 = vmul.f32 %v3543, %v3548
        %v3550 = vmul.f32 %v3544, %v3548
        %v3551 = vlaneseq
        %v3552 = vshrl.u32 %v3551, 7
        %v3553 = vsub.s32 3, %v3552
        %v3554 = vrot.slane %v659, %v3553
        %v3555 = vadd.f32 %v3549, %v3554
        %v3556 = vadd.f32 %v3550, %v3554
        %v3557 = vpack.c.bf16 %v3556, %v3555
        %v3558 = vld [vmem:[#allocation9] sm:$0xff]
        %v3559 = vld [vmem:[#allocation9 + $0x8] sm:$0xff]
        %v3560 = vld [vmem:[#allocation9 + $0x10] sm:$0xff]
        %v3561 = vld [vmem:[#allocation9 + $0x18] sm:$0xff]
        %v3562 = vld [vmem:[#allocation9 + $0x20] sm:$0xff]
        %v3563 = vld [vmem:[#allocation9 + $0x28] sm:$0xff]
        %v3564 = vld [vmem:[#allocation9 + $0x30] sm:$0xff]
        %v3565 = vld [vmem:[#allocation9 + $0x38] sm:$0xff]
        %v3566 = vld [vmem:[#allocation9 + $0x40] sm:$0xff]
        %v3567 = vld [vmem:[#allocation9 + $0x48] sm:$0xff]
        %v3568 = vld [vmem:[#allocation9 + $0x50] sm:$0xff]
        %v3569 = vld [vmem:[#allocation9 + $0x58] sm:$0xff]
        %v3570 = vld [vmem:[#allocation9 + $0x60] sm:$0xff]
        %v3571 = vld [vmem:[#allocation9 + $0x68] sm:$0xff]
        %v3572 = vld [vmem:[#allocation9 + $0x70] sm:$0xff]
        %v3573 = vld [vmem:[#allocation9 + $0x78] sm:$0xff]
        %v3574 = vld [vmem:[%s13] sm:$0x3]
        %v3576 = vlaneseq
        %v3577 = vshrl.u32 %v3576, 7
        %v3578 = vsub.s32 0, %v3577
        %v3579 = vrot.slane %v3574, %v3578
        %v3580 = vlaneseq
        %v3581 = vshrl.u32 %v3580, 7
        %v3582 = vsub.s32 1, %v3581
        %v3583 = vrot.slane %v3574, %v3582
        %v3602 = vunpack.c.l.b16 %v3558
        %v3603 = vunpack.c.h.b16 %v3558
        %v3604 = vunpack.c.l.b16 %v3559
        %v3605 = vunpack.c.h.b16 %v3559
        %v3606 = vunpack.c.l.b16 %v3560
        %v3607 = vunpack.c.h.b16 %v3560
        %v3608 = vunpack.c.l.b16 %v3561
        %v3609 = vunpack.c.h.b16 %v3561
        %v3610 = vunpack.c.l.b16 %v3562
        %v3611 = vunpack.c.h.b16 %v3562
        %v3612 = vunpack.c.l.b16 %v3563
        %v3613 = vunpack.c.h.b16 %v3563
        %v3614 = vunpack.c.l.b16 %v3564
        %v3615 = vunpack.c.h.b16 %v3564
        %v3616 = vunpack.c.l.b16 %v3565
        %v3617 = vunpack.c.h.b16 %v3565
        %v3618 = vunpack.c.l.b16 %v3566
        %v3619 = vunpack.c.h.b16 %v3566
        %v3620 = vunpack.c.l.b16 %v3567
        %v3621 = vunpack.c.h.b16 %v3567
        %v3622 = vunpack.c.l.b16 %v3568
        %v3623 = vunpack.c.h.b16 %v3568
        %v3624 = vunpack.c.l.b16 %v3569
        %v3625 = vunpack.c.h.b16 %v3569
        %v3626 = vunpack.c.l.b16 %v3570
        %v3627 = vunpack.c.h.b16 %v3570
        %v3628 = vunpack.c.l.b16 %v3571
        %v3629 = vunpack.c.h.b16 %v3571
        %v3630 = vunpack.c.l.b16 %v3572
        %v3631 = vunpack.c.h.b16 %v3572
        %v3632 = vunpack.c.l.b16 %v3573
        %v3633 = vunpack.c.h.b16 %v3573
        %v3634 = vpack.c.b16 %v3604, %v3602
        %v3635 = vpack.c.b16 %v3605, %v3603
        %v3636 = vpack.c.b16 %v3608, %v3606
        %v3637 = vpack.c.b16 %v3609, %v3607
        %v3638 = vpack.c.b16 %v3612, %v3610
        %v3639 = vpack.c.b16 %v3613, %v3611
        %v3640 = vpack.c.b16 %v3616, %v3614
        %v3641 = vpack.c.b16 %v3617, %v3615
        %v3642 = vpack.c.b16 %v3620, %v3618
        %v3643 = vpack.c.b16 %v3621, %v3619
        %v3644 = vpack.c.b16 %v3624, %v3622
        %v3645 = vpack.c.b16 %v3625, %v3623
        %v3646 = vpack.c.b16 %v3628, %v3626
        %v3647 = vpack.c.b16 %v3629, %v3627
        %v3648 = vpack.c.b16 %v3632, %v3630
        %v3649 = vpack.c.b16 %v3633, %v3631
        %3666 = vmatprep.subr.bf16.mxu0 %v3649
        %3667 = vmatpush1.bf16.msra.mxu0 %v3648
        %3668 = vmatprep.subr.bf16.mxu0 %v3647
        %3669 = vmatpush1.bf16.msra.mxu0 %v3646
        %3670 = vmatprep.subr.bf16.mxu0 %v3645
        %3671 = vmatpush1.bf16.msra.mxu0 %v3644
        %3672 = vmatprep.subr.bf16.mxu0 %v3643
        %3673 = vmatpush1.bf16.msra.mxu0 %v3642
        %3674 = vmatprep.subr.bf16.mxu0 %v3641
        %3675 = vmatpush1.bf16.msra.mxu0 %v3640
        %3676 = vmatprep.subr.bf16.mxu0 %v3639
        %3677 = vmatpush1.bf16.msra.mxu0 %v3638
        %3678 = vmatprep.subr.bf16.mxu0 %v3637
        %3679 = vmatpush1.bf16.msra.mxu0 %v3636
        %3680 = vmatprep.subr.bf16.mxu0 %v3635
        %3681 = vmatpush1.bf16.msra.mxu0 %v3634
        %3682 = vmatprep.subr.bf16.mxu0 0
        %3683 = vmatpush2.bf16.msra.mxu0 0
        %3684 = vmatprep.subr.bf16.mxu0 0
        %3685 = vmatpush2.bf16.msra.mxu0 0
        %3686 = vmatprep.subr.bf16.mxu0 0
        %3687 = vmatpush2.bf16.msra.mxu0 0
        %3688 = vmatprep.subr.bf16.mxu0 0
        %3689 = vmatpush2.bf16.msra.mxu0 0
        %3690 = vmatprep.subr.bf16.mxu0 0
        %3691 = vmatpush2.bf16.msra.mxu0 0
        %3692 = vmatprep.subr.bf16.mxu0 0
        %3693 = vmatpush2.bf16.msra.mxu0 0
        %3694 = vmatprep.subr.bf16.mxu0 0
        %3695 = vmatpush2.bf16.msra.mxu0 0
        %3696 = vmatprep.subr.bf16.mxu0 0
        %3697 = vmatpush2.bf16.msra.mxu0 0
        %3698 = vmatprep.mubr.bf16.mxu0 0
        %3699 = vmatmul.mubr.bf16.gmra.mxu0 %v3557
        %v3700 = vpop.f32.mrf.mxu0
        %v3701 = vadd.f32 %v3579, %v3700
        %v3702 = vpop.f32.mrf.mxu0
        %v3703 = vadd.f32 %v3583, %v3702
        %v3704 = vpop.f32.mrf.mxu0
        %v3705 = vadd.f32 %v3579, %v3704
        %v3706 = vpop.f32.mrf.mxu0
        %v3707 = vadd.f32 %v3583, %v3706
        %3708 = vdwg.mxu0
        %v3709 = vmax.f32 %v3701, 0.0
        %v3710 = vmax.f32 %v3703, 0.0
        %v3711 = vmax.f32 %v3705, 0.0
        %v3712 = vmax.f32 %v3707, 0.0
        %v3713 = vpack.c.bf16 %v3711, %v3709
        %v3714 = vpack.c.bf16 %v3712, %v3710
        %v3715 = vld [vmem:[#allocation10] sm:$0xf]
        %v3716 = vld [vmem:[#allocation10 + $0x4] sm:$0xf]
        %v3717 = vld [vmem:[#allocation10 + $0x8] sm:$0xf]
        %v3718 = vld [vmem:[#allocation10 + $0xc] sm:$0xf]
        %v3719 = vld [vmem:[#allocation10 + $0x10] sm:$0xf]
        %v3720 = vld [vmem:[#allocation10 + $0x14] sm:$0xf]
        %v3721 = vld [vmem:[#allocation10 + $0x18] sm:$0xf]
        %v3722 = vld [vmem:[#allocation10 + $0x1c] sm:$0xf]
        %v3723 = vld [vmem:[#allocation10 + $0x20] sm:$0xf]
        %v3724 = vld [vmem:[#allocation10 + $0x24] sm:$0xf]
        %v3725 = vld [vmem:[#allocation10 + $0x28] sm:$0xf]
        %v3726 = vld [vmem:[#allocation10 + $0x2c] sm:$0xf]
        %v3727 = vld [vmem:[#allocation10 + $0x30] sm:$0xf]
        %v3728 = vld [vmem:[#allocation10 + $0x34] sm:$0xf]
        %v3729 = vld [vmem:[#allocation10 + $0x38] sm:$0xf]
        %v3730 = vld [vmem:[#allocation10 + $0x3c] sm:$0xf]
        %v3731 = vld [vmem:[#allocation10 + $0x40] sm:$0xf]
        %v3732 = vld [vmem:[#allocation10 + $0x44] sm:$0xf]
        %v3733 = vld [vmem:[#allocation10 + $0x48] sm:$0xf]
        %v3734 = vld [vmem:[#allocation10 + $0x4c] sm:$0xf]
        %v3735 = vld [vmem:[#allocation10 + $0x50] sm:$0xf]
        %v3736 = vld [vmem:[#allocation10 + $0x54] sm:$0xf]
        %v3737 = vld [vmem:[#allocation10 + $0x58] sm:$0xf]
        %v3738 = vld [vmem:[#allocation10 + $0x5c] sm:$0xf]
        %v3739 = vld [vmem:[#allocation10 + $0x60] sm:$0xf]
        %v3740 = vld [vmem:[#allocation10 + $0x64] sm:$0xf]
        %v3741 = vld [vmem:[#allocation10 + $0x68] sm:$0xf]
        %v3742 = vld [vmem:[#allocation10 + $0x6c] sm:$0xf]
        %v3743 = vld [vmem:[#allocation10 + $0x70] sm:$0xf]
        %v3744 = vld [vmem:[#allocation10 + $0x74] sm:$0xf]
        %v3745 = vld [vmem:[#allocation10 + $0x78] sm:$0xf]
        %v3746 = vld [vmem:[#allocation10 + $0x7c] sm:$0xf]
        %v3747 = vld [vmem:[%s15] sm:$0x1]
        %v3749 = vlaneseq
        %v3750 = vshrl.u32 %v3749, 7
        %v3751 = vsub.s32 0, %v3750
        %v3752 = vrot.slane %v3747, %v3751
        %v3786 = vunpack.c.l.b16 %v3715
        %v3787 = vunpack.c.l.b16 %v3716
        %v3788 = vunpack.c.l.b16 %v3717
        %v3789 = vunpack.c.l.b16 %v3718
        %v3790 = vunpack.c.l.b16 %v3719
        %v3791 = vunpack.c.l.b16 %v3720
        %v3792 = vunpack.c.l.b16 %v3721
        %v3793 = vunpack.c.l.b16 %v3722
        %v3794 = vunpack.c.l.b16 %v3723
        %v3795 = vunpack.c.l.b16 %v3724
        %v3796 = vunpack.c.l.b16 %v3725
        %v3797 = vunpack.c.l.b16 %v3726
        %v3798 = vunpack.c.l.b16 %v3727
        %v3799 = vunpack.c.l.b16 %v3728
        %v3800 = vunpack.c.l.b16 %v3729
        %v3801 = vunpack.c.l.b16 %v3730
        %v3802 = vunpack.c.l.b16 %v3731
        %v3803 = vunpack.c.l.b16 %v3732
        %v3804 = vunpack.c.l.b16 %v3733
        %v3805 = vunpack.c.l.b16 %v3734
        %v3806 = vunpack.c.l.b16 %v3735
        %v3807 = vunpack.c.l.b16 %v3736
        %v3808 = vunpack.c.l.b16 %v3737
        %v3809 = vunpack.c.l.b16 %v3738
        %v3810 = vunpack.c.l.b16 %v3739
        %v3811 = vunpack.c.l.b16 %v3740
        %v3812 = vunpack.c.l.b16 %v3741
        %v3813 = vunpack.c.l.b16 %v3742
        %v3814 = vunpack.c.l.b16 %v3743
        %v3815 = vunpack.c.l.b16 %v3744
        %v3816 = vunpack.c.l.b16 %v3745
        %v3817 = vunpack.c.l.b16 %v3746
        %v3818 = vpack.c.b16 %v3787, %v3786
        %v3819 = vpack.c.b16 %v3789, %v3788
        %v3820 = vpack.c.b16 %v3791, %v3790
        %v3821 = vpack.c.b16 %v3793, %v3792
        %v3822 = vpack.c.b16 %v3795, %v3794
        %v3823 = vpack.c.b16 %v3797, %v3796
        %v3824 = vpack.c.b16 %v3799, %v3798
        %v3825 = vpack.c.b16 %v3801, %v3800
        %v3826 = vpack.c.b16 %v3803, %v3802
        %v3827 = vpack.c.b16 %v3805, %v3804
        %v3828 = vpack.c.b16 %v3807, %v3806
        %v3829 = vpack.c.b16 %v3809, %v3808
        %v3830 = vpack.c.b16 %v3811, %v3810
        %v3831 = vpack.c.b16 %v3813, %v3812
        %v3832 = vpack.c.b16 %v3815, %v3814
        %v3833 = vpack.c.b16 %v3817, %v3816
        %3850 = vmatprep.subr.bf16.mxu0 0
        %3851 = vmatpush1.bf16.msra.mxu0 %v3825
        %3852 = vmatprep.subr.bf16.mxu0 0
        %3853 = vmatpush1.bf16.msra.mxu0 %v3824
        %3854 = vmatprep.subr.bf16.mxu0 0
        %3855 = vmatpush1.bf16.msra.mxu0 %v3823
        %3856 = vmatprep.subr.bf16.mxu0 0
        %3857 = vmatpush1.bf16.msra.mxu0 %v3822
        %3858 = vmatprep.subr.bf16.mxu0 0
        %3859 = vmatpush1.bf16.msra.mxu0 %v3821
        %3860 = vmatprep.subr.bf16.mxu0 0
        %3861 = vmatpush1.bf16.msra.mxu0 %v3820
        %3862 = vmatprep.subr.bf16.mxu0 0
        %3863 = vmatpush1.bf16.msra.mxu0 %v3819
        %3864 = vmatprep.subr.bf16.mxu0 0
        %3865 = vmatpush1.bf16.msra.mxu0 %v3818
        %3866 = vmatprep.subr.bf16.mxu0 0
        %3867 = vmatpush2.bf16.msra.mxu0 %v3833
        %3868 = vmatprep.subr.bf16.mxu0 0
        %3869 = vmatpush2.bf16.msra.mxu0 %v3832
        %3870 = vmatprep.subr.bf16.mxu0 0
        %3871 = vmatpush2.bf16.msra.mxu0 %v3831
        %3872 = vmatprep.subr.bf16.mxu0 0
        %3873 = vmatpush2.bf16.msra.mxu0 %v3830
        %3874 = vmatprep.subr.bf16.mxu0 0
        %3875 = vmatpush2.bf16.msra.mxu0 %v3829
        %3876 = vmatprep.subr.bf16.mxu0 0
        %3877 = vmatpush2.bf16.msra.mxu0 %v3828
        %3878 = vmatprep.subr.bf16.mxu0 0
        %3879 = vmatpush2.bf16.msra.mxu0 %v3827
        %3880 = vmatprep.subr.bf16.mxu0 0
        %3881 = vmatpush2.bf16.msra.mxu0 %v3826
        %3882 = vmatprep.mubr.bf16.mxu0 %v3714
        %3883 = vmatmul.mubr.bf16.gmra.mxu0 %v3713
        %v3884 = vpop.f32.mrf.mxu0
        %v3885 = vadd.f32 %v3752, %v3884
        %v3886 = vpop.f32.mrf.mxu0
        %v3887 = vpop.f32.mrf.mxu0
        %v3888 = vadd.f32 %v3752, %v3887
        %v3889 = vpop.f32.mrf.mxu0
        %3890 = vdwg.mxu0
        %v3891 = vadd.f32 %v3555, %v3885
        %v3892 = vadd.f32 %v3556, %v3888
        %3893 = vadd.xlane.f32.xlu0 %v3891
        %v3894 = vpop.xlane.xlu0 %3893
        %v3895 = vsel %vm1059, %v3892, 0.0
        %3896 = vadd.xlane.f32.xlu0 %v3895
        %v3897 = vpop.xlane.xlu0 %3896
        %v3898 = vmul.f32 %v3894, %v2093
        %v3899 = vmul.f32 %v3897, %v2093
        %v3900 = vsub.f32 %v3891, %v3898
        %v3901 = vsub.f32 %v3892, %v3899
        %v3902 = vmul.f32 %v3900, %v3900
        %v3903 = vmul.f32 %v3901, %v3901
        %3904 = vadd.xlane.f32.xlu0 %v3902
        %v3905 = vpop.xlane.xlu0 %3904
        %v3906 = vsel %vm1059, %v3903, 0.0
        %3907 = vadd.xlane.f32.xlu0 %v3906
        %v3908 = vpop.xlane.xlu0 %3907
        %v3909 = vmul.f32 %v3905, %v2093
        %v3910 = vmul.f32 %v3908, %v2093
        %v3911 = vadd.f32 %v3909, 1e-05
        %v3912 = vadd.f32 %v3910, 1e-05
        %v3913 = vrsqrt.pop %v3911
        %v3914 = vrsqrt.pop %v3912
        %v3915 = vmul.f32 %v3900, %v3913
        %v3916 = vmul.f32 %v3901, %v3914
        %v3917 = vlaneseq
        %v3918 = vshrl.u32 %v3917, 7
        %v3919 = vsub.s32 4, %v3918
        %v3920 = vrot.slane %v659, %v3919
        %v3921 = vmul.f32 %v3915, %v3920
        %v3922 = vmul.f32 %v3916, %v3920
        %v3923 = vlaneseq
        %v3924 = vshrl.u32 %v3923, 7
        %v3925 = vsub.s32 5, %v3924
        %v3926 = vrot.slane %v659, %v3925
        %v3927 = vadd.f32 %v3921, %v3926
        %v3928 = vadd.f32 %v3922, %v3926
        %s3929 = scalar_lea.vmem %s16, 8
        %v3930 = vld [vmem:[%s3929] sm:$0xff]
        %v3931 = vpack.c.bf16 %v3928, %v3927
        %s3932 = scalar_lea.vmem %s2, 192
        %v3933 = vld [vmem:[%s3932] sm:$0xff]
        %v3934 = vld [vmem:[%s3932 + $0x8] sm:$0xf]
        %v3935 = vld [vmem:[%s3932 + $0xc] sm:$0xff]
        %v3936 = vld [vmem:[%s3932 + $0x14] sm:$0xf]
        %v3937 = vld [vmem:[%s3932 + $0x18] sm:$0xff]
        %v3938 = vld [vmem:[%s3932 + $0x20] sm:$0xf]
        %v3939 = vld [vmem:[%s3932 + $0x24] sm:$0xff]
        %v3940 = vld [vmem:[%s3932 + $0x2c] sm:$0xf]
        %v3941 = vld [vmem:[%s3932 + $0x30] sm:$0xff]
        %v3942 = vld [vmem:[%s3932 + $0x38] sm:$0xf]
        %v3943 = vld [vmem:[%s3932 + $0x3c] sm:$0xff]
        %v3944 = vld [vmem:[%s3932 + $0x44] sm:$0xf]
        %v3945 = vld [vmem:[%s3932 + $0x48] sm:$0xff]
        %v3946 = vld [vmem:[%s3932 + $0x50] sm:$0xf]
        %v3947 = vld [vmem:[%s3932 + $0x54] sm:$0xff]
        %v3948 = vld [vmem:[%s3932 + $0x5c] sm:$0xf]
        %v3949 = vld [vmem:[%s3932 + $0x60] sm:$0xff]
        %v3950 = vld [vmem:[%s3932 + $0x68] sm:$0xf]
        %v3951 = vld [vmem:[%s3932 + $0x6c] sm:$0xff]
        %v3952 = vld [vmem:[%s3932 + $0x74] sm:$0xf]
        %v3953 = vld [vmem:[%s3932 + $0x78] sm:$0xff]
        %v3954 = vld [vmem:[%s3932 + $0x80] sm:$0xf]
        %v3955 = vld [vmem:[%s3932 + $0x84] sm:$0xff]
        %v3956 = vld [vmem:[%s3932 + $0x8c] sm:$0xf]
        %v3957 = vld [vmem:[%s3932 + $0x90] sm:$0xff]
        %v3958 = vld [vmem:[%s3932 + $0x98] sm:$0xf]
        %v3959 = vld [vmem:[%s3932 + $0x9c] sm:$0xff]
        %v3960 = vld [vmem:[%s3932 + $0xa4] sm:$0xf]
        %v3961 = vld [vmem:[%s3932 + $0xa8] sm:$0xff]
        %v3962 = vld [vmem:[%s3932 + $0xb0] sm:$0xf]
        %v3963 = vld [vmem:[%s3932 + $0xb4] sm:$0xff]
        %v3964 = vld [vmem:[%s3932 + $0xbc] sm:$0xf]
        %s3965 = scalar_lea.vmem %s3, 3
        %v3966 = vld [vmem:[%s3965] sm:$0x7]
        %v3968 = vlaneseq
        %v3969 = vshrl.u32 %v3968, 7
        %v3970 = vsub.s32 0, %v3969
        %v3971 = vrot.slane %v3966, %v3970
        %v3972 = vlaneseq
        %v3973 = vshrl.u32 %v3972, 7
        %v3974 = vsub.s32 1, %v3973
        %v3975 = vrot.slane %v3966, %v3974
        %v3976 = vlaneseq
        %v3977 = vshrl.u32 %v3976, 7
        %v3978 = vsub.s32 2, %v3977
        %v3979 = vrot.slane %v3966, %v3978
        %v4015 = vunpack.c.l.b16 %v3933
        %v4016 = vunpack.c.h.b16 %v3933
        %v4017 = vunpack.c.l.b16 %v3934
        %v4018 = vunpack.c.l.b16 %v3935
        %v4019 = vunpack.c.h.b16 %v3935
        %v4020 = vunpack.c.l.b16 %v3936
        %v4021 = vunpack.c.l.b16 %v3937
        %v4022 = vunpack.c.h.b16 %v3937
        %v4023 = vunpack.c.l.b16 %v3938
        %v4024 = vunpack.c.l.b16 %v3939
        %v4025 = vunpack.c.h.b16 %v3939
        %v4026 = vunpack.c.l.b16 %v3940
        %v4027 = vunpack.c.l.b16 %v3941
        %v4028 = vunpack.c.h.b16 %v3941
        %v4029 = vunpack.c.l.b16 %v3942
        %v4030 = vunpack.c.l.b16 %v3943
        %v4031 = vunpack.c.h.b16 %v3943
        %v4032 = vunpack.c.l.b16 %v3944
        %v4033 = vunpack.c.l.b16 %v3945
        %v4034 = vunpack.c.h.b16 %v3945
        %v4035 = vunpack.c.l.b16 %v3946
        %v4036 = vunpack.c.l.b16 %v3947
        %v4037 = vunpack.c.h.b16 %v3947
        %v4038 = vunpack.c.l.b16 %v3948
        %v4039 = vunpack.c.l.b16 %v3949
        %v4040 = vunpack.c.h.b16 %v3949
        %v4041 = vunpack.c.l.b16 %v3950
        %v4042 = vunpack.c.l.b16 %v3951
        %v4043 = vunpack.c.h.b16 %v3951
        %v4044 = vunpack.c.l.b16 %v3952
        %v4045 = vunpack.c.l.b16 %v3953
        %v4046 = vunpack.c.h.b16 %v3953
        %v4047 = vunpack.c.l.b16 %v3954
        %v4048 = vunpack.c.l.b16 %v3955
        %v4049 = vunpack.c.h.b16 %v3955
        %v4050 = vunpack.c.l.b16 %v3956
        %v4051 = vunpack.c.l.b16 %v3957
        %v4052 = vunpack.c.h.b16 %v3957
        %v4053 = vunpack.c.l.b16 %v3958
        %v4054 = vunpack.c.l.b16 %v3959
        %v4055 = vunpack.c.h.b16 %v3959
        %v4056 = vunpack.c.l.b16 %v3960
        %v4057 = vunpack.c.l.b16 %v3961
        %v4058 = vunpack.c.h.b16 %v3961
        %v4059 = vunpack.c.l.b16 %v3962
        %v4060 = vunpack.c.l.b16 %v3963
        %v4061 = vunpack.c.h.b16 %v3963
        %v4062 = vunpack.c.l.b16 %v3964
        %v4063 = vpack.c.b16 %v4018, %v4015
        %v4064 = vpack.c.b16 %v4019, %v4016
        %v4065 = vpack.c.b16 %v4020, %v4017
        %v4066 = vpack.c.b16 %v4024, %v4021
        %v4067 = vpack.c.b16 %v4025, %v4022
        %v4068 = vpack.c.b16 %v4026, %v4023
        %v4069 = vpack.c.b16 %v4030, %v4027
        %v4070 = vpack.c.b16 %v4031, %v4028
        %v4071 = vpack.c.b16 %v4032, %v4029
        %v4072 = vpack.c.b16 %v4036, %v4033
        %v4073 = vpack.c.b16 %v4037, %v4034
        %v4074 = vpack.c.b16 %v4038, %v4035
        %v4075 = vpack.c.b16 %v4042, %v4039
        %v4076 = vpack.c.b16 %v4043, %v4040
        %v4077 = vpack.c.b16 %v4044, %v4041
        %v4078 = vpack.c.b16 %v4048, %v4045
        %v4079 = vpack.c.b16 %v4049, %v4046
        %v4080 = vpack.c.b16 %v4050, %v4047
        %v4081 = vpack.c.b16 %v4054, %v4051
        %v4082 = vpack.c.b16 %v4055, %v4052
        %v4083 = vpack.c.b16 %v4056, %v4053
        %v4084 = vpack.c.b16 %v4060, %v4057
        %v4085 = vpack.c.b16 %v4061, %v4058
        %v4086 = vpack.c.b16 %v4062, %v4059
        %4111 = vmatprep.subr.bf16.mxu0 %v4085
        %4112 = vmatpush1.bf16.msra.mxu0 %v4084
        %4113 = vmatprep.subr.bf16.mxu0 %v4082
        %4114 = vmatpush1.bf16.msra.mxu0 %v4081
        %4115 = vmatprep.subr.bf16.mxu0 %v4079
        %4116 = vmatpush1.bf16.msra.mxu0 %v4078
        %4117 = vmatprep.subr.bf16.mxu0 %v4076
        %4118 = vmatpush1.bf16.msra.mxu0 %v4075
        %4119 = vmatprep.subr.bf16.mxu0 %v4073
        %4120 = vmatpush1.bf16.msra.mxu0 %v4072
        %4121 = vmatprep.subr.bf16.mxu0 %v4070
        %4122 = vmatpush1.bf16.msra.mxu0 %v4069
        %4123 = vmatprep.subr.bf16.mxu0 %v4067
        %4124 = vmatpush1.bf16.msra.mxu0 %v4066
        %4125 = vmatprep.subr.bf16.mxu0 %v4064
        %4126 = vmatpush1.bf16.msra.mxu0 %v4063
        %4127 = vmatprep.subr.bf16.mxu0 0
        %4128 = vmatpush2.bf16.msra.mxu0 0
        %4129 = vmatprep.subr.bf16.mxu0 0
        %4130 = vmatpush2.bf16.msra.mxu0 0
        %4131 = vmatprep.subr.bf16.mxu0 0
        %4132 = vmatpush2.bf16.msra.mxu0 0
        %4133 = vmatprep.subr.bf16.mxu0 0
        %4134 = vmatpush2.bf16.msra.mxu0 0
        %4135 = vmatprep.subr.bf16.mxu0 0
        %4136 = vmatpush2.bf16.msra.mxu0 0
        %4137 = vmatprep.subr.bf16.mxu0 0
        %4138 = vmatpush2.bf16.msra.mxu0 0
        %4139 = vmatprep.subr.bf16.mxu0 0
        %4140 = vmatpush2.bf16.msra.mxu0 0
        %4141 = vmatprep.subr.bf16.mxu0 0
        %4142 = vmatpush2.bf16.msra.mxu0 0
        %4143 = vmatprep.mubr.bf16.mxu0 0
        %4144 = vmatmul.mubr.bf16.gmra.mxu0 %v3931
        %v4145 = vpop.f32.mrf.mxu0
        %v4146 = vadd.f32 %v3971, %v4145
        %v4147 = vpop.f32.mrf.mxu0
        %v4148 = vadd.f32 %v3975, %v4147
        %v4149 = vpop.f32.mrf.mxu0
        %v4150 = vadd.f32 %v3971, %v4149
        %v4151 = vpop.f32.mrf.mxu0
        %v4152 = vadd.f32 %v3975, %v4151
        %4153 = vdwg.mxu0
        %4154 = vmatprep.subr.bf16.mxu0 0
        %4155 = vmatpush1.bf16.msra.mxu0 %v4086
        %4156 = vmatprep.subr.bf16.mxu0 0
        %4157 = vmatpush1.bf16.msra.mxu0 %v4083
        %4158 = vmatprep.subr.bf16.mxu0 0
        %4159 = vmatpush1.bf16.msra.mxu0 %v4080
        %4160 = vmatprep.subr.bf16.mxu0 0
        %4161 = vmatpush1.bf16.msra.mxu0 %v4077
        %4162 = vmatprep.subr.bf16.mxu0 0
        %4163 = vmatpush1.bf16.msra.mxu0 %v4074
        %4164 = vmatprep.subr.bf16.mxu0 0
        %4165 = vmatpush1.bf16.msra.mxu0 %v4071
        %4166 = vmatprep.subr.bf16.mxu0 0
        %4167 = vmatpush1.bf16.msra.mxu0 %v4068
        %4168 = vmatprep.subr.bf16.mxu0 0
        %4169 = vmatpush1.bf16.msra.mxu0 %v4065
        %4170 = vmatprep.subr.bf16.mxu0 0
        %4171 = vmatpush2.bf16.msra.mxu0 0
        %4172 = vmatprep.subr.bf16.mxu0 0
        %4173 = vmatpush2.bf16.msra.mxu0 0
        %4174 = vmatprep.subr.bf16.mxu0 0
        %4175 = vmatpush2.bf16.msra.mxu0 0
        %4176 = vmatprep.subr.bf16.mxu0 0
        %4177 = vmatpush2.bf16.msra.mxu0 0
        %4178 = vmatprep.subr.bf16.mxu0 0
        %4179 = vmatpush2.bf16.msra.mxu0 0
        %4180 = vmatprep.subr.bf16.mxu0 0
        %4181 = vmatpush2.bf16.msra.mxu0 0
        %4182 = vmatprep.subr.bf16.mxu0 0
        %4183 = vmatpush2.bf16.msra.mxu0 0
        %4184 = vmatprep.subr.bf16.mxu0 0
        %4185 = vmatpush2.bf16.msra.mxu0 0
        %4186 = vmatprep.mubr.bf16.mxu0 0
        %4187 = vmatmul.mubr.bf16.gmra.mxu0 %v3931
        %v4188 = vpop.f32.mrf.mxu0
        %v4189 = vadd.f32 %v3979, %v4188
        %v4190 = vpop.f32.mrf.mxu0
        %v4191 = vpop.f32.mrf.mxu0
        %v4192 = vadd.f32 %v3979, %v4191
        %v4193 = vpop.f32.mrf.mxu0
        %4194 = vdwg.mxu0
        %s4195 = scalar_lea.vmem [#allocation2], 128
        %v4196 = vld [vmem:[%s4195] sm:$0xff]
        %v4197 = vld [vmem:[%s4195 + $0x8] sm:$0xff]
        %v4198 = vld [vmem:[%s4195 + $0x10] sm:$0xff]
        %v4199 = vld [vmem:[%s4195 + $0x18] sm:$0xff]
        %v4200 = vld [vmem:[%s4195 + $0x20] sm:$0xff]
        %v4201 = vld [vmem:[%s4195 + $0x28] sm:$0xff]
        %v4202 = vld [vmem:[%s4195 + $0x30] sm:$0xff]
        %v4203 = vld [vmem:[%s4195 + $0x38] sm:$0xff]
        %v4204 = vld [vmem:[%s4195 + $0x40] sm:$0xff]
        %v4205 = vld [vmem:[%s4195 + $0x48] sm:$0xff]
        %v4206 = vld [vmem:[%s4195 + $0x50] sm:$0xff]
        %v4207 = vld [vmem:[%s4195 + $0x58] sm:$0xff]
        %v4208 = vld [vmem:[%s4195 + $0x60] sm:$0xff]
        %v4209 = vld [vmem:[%s4195 + $0x68] sm:$0xff]
        %v4210 = vld [vmem:[%s4195 + $0x70] sm:$0xff]
        %v4211 = vld [vmem:[%s4195 + $0x78] sm:$0xff]
        %s4212 = scalar_lea.vmem %s5, 1
        %v4213 = vld [vmem:[%s4212] sm:$0x1]
        %v4215 = vsel %vm939, %v4146, 0
        %v4218 = vsel %vm939, %v4150, 0
        %v4221 = vsel %vm939, %v4148, 0
        %v4224 = vsel %vm939, %v4152, 0
        %4226 = vmatprep.subr.mxu0 0.0
        %4227 = vmatpush1.xpose.msra.mxu0 0.0
        %4228 = vmatprep.subr.mxu0 0.0
        %4229 = vmatpush1.xpose.msra.mxu0 0.0
        %4230 = vmatprep.subr.mxu0 0.0
        %4231 = vmatpush1.xpose.msra.mxu0 0.0
        %4232 = vmatprep.subr.mxu0 0.0
        %4233 = vmatpush1.xpose.msra.mxu0 0.0
        %4234 = vmatprep.subr.mxu0 0.0
        %4235 = vmatpush1.xpose.msra.mxu0 0.0
        %4236 = vmatprep.subr.mxu0 0.0
        %4237 = vmatpush1.xpose.msra.mxu0 0.0
        %4238 = vmatprep.subr.mxu0 0.0
        %4239 = vmatpush1.xpose.msra.mxu0 0.0
        %4240 = vmatprep.subr.mxu0 0.0
        %4241 = vmatpush1.xpose.msra.mxu0 0.0
        %4242 = vmatprep.subr.mxu0 0.0
        %4243 = vmatpush1.xpose.msra.mxu0 0.0
        %4244 = vmatprep.subr.mxu0 0.0
        %4245 = vmatpush1.xpose.msra.mxu0 0.0
        %4246 = vmatprep.subr.mxu0 0.0
        %4247 = vmatpush1.xpose.msra.mxu0 0.0
        %4248 = vmatprep.subr.mxu0 0.0
        %4249 = vmatpush1.xpose.msra.mxu0 0.0
        %4250 = vmatprep.subr.mxu0 0.0
        %4251 = vmatpush1.xpose.msra.mxu0 0.0
        %4252 = vmatprep.subr.mxu0 0.0
        %4253 = vmatpush1.xpose.msra.mxu0 0.0
        %4254 = vmatprep.subr.mxu0 0.0
        %4255 = vmatpush1.xpose.msra.mxu0 %v4224
        %4256 = vmatprep.subr.mxu0 0.0
        %4257 = vmatpush1.xpose.msra.mxu0 %v4221
        %4258 = vmatprep.subr.mxu0 0.0
        %4259 = vmatpush2.xpose.msra.mxu0 0.0
        %4260 = vmatprep.subr.mxu0 0.0
        %4261 = vmatpush2.xpose.msra.mxu0 0.0
        %4262 = vmatprep.subr.mxu0 0.0
        %4263 = vmatpush2.xpose.msra.mxu0 0.0
        %4264 = vmatprep.subr.mxu0 0.0
        %4265 = vmatpush2.xpose.msra.mxu0 0.0
        %4266 = vmatprep.subr.mxu0 0.0
        %4267 = vmatpush2.xpose.msra.mxu0 0.0
        %4268 = vmatprep.subr.mxu0 0.0
        %4269 = vmatpush2.xpose.msra.mxu0 0.0
        %4270 = vmatprep.subr.mxu0 0.0
        %4271 = vmatpush2.xpose.msra.mxu0 0.0
        %4272 = vmatprep.subr.mxu0 0.0
        %4273 = vmatpush2.xpose.msra.mxu0 0.0
        %4274 = vmatprep.subr.mxu0 0.0
        %4275 = vmatpush2.xpose.msra.mxu0 0.0
        %4276 = vmatprep.subr.mxu0 0.0
        %4277 = vmatpush2.xpose.msra.mxu0 0.0
        %4278 = vmatprep.subr.mxu0 0.0
        %4279 = vmatpush2.xpose.msra.mxu0 0.0
        %4280 = vmatprep.subr.mxu0 0.0
        %4281 = vmatpush2.xpose.msra.mxu0 0.0
        %4282 = vmatprep.subr.mxu0 0.0
        %4283 = vmatpush2.xpose.msra.mxu0 0.0
        %4284 = vmatprep.subr.mxu0 0.0
        %4285 = vmatpush2.xpose.msra.mxu0 0.0
        %4286 = vmatprep.subr.mxu0 0.0
        %4287 = vmatpush2.xpose.msra.mxu0 0.0
        %4288 = vmatprep.subr.mxu0 0.0
        %4289 = vmatpush2.xpose.msra.mxu0 0.0
        %4290 = vmatprep.mubr.f32.mxu0 0.0
        %4291 = vmatmul.mubr.f32.gmra.mxu0 %v4215
        %v4292 = vpop.f32.mrf.mxu0
        %v4293 = vadd.f32 0.0, %v4292
        %v4294 = vpop.f32.mrf.mxu0
        %4295 = vmatprep.mubr.f32.mxu0 0.0
        %4296 = vmatmul.mubr.f32.gmra.mxu0 %v4218
        %v4297 = vpop.f32.mrf.mxu0
        %v4298 = vadd.f32 0.0, %v4297
        %v4299 = vpop.f32.mrf.mxu0
        %4300 = vdwg.mxu0
        %v4301 = vmul.f32 %v4293, 0.17677669
        %v4302 = vmul.f32 %v4298, 0.17677669
        %v4303 = vsel %vm1029, %v4301, -inf
        %4304 = vmax.xlane.f32.xlu0 %v4303
        %v4305 = vpop.xlane.xlu0 %4304
        %v4306 = vsel %vm1033, %v4302, -inf
        %4307 = vmax.xlane.f32.xlu0 %v4306
        %v4308 = vpop.xlane.xlu0 %4307
        %v4309 = vsub.f32 %v4301, %v4305
        %v4310 = vsub.f32 %v4302, %v4308
        %v4311 = vmul.f32 %v4309, 1.442695
        %v4312 = vpow.pop %v4311
        %v4313 = vmul.f32 %v4310, 1.442695
        %v4314 = vpow.pop %v4313
        %v4315 = vsel %vm1029, %v4312, 0.0
        %4316 = vadd.xlane.f32.xlu0 %v4315
        %v4317 = vpop.xlane.xlu0 %4316
        %v4318 = vsel %vm1033, %v4314, 0.0
        %4319 = vadd.xlane.f32.xlu0 %v4318
        %v4320 = vpop.xlane.xlu0 %4319
        %v4321 = vrcp.pop %v4317
        %v4322 = vmul.f32 %v4312, %v4321
        %v4323 = vrcp.pop %v4320
        %v4324 = vmul.f32 %v4314, %v4323
        %v4326 = vsel %vm1029, %v4322, 0
        %v4329 = vsel %vm1029, %v4324, 0
        %v4332 = vsel %vm1059, %v4192, 0
        %4334 = vmatprep.subr.mxu0 0.0
        %4335 = vmatpush1.msra.mxu0 0.0
        %4336 = vmatprep.subr.mxu0 0.0
        %4337 = vmatpush1.msra.mxu0 0.0
        %4338 = vmatprep.subr.mxu0 0.0
        %4339 = vmatpush1.msra.mxu0 0.0
        %4340 = vmatprep.subr.mxu0 0.0
        %4341 = vmatpush1.msra.mxu0 0.0
        %4342 = vmatprep.subr.mxu0 0.0
        %4343 = vmatpush1.msra.mxu0 0.0
        %4344 = vmatprep.subr.mxu0 0.0
        %4345 = vmatpush1.msra.mxu0 0.0
        %4346 = vmatprep.subr.mxu0 0.0
        %4347 = vmatpush1.msra.mxu0 0.0
        %4348 = vmatprep.subr.mxu0 0.0
        %4349 = vmatpush1.msra.mxu0 0.0
        %4350 = vmatprep.subr.mxu0 0.0
        %4351 = vmatpush1.msra.mxu0 0.0
        %4352 = vmatprep.subr.mxu0 0.0
        %4353 = vmatpush1.msra.mxu0 0.0
        %4354 = vmatprep.subr.mxu0 0.0
        %4355 = vmatpush1.msra.mxu0 0.0
        %4356 = vmatprep.subr.mxu0 0.0
        %4357 = vmatpush1.msra.mxu0 0.0
        %4358 = vmatprep.subr.mxu0 0.0
        %4359 = vmatpush1.msra.mxu0 0.0
        %4360 = vmatprep.subr.mxu0 0.0
        %4361 = vmatpush1.msra.mxu0 0.0
        %4362 = vmatprep.subr.mxu0 0.0
        %4363 = vmatpush1.msra.mxu0 %v4332
        %4364 = vmatprep.subr.mxu0 0.0
        %4365 = vmatpush1.msra.mxu0 %v4189
        %4366 = vmatprep.subr.mxu0 0.0
        %4367 = vmatpush2.msra.mxu0 0.0
        %4368 = vmatprep.subr.mxu0 0.0
        %4369 = vmatpush2.msra.mxu0 0.0
        %4370 = vmatprep.subr.mxu0 0.0
        %4371 = vmatpush2.msra.mxu0 0.0
        %4372 = vmatprep.subr.mxu0 0.0
        %4373 = vmatpush2.msra.mxu0 0.0
        %4374 = vmatprep.subr.mxu0 0.0
        %4375 = vmatpush2.msra.mxu0 0.0
        %4376 = vmatprep.subr.mxu0 0.0
        %4377 = vmatpush2.msra.mxu0 0.0
        %4378 = vmatprep.subr.mxu0 0.0
        %4379 = vmatpush2.msra.mxu0 0.0
        %4380 = vmatprep.subr.mxu0 0.0
        %4381 = vmatpush2.msra.mxu0 0.0
        %4382 = vmatprep.subr.mxu0 0.0
        %4383 = vmatpush2.msra.mxu0 0.0
        %4384 = vmatprep.subr.mxu0 0.0
        %4385 = vmatpush2.msra.mxu0 0.0
        %4386 = vmatprep.subr.mxu0 0.0
        %4387 = vmatpush2.msra.mxu0 0.0
        %4388 = vmatprep.subr.mxu0 0.0
        %4389 = vmatpush2.msra.mxu0 0.0
        %4390 = vmatprep.subr.mxu0 0.0
        %4391 = vmatpush2.msra.mxu0 0.0
        %4392 = vmatprep.subr.mxu0 0.0
        %4393 = vmatpush2.msra.mxu0 0.0
        %4394 = vmatprep.subr.mxu0 0.0
        %4395 = vmatpush2.msra.mxu0 0.0
        %4396 = vmatprep.subr.mxu0 0.0
        %4397 = vmatpush2.msra.mxu0 0.0
        %4398 = vmatprep.mubr.f32.mxu0 0.0
        %4399 = vmatmul.mubr.f32.gmra.mxu0 %v4326
        %v4400 = vpop.f32.mrf.mxu0
        %v4401 = vadd.f32 0.0, %v4400
        %v4402 = vpop.f32.mrf.mxu0
        %4403 = vmatprep.mubr.f32.mxu0 0.0
        %4404 = vmatmul.mubr.f32.gmra.mxu0 %v4329
        %v4405 = vpop.f32.mrf.mxu0
        %v4406 = vadd.f32 0.0, %v4405
        %v4407 = vpop.f32.mrf.mxu0
        %4408 = vdwg.mxu0
        %v4410 = vsel %vm939, %v4401, 0
        %v4413 = vsel %vm939, %v4406, 0
        %4415 = vmatprep.subr.mxu0 0.0
        %4416 = vmatpush1.msra.mxu0 0.0
        %4417 = vmatprep.subr.mxu0 0.0
        %4418 = vmatpush1.msra.mxu0 0.0
        %4419 = vmatprep.subr.mxu0 0.0
        %4420 = vmatpush1.msra.mxu0 0.0
        %4421 = vmatprep.subr.mxu0 0.0
        %4422 = vmatpush1.msra.mxu0 0.0
        %4423 = vmatprep.subr.mxu0 0.0
        %4424 = vmatpush1.msra.mxu0 0.0
        %4425 = vmatprep.subr.mxu0 0.0
        %4426 = vmatpush1.msra.mxu0 0.0
        %4427 = vmatprep.subr.mxu0 0.0
        %4428 = vmatpush1.msra.mxu0 0.0
        %4429 = vmatprep.subr.mxu0 0.0
        %4430 = vmatpush1.msra.mxu0 0.0
        %4431 = vmatprep.subr.mxu0 0.0
        %4432 = vmatpush1.msra.mxu0 0.0
        %4433 = vmatprep.subr.mxu0 0.0
        %4434 = vmatpush1.msra.mxu0 0.0
        %4435 = vmatprep.subr.mxu0 0.0
        %4436 = vmatpush1.msra.mxu0 0.0
        %4437 = vmatprep.subr.mxu0 0.0
        %4438 = vmatpush1.msra.mxu0 0.0
        %4439 = vmatprep.subr.mxu0 0.0
        %4440 = vmatpush1.msra.mxu0 %v4199
        %4441 = vmatprep.subr.mxu0 0.0
        %4442 = vmatpush1.msra.mxu0 %v4198
        %4443 = vmatprep.subr.mxu0 0.0
        %4444 = vmatpush1.msra.mxu0 %v4197
        %4445 = vmatprep.subr.mxu0 0.0
        %4446 = vmatpush1.msra.mxu0 %v4196
        %4447 = vmatprep.subr.mxu0 0.0
        %4448 = vmatpush2.msra.mxu0 0.0
        %4449 = vmatprep.subr.mxu0 0.0
        %4450 = vmatpush2.msra.mxu0 0.0
        %4451 = vmatprep.subr.mxu0 0.0
        %4452 = vmatpush2.msra.mxu0 0.0
        %4453 = vmatprep.subr.mxu0 0.0
        %4454 = vmatpush2.msra.mxu0 0.0
        %4455 = vmatprep.subr.mxu0 0.0
        %4456 = vmatpush2.msra.mxu0 0.0
        %4457 = vmatprep.subr.mxu0 0.0
        %4458 = vmatpush2.msra.mxu0 0.0
        %4459 = vmatprep.subr.mxu0 0.0
        %4460 = vmatpush2.msra.mxu0 0.0
        %4461 = vmatprep.subr.mxu0 0.0
        %4462 = vmatpush2.msra.mxu0 0.0
        %4463 = vmatprep.subr.mxu0 0.0
        %4464 = vmatpush2.msra.mxu0 0.0
        %4465 = vmatprep.subr.mxu0 0.0
        %4466 = vmatpush2.msra.mxu0 0.0
        %4467 = vmatprep.subr.mxu0 0.0
        %4468 = vmatpush2.msra.mxu0 0.0
        %4469 = vmatprep.subr.mxu0 0.0
        %4470 = vmatpush2.msra.mxu0 0.0
        %4471 = vmatprep.subr.mxu0 0.0
        %4472 = vmatpush2.msra.mxu0 0.0
        %4473 = vmatprep.subr.mxu0 0.0
        %4474 = vmatpush2.msra.mxu0 0.0
        %4475 = vmatprep.subr.mxu0 0.0
        %4476 = vmatpush2.msra.mxu0 0.0
        %4477 = vmatprep.subr.mxu0 0.0
        %4478 = vmatpush2.msra.mxu0 0.0
        %4479 = vmatprep.mubr.f32.mxu0 0.0
        %4480 = vmatmul.mubr.f32.gmra.mxu0 %v4410
        %v4481 = vpop.f32.mrf.mxu0
        %v4482 = vadd.f32 0.0, %v4481
        %v4483 = vpop.f32.mrf.mxu0
        %4484 = vmatprep.mubr.f32.mxu0 0.0
        %4485 = vmatmul.mubr.f32.gmra.mxu0 %v4413
        %v4486 = vpop.f32.mrf.mxu0
        %v4487 = vadd.f32 0.0, %v4486
        %v4488 = vpop.f32.mrf.mxu0
        %4489 = vdwg.mxu0
        %v4491 = vlaneseq
        %v4492 = vshrl.u32 %v4491, 7
        %v4493 = vsub.s32 0, %v4492
        %v4494 = vrot.slane %v4213, %v4493
        %v4496 = vadd.f32 %v4494, %v4482
        %v4497 = vadd.f32 %v4494, %v4487
        %4498 = vrot.lane.b32.xlu0 %v4146, 96
        %v4499 = vpop.permute.xlu0 %4498
        %4500 = vrot.lane.b32.xlu0 %v4150, 96
        %v4501 = vpop.permute.xlu0 %4500
        %4502 = vrot.lane.b32.xlu0 %v4148, 96
        %v4503 = vpop.permute.xlu0 %4502
        %4504 = vrot.lane.b32.xlu0 %v4152, 96
        %v4505 = vpop.permute.xlu0 %4504
        %v4506 = vsel %vm939, %v4499, 0
        %v4508 = vsel %vm939, %v4501, 0
        %v4510 = vsel %vm939, %v4503, 0
        %v4512 = vsel %vm939, %v4505, 0
        %4514 = vmatprep.subr.mxu0 0.0
        %4515 = vmatpush1.xpose.msra.mxu0 0.0
        %4516 = vmatprep.subr.mxu0 0.0
        %4517 = vmatpush1.xpose.msra.mxu0 0.0
        %4518 = vmatprep.subr.mxu0 0.0
        %4519 = vmatpush1.xpose.msra.mxu0 0.0
        %4520 = vmatprep.subr.mxu0 0.0
        %4521 = vmatpush1.xpose.msra.mxu0 0.0
        %4522 = vmatprep.subr.mxu0 0.0
        %4523 = vmatpush1.xpose.msra.mxu0 0.0
        %4524 = vmatprep.subr.mxu0 0.0
        %4525 = vmatpush1.xpose.msra.mxu0 0.0
        %4526 = vmatprep.subr.mxu0 0.0
        %4527 = vmatpush1.xpose.msra.mxu0 0.0
        %4528 = vmatprep.subr.mxu0 0.0
        %4529 = vmatpush1.xpose.msra.mxu0 0.0
        %4530 = vmatprep.subr.mxu0 0.0
        %4531 = vmatpush1.xpose.msra.mxu0 0.0
        %4532 = vmatprep.subr.mxu0 0.0
        %4533 = vmatpush1.xpose.msra.mxu0 0.0
        %4534 = vmatprep.subr.mxu0 0.0
        %4535 = vmatpush1.xpose.msra.mxu0 0.0
        %4536 = vmatprep.subr.mxu0 0.0
        %4537 = vmatpush1.xpose.msra.mxu0 0.0
        %4538 = vmatprep.subr.mxu0 0.0
        %4539 = vmatpush1.xpose.msra.mxu0 0.0
        %4540 = vmatprep.subr.mxu0 0.0
        %4541 = vmatpush1.xpose.msra.mxu0 0.0
        %4542 = vmatprep.subr.mxu0 0.0
        %4543 = vmatpush1.xpose.msra.mxu0 %v4512
        %4544 = vmatprep.subr.mxu0 0.0
        %4545 = vmatpush1.xpose.msra.mxu0 %v4510
        %4546 = vmatprep.subr.mxu0 0.0
        %4547 = vmatpush2.xpose.msra.mxu0 0.0
        %4548 = vmatprep.subr.mxu0 0.0
        %4549 = vmatpush2.xpose.msra.mxu0 0.0
        %4550 = vmatprep.subr.mxu0 0.0
        %4551 = vmatpush2.xpose.msra.mxu0 0.0
        %4552 = vmatprep.subr.mxu0 0.0
        %4553 = vmatpush2.xpose.msra.mxu0 0.0
        %4554 = vmatprep.subr.mxu0 0.0
        %4555 = vmatpush2.xpose.msra.mxu0 0.0
        %4556 = vmatprep.subr.mxu0 0.0
        %4557 = vmatpush2.xpose.msra.mxu0 0.0
        %4558 = vmatprep.subr.mxu0 0.0
        %4559 = vmatpush2.xpose.msra.mxu0 0.0
        %4560 = vmatprep.subr.mxu0 0.0
        %4561 = vmatpush2.xpose.msra.mxu0 0.0
        %4562 = vmatprep.subr.mxu0 0.0
        %4563 = vmatpush2.xpose.msra.mxu0 0.0
        %4564 = vmatprep.subr.mxu0 0.0
        %4565 = vmatpush2.xpose.msra.mxu0 0.0
        %4566 = vmatprep.subr.mxu0 0.0
        %4567 = vmatpush2.xpose.msra.mxu0 0.0
        %4568 = vmatprep.subr.mxu0 0.0
        %4569 = vmatpush2.xpose.msra.mxu0 0.0
        %4570 = vmatprep.subr.mxu0 0.0
        %4571 = vmatpush2.xpose.msra.mxu0 0.0
        %4572 = vmatprep.subr.mxu0 0.0
        %4573 = vmatpush2.xpose.msra.mxu0 0.0
        %4574 = vmatprep.subr.mxu0 0.0
        %4575 = vmatpush2.xpose.msra.mxu0 0.0
        %4576 = vmatprep.subr.mxu0 0.0
        %4577 = vmatpush2.xpose.msra.mxu0 0.0
        %4578 = vmatprep.mubr.f32.mxu0 0.0
        %4579 = vmatmul.mubr.f32.gmra.mxu0 %v4506
        %v4580 = vpop.f32.mrf.mxu0
        %v4581 = vadd.f32 0.0, %v4580
        %v4582 = vpop.f32.mrf.mxu0
        %4583 = vmatprep.mubr.f32.mxu0 0.0
        %4584 = vmatmul.mubr.f32.gmra.mxu0 %v4508
        %v4585 = vpop.f32.mrf.mxu0
        %v4586 = vadd.f32 0.0, %v4585
        %v4587 = vpop.f32.mrf.mxu0
        %4588 = vdwg.mxu0
        %v4589 = vmul.f32 %v4581, 0.17677669
        %v4590 = vmul.f32 %v4586, 0.17677669
        %v4591 = vsel %vm1029, %v4589, -inf
        %4592 = vmax.xlane.f32.xlu0 %v4591
        %v4593 = vpop.xlane.xlu0 %4592
        %v4594 = vsel %vm1033, %v4590, -inf
        %4595 = vmax.xlane.f32.xlu0 %v4594
        %v4596 = vpop.xlane.xlu0 %4595
        %v4597 = vsub.f32 %v4589, %v4593
        %v4598 = vsub.f32 %v4590, %v4596
        %v4599 = vmul.f32 %v4597, 1.442695
        %v4600 = vpow.pop %v4599
        %v4601 = vmul.f32 %v4598, 1.442695
        %v4602 = vpow.pop %v4601
        %v4603 = vsel %vm1029, %v4600, 0.0
        %4604 = vadd.xlane.f32.xlu0 %v4603
        %v4605 = vpop.xlane.xlu0 %4604
        %v4606 = vsel %vm1033, %v4602, 0.0
        %4607 = vadd.xlane.f32.xlu0 %v4606
        %v4608 = vpop.xlane.xlu0 %4607
        %v4609 = vrcp.pop %v4605
        %v4610 = vmul.f32 %v4600, %v4609
        %v4611 = vrcp.pop %v4608
        %v4612 = vmul.f32 %v4602, %v4611
        %4614 = vrot.lane.b32.xlu0 %v4189, 96
        %v4615 = vpop.permute.xlu0 %4614
        %4616 = vrot.lane.b32.xlu0 %v4192, 96
        %v4617 = vpop.permute.xlu0 %4616
        %v4620 = vsel %vm1029, %v4610, 0
        %v4623 = vsel %vm1029, %v4612, 0
        %v4625 = vsel %vm1059, %v4617, 0
        %4627 = vmatprep.subr.mxu0 0.0
        %4628 = vmatpush1.msra.mxu0 0.0
        %4629 = vmatprep.subr.mxu0 0.0
        %4630 = vmatpush1.msra.mxu0 0.0
        %4631 = vmatprep.subr.mxu0 0.0
        %4632 = vmatpush1.msra.mxu0 0.0
        %4633 = vmatprep.subr.mxu0 0.0
        %4634 = vmatpush1.msra.mxu0 0.0
        %4635 = vmatprep.subr.mxu0 0.0
        %4636 = vmatpush1.msra.mxu0 0.0
        %4637 = vmatprep.subr.mxu0 0.0
        %4638 = vmatpush1.msra.mxu0 0.0
        %4639 = vmatprep.subr.mxu0 0.0
        %4640 = vmatpush1.msra.mxu0 0.0
        %4641 = vmatprep.subr.mxu0 0.0
        %4642 = vmatpush1.msra.mxu0 0.0
        %4643 = vmatprep.subr.mxu0 0.0
        %4644 = vmatpush1.msra.mxu0 0.0
        %4645 = vmatprep.subr.mxu0 0.0
        %4646 = vmatpush1.msra.mxu0 0.0
        %4647 = vmatprep.subr.mxu0 0.0
        %4648 = vmatpush1.msra.mxu0 0.0
        %4649 = vmatprep.subr.mxu0 0.0
        %4650 = vmatpush1.msra.mxu0 0.0
        %4651 = vmatprep.subr.mxu0 0.0
        %4652 = vmatpush1.msra.mxu0 0.0
        %4653 = vmatprep.subr.mxu0 0.0
        %4654 = vmatpush1.msra.mxu0 0.0
        %4655 = vmatprep.subr.mxu0 0.0
        %4656 = vmatpush1.msra.mxu0 %v4625
        %4657 = vmatprep.subr.mxu0 0.0
        %4658 = vmatpush1.msra.mxu0 %v4615
        %4659 = vmatprep.subr.mxu0 0.0
        %4660 = vmatpush2.msra.mxu0 0.0
        %4661 = vmatprep.subr.mxu0 0.0
        %4662 = vmatpush2.msra.mxu0 0.0
        %4663 = vmatprep.subr.mxu0 0.0
        %4664 = vmatpush2.msra.mxu0 0.0
        %4665 = vmatprep.subr.mxu0 0.0
        %4666 = vmatpush2.msra.mxu0 0.0
        %4667 = vmatprep.subr.mxu0 0.0
        %4668 = vmatpush2.msra.mxu0 0.0
        %4669 = vmatprep.subr.mxu0 0.0
        %4670 = vmatpush2.msra.mxu0 0.0
        %4671 = vmatprep.subr.mxu0 0.0
        %4672 = vmatpush2.msra.mxu0 0.0
        %4673 = vmatprep.subr.mxu0 0.0
        %4674 = vmatpush2.msra.mxu0 0.0
        %4675 = vmatprep.subr.mxu0 0.0
        %4676 = vmatpush2.msra.mxu0 0.0
        %4677 = vmatprep.subr.mxu0 0.0
        %4678 = vmatpush2.msra.mxu0 0.0
        %4679 = vmatprep.subr.mxu0 0.0
        %4680 = vmatpush2.msra.mxu0 0.0
        %4681 = vmatprep.subr.mxu0 0.0
        %4682 = vmatpush2.msra.mxu0 0.0
        %4683 = vmatprep.subr.mxu0 0.0
        %4684 = vmatpush2.msra.mxu0 0.0
        %4685 = vmatprep.subr.mxu0 0.0
        %4686 = vmatpush2.msra.mxu0 0.0
        %4687 = vmatprep.subr.mxu0 0.0
        %4688 = vmatpush2.msra.mxu0 0.0
        %4689 = vmatprep.subr.mxu0 0.0
        %4690 = vmatpush2.msra.mxu0 0.0
        %4691 = vmatprep.mubr.f32.mxu0 0.0
        %4692 = vmatmul.mubr.f32.gmra.mxu0 %v4620
        %v4693 = vpop.f32.mrf.mxu0
        %v4694 = vadd.f32 0.0, %v4693
        %v4695 = vpop.f32.mrf.mxu0
        %4696 = vmatprep.mubr.f32.mxu0 0.0
        %4697 = vmatmul.mubr.f32.gmra.mxu0 %v4623
        %v4698 = vpop.f32.mrf.mxu0
        %v4699 = vadd.f32 0.0, %v4698
        %v4700 = vpop.f32.mrf.mxu0
        %4701 = vdwg.mxu0
        %v4703 = vsel %vm939, %v4694, 0
        %v4706 = vsel %vm939, %v4699, 0
        %4708 = vmatprep.subr.mxu0 0.0
        %4709 = vmatpush1.msra.mxu0 0.0
        %4710 = vmatprep.subr.mxu0 0.0
        %4711 = vmatpush1.msra.mxu0 0.0
        %4712 = vmatprep.subr.mxu0 0.0
        %4713 = vmatpush1.msra.mxu0 0.0
        %4714 = vmatprep.subr.mxu0 0.0
        %4715 = vmatpush1.msra.mxu0 0.0
        %4716 = vmatprep.subr.mxu0 0.0
        %4717 = vmatpush1.msra.mxu0 0.0
        %4718 = vmatprep.subr.mxu0 0.0
        %4719 = vmatpush1.msra.mxu0 0.0
        %4720 = vmatprep.subr.mxu0 0.0
        %4721 = vmatpush1.msra.mxu0 0.0
        %4722 = vmatprep.subr.mxu0 0.0
        %4723 = vmatpush1.msra.mxu0 0.0
        %4724 = vmatprep.subr.mxu0 0.0
        %4725 = vmatpush1.msra.mxu0 0.0
        %4726 = vmatprep.subr.mxu0 0.0
        %4727 = vmatpush1.msra.mxu0 0.0
        %4728 = vmatprep.subr.mxu0 0.0
        %4729 = vmatpush1.msra.mxu0 0.0
        %4730 = vmatprep.subr.mxu0 0.0
        %4731 = vmatpush1.msra.mxu0 0.0
        %4732 = vmatprep.subr.mxu0 0.0
        %4733 = vmatpush1.msra.mxu0 %v4203
        %4734 = vmatprep.subr.mxu0 0.0
        %4735 = vmatpush1.msra.mxu0 %v4202
        %4736 = vmatprep.subr.mxu0 0.0
        %4737 = vmatpush1.msra.mxu0 %v4201
        %4738 = vmatprep.subr.mxu0 0.0
        %4739 = vmatpush1.msra.mxu0 %v4200
        %4740 = vmatprep.subr.mxu0 0.0
        %4741 = vmatpush2.msra.mxu0 0.0
        %4742 = vmatprep.subr.mxu0 0.0
        %4743 = vmatpush2.msra.mxu0 0.0
        %4744 = vmatprep.subr.mxu0 0.0
        %4745 = vmatpush2.msra.mxu0 0.0
        %4746 = vmatprep.subr.mxu0 0.0
        %4747 = vmatpush2.msra.mxu0 0.0
        %4748 = vmatprep.subr.mxu0 0.0
        %4749 = vmatpush2.msra.mxu0 0.0
        %4750 = vmatprep.subr.mxu0 0.0
        %4751 = vmatpush2.msra.mxu0 0.0
        %4752 = vmatprep.subr.mxu0 0.0
        %4753 = vmatpush2.msra.mxu0 0.0
        %4754 = vmatprep.subr.mxu0 0.0
        %4755 = vmatpush2.msra.mxu0 0.0
        %4756 = vmatprep.subr.mxu0 0.0
        %4757 = vmatpush2.msra.mxu0 0.0
        %4758 = vmatprep.subr.mxu0 0.0
        %4759 = vmatpush2.msra.mxu0 0.0
        %4760 = vmatprep.subr.mxu0 0.0
        %4761 = vmatpush2.msra.mxu0 0.0
        %4762 = vmatprep.subr.mxu0 0.0
        %4763 = vmatpush2.msra.mxu0 0.0
        %4764 = vmatprep.subr.mxu0 0.0
        %4765 = vmatpush2.msra.mxu0 0.0
        %4766 = vmatprep.subr.mxu0 0.0
        %4767 = vmatpush2.msra.mxu0 0.0
        %4768 = vmatprep.subr.mxu0 0.0
        %4769 = vmatpush2.msra.mxu0 0.0
        %4770 = vmatprep.subr.mxu0 0.0
        %4771 = vmatpush2.msra.mxu0 0.0
        %4772 = vmatprep.mubr.f32.mxu0 0.0
        %4773 = vmatmul.mubr.f32.gmra.mxu0 %v4703
        %v4774 = vpop.f32.mrf.mxu0
        %v4775 = vadd.f32 0.0, %v4774
        %v4776 = vpop.f32.mrf.mxu0
        %4777 = vmatprep.mubr.f32.mxu0 0.0
        %4778 = vmatmul.mubr.f32.gmra.mxu0 %v4706
        %v4779 = vpop.f32.mrf.mxu0
        %v4780 = vadd.f32 0.0, %v4779
        %v4781 = vpop.f32.mrf.mxu0
        %4782 = vdwg.mxu0
        %v4783 = vadd.f32 %v4496, %v4775
        %v4784 = vadd.f32 %v4497, %v4780
        %4785 = vrot.lane.b32.xlu0 %v4146, 64
        %v4786 = vpop.permute.xlu0 %4785
        %4787 = vrot.lane.b32.xlu0 %v4150, 64
        %v4788 = vpop.permute.xlu0 %4787
        %4789 = vrot.lane.b32.xlu0 %v4148, 64
        %v4790 = vpop.permute.xlu0 %4789
        %4791 = vrot.lane.b32.xlu0 %v4152, 64
        %v4792 = vpop.permute.xlu0 %4791
        %v4793 = vsel %vm939, %v4786, 0
        %v4795 = vsel %vm939, %v4788, 0
        %v4797 = vsel %vm939, %v4790, 0
        %v4799 = vsel %vm939, %v4792, 0
        %4801 = vmatprep.subr.mxu0 0.0
        %4802 = vmatpush1.xpose.msra.mxu0 0.0
        %4803 = vmatprep.subr.mxu0 0.0
        %4804 = vmatpush1.xpose.msra.mxu0 0.0
        %4805 = vmatprep.subr.mxu0 0.0
        %4806 = vmatpush1.xpose.msra.mxu0 0.0
        %4807 = vmatprep.subr.mxu0 0.0
        %4808 = vmatpush1.xpose.msra.mxu0 0.0
        %4809 = vmatprep.subr.mxu0 0.0
        %4810 = vmatpush1.xpose.msra.mxu0 0.0
        %4811 = vmatprep.subr.mxu0 0.0
        %4812 = vmatpush1.xpose.msra.mxu0 0.0
        %4813 = vmatprep.subr.mxu0 0.0
        %4814 = vmatpush1.xpose.msra.mxu0 0.0
        %4815 = vmatprep.subr.mxu0 0.0
        %4816 = vmatpush1.xpose.msra.mxu0 0.0
        %4817 = vmatprep.subr.mxu0 0.0
        %4818 = vmatpush1.xpose.msra.mxu0 0.0
        %4819 = vmatprep.subr.mxu0 0.0
        %4820 = vmatpush1.xpose.msra.mxu0 0.0
        %4821 = vmatprep.subr.mxu0 0.0
        %4822 = vmatpush1.xpose.msra.mxu0 0.0
        %4823 = vmatprep.subr.mxu0 0.0
        %4824 = vmatpush1.xpose.msra.mxu0 0.0
        %4825 = vmatprep.subr.mxu0 0.0
        %4826 = vmatpush1.xpose.msra.mxu0 0.0
        %4827 = vmatprep.subr.mxu0 0.0
        %4828 = vmatpush1.xpose.msra.mxu0 0.0
        %4829 = vmatprep.subr.mxu0 0.0
        %4830 = vmatpush1.xpose.msra.mxu0 %v4799
        %4831 = vmatprep.subr.mxu0 0.0
        %4832 = vmatpush1.xpose.msra.mxu0 %v4797
        %4833 = vmatprep.subr.mxu0 0.0
        %4834 = vmatpush2.xpose.msra.mxu0 0.0
        %4835 = vmatprep.subr.mxu0 0.0
        %4836 = vmatpush2.xpose.msra.mxu0 0.0
        %4837 = vmatprep.subr.mxu0 0.0
        %4838 = vmatpush2.xpose.msra.mxu0 0.0
        %4839 = vmatprep.subr.mxu0 0.0
        %4840 = vmatpush2.xpose.msra.mxu0 0.0
        %4841 = vmatprep.subr.mxu0 0.0
        %4842 = vmatpush2.xpose.msra.mxu0 0.0
        %4843 = vmatprep.subr.mxu0 0.0
        %4844 = vmatpush2.xpose.msra.mxu0 0.0
        %4845 = vmatprep.subr.mxu0 0.0
        %4846 = vmatpush2.xpose.msra.mxu0 0.0
        %4847 = vmatprep.subr.mxu0 0.0
        %4848 = vmatpush2.xpose.msra.mxu0 0.0
        %4849 = vmatprep.subr.mxu0 0.0
        %4850 = vmatpush2.xpose.msra.mxu0 0.0
        %4851 = vmatprep.subr.mxu0 0.0
        %4852 = vmatpush2.xpose.msra.mxu0 0.0
        %4853 = vmatprep.subr.mxu0 0.0
        %4854 = vmatpush2.xpose.msra.mxu0 0.0
        %4855 = vmatprep.subr.mxu0 0.0
        %4856 = vmatpush2.xpose.msra.mxu0 0.0
        %4857 = vmatprep.subr.mxu0 0.0
        %4858 = vmatpush2.xpose.msra.mxu0 0.0
        %4859 = vmatprep.subr.mxu0 0.0
        %4860 = vmatpush2.xpose.msra.mxu0 0.0
        %4861 = vmatprep.subr.mxu0 0.0
        %4862 = vmatpush2.xpose.msra.mxu0 0.0
        %4863 = vmatprep.subr.mxu0 0.0
        %4864 = vmatpush2.xpose.msra.mxu0 0.0
        %4865 = vmatprep.mubr.f32.mxu0 0.0
        %4866 = vmatmul.mubr.f32.gmra.mxu0 %v4793
        %v4867 = vpop.f32.mrf.mxu0
        %v4868 = vadd.f32 0.0, %v4867
        %v4869 = vpop.f32.mrf.mxu0
        %4870 = vmatprep.mubr.f32.mxu0 0.0
        %4871 = vmatmul.mubr.f32.gmra.mxu0 %v4795
        %v4872 = vpop.f32.mrf.mxu0
        %v4873 = vadd.f32 0.0, %v4872
        %v4874 = vpop.f32.mrf.mxu0
        %4875 = vdwg.mxu0
        %v4876 = vmul.f32 %v4868, 0.17677669
        %v4877 = vmul.f32 %v4873, 0.17677669
        %v4878 = vsel %vm1029, %v4876, -inf
        %4879 = vmax.xlane.f32.xlu0 %v4878
        %v4880 = vpop.xlane.xlu0 %4879
        %v4881 = vsel %vm1033, %v4877, -inf
        %4882 = vmax.xlane.f32.xlu0 %v4881
        %v4883 = vpop.xlane.xlu0 %4882
        %v4884 = vsub.f32 %v4876, %v4880
        %v4885 = vsub.f32 %v4877, %v4883
        %v4886 = vmul.f32 %v4884, 1.442695
        %v4887 = vpow.pop %v4886
        %v4888 = vmul.f32 %v4885, 1.442695
        %v4889 = vpow.pop %v4888
        %v4890 = vsel %vm1029, %v4887, 0.0
        %4891 = vadd.xlane.f32.xlu0 %v4890
        %v4892 = vpop.xlane.xlu0 %4891
        %v4893 = vsel %vm1033, %v4889, 0.0
        %4894 = vadd.xlane.f32.xlu0 %v4893
        %v4895 = vpop.xlane.xlu0 %4894
        %v4896 = vrcp.pop %v4892
        %v4897 = vmul.f32 %v4887, %v4896
        %v4898 = vrcp.pop %v4895
        %v4899 = vmul.f32 %v4889, %v4898
        %4900 = vrot.lane.b32.xlu0 %v4189, 64
        %v4901 = vpop.permute.xlu0 %4900
        %4902 = vrot.lane.b32.xlu0 %v4192, 64
        %v4903 = vpop.permute.xlu0 %4902
        %v4906 = vsel %vm1029, %v4897, 0
        %v4909 = vsel %vm1029, %v4899, 0
        %v4911 = vsel %vm1059, %v4903, 0
        %4913 = vmatprep.subr.mxu0 0.0
        %4914 = vmatpush1.msra.mxu0 0.0
        %4915 = vmatprep.subr.mxu0 0.0
        %4916 = vmatpush1.msra.mxu0 0.0
        %4917 = vmatprep.subr.mxu0 0.0
        %4918 = vmatpush1.msra.mxu0 0.0
        %4919 = vmatprep.subr.mxu0 0.0
        %4920 = vmatpush1.msra.mxu0 0.0
        %4921 = vmatprep.subr.mxu0 0.0
        %4922 = vmatpush1.msra.mxu0 0.0
        %4923 = vmatprep.subr.mxu0 0.0
        %4924 = vmatpush1.msra.mxu0 0.0
        %4925 = vmatprep.subr.mxu0 0.0
        %4926 = vmatpush1.msra.mxu0 0.0
        %4927 = vmatprep.subr.mxu0 0.0
        %4928 = vmatpush1.msra.mxu0 0.0
        %4929 = vmatprep.subr.mxu0 0.0
        %4930 = vmatpush1.msra.mxu0 0.0
        %4931 = vmatprep.subr.mxu0 0.0
        %4932 = vmatpush1.msra.mxu0 0.0
        %4933 = vmatprep.subr.mxu0 0.0
        %4934 = vmatpush1.msra.mxu0 0.0
        %4935 = vmatprep.subr.mxu0 0.0
        %4936 = vmatpush1.msra.mxu0 0.0
        %4937 = vmatprep.subr.mxu0 0.0
        %4938 = vmatpush1.msra.mxu0 0.0
        %4939 = vmatprep.subr.mxu0 0.0
        %4940 = vmatpush1.msra.mxu0 0.0
        %4941 = vmatprep.subr.mxu0 0.0
        %4942 = vmatpush1.msra.mxu0 %v4911
        %4943 = vmatprep.subr.mxu0 0.0
        %4944 = vmatpush1.msra.mxu0 %v4901
        %4945 = vmatprep.subr.mxu0 0.0
        %4946 = vmatpush2.msra.mxu0 0.0
        %4947 = vmatprep.subr.mxu0 0.0
        %4948 = vmatpush2.msra.mxu0 0.0
        %4949 = vmatprep.subr.mxu0 0.0
        %4950 = vmatpush2.msra.mxu0 0.0
        %4951 = vmatprep.subr.mxu0 0.0
        %4952 = vmatpush2.msra.mxu0 0.0
        %4953 = vmatprep.subr.mxu0 0.0
        %4954 = vmatpush2.msra.mxu0 0.0
        %4955 = vmatprep.subr.mxu0 0.0
        %4956 = vmatpush2.msra.mxu0 0.0
        %4957 = vmatprep.subr.mxu0 0.0
        %4958 = vmatpush2.msra.mxu0 0.0
        %4959 = vmatprep.subr.mxu0 0.0
        %4960 = vmatpush2.msra.mxu0 0.0
        %4961 = vmatprep.subr.mxu0 0.0
        %4962 = vmatpush2.msra.mxu0 0.0
        %4963 = vmatprep.subr.mxu0 0.0
        %4964 = vmatpush2.msra.mxu0 0.0
        %4965 = vmatprep.subr.mxu0 0.0
        %4966 = vmatpush2.msra.mxu0 0.0
        %4967 = vmatprep.subr.mxu0 0.0
        %4968 = vmatpush2.msra.mxu0 0.0
        %4969 = vmatprep.subr.mxu0 0.0
        %4970 = vmatpush2.msra.mxu0 0.0
        %4971 = vmatprep.subr.mxu0 0.0
        %4972 = vmatpush2.msra.mxu0 0.0
        %4973 = vmatprep.subr.mxu0 0.0
        %4974 = vmatpush2.msra.mxu0 0.0
        %4975 = vmatprep.subr.mxu0 0.0
        %4976 = vmatpush2.msra.mxu0 0.0
        %4977 = vmatprep.mubr.f32.mxu0 0.0
        %4978 = vmatmul.mubr.f32.gmra.mxu0 %v4906
        %v4979 = vpop.f32.mrf.mxu0
        %v4980 = vadd.f32 0.0, %v4979
        %v4981 = vpop.f32.mrf.mxu0
        %4982 = vmatprep.mubr.f32.mxu0 0.0
        %4983 = vmatmul.mubr.f32.gmra.mxu0 %v4909
        %v4984 = vpop.f32.mrf.mxu0
        %v4985 = vadd.f32 0.0, %v4984
        %v4986 = vpop.f32.mrf.mxu0
        %4987 = vdwg.mxu0
        %v4989 = vsel %vm939, %v4980, 0
        %v4992 = vsel %vm939, %v4985, 0
        %4994 = vmatprep.subr.mxu0 0.0
        %4995 = vmatpush1.msra.mxu0 0.0
        %4996 = vmatprep.subr.mxu0 0.0
        %4997 = vmatpush1.msra.mxu0 0.0
        %4998 = vmatprep.subr.mxu0 0.0
        %4999 = vmatpush1.msra.mxu0 0.0
        %5000 = vmatprep.subr.mxu0 0.0
        %5001 = vmatpush1.msra.mxu0 0.0
        %5002 = vmatprep.subr.mxu0 0.0
        %5003 = vmatpush1.msra.mxu0 0.0
        %5004 = vmatprep.subr.mxu0 0.0
        %5005 = vmatpush1.msra.mxu0 0.0
        %5006 = vmatprep.subr.mxu0 0.0
        %5007 = vmatpush1.msra.mxu0 0.0
        %5008 = vmatprep.subr.mxu0 0.0
        %5009 = vmatpush1.msra.mxu0 0.0
        %5010 = vmatprep.subr.mxu0 0.0
        %5011 = vmatpush1.msra.mxu0 0.0
        %5012 = vmatprep.subr.mxu0 0.0
        %5013 = vmatpush1.msra.mxu0 0.0
        %5014 = vmatprep.subr.mxu0 0.0
        %5015 = vmatpush1.msra.mxu0 0.0
        %5016 = vmatprep.subr.mxu0 0.0
        %5017 = vmatpush1.msra.mxu0 0.0
        %5018 = vmatprep.subr.mxu0 0.0
        %5019 = vmatpush1.msra.mxu0 %v4207
        %5020 = vmatprep.subr.mxu0 0.0
        %5021 = vmatpush1.msra.mxu0 %v4206
        %5022 = vmatprep.subr.mxu0 0.0
        %5023 = vmatpush1.msra.mxu0 %v4205
        %5024 = vmatprep.subr.mxu0 0.0
        %5025 = vmatpush1.msra.mxu0 %v4204
        %5026 = vmatprep.subr.mxu0 0.0
        %5027 = vmatpush2.msra.mxu0 0.0
        %5028 = vmatprep.subr.mxu0 0.0
        %5029 = vmatpush2.msra.mxu0 0.0
        %5030 = vmatprep.subr.mxu0 0.0
        %5031 = vmatpush2.msra.mxu0 0.0
        %5032 = vmatprep.subr.mxu0 0.0
        %5033 = vmatpush2.msra.mxu0 0.0
        %5034 = vmatprep.subr.mxu0 0.0
        %5035 = vmatpush2.msra.mxu0 0.0
        %5036 = vmatprep.subr.mxu0 0.0
        %5037 = vmatpush2.msra.mxu0 0.0
        %5038 = vmatprep.subr.mxu0 0.0
        %5039 = vmatpush2.msra.mxu0 0.0
        %5040 = vmatprep.subr.mxu0 0.0
        %5041 = vmatpush2.msra.mxu0 0.0
        %5042 = vmatprep.subr.mxu0 0.0
        %5043 = vmatpush2.msra.mxu0 0.0
        %5044 = vmatprep.subr.mxu0 0.0
        %5045 = vmatpush2.msra.mxu0 0.0
        %5046 = vmatprep.subr.mxu0 0.0
        %5047 = vmatpush2.msra.mxu0 0.0
        %5048 = vmatprep.subr.mxu0 0.0
        %5049 = vmatpush2.msra.mxu0 0.0
        %5050 = vmatprep.subr.mxu0 0.0
        %5051 = vmatpush2.msra.mxu0 0.0
        %5052 = vmatprep.subr.mxu0 0.0
        %5053 = vmatpush2.msra.mxu0 0.0
        %5054 = vmatprep.subr.mxu0 0.0
        %5055 = vmatpush2.msra.mxu0 0.0
        %5056 = vmatprep.subr.mxu0 0.0
        %5057 = vmatpush2.msra.mxu0 0.0
        %5058 = vmatprep.mubr.f32.mxu0 0.0
        %5059 = vmatmul.mubr.f32.gmra.mxu0 %v4989
        %v5060 = vpop.f32.mrf.mxu0
        %v5061 = vadd.f32 0.0, %v5060
        %v5062 = vpop.f32.mrf.mxu0
        %5063 = vmatprep.mubr.f32.mxu0 0.0
        %5064 = vmatmul.mubr.f32.gmra.mxu0 %v4992
        %v5065 = vpop.f32.mrf.mxu0
        %v5066 = vadd.f32 0.0, %v5065
        %v5067 = vpop.f32.mrf.mxu0
        %5068 = vdwg.mxu0
        %v5069 = vadd.f32 %v4783, %v5061
        %v5070 = vadd.f32 %v4784, %v5066
        %5071 = vrot.lane.b32.xlu0 %v4146, 32
        %v5072 = vpop.permute.xlu0 %5071
        %5073 = vrot.lane.b32.xlu0 %v4150, 32
        %v5074 = vpop.permute.xlu0 %5073
        %5075 = vrot.lane.b32.xlu0 %v4148, 32
        %v5076 = vpop.permute.xlu0 %5075
        %5077 = vrot.lane.b32.xlu0 %v4152, 32
        %v5078 = vpop.permute.xlu0 %5077
        %v5079 = vsel %vm939, %v5072, 0
        %v5081 = vsel %vm939, %v5074, 0
        %v5083 = vsel %vm939, %v5076, 0
        %v5085 = vsel %vm939, %v5078, 0
        %5087 = vmatprep.subr.mxu0 0.0
        %5088 = vmatpush1.xpose.msra.mxu0 0.0
        %5089 = vmatprep.subr.mxu0 0.0
        %5090 = vmatpush1.xpose.msra.mxu0 0.0
        %5091 = vmatprep.subr.mxu0 0.0
        %5092 = vmatpush1.xpose.msra.mxu0 0.0
        %5093 = vmatprep.subr.mxu0 0.0
        %5094 = vmatpush1.xpose.msra.mxu0 0.0
        %5095 = vmatprep.subr.mxu0 0.0
        %5096 = vmatpush1.xpose.msra.mxu0 0.0
        %5097 = vmatprep.subr.mxu0 0.0
        %5098 = vmatpush1.xpose.msra.mxu0 0.0
        %5099 = vmatprep.subr.mxu0 0.0
        %5100 = vmatpush1.xpose.msra.mxu0 0.0
        %5101 = vmatprep.subr.mxu0 0.0
        %5102 = vmatpush1.xpose.msra.mxu0 0.0
        %5103 = vmatprep.subr.mxu0 0.0
        %5104 = vmatpush1.xpose.msra.mxu0 0.0
        %5105 = vmatprep.subr.mxu0 0.0
        %5106 = vmatpush1.xpose.msra.mxu0 0.0
        %5107 = vmatprep.subr.mxu0 0.0
        %5108 = vmatpush1.xpose.msra.mxu0 0.0
        %5109 = vmatprep.subr.mxu0 0.0
        %5110 = vmatpush1.xpose.msra.mxu0 0.0
        %5111 = vmatprep.subr.mxu0 0.0
        %5112 = vmatpush1.xpose.msra.mxu0 0.0
        %5113 = vmatprep.subr.mxu0 0.0
        %5114 = vmatpush1.xpose.msra.mxu0 0.0
        %5115 = vmatprep.subr.mxu0 0.0
        %5116 = vmatpush1.xpose.msra.mxu0 %v5085
        %5117 = vmatprep.subr.mxu0 0.0
        %5118 = vmatpush1.xpose.msra.mxu0 %v5083
        %5119 = vmatprep.subr.mxu0 0.0
        %5120 = vmatpush2.xpose.msra.mxu0 0.0
        %5121 = vmatprep.subr.mxu0 0.0
        %5122 = vmatpush2.xpose.msra.mxu0 0.0
        %5123 = vmatprep.subr.mxu0 0.0
        %5124 = vmatpush2.xpose.msra.mxu0 0.0
        %5125 = vmatprep.subr.mxu0 0.0
        %5126 = vmatpush2.xpose.msra.mxu0 0.0
        %5127 = vmatprep.subr.mxu0 0.0
        %5128 = vmatpush2.xpose.msra.mxu0 0.0
        %5129 = vmatprep.subr.mxu0 0.0
        %5130 = vmatpush2.xpose.msra.mxu0 0.0
        %5131 = vmatprep.subr.mxu0 0.0
        %5132 = vmatpush2.xpose.msra.mxu0 0.0
        %5133 = vmatprep.subr.mxu0 0.0
        %5134 = vmatpush2.xpose.msra.mxu0 0.0
        %5135 = vmatprep.subr.mxu0 0.0
        %5136 = vmatpush2.xpose.msra.mxu0 0.0
        %5137 = vmatprep.subr.mxu0 0.0
        %5138 = vmatpush2.xpose.msra.mxu0 0.0
        %5139 = vmatprep.subr.mxu0 0.0
        %5140 = vmatpush2.xpose.msra.mxu0 0.0
        %5141 = vmatprep.subr.mxu0 0.0
        %5142 = vmatpush2.xpose.msra.mxu0 0.0
        %5143 = vmatprep.subr.mxu0 0.0
        %5144 = vmatpush2.xpose.msra.mxu0 0.0
        %5145 = vmatprep.subr.mxu0 0.0
        %5146 = vmatpush2.xpose.msra.mxu0 0.0
        %5147 = vmatprep.subr.mxu0 0.0
        %5148 = vmatpush2.xpose.msra.mxu0 0.0
        %5149 = vmatprep.subr.mxu0 0.0
        %5150 = vmatpush2.xpose.msra.mxu0 0.0
        %5151 = vmatprep.mubr.f32.mxu0 0.0
        %5152 = vmatmul.mubr.f32.gmra.mxu0 %v5079
        %v5153 = vpop.f32.mrf.mxu0
        %v5154 = vadd.f32 0.0, %v5153
        %v5155 = vpop.f32.mrf.mxu0
        %5156 = vmatprep.mubr.f32.mxu0 0.0
        %5157 = vmatmul.mubr.f32.gmra.mxu0 %v5081
        %v5158 = vpop.f32.mrf.mxu0
        %v5159 = vadd.f32 0.0, %v5158
        %v5160 = vpop.f32.mrf.mxu0
        %5161 = vdwg.mxu0
        %v5162 = vmul.f32 %v5154, 0.17677669
        %v5163 = vmul.f32 %v5159, 0.17677669
        %v5164 = vsel %vm1029, %v5162, -inf
        %5165 = vmax.xlane.f32.xlu0 %v5164
        %v5166 = vpop.xlane.xlu0 %5165
        %v5167 = vsel %vm1033, %v5163, -inf
        %5168 = vmax.xlane.f32.xlu0 %v5167
        %v5169 = vpop.xlane.xlu0 %5168
        %v5170 = vsub.f32 %v5162, %v5166
        %v5171 = vsub.f32 %v5163, %v5169
        %v5172 = vmul.f32 %v5170, 1.442695
        %v5173 = vpow.pop %v5172
        %v5174 = vmul.f32 %v5171, 1.442695
        %v5175 = vpow.pop %v5174
        %v5176 = vsel %vm1029, %v5173, 0.0
        %5177 = vadd.xlane.f32.xlu0 %v5176
        %v5178 = vpop.xlane.xlu0 %5177
        %v5179 = vsel %vm1033, %v5175, 0.0
        %5180 = vadd.xlane.f32.xlu0 %v5179
        %v5181 = vpop.xlane.xlu0 %5180
        %v5182 = vrcp.pop %v5178
        %v5183 = vmul.f32 %v5173, %v5182
        %v5184 = vrcp.pop %v5181
        %v5185 = vmul.f32 %v5175, %v5184
        %5186 = vrot.lane.b32.xlu0 %v4189, 32
        %v5187 = vpop.permute.xlu0 %5186
        %5188 = vrot.lane.b32.xlu0 %v4192, 32
        %v5189 = vpop.permute.xlu0 %5188
        %v5192 = vsel %vm1029, %v5183, 0
        %v5195 = vsel %vm1029, %v5185, 0
        %v5197 = vsel %vm1059, %v5189, 0
        %5199 = vmatprep.subr.mxu0 0.0
        %5200 = vmatpush1.msra.mxu0 0.0
        %5201 = vmatprep.subr.mxu0 0.0
        %5202 = vmatpush1.msra.mxu0 0.0
        %5203 = vmatprep.subr.mxu0 0.0
        %5204 = vmatpush1.msra.mxu0 0.0
        %5205 = vmatprep.subr.mxu0 0.0
        %5206 = vmatpush1.msra.mxu0 0.0
        %5207 = vmatprep.subr.mxu0 0.0
        %5208 = vmatpush1.msra.mxu0 0.0
        %5209 = vmatprep.subr.mxu0 0.0
        %5210 = vmatpush1.msra.mxu0 0.0
        %5211 = vmatprep.subr.mxu0 0.0
        %5212 = vmatpush1.msra.mxu0 0.0
        %5213 = vmatprep.subr.mxu0 0.0
        %5214 = vmatpush1.msra.mxu0 0.0
        %5215 = vmatprep.subr.mxu0 0.0
        %5216 = vmatpush1.msra.mxu0 0.0
        %5217 = vmatprep.subr.mxu0 0.0
        %5218 = vmatpush1.msra.mxu0 0.0
        %5219 = vmatprep.subr.mxu0 0.0
        %5220 = vmatpush1.msra.mxu0 0.0
        %5221 = vmatprep.subr.mxu0 0.0
        %5222 = vmatpush1.msra.mxu0 0.0
        %5223 = vmatprep.subr.mxu0 0.0
        %5224 = vmatpush1.msra.mxu0 0.0
        %5225 = vmatprep.subr.mxu0 0.0
        %5226 = vmatpush1.msra.mxu0 0.0
        %5227 = vmatprep.subr.mxu0 0.0
        %5228 = vmatpush1.msra.mxu0 %v5197
        %5229 = vmatprep.subr.mxu0 0.0
        %5230 = vmatpush1.msra.mxu0 %v5187
        %5231 = vmatprep.subr.mxu0 0.0
        %5232 = vmatpush2.msra.mxu0 0.0
        %5233 = vmatprep.subr.mxu0 0.0
        %5234 = vmatpush2.msra.mxu0 0.0
        %5235 = vmatprep.subr.mxu0 0.0
        %5236 = vmatpush2.msra.mxu0 0.0
        %5237 = vmatprep.subr.mxu0 0.0
        %5238 = vmatpush2.msra.mxu0 0.0
        %5239 = vmatprep.subr.mxu0 0.0
        %5240 = vmatpush2.msra.mxu0 0.0
        %5241 = vmatprep.subr.mxu0 0.0
        %5242 = vmatpush2.msra.mxu0 0.0
        %5243 = vmatprep.subr.mxu0 0.0
        %5244 = vmatpush2.msra.mxu0 0.0
        %5245 = vmatprep.subr.mxu0 0.0
        %5246 = vmatpush2.msra.mxu0 0.0
        %5247 = vmatprep.subr.mxu0 0.0
        %5248 = vmatpush2.msra.mxu0 0.0
        %5249 = vmatprep.subr.mxu0 0.0
        %5250 = vmatpush2.msra.mxu0 0.0
        %5251 = vmatprep.subr.mxu0 0.0
        %5252 = vmatpush2.msra.mxu0 0.0
        %5253 = vmatprep.subr.mxu0 0.0
        %5254 = vmatpush2.msra.mxu0 0.0
        %5255 = vmatprep.subr.mxu0 0.0
        %5256 = vmatpush2.msra.mxu0 0.0
        %5257 = vmatprep.subr.mxu0 0.0
        %5258 = vmatpush2.msra.mxu0 0.0
        %5259 = vmatprep.subr.mxu0 0.0
        %5260 = vmatpush2.msra.mxu0 0.0
        %5261 = vmatprep.subr.mxu0 0.0
        %5262 = vmatpush2.msra.mxu0 0.0
        %5263 = vmatprep.mubr.f32.mxu0 0.0
        %5264 = vmatmul.mubr.f32.gmra.mxu0 %v5192
        %v5265 = vpop.f32.mrf.mxu0
        %v5266 = vadd.f32 0.0, %v5265
        %v5267 = vpop.f32.mrf.mxu0
        %5268 = vmatprep.mubr.f32.mxu0 0.0
        %5269 = vmatmul.mubr.f32.gmra.mxu0 %v5195
        %v5270 = vpop.f32.mrf.mxu0
        %v5271 = vadd.f32 0.0, %v5270
        %v5272 = vpop.f32.mrf.mxu0
        %5273 = vdwg.mxu0
        %v5275 = vsel %vm939, %v5266, 0
        %v5278 = vsel %vm939, %v5271, 0
        %5280 = vmatprep.subr.mxu0 0.0
        %5281 = vmatpush1.msra.mxu0 0.0
        %5282 = vmatprep.subr.mxu0 0.0
        %5283 = vmatpush1.msra.mxu0 0.0
        %5284 = vmatprep.subr.mxu0 0.0
        %5285 = vmatpush1.msra.mxu0 0.0
        %5286 = vmatprep.subr.mxu0 0.0
        %5287 = vmatpush1.msra.mxu0 0.0
        %5288 = vmatprep.subr.mxu0 0.0
        %5289 = vmatpush1.msra.mxu0 0.0
        %5290 = vmatprep.subr.mxu0 0.0
        %5291 = vmatpush1.msra.mxu0 0.0
        %5292 = vmatprep.subr.mxu0 0.0
        %5293 = vmatpush1.msra.mxu0 0.0
        %5294 = vmatprep.subr.mxu0 0.0
        %5295 = vmatpush1.msra.mxu0 0.0
        %5296 = vmatprep.subr.mxu0 0.0
        %5297 = vmatpush1.msra.mxu0 0.0
        %5298 = vmatprep.subr.mxu0 0.0
        %5299 = vmatpush1.msra.mxu0 0.0
        %5300 = vmatprep.subr.mxu0 0.0
        %5301 = vmatpush1.msra.mxu0 0.0
        %5302 = vmatprep.subr.mxu0 0.0
        %5303 = vmatpush1.msra.mxu0 0.0
        %5304 = vmatprep.subr.mxu0 0.0
        %5305 = vmatpush1.msra.mxu0 %v4211
        %5306 = vmatprep.subr.mxu0 0.0
        %5307 = vmatpush1.msra.mxu0 %v4210
        %5308 = vmatprep.subr.mxu0 0.0
        %5309 = vmatpush1.msra.mxu0 %v4209
        %5310 = vmatprep.subr.mxu0 0.0
        %5311 = vmatpush1.msra.mxu0 %v4208
        %5312 = vmatprep.subr.mxu0 0.0
        %5313 = vmatpush2.msra.mxu0 0.0
        %5314 = vmatprep.subr.mxu0 0.0
        %5315 = vmatpush2.msra.mxu0 0.0
        %5316 = vmatprep.subr.mxu0 0.0
        %5317 = vmatpush2.msra.mxu0 0.0
        %5318 = vmatprep.subr.mxu0 0.0
        %5319 = vmatpush2.msra.mxu0 0.0
        %5320 = vmatprep.subr.mxu0 0.0
        %5321 = vmatpush2.msra.mxu0 0.0
        %5322 = vmatprep.subr.mxu0 0.0
        %5323 = vmatpush2.msra.mxu0 0.0
        %5324 = vmatprep.subr.mxu0 0.0
        %5325 = vmatpush2.msra.mxu0 0.0
        %5326 = vmatprep.subr.mxu0 0.0
        %5327 = vmatpush2.msra.mxu0 0.0
        %5328 = vmatprep.subr.mxu0 0.0
        %5329 = vmatpush2.msra.mxu0 0.0
        %5330 = vmatprep.subr.mxu0 0.0
        %5331 = vmatpush2.msra.mxu0 0.0
        %5332 = vmatprep.subr.mxu0 0.0
        %5333 = vmatpush2.msra.mxu0 0.0
        %5334 = vmatprep.subr.mxu0 0.0
        %5335 = vmatpush2.msra.mxu0 0.0
        %5336 = vmatprep.subr.mxu0 0.0
        %5337 = vmatpush2.msra.mxu0 0.0
        %5338 = vmatprep.subr.mxu0 0.0
        %5339 = vmatpush2.msra.mxu0 0.0
        %5340 = vmatprep.subr.mxu0 0.0
        %5341 = vmatpush2.msra.mxu0 0.0
        %5342 = vmatprep.subr.mxu0 0.0
        %5343 = vmatpush2.msra.mxu0 0.0
        %5344 = vmatprep.mubr.f32.mxu0 0.0
        %5345 = vmatmul.mubr.f32.gmra.mxu0 %v5275
        %v5346 = vpop.f32.mrf.mxu0
        %v5347 = vadd.f32 0.0, %v5346
        %v5348 = vpop.f32.mrf.mxu0
        %5349 = vmatprep.mubr.f32.mxu0 0.0
        %5350 = vmatmul.mubr.f32.gmra.mxu0 %v5278
        %v5351 = vpop.f32.mrf.mxu0
        %v5352 = vadd.f32 0.0, %v5351
        %v5353 = vpop.f32.mrf.mxu0
        %5354 = vdwg.mxu0
        %v5355 = vadd.f32 %v5069, %v5347
        %v5356 = vadd.f32 %v5070, %v5352
        %v5357 = vadd.f32 %v3927, %v5355
        %v5358 = vadd.f32 %v3928, %v5356
        %5359 = vadd.xlane.f32.xlu0 %v5357
        %v5360 = vpop.xlane.xlu0 %5359
        %v5361 = vsel %vm1059, %v5358, 0.0
        %5362 = vadd.xlane.f32.xlu0 %v5361
        %v5363 = vpop.xlane.xlu0 %5362
        %v5364 = vmul.f32 %v5360, %v2093
        %v5365 = vmul.f32 %v5363, %v2093
        %v5366 = vsub.f32 %v5357, %v5364
        %v5367 = vsub.f32 %v5358, %v5365
        %v5368 = vmul.f32 %v5366, %v5366
        %v5369 = vmul.f32 %v5367, %v5367
        %5370 = vadd.xlane.f32.xlu0 %v5368
        %v5371 = vpop.xlane.xlu0 %5370
        %v5372 = vsel %vm1059, %v5369, 0.0
        %5373 = vadd.xlane.f32.xlu0 %v5372
        %v5374 = vpop.xlane.xlu0 %5373
        %v5375 = vmul.f32 %v5371, %v2093
        %v5376 = vmul.f32 %v5374, %v2093
        %v5377 = vadd.f32 %v5375, 1e-05
        %v5378 = vadd.f32 %v5376, 1e-05
        %v5379 = vrsqrt.pop %v5377
        %v5380 = vrsqrt.pop %v5378
        %v5381 = vmul.f32 %v5366, %v5379
        %v5382 = vmul.f32 %v5367, %v5380
        %v5383 = vlaneseq
        %v5384 = vshrl.u32 %v5383, 7
        %v5385 = vsub.s32 0, %v5384
        %v5386 = vrot.slane %v3930, %v5385
        %v5387 = vmul.f32 %v5381, %v5386
        %v5388 = vmul.f32 %v5382, %v5386
        %v5389 = vlaneseq
        %v5390 = vshrl.u32 %v5389, 7
        %v5391 = vsub.s32 1, %v5390
        %v5392 = vrot.slane %v3930, %v5391
        %v5393 = vadd.f32 %v5387, %v5392
        %v5394 = vadd.f32 %v5388, %v5392
        %v5395 = vpack.c.bf16 %v5394, %v5393
        %s5396 = scalar_lea.vmem [#allocation4], 64
        %v5397 = vld [vmem:[%s5396] sm:$0xf]
        %v5398 = vld [vmem:[%s5396 + $0x4] sm:$0xf]
        %v5399 = vld [vmem:[%s5396 + $0x8] sm:$0xf]
        %v5400 = vld [vmem:[%s5396 + $0xc] sm:$0xf]
        %v5401 = vld [vmem:[%s5396 + $0x10] sm:$0xf]
        %v5402 = vld [vmem:[%s5396 + $0x14] sm:$0xf]
        %v5403 = vld [vmem:[%s5396 + $0x18] sm:$0xf]
        %v5404 = vld [vmem:[%s5396 + $0x1c] sm:$0xf]
        %v5405 = vld [vmem:[%s5396 + $0x20] sm:$0xf]
        %v5406 = vld [vmem:[%s5396 + $0x24] sm:$0xf]
        %v5407 = vld [vmem:[%s5396 + $0x28] sm:$0xf]
        %v5408 = vld [vmem:[%s5396 + $0x2c] sm:$0xf]
        %v5409 = vld [vmem:[%s5396 + $0x30] sm:$0xf]
        %v5410 = vld [vmem:[%s5396 + $0x34] sm:$0xf]
        %v5411 = vld [vmem:[%s5396 + $0x38] sm:$0xf]
        %v5412 = vld [vmem:[%s5396 + $0x3c] sm:$0xf]
        %s5413 = scalar_lea.vmem %s7, 1
        %v5414 = vld [vmem:[%s5413] sm:$0x1]
        %v5416 = vlaneseq
        %v5417 = vshrl.u32 %v5416, 7
        %v5418 = vsub.s32 0, %v5417
        %v5419 = vrot.slane %v5414, %v5418
        %v5437 = vunpack.c.l.b16 %v5397
        %v5438 = vunpack.c.l.b16 %v5398
        %v5439 = vunpack.c.l.b16 %v5399
        %v5440 = vunpack.c.l.b16 %v5400
        %v5441 = vunpack.c.l.b16 %v5401
        %v5442 = vunpack.c.l.b16 %v5402
        %v5443 = vunpack.c.l.b16 %v5403
        %v5444 = vunpack.c.l.b16 %v5404
        %v5445 = vunpack.c.l.b16 %v5405
        %v5446 = vunpack.c.l.b16 %v5406
        %v5447 = vunpack.c.l.b16 %v5407
        %v5448 = vunpack.c.l.b16 %v5408
        %v5449 = vunpack.c.l.b16 %v5409
        %v5450 = vunpack.c.l.b16 %v5410
        %v5451 = vunpack.c.l.b16 %v5411
        %v5452 = vunpack.c.l.b16 %v5412
        %v5453 = vpack.c.b16 %v5438, %v5437
        %v5454 = vpack.c.b16 %v5440, %v5439
        %v5455 = vpack.c.b16 %v5442, %v5441
        %v5456 = vpack.c.b16 %v5444, %v5443
        %v5457 = vpack.c.b16 %v5446, %v5445
        %v5458 = vpack.c.b16 %v5448, %v5447
        %v5459 = vpack.c.b16 %v5450, %v5449
        %v5460 = vpack.c.b16 %v5452, %v5451
        %5469 = vmatprep.subr.bf16.mxu0 0
        %5470 = vmatpush1.bf16.msra.mxu0 %v5460
        %5471 = vmatprep.subr.bf16.mxu0 0
        %5472 = vmatpush1.bf16.msra.mxu0 %v5459
        %5473 = vmatprep.subr.bf16.mxu0 0
        %5474 = vmatpush1.bf16.msra.mxu0 %v5458
        %5475 = vmatprep.subr.bf16.mxu0 0
        %5476 = vmatpush1.bf16.msra.mxu0 %v5457
        %5477 = vmatprep.subr.bf16.mxu0 0
        %5478 = vmatpush1.bf16.msra.mxu0 %v5456
        %5479 = vmatprep.subr.bf16.mxu0 0
        %5480 = vmatpush1.bf16.msra.mxu0 %v5455
        %5481 = vmatprep.subr.bf16.mxu0 0
        %5482 = vmatpush1.bf16.msra.mxu0 %v5454
        %5483 = vmatprep.subr.bf16.mxu0 0
        %5484 = vmatpush1.bf16.msra.mxu0 %v5453
        %5485 = vmatprep.subr.bf16.mxu0 0
        %5486 = vmatpush2.bf16.msra.mxu0 0
        %5487 = vmatprep.subr.bf16.mxu0 0
        %5488 = vmatpush2.bf16.msra.mxu0 0
        %5489 = vmatprep.subr.bf16.mxu0 0
        %5490 = vmatpush2.bf16.msra.mxu0 0
        %5491 = vmatprep.subr.bf16.mxu0 0
        %5492 = vmatpush2.bf16.msra.mxu0 0
        %5493 = vmatprep.subr.bf16.mxu0 0
        %5494 = vmatpush2.bf16.msra.mxu0 0
        %5495 = vmatprep.subr.bf16.mxu0 0
        %5496 = vmatpush2.bf16.msra.mxu0 0
        %5497 = vmatprep.subr.bf16.mxu0 0
        %5498 = vmatpush2.bf16.msra.mxu0 0
        %5499 = vmatprep.subr.bf16.mxu0 0
        %5500 = vmatpush2.bf16.msra.mxu0 0
        %5501 = vmatprep.mubr.bf16.mxu0 0
        %5502 = vmatmul.mubr.bf16.gmra.mxu0 %v5395
        %v5503 = vpop.f32.mrf.mxu0
        %v5504 = vadd.f32 %v5419, %v5503
        %v5505 = vpop.f32.mrf.mxu0
        %v5506 = vpop.f32.mrf.mxu0
        %v5507 = vadd.f32 %v5419, %v5506
        %v5508 = vpop.f32.mrf.mxu0
        %5509 = vdwg.mxu0
        %s5510 = scalar_lea.vmem [#allocation6], 128
        %v5511 = vld [vmem:[%s5510] sm:$0xff]
        %v5512 = vld [vmem:[%s5510 + $0x8] sm:$0xff]
        %v5513 = vld [vmem:[%s5510 + $0x10] sm:$0xff]
        %v5514 = vld [vmem:[%s5510 + $0x18] sm:$0xff]
        %v5515 = vld [vmem:[%s5510 + $0x20] sm:$0xff]
        %v5516 = vld [vmem:[%s5510 + $0x28] sm:$0xff]
        %v5517 = vld [vmem:[%s5510 + $0x30] sm:$0xff]
        %v5518 = vld [vmem:[%s5510 + $0x38] sm:$0xff]
        %v5519 = vld [vmem:[%s5510 + $0x40] sm:$0xff]
        %v5520 = vld [vmem:[%s5510 + $0x48] sm:$0xff]
        %v5521 = vld [vmem:[%s5510 + $0x50] sm:$0xff]
        %v5522 = vld [vmem:[%s5510 + $0x58] sm:$0xff]
        %v5523 = vld [vmem:[%s5510 + $0x60] sm:$0xff]
        %v5524 = vld [vmem:[%s5510 + $0x68] sm:$0xff]
        %v5525 = vld [vmem:[%s5510 + $0x70] sm:$0xff]
        %v5526 = vld [vmem:[%s5510 + $0x78] sm:$0xff]
        %s5527 = scalar_lea.vmem %s9, 2
        %v5528 = vld [vmem:[%s5527] sm:$0x3]
        %v5530 = vlaneseq
        %v5531 = vshrl.u32 %v5530, 7
        %v5532 = vsub.s32 0, %v5531
        %v5533 = vrot.slane %v5528, %v5532
        %v5534 = vlaneseq
        %v5535 = vshrl.u32 %v5534, 7
        %v5536 = vsub.s32 1, %v5535
        %v5537 = vrot.slane %v5528, %v5536
        %v5556 = vunpack.c.l.b16 %v5511
        %v5557 = vunpack.c.h.b16 %v5511
        %v5558 = vunpack.c.l.b16 %v5512
        %v5559 = vunpack.c.h.b16 %v5512
        %v5560 = vunpack.c.l.b16 %v5513
        %v5561 = vunpack.c.h.b16 %v5513
        %v5562 = vunpack.c.l.b16 %v5514
        %v5563 = vunpack.c.h.b16 %v5514
        %v5564 = vunpack.c.l.b16 %v5515
        %v5565 = vunpack.c.h.b16 %v5515
        %v5566 = vunpack.c.l.b16 %v5516
        %v5567 = vunpack.c.h.b16 %v5516
        %v5568 = vunpack.c.l.b16 %v5517
        %v5569 = vunpack.c.h.b16 %v5517
        %v5570 = vunpack.c.l.b16 %v5518
        %v5571 = vunpack.c.h.b16 %v5518
        %v5572 = vunpack.c.l.b16 %v5519
        %v5573 = vunpack.c.h.b16 %v5519
        %v5574 = vunpack.c.l.b16 %v5520
        %v5575 = vunpack.c.h.b16 %v5520
        %v5576 = vunpack.c.l.b16 %v5521
        %v5577 = vunpack.c.h.b16 %v5521
        %v5578 = vunpack.c.l.b16 %v5522
        %v5579 = vunpack.c.h.b16 %v5522
        %v5580 = vunpack.c.l.b16 %v5523
        %v5581 = vunpack.c.h.b16 %v5523
        %v5582 = vunpack.c.l.b16 %v5524
        %v5583 = vunpack.c.h.b16 %v5524
        %v5584 = vunpack.c.l.b16 %v5525
        %v5585 = vunpack.c.h.b16 %v5525
        %v5586 = vunpack.c.l.b16 %v5526
        %v5587 = vunpack.c.h.b16 %v5526
        %v5588 = vpack.c.b16 %v5558, %v5556
        %v5589 = vpack.c.b16 %v5559, %v5557
        %v5590 = vpack.c.b16 %v5562, %v5560
        %v5591 = vpack.c.b16 %v5563, %v5561
        %v5592 = vpack.c.b16 %v5566, %v5564
        %v5593 = vpack.c.b16 %v5567, %v5565
        %v5594 = vpack.c.b16 %v5570, %v5568
        %v5595 = vpack.c.b16 %v5571, %v5569
        %v5596 = vpack.c.b16 %v5574, %v5572
        %v5597 = vpack.c.b16 %v5575, %v5573
        %v5598 = vpack.c.b16 %v5578, %v5576
        %v5599 = vpack.c.b16 %v5579, %v5577
        %v5600 = vpack.c.b16 %v5582, %v5580
        %v5601 = vpack.c.b16 %v5583, %v5581
        %v5602 = vpack.c.b16 %v5586, %v5584
        %v5603 = vpack.c.b16 %v5587, %v5585
        %5620 = vmatprep.subr.bf16.mxu0 %v5603
        %5621 = vmatpush1.bf16.msra.mxu0 %v5602
        %5622 = vmatprep.subr.bf16.mxu0 %v5601
        %5623 = vmatpush1.bf16.msra.mxu0 %v5600
        %5624 = vmatprep.subr.bf16.mxu0 %v5599
        %5625 = vmatpush1.bf16.msra.mxu0 %v5598
        %5626 = vmatprep.subr.bf16.mxu0 %v5597
        %5627 = vmatpush1.bf16.msra.mxu0 %v5596
        %5628 = vmatprep.subr.bf16.mxu0 %v5595
        %5629 = vmatpush1.bf16.msra.mxu0 %v5594
        %5630 = vmatprep.subr.bf16.mxu0 %v5593
        %5631 = vmatpush1.bf16.msra.mxu0 %v5592
        %5632 = vmatprep.subr.bf16.mxu0 %v5591
        %5633 = vmatpush1.bf16.msra.mxu0 %v5590
        %5634 = vmatprep.subr.bf16.mxu0 %v5589
        %5635 = vmatpush1.bf16.msra.mxu0 %v5588
        %5636 = vmatprep.subr.bf16.mxu0 0
        %5637 = vmatpush2.bf16.msra.mxu0 0
        %5638 = vmatprep.subr.bf16.mxu0 0
        %5639 = vmatpush2.bf16.msra.mxu0 0
        %5640 = vmatprep.subr.bf16.mxu0 0
        %5641 = vmatpush2.bf16.msra.mxu0 0
        %5642 = vmatprep.subr.bf16.mxu0 0
        %5643 = vmatpush2.bf16.msra.mxu0 0
        %5644 = vmatprep.subr.bf16.mxu0 0
        %5645 = vmatpush2.bf16.msra.mxu0 0
        %5646 = vmatprep.subr.bf16.mxu0 0
        %5647 = vmatpush2.bf16.msra.mxu0 0
        %5648 = vmatprep.subr.bf16.mxu0 0
        %5649 = vmatpush2.bf16.msra.mxu0 0
        %5650 = vmatprep.subr.bf16.mxu0 0
        %5651 = vmatpush2.bf16.msra.mxu0 0
        %5652 = vmatprep.mubr.bf16.mxu0 0
        %5653 = vmatmul.mubr.bf16.gmra.mxu0 %v658
        %v5654 = vpop.f32.mrf.mxu0
        %v5655 = vadd.f32 %v5533, %v5654
        %v5656 = vpop.f32.mrf.mxu0
        %v5657 = vadd.f32 %v5537, %v5656
        %v5658 = vpop.f32.mrf.mxu0
        %v5659 = vpop.f32.mrf.mxu0
        %5660 = vdwg.mxu0
        %s5661 = scalar_lea.vmem [#allocation7], 128
        %v5662 = vld [vmem:[%s5661] sm:$0xff]
        %v5663 = vld [vmem:[%s5661 + $0x8] sm:$0xff]
        %v5664 = vld [vmem:[%s5661 + $0x10] sm:$0xff]
        %v5665 = vld [vmem:[%s5661 + $0x18] sm:$0xff]
        %v5666 = vld [vmem:[%s5661 + $0x20] sm:$0xff]
        %v5667 = vld [vmem:[%s5661 + $0x28] sm:$0xff]
        %v5668 = vld [vmem:[%s5661 + $0x30] sm:$0xff]
        %v5669 = vld [vmem:[%s5661 + $0x38] sm:$0xff]
        %v5670 = vld [vmem:[%s5661 + $0x40] sm:$0xff]
        %v5671 = vld [vmem:[%s5661 + $0x48] sm:$0xff]
        %v5672 = vld [vmem:[%s5661 + $0x50] sm:$0xff]
        %v5673 = vld [vmem:[%s5661 + $0x58] sm:$0xff]
        %v5674 = vld [vmem:[%s5661 + $0x60] sm:$0xff]
        %v5675 = vld [vmem:[%s5661 + $0x68] sm:$0xff]
        %v5676 = vld [vmem:[%s5661 + $0x70] sm:$0xff]
        %v5677 = vld [vmem:[%s5661 + $0x78] sm:$0xff]
        %s5678 = scalar_lea.vmem %s11, 1
        %v5679 = vld [vmem:[%s5678] sm:$0x1]
        %v5681 = vsel %vm939, %v5504, 0
        %v5684 = vsel %vm939, %v5507, 0
        %v5687 = vsel %vm939, %v5655, 0
        %5689 = vmatprep.subr.mxu0 0.0
        %5690 = vmatpush1.xpose.msra.mxu0 0.0
        %5691 = vmatprep.subr.mxu0 0.0
        %5692 = vmatpush1.xpose.msra.mxu0 0.0
        %5693 = vmatprep.subr.mxu0 0.0
        %5694 = vmatpush1.xpose.msra.mxu0 0.0
        %5695 = vmatprep.subr.mxu0 0.0
        %5696 = vmatpush1.xpose.msra.mxu0 0.0
        %5697 = vmatprep.subr.mxu0 0.0
        %5698 = vmatpush1.xpose.msra.mxu0 0.0
        %5699 = vmatprep.subr.mxu0 0.0
        %5700 = vmatpush1.xpose.msra.mxu0 0.0
        %5701 = vmatprep.subr.mxu0 0.0
        %5702 = vmatpush1.xpose.msra.mxu0 0.0
        %5703 = vmatprep.subr.mxu0 0.0
        %5704 = vmatpush1.xpose.msra.mxu0 0.0
        %5705 = vmatprep.subr.mxu0 0.0
        %5706 = vmatpush1.xpose.msra.mxu0 0.0
        %5707 = vmatprep.subr.mxu0 0.0
        %5708 = vmatpush1.xpose.msra.mxu0 0.0
        %5709 = vmatprep.subr.mxu0 0.0
        %5710 = vmatpush1.xpose.msra.mxu0 0.0
        %5711 = vmatprep.subr.mxu0 0.0
        %5712 = vmatpush1.xpose.msra.mxu0 0.0
        %5713 = vmatprep.subr.mxu0 0.0
        %5714 = vmatpush1.xpose.msra.mxu0 0.0
        %5715 = vmatprep.subr.mxu0 0.0
        %5716 = vmatpush1.xpose.msra.mxu0 0.0
        %5717 = vmatprep.subr.mxu0 0.0
        %5718 = vmatpush1.xpose.msra.mxu0 0.0
        %5719 = vmatprep.subr.mxu0 0.0
        %5720 = vmatpush1.xpose.msra.mxu0 %v5687
        %5721 = vmatprep.subr.mxu0 0.0
        %5722 = vmatpush2.xpose.msra.mxu0 0.0
        %5723 = vmatprep.subr.mxu0 0.0
        %5724 = vmatpush2.xpose.msra.mxu0 0.0
        %5725 = vmatprep.subr.mxu0 0.0
        %5726 = vmatpush2.xpose.msra.mxu0 0.0
        %5727 = vmatprep.subr.mxu0 0.0
        %5728 = vmatpush2.xpose.msra.mxu0 0.0
        %5729 = vmatprep.subr.mxu0 0.0
        %5730 = vmatpush2.xpose.msra.mxu0 0.0
        %5731 = vmatprep.subr.mxu0 0.0
        %5732 = vmatpush2.xpose.msra.mxu0 0.0
        %5733 = vmatprep.subr.mxu0 0.0
        %5734 = vmatpush2.xpose.msra.mxu0 0.0
        %5735 = vmatprep.subr.mxu0 0.0
        %5736 = vmatpush2.xpose.msra.mxu0 0.0
        %5737 = vmatprep.subr.mxu0 0.0
        %5738 = vmatpush2.xpose.msra.mxu0 0.0
        %5739 = vmatprep.subr.mxu0 0.0
        %5740 = vmatpush2.xpose.msra.mxu0 0.0
        %5741 = vmatprep.subr.mxu0 0.0
        %5742 = vmatpush2.xpose.msra.mxu0 0.0
        %5743 = vmatprep.subr.mxu0 0.0
        %5744 = vmatpush2.xpose.msra.mxu0 0.0
        %5745 = vmatprep.subr.mxu0 0.0
        %5746 = vmatpush2.xpose.msra.mxu0 0.0
        %5747 = vmatprep.subr.mxu0 0.0
        %5748 = vmatpush2.xpose.msra.mxu0 0.0
        %5749 = vmatprep.subr.mxu0 0.0
        %5750 = vmatpush2.xpose.msra.mxu0 0.0
        %5751 = vmatprep.subr.mxu0 0.0
        %5752 = vmatpush2.xpose.msra.mxu0 0.0
        %5753 = vmatprep.mubr.f32.mxu0 0.0
        %5754 = vmatmul.mubr.f32.gmra.mxu0 %v5681
        %v5755 = vpop.f32.mrf.mxu0
        %v5756 = vadd.f32 0.0, %v5755
        %v5757 = vpop.f32.mrf.mxu0
        %5758 = vmatprep.mubr.f32.mxu0 0.0
        %5759 = vmatmul.mubr.f32.gmra.mxu0 %v5684
        %v5760 = vpop.f32.mrf.mxu0
        %v5761 = vadd.f32 0.0, %v5760
        %v5762 = vpop.f32.mrf.mxu0
        %5763 = vdwg.mxu0
        %v5764 = vmul.f32 %v5756, 0.17677669
        %v5765 = vmul.f32 %v5761, 0.17677669
        %v5766 = vsel %vm2490, %v5764, -inf
        %5767 = vmax.xlane.f32.xlu0 %v5766
        %v5768 = vpop.xlane.xlu0 %5767
        %v5769 = vsel %vm2494, %v5765, -inf
        %5770 = vmax.xlane.f32.xlu0 %v5769
        %v5771 = vpop.xlane.xlu0 %5770
        %v5772 = vsub.f32 %v5764, %v5768
        %v5773 = vsub.f32 %v5765, %v5771
        %v5774 = vmul.f32 %v5772, 1.442695
        %v5775 = vpow.pop %v5774
        %v5776 = vmul.f32 %v5773, 1.442695
        %v5777 = vpow.pop %v5776
        %v5778 = vsel %vm2490, %v5775, 0.0
        %5779 = vadd.xlane.f32.xlu0 %v5778
        %v5780 = vpop.xlane.xlu0 %5779
        %v5781 = vsel %vm2494, %v5777, 0.0
        %5782 = vadd.xlane.f32.xlu0 %v5781
        %v5783 = vpop.xlane.xlu0 %5782
        %v5784 = vrcp.pop %v5780
        %v5785 = vmul.f32 %v5775, %v5784
        %v5786 = vrcp.pop %v5783
        %v5787 = vmul.f32 %v5777, %v5786
        %v5789 = vsel %vm2490, %v5785, 0
        %v5792 = vsel %vm2490, %v5787, 0
        %5794 = vmatprep.subr.mxu0 0.0
        %5795 = vmatpush1.msra.mxu0 0.0
        %5796 = vmatprep.subr.mxu0 0.0
        %5797 = vmatpush1.msra.mxu0 0.0
        %5798 = vmatprep.subr.mxu0 0.0
        %5799 = vmatpush1.msra.mxu0 0.0
        %5800 = vmatprep.subr.mxu0 0.0
        %5801 = vmatpush1.msra.mxu0 0.0
        %5802 = vmatprep.subr.mxu0 0.0
        %5803 = vmatpush1.msra.mxu0 0.0
        %5804 = vmatprep.subr.mxu0 0.0
        %5805 = vmatpush1.msra.mxu0 0.0
        %5806 = vmatprep.subr.mxu0 0.0
        %5807 = vmatpush1.msra.mxu0 0.0
        %5808 = vmatprep.subr.mxu0 0.0
        %5809 = vmatpush1.msra.mxu0 0.0
        %5810 = vmatprep.subr.mxu0 0.0
        %5811 = vmatpush1.msra.mxu0 0.0
        %5812 = vmatprep.subr.mxu0 0.0
        %5813 = vmatpush1.msra.mxu0 0.0
        %5814 = vmatprep.subr.mxu0 0.0
        %5815 = vmatpush1.msra.mxu0 0.0
        %5816 = vmatprep.subr.mxu0 0.0
        %5817 = vmatpush1.msra.mxu0 0.0
        %5818 = vmatprep.subr.mxu0 0.0
        %5819 = vmatpush1.msra.mxu0 0.0
        %5820 = vmatprep.subr.mxu0 0.0
        %5821 = vmatpush1.msra.mxu0 0.0
        %5822 = vmatprep.subr.mxu0 0.0
        %5823 = vmatpush1.msra.mxu0 0.0
        %5824 = vmatprep.subr.mxu0 0.0
        %5825 = vmatpush1.msra.mxu0 %v5657
        %5826 = vmatprep.subr.mxu0 0.0
        %5827 = vmatpush2.msra.mxu0 0.0
        %5828 = vmatprep.subr.mxu0 0.0
        %5829 = vmatpush2.msra.mxu0 0.0
        %5830 = vmatprep.subr.mxu0 0.0
        %5831 = vmatpush2.msra.mxu0 0.0
        %5832 = vmatprep.subr.mxu0 0.0
        %5833 = vmatpush2.msra.mxu0 0.0
        %5834 = vmatprep.subr.mxu0 0.0
        %5835 = vmatpush2.msra.mxu0 0.0
        %5836 = vmatprep.subr.mxu0 0.0
        %5837 = vmatpush2.msra.mxu0 0.0
        %5838 = vmatprep.subr.mxu0 0.0
        %5839 = vmatpush2.msra.mxu0 0.0
        %5840 = vmatprep.subr.mxu0 0.0
        %5841 = vmatpush2.msra.mxu0 0.0
        %5842 = vmatprep.subr.mxu0 0.0
        %5843 = vmatpush2.msra.mxu0 0.0
        %5844 = vmatprep.subr.mxu0 0.0
        %5845 = vmatpush2.msra.mxu0 0.0
        %5846 = vmatprep.subr.mxu0 0.0
        %5847 = vmatpush2.msra.mxu0 0.0
        %5848 = vmatprep.subr.mxu0 0.0
        %5849 = vmatpush2.msra.mxu0 0.0
        %5850 = vmatprep.subr.mxu0 0.0
        %5851 = vmatpush2.msra.mxu0 0.0
        %5852 = vmatprep.subr.mxu0 0.0
        %5853 = vmatpush2.msra.mxu0 0.0
        %5854 = vmatprep.subr.mxu0 0.0
        %5855 = vmatpush2.msra.mxu0 0.0
        %5856 = vmatprep.subr.mxu0 0.0
        %5857 = vmatpush2.msra.mxu0 0.0
        %5858 = vmatprep.mubr.f32.mxu0 0.0
        %5859 = vmatmul.mubr.f32.gmra.mxu0 %v5789
        %v5860 = vpop.f32.mrf.mxu0
        %v5861 = vadd.f32 0.0, %v5860
        %v5862 = vpop.f32.mrf.mxu0
        %5863 = vmatprep.mubr.f32.mxu0 0.0
        %5864 = vmatmul.mubr.f32.gmra.mxu0 %v5792
        %v5865 = vpop.f32.mrf.mxu0
        %v5866 = vadd.f32 0.0, %v5865
        %v5867 = vpop.f32.mrf.mxu0
        %5868 = vdwg.mxu0
        %v5870 = vsel %vm939, %v5861, 0
        %v5873 = vsel %vm939, %v5866, 0
        %5875 = vmatprep.subr.mxu0 0.0
        %5876 = vmatpush1.msra.mxu0 0.0
        %5877 = vmatprep.subr.mxu0 0.0
        %5878 = vmatpush1.msra.mxu0 0.0
        %5879 = vmatprep.subr.mxu0 0.0
        %5880 = vmatpush1.msra.mxu0 0.0
        %5881 = vmatprep.subr.mxu0 0.0
        %5882 = vmatpush1.msra.mxu0 0.0
        %5883 = vmatprep.subr.mxu0 0.0
        %5884 = vmatpush1.msra.mxu0 0.0
        %5885 = vmatprep.subr.mxu0 0.0
        %5886 = vmatpush1.msra.mxu0 0.0
        %5887 = vmatprep.subr.mxu0 0.0
        %5888 = vmatpush1.msra.mxu0 0.0
        %5889 = vmatprep.subr.mxu0 0.0
        %5890 = vmatpush1.msra.mxu0 0.0
        %5891 = vmatprep.subr.mxu0 0.0
        %5892 = vmatpush1.msra.mxu0 0.0
        %5893 = vmatprep.subr.mxu0 0.0
        %5894 = vmatpush1.msra.mxu0 0.0
        %5895 = vmatprep.subr.mxu0 0.0
        %5896 = vmatpush1.msra.mxu0 0.0
        %5897 = vmatprep.subr.mxu0 0.0
        %5898 = vmatpush1.msra.mxu0 0.0
        %5899 = vmatprep.subr.mxu0 0.0
        %5900 = vmatpush1.msra.mxu0 %v5665
        %5901 = vmatprep.subr.mxu0 0.0
        %5902 = vmatpush1.msra.mxu0 %v5664
        %5903 = vmatprep.subr.mxu0 0.0
        %5904 = vmatpush1.msra.mxu0 %v5663
        %5905 = vmatprep.subr.mxu0 0.0
        %5906 = vmatpush1.msra.mxu0 %v5662
        %5907 = vmatprep.subr.mxu0 0.0
        %5908 = vmatpush2.msra.mxu0 0.0
        %5909 = vmatprep.subr.mxu0 0.0
        %5910 = vmatpush2.msra.mxu0 0.0
        %5911 = vmatprep.subr.mxu0 0.0
        %5912 = vmatpush2.msra.mxu0 0.0
        %5913 = vmatprep.subr.mxu0 0.0
        %5914 = vmatpush2.msra.mxu0 0.0
        %5915 = vmatprep.subr.mxu0 0.0
        %5916 = vmatpush2.msra.mxu0 0.0
        %5917 = vmatprep.subr.mxu0 0.0
        %5918 = vmatpush2.msra.mxu0 0.0
        %5919 = vmatprep.subr.mxu0 0.0
        %5920 = vmatpush2.msra.mxu0 0.0
        %5921 = vmatprep.subr.mxu0 0.0
        %5922 = vmatpush2.msra.mxu0 0.0
        %5923 = vmatprep.subr.mxu0 0.0
        %5924 = vmatpush2.msra.mxu0 0.0
        %5925 = vmatprep.subr.mxu0 0.0
        %5926 = vmatpush2.msra.mxu0 0.0
        %5927 = vmatprep.subr.mxu0 0.0
        %5928 = vmatpush2.msra.mxu0 0.0
        %5929 = vmatprep.subr.mxu0 0.0
        %5930 = vmatpush2.msra.mxu0 0.0
        %5931 = vmatprep.subr.mxu0 0.0
        %5932 = vmatpush2.msra.mxu0 0.0
        %5933 = vmatprep.subr.mxu0 0.0
        %5934 = vmatpush2.msra.mxu0 0.0
        %5935 = vmatprep.subr.mxu0 0.0
        %5936 = vmatpush2.msra.mxu0 0.0
        %5937 = vmatprep.subr.mxu0 0.0
        %5938 = vmatpush2.msra.mxu0 0.0
        %5939 = vmatprep.mubr.f32.mxu0 0.0
        %5940 = vmatmul.mubr.f32.gmra.mxu0 %v5870
        %v5941 = vpop.f32.mrf.mxu0
        %v5942 = vadd.f32 0.0, %v5941
        %v5943 = vpop.f32.mrf.mxu0
        %5944 = vmatprep.mubr.f32.mxu0 0.0
        %5945 = vmatmul.mubr.f32.gmra.mxu0 %v5873
        %v5946 = vpop.f32.mrf.mxu0
        %v5947 = vadd.f32 0.0, %v5946
        %v5948 = vpop.f32.mrf.mxu0
        %5949 = vdwg.mxu0
        %v5951 = vlaneseq
        %v5952 = vshrl.u32 %v5951, 7
        %v5953 = vsub.s32 0, %v5952
        %v5954 = vrot.slane %v5679, %v5953
        %v5956 = vadd.f32 %v5954, %v5942
        %v5957 = vadd.f32 %v5954, %v5947
        %5958 = vrot.lane.b32.xlu0 %v5504, 96
        %v5959 = vpop.permute.xlu0 %5958
        %5960 = vrot.lane.b32.xlu0 %v5507, 96
        %v5961 = vpop.permute.xlu0 %5960
        %5962 = vrot.lane.b32.xlu0 %v5655, 96
        %v5963 = vpop.permute.xlu0 %5962
        %v5964 = vsel %vm939, %v5959, 0
        %v5966 = vsel %vm939, %v5961, 0
        %v5968 = vsel %vm939, %v5963, 0
        %5970 = vmatprep.subr.mxu0 0.0
        %5971 = vmatpush1.xpose.msra.mxu0 0.0
        %5972 = vmatprep.subr.mxu0 0.0
        %5973 = vmatpush1.xpose.msra.mxu0 0.0
        %5974 = vmatprep.subr.mxu0 0.0
        %5975 = vmatpush1.xpose.msra.mxu0 0.0
        %5976 = vmatprep.subr.mxu0 0.0
        %5977 = vmatpush1.xpose.msra.mxu0 0.0
        %5978 = vmatprep.subr.mxu0 0.0
        %5979 = vmatpush1.xpose.msra.mxu0 0.0
        %5980 = vmatprep.subr.mxu0 0.0
        %5981 = vmatpush1.xpose.msra.mxu0 0.0
        %5982 = vmatprep.subr.mxu0 0.0
        %5983 = vmatpush1.xpose.msra.mxu0 0.0
        %5984 = vmatprep.subr.mxu0 0.0
        %5985 = vmatpush1.xpose.msra.mxu0 0.0
        %5986 = vmatprep.subr.mxu0 0.0
        %5987 = vmatpush1.xpose.msra.mxu0 0.0
        %5988 = vmatprep.subr.mxu0 0.0
        %5989 = vmatpush1.xpose.msra.mxu0 0.0
        %5990 = vmatprep.subr.mxu0 0.0
        %5991 = vmatpush1.xpose.msra.mxu0 0.0
        %5992 = vmatprep.subr.mxu0 0.0
        %5993 = vmatpush1.xpose.msra.mxu0 0.0
        %5994 = vmatprep.subr.mxu0 0.0
        %5995 = vmatpush1.xpose.msra.mxu0 0.0
        %5996 = vmatprep.subr.mxu0 0.0
        %5997 = vmatpush1.xpose.msra.mxu0 0.0
        %5998 = vmatprep.subr.mxu0 0.0
        %5999 = vmatpush1.xpose.msra.mxu0 0.0
        %6000 = vmatprep.subr.mxu0 0.0
        %6001 = vmatpush1.xpose.msra.mxu0 %v5968
        %6002 = vmatprep.subr.mxu0 0.0
        %6003 = vmatpush2.xpose.msra.mxu0 0.0
        %6004 = vmatprep.subr.mxu0 0.0
        %6005 = vmatpush2.xpose.msra.mxu0 0.0
        %6006 = vmatprep.subr.mxu0 0.0
        %6007 = vmatpush2.xpose.msra.mxu0 0.0
        %6008 = vmatprep.subr.mxu0 0.0
        %6009 = vmatpush2.xpose.msra.mxu0 0.0
        %6010 = vmatprep.subr.mxu0 0.0
        %6011 = vmatpush2.xpose.msra.mxu0 0.0
        %6012 = vmatprep.subr.mxu0 0.0
        %6013 = vmatpush2.xpose.msra.mxu0 0.0
        %6014 = vmatprep.subr.mxu0 0.0
        %6015 = vmatpush2.xpose.msra.mxu0 0.0
        %6016 = vmatprep.subr.mxu0 0.0
        %6017 = vmatpush2.xpose.msra.mxu0 0.0
        %6018 = vmatprep.subr.mxu0 0.0
        %6019 = vmatpush2.xpose.msra.mxu0 0.0
        %6020 = vmatprep.subr.mxu0 0.0
        %6021 = vmatpush2.xpose.msra.mxu0 0.0
        %6022 = vmatprep.subr.mxu0 0.0
        %6023 = vmatpush2.xpose.msra.mxu0 0.0
        %6024 = vmatprep.subr.mxu0 0.0
        %6025 = vmatpush2.xpose.msra.mxu0 0.0
        %6026 = vmatprep.subr.mxu0 0.0
        %6027 = vmatpush2.xpose.msra.mxu0 0.0
        %6028 = vmatprep.subr.mxu0 0.0
        %6029 = vmatpush2.xpose.msra.mxu0 0.0
        %6030 = vmatprep.subr.mxu0 0.0
        %6031 = vmatpush2.xpose.msra.mxu0 0.0
        %6032 = vmatprep.subr.mxu0 0.0
        %6033 = vmatpush2.xpose.msra.mxu0 0.0
        %6034 = vmatprep.mubr.f32.mxu0 0.0
        %6035 = vmatmul.mubr.f32.gmra.mxu0 %v5964
        %v6036 = vpop.f32.mrf.mxu0
        %v6037 = vadd.f32 0.0, %v6036
        %v6038 = vpop.f32.mrf.mxu0
        %6039 = vmatprep.mubr.f32.mxu0 0.0
        %6040 = vmatmul.mubr.f32.gmra.mxu0 %v5966
        %v6041 = vpop.f32.mrf.mxu0
        %v6042 = vadd.f32 0.0, %v6041
        %v6043 = vpop.f32.mrf.mxu0
        %6044 = vdwg.mxu0
        %v6045 = vmul.f32 %v6037, 0.17677669
        %v6046 = vmul.f32 %v6042, 0.17677669
        %v6047 = vsel %vm2490, %v6045, -inf
        %6048 = vmax.xlane.f32.xlu0 %v6047
        %v6049 = vpop.xlane.xlu0 %6048
        %v6050 = vsel %vm2494, %v6046, -inf
        %6051 = vmax.xlane.f32.xlu0 %v6050
        %v6052 = vpop.xlane.xlu0 %6051
        %v6053 = vsub.f32 %v6045, %v6049
        %v6054 = vsub.f32 %v6046, %v6052
        %v6055 = vmul.f32 %v6053, 1.442695
        %v6056 = vpow.pop %v6055
        %v6057 = vmul.f32 %v6054, 1.442695
        %v6058 = vpow.pop %v6057
        %v6059 = vsel %vm2490, %v6056, 0.0
        %6060 = vadd.xlane.f32.xlu0 %v6059
        %v6061 = vpop.xlane.xlu0 %6060
        %v6062 = vsel %vm2494, %v6058, 0.0
        %6063 = vadd.xlane.f32.xlu0 %v6062
        %v6064 = vpop.xlane.xlu0 %6063
        %v6065 = vrcp.pop %v6061
        %v6066 = vmul.f32 %v6056, %v6065
        %v6067 = vrcp.pop %v6064
        %v6068 = vmul.f32 %v6058, %v6067
        %6070 = vrot.lane.b32.xlu0 %v5657, 96
        %v6071 = vpop.permute.xlu0 %6070
        %v6074 = vsel %vm2490, %v6066, 0
        %v6077 = vsel %vm2490, %v6068, 0
        %6079 = vmatprep.subr.mxu0 0.0
        %6080 = vmatpush1.msra.mxu0 0.0
        %6081 = vmatprep.subr.mxu0 0.0
        %6082 = vmatpush1.msra.mxu0 0.0
        %6083 = vmatprep.subr.mxu0 0.0
        %6084 = vmatpush1.msra.mxu0 0.0
        %6085 = vmatprep.subr.mxu0 0.0
        %6086 = vmatpush1.msra.mxu0 0.0
        %6087 = vmatprep.subr.mxu0 0.0
        %6088 = vmatpush1.msra.mxu0 0.0
        %6089 = vmatprep.subr.mxu0 0.0
        %6090 = vmatpush1.msra.mxu0 0.0
        %6091 = vmatprep.subr.mxu0 0.0
        %6092 = vmatpush1.msra.mxu0 0.0
        %6093 = vmatprep.subr.mxu0 0.0
        %6094 = vmatpush1.msra.mxu0 0.0
        %6095 = vmatprep.subr.mxu0 0.0
        %6096 = vmatpush1.msra.mxu0 0.0
        %6097 = vmatprep.subr.mxu0 0.0
        %6098 = vmatpush1.msra.mxu0 0.0
        %6099 = vmatprep.subr.mxu0 0.0
        %6100 = vmatpush1.msra.mxu0 0.0
        %6101 = vmatprep.subr.mxu0 0.0
        %6102 = vmatpush1.msra.mxu0 0.0
        %6103 = vmatprep.subr.mxu0 0.0
        %6104 = vmatpush1.msra.mxu0 0.0
        %6105 = vmatprep.subr.mxu0 0.0
        %6106 = vmatpush1.msra.mxu0 0.0
        %6107 = vmatprep.subr.mxu0 0.0
        %6108 = vmatpush1.msra.mxu0 0.0
        %6109 = vmatprep.subr.mxu0 0.0
        %6110 = vmatpush1.msra.mxu0 %v6071
        %6111 = vmatprep.subr.mxu0 0.0
        %6112 = vmatpush2.msra.mxu0 0.0
        %6113 = vmatprep.subr.mxu0 0.0
        %6114 = vmatpush2.msra.mxu0 0.0
        %6115 = vmatprep.subr.mxu0 0.0
        %6116 = vmatpush2.msra.mxu0 0.0
        %6117 = vmatprep.subr.mxu0 0.0
        %6118 = vmatpush2.msra.mxu0 0.0
        %6119 = vmatprep.subr.mxu0 0.0
        %6120 = vmatpush2.msra.mxu0 0.0
        %6121 = vmatprep.subr.mxu0 0.0
        %6122 = vmatpush2.msra.mxu0 0.0
        %6123 = vmatprep.subr.mxu0 0.0
        %6124 = vmatpush2.msra.mxu0 0.0
        %6125 = vmatprep.subr.mxu0 0.0
        %6126 = vmatpush2.msra.mxu0 0.0
        %6127 = vmatprep.subr.mxu0 0.0
        %6128 = vmatpush2.msra.mxu0 0.0
        %6129 = vmatprep.subr.mxu0 0.0
        %6130 = vmatpush2.msra.mxu0 0.0
        %6131 = vmatprep.subr.mxu0 0.0
        %6132 = vmatpush2.msra.mxu0 0.0
        %6133 = vmatprep.subr.mxu0 0.0
        %6134 = vmatpush2.msra.mxu0 0.0
        %6135 = vmatprep.subr.mxu0 0.0
        %6136 = vmatpush2.msra.mxu0 0.0
        %6137 = vmatprep.subr.mxu0 0.0
        %6138 = vmatpush2.msra.mxu0 0.0
        %6139 = vmatprep.subr.mxu0 0.0
        %6140 = vmatpush2.msra.mxu0 0.0
        %6141 = vmatprep.subr.mxu0 0.0
        %6142 = vmatpush2.msra.mxu0 0.0
        %6143 = vmatprep.mubr.f32.mxu0 0.0
        %6144 = vmatmul.mubr.f32.gmra.mxu0 %v6074
        %v6145 = vpop.f32.mrf.mxu0
        %v6146 = vadd.f32 0.0, %v6145
        %v6147 = vpop.f32.mrf.mxu0
        %6148 = vmatprep.mubr.f32.mxu0 0.0
        %6149 = vmatmul.mubr.f32.gmra.mxu0 %v6077
        %v6150 = vpop.f32.mrf.mxu0
        %v6151 = vadd.f32 0.0, %v6150
        %v6152 = vpop.f32.mrf.mxu0
        %6153 = vdwg.mxu0
        %v6155 = vsel %vm939, %v6146, 0
        %v6158 = vsel %vm939, %v6151, 0
        %6160 = vmatprep.subr.mxu0 0.0
        %6161 = vmatpush1.msra.mxu0 0.0
        %6162 = vmatprep.subr.mxu0 0.0
        %6163 = vmatpush1.msra.mxu0 0.0
        %6164 = vmatprep.subr.mxu0 0.0
        %6165 = vmatpush1.msra.mxu0 0.0
        %6166 = vmatprep.subr.mxu0 0.0
        %6167 = vmatpush1.msra.mxu0 0.0
        %6168 = vmatprep.subr.mxu0 0.0
        %6169 = vmatpush1.msra.mxu0 0.0
        %6170 = vmatprep.subr.mxu0 0.0
        %6171 = vmatpush1.msra.mxu0 0.0
        %6172 = vmatprep.subr.mxu0 0.0
        %6173 = vmatpush1.msra.mxu0 0.0
        %6174 = vmatprep.subr.mxu0 0.0
        %6175 = vmatpush1.msra.mxu0 0.0
        %6176 = vmatprep.subr.mxu0 0.0
        %6177 = vmatpush1.msra.mxu0 0.0
        %6178 = vmatprep.subr.mxu0 0.0
        %6179 = vmatpush1.msra.mxu0 0.0
        %6180 = vmatprep.subr.mxu0 0.0
        %6181 = vmatpush1.msra.mxu0 0.0
        %6182 = vmatprep.subr.mxu0 0.0
        %6183 = vmatpush1.msra.mxu0 0.0
        %6184 = vmatprep.subr.mxu0 0.0
        %6185 = vmatpush1.msra.mxu0 %v5669
        %6186 = vmatprep.subr.mxu0 0.0
        %6187 = vmatpush1.msra.mxu0 %v5668
        %6188 = vmatprep.subr.mxu0 0.0
        %6189 = vmatpush1.msra.mxu0 %v5667
        %6190 = vmatprep.subr.mxu0 0.0
        %6191 = vmatpush1.msra.mxu0 %v5666
        %6192 = vmatprep.subr.mxu0 0.0
        %6193 = vmatpush2.msra.mxu0 0.0
        %6194 = vmatprep.subr.mxu0 0.0
        %6195 = vmatpush2.msra.mxu0 0.0
        %6196 = vmatprep.subr.mxu0 0.0
        %6197 = vmatpush2.msra.mxu0 0.0
        %6198 = vmatprep.subr.mxu0 0.0
        %6199 = vmatpush2.msra.mxu0 0.0
        %6200 = vmatprep.subr.mxu0 0.0
        %6201 = vmatpush2.msra.mxu0 0.0
        %6202 = vmatprep.subr.mxu0 0.0
        %6203 = vmatpush2.msra.mxu0 0.0
        %6204 = vmatprep.subr.mxu0 0.0
        %6205 = vmatpush2.msra.mxu0 0.0
        %6206 = vmatprep.subr.mxu0 0.0
        %6207 = vmatpush2.msra.mxu0 0.0
        %6208 = vmatprep.subr.mxu0 0.0
        %6209 = vmatpush2.msra.mxu0 0.0
        %6210 = vmatprep.subr.mxu0 0.0
        %6211 = vmatpush2.msra.mxu0 0.0
        %6212 = vmatprep.subr.mxu0 0.0
        %6213 = vmatpush2.msra.mxu0 0.0
        %6214 = vmatprep.subr.mxu0 0.0
        %6215 = vmatpush2.msra.mxu0 0.0
        %6216 = vmatprep.subr.mxu0 0.0
        %6217 = vmatpush2.msra.mxu0 0.0
        %6218 = vmatprep.subr.mxu0 0.0
        %6219 = vmatpush2.msra.mxu0 0.0
        %6220 = vmatprep.subr.mxu0 0.0
        %6221 = vmatpush2.msra.mxu0 0.0
        %6222 = vmatprep.subr.mxu0 0.0
        %6223 = vmatpush2.msra.mxu0 0.0
        %6224 = vmatprep.mubr.f32.mxu0 0.0
        %6225 = vmatmul.mubr.f32.gmra.mxu0 %v6155
        %v6226 = vpop.f32.mrf.mxu0
        %v6227 = vadd.f32 0.0, %v6226
        %v6228 = vpop.f32.mrf.mxu0
        %6229 = vmatprep.mubr.f32.mxu0 0.0
        %6230 = vmatmul.mubr.f32.gmra.mxu0 %v6158
        %v6231 = vpop.f32.mrf.mxu0
        %v6232 = vadd.f32 0.0, %v6231
        %v6233 = vpop.f32.mrf.mxu0
        %6234 = vdwg.mxu0
        %v6235 = vadd.f32 %v5956, %v6227
        %v6236 = vadd.f32 %v5957, %v6232
        %6237 = vrot.lane.b32.xlu0 %v5504, 64
        %v6238 = vpop.permute.xlu0 %6237
        %6239 = vrot.lane.b32.xlu0 %v5507, 64
        %v6240 = vpop.permute.xlu0 %6239
        %6241 = vrot.lane.b32.xlu0 %v5655, 64
        %v6242 = vpop.permute.xlu0 %6241
        %v6243 = vsel %vm939, %v6238, 0
        %v6245 = vsel %vm939, %v6240, 0
        %v6247 = vsel %vm939, %v6242, 0
        %6249 = vmatprep.subr.mxu0 0.0
        %6250 = vmatpush1.xpose.msra.mxu0 0.0
        %6251 = vmatprep.subr.mxu0 0.0
        %6252 = vmatpush1.xpose.msra.mxu0 0.0
        %6253 = vmatprep.subr.mxu0 0.0
        %6254 = vmatpush1.xpose.msra.mxu0 0.0
        %6255 = vmatprep.subr.mxu0 0.0
        %6256 = vmatpush1.xpose.msra.mxu0 0.0
        %6257 = vmatprep.subr.mxu0 0.0
        %6258 = vmatpush1.xpose.msra.mxu0 0.0
        %6259 = vmatprep.subr.mxu0 0.0
        %6260 = vmatpush1.xpose.msra.mxu0 0.0
        %6261 = vmatprep.subr.mxu0 0.0
        %6262 = vmatpush1.xpose.msra.mxu0 0.0
        %6263 = vmatprep.subr.mxu0 0.0
        %6264 = vmatpush1.xpose.msra.mxu0 0.0
        %6265 = vmatprep.subr.mxu0 0.0
        %6266 = vmatpush1.xpose.msra.mxu0 0.0
        %6267 = vmatprep.subr.mxu0 0.0
        %6268 = vmatpush1.xpose.msra.mxu0 0.0
        %6269 = vmatprep.subr.mxu0 0.0
        %6270 = vmatpush1.xpose.msra.mxu0 0.0
        %6271 = vmatprep.subr.mxu0 0.0
        %6272 = vmatpush1.xpose.msra.mxu0 0.0
        %6273 = vmatprep.subr.mxu0 0.0
        %6274 = vmatpush1.xpose.msra.mxu0 0.0
        %6275 = vmatprep.subr.mxu0 0.0
        %6276 = vmatpush1.xpose.msra.mxu0 0.0
        %6277 = vmatprep.subr.mxu0 0.0
        %6278 = vmatpush1.xpose.msra.mxu0 0.0
        %6279 = vmatprep.subr.mxu0 0.0
        %6280 = vmatpush1.xpose.msra.mxu0 %v6247
        %6281 = vmatprep.subr.mxu0 0.0
        %6282 = vmatpush2.xpose.msra.mxu0 0.0
        %6283 = vmatprep.subr.mxu0 0.0
        %6284 = vmatpush2.xpose.msra.mxu0 0.0
        %6285 = vmatprep.subr.mxu0 0.0
        %6286 = vmatpush2.xpose.msra.mxu0 0.0
        %6287 = vmatprep.subr.mxu0 0.0
        %6288 = vmatpush2.xpose.msra.mxu0 0.0
        %6289 = vmatprep.subr.mxu0 0.0
        %6290 = vmatpush2.xpose.msra.mxu0 0.0
        %6291 = vmatprep.subr.mxu0 0.0
        %6292 = vmatpush2.xpose.msra.mxu0 0.0
        %6293 = vmatprep.subr.mxu0 0.0
        %6294 = vmatpush2.xpose.msra.mxu0 0.0
        %6295 = vmatprep.subr.mxu0 0.0
        %6296 = vmatpush2.xpose.msra.mxu0 0.0
        %6297 = vmatprep.subr.mxu0 0.0
        %6298 = vmatpush2.xpose.msra.mxu0 0.0
        %6299 = vmatprep.subr.mxu0 0.0
        %6300 = vmatpush2.xpose.msra.mxu0 0.0
        %6301 = vmatprep.subr.mxu0 0.0
        %6302 = vmatpush2.xpose.msra.mxu0 0.0
        %6303 = vmatprep.subr.mxu0 0.0
        %6304 = vmatpush2.xpose.msra.mxu0 0.0
        %6305 = vmatprep.subr.mxu0 0.0
        %6306 = vmatpush2.xpose.msra.mxu0 0.0
        %6307 = vmatprep.subr.mxu0 0.0
        %6308 = vmatpush2.xpose.msra.mxu0 0.0
        %6309 = vmatprep.subr.mxu0 0.0
        %6310 = vmatpush2.xpose.msra.mxu0 0.0
        %6311 = vmatprep.subr.mxu0 0.0
        %6312 = vmatpush2.xpose.msra.mxu0 0.0
        %6313 = vmatprep.mubr.f32.mxu0 0.0
        %6314 = vmatmul.mubr.f32.gmra.mxu0 %v6243
        %v6315 = vpop.f32.mrf.mxu0
        %v6316 = vadd.f32 0.0, %v6315
        %v6317 = vpop.f32.mrf.mxu0
        %6318 = vmatprep.mubr.f32.mxu0 0.0
        %6319 = vmatmul.mubr.f32.gmra.mxu0 %v6245
        %v6320 = vpop.f32.mrf.mxu0
        %v6321 = vadd.f32 0.0, %v6320
        %v6322 = vpop.f32.mrf.mxu0
        %6323 = vdwg.mxu0
        %v6324 = vmul.f32 %v6316, 0.17677669
        %v6325 = vmul.f32 %v6321, 0.17677669
        %v6326 = vsel %vm2490, %v6324, -inf
        %6327 = vmax.xlane.f32.xlu0 %v6326
        %v6328 = vpop.xlane.xlu0 %6327
        %v6329 = vsel %vm2494, %v6325, -inf
        %6330 = vmax.xlane.f32.xlu0 %v6329
        %v6331 = vpop.xlane.xlu0 %6330
        %v6332 = vsub.f32 %v6324, %v6328
        %v6333 = vsub.f32 %v6325, %v6331
        %v6334 = vmul.f32 %v6332, 1.442695
        %v6335 = vpow.pop %v6334
        %v6336 = vmul.f32 %v6333, 1.442695
        %v6337 = vpow.pop %v6336
        %v6338 = vsel %vm2490, %v6335, 0.0
        %6339 = vadd.xlane.f32.xlu0 %v6338
        %v6340 = vpop.xlane.xlu0 %6339
        %v6341 = vsel %vm2494, %v6337, 0.0
        %6342 = vadd.xlane.f32.xlu0 %v6341
        %v6343 = vpop.xlane.xlu0 %6342
        %v6344 = vrcp.pop %v6340
        %v6345 = vmul.f32 %v6335, %v6344
        %v6346 = vrcp.pop %v6343
        %v6347 = vmul.f32 %v6337, %v6346
        %6348 = vrot.lane.b32.xlu0 %v5657, 64
        %v6349 = vpop.permute.xlu0 %6348
        %v6352 = vsel %vm2490, %v6345, 0
        %v6355 = vsel %vm2490, %v6347, 0
        %6357 = vmatprep.subr.mxu0 0.0
        %6358 = vmatpush1.msra.mxu0 0.0
        %6359 = vmatprep.subr.mxu0 0.0
        %6360 = vmatpush1.msra.mxu0 0.0
        %6361 = vmatprep.subr.mxu0 0.0
        %6362 = vmatpush1.msra.mxu0 0.0
        %6363 = vmatprep.subr.mxu0 0.0
        %6364 = vmatpush1.msra.mxu0 0.0
        %6365 = vmatprep.subr.mxu0 0.0
        %6366 = vmatpush1.msra.mxu0 0.0
        %6367 = vmatprep.subr.mxu0 0.0
        %6368 = vmatpush1.msra.mxu0 0.0
        %6369 = vmatprep.subr.mxu0 0.0
        %6370 = vmatpush1.msra.mxu0 0.0
        %6371 = vmatprep.subr.mxu0 0.0
        %6372 = vmatpush1.msra.mxu0 0.0
        %6373 = vmatprep.subr.mxu0 0.0
        %6374 = vmatpush1.msra.mxu0 0.0
        %6375 = vmatprep.subr.mxu0 0.0
        %6376 = vmatpush1.msra.mxu0 0.0
        %6377 = vmatprep.subr.mxu0 0.0
        %6378 = vmatpush1.msra.mxu0 0.0
        %6379 = vmatprep.subr.mxu0 0.0
        %6380 = vmatpush1.msra.mxu0 0.0
        %6381 = vmatprep.subr.mxu0 0.0
        %6382 = vmatpush1.msra.mxu0 0.0
        %6383 = vmatprep.subr.mxu0 0.0
        %6384 = vmatpush1.msra.mxu0 0.0
        %6385 = vmatprep.subr.mxu0 0.0
        %6386 = vmatpush1.msra.mxu0 0.0
        %6387 = vmatprep.subr.mxu0 0.0
        %6388 = vmatpush1.msra.mxu0 %v6349
        %6389 = vmatprep.subr.mxu0 0.0
        %6390 = vmatpush2.msra.mxu0 0.0
        %6391 = vmatprep.subr.mxu0 0.0
        %6392 = vmatpush2.msra.mxu0 0.0
        %6393 = vmatprep.subr.mxu0 0.0
        %6394 = vmatpush2.msra.mxu0 0.0
        %6395 = vmatprep.subr.mxu0 0.0
        %6396 = vmatpush2.msra.mxu0 0.0
        %6397 = vmatprep.subr.mxu0 0.0
        %6398 = vmatpush2.msra.mxu0 0.0
        %6399 = vmatprep.subr.mxu0 0.0
        %6400 = vmatpush2.msra.mxu0 0.0
        %6401 = vmatprep.subr.mxu0 0.0
        %6402 = vmatpush2.msra.mxu0 0.0
        %6403 = vmatprep.subr.mxu0 0.0
        %6404 = vmatpush2.msra.mxu0 0.0
        %6405 = vmatprep.subr.mxu0 0.0
        %6406 = vmatpush2.msra.mxu0 0.0
        %6407 = vmatprep.subr.mxu0 0.0
        %6408 = vmatpush2.msra.mxu0 0.0
        %6409 = vmatprep.subr.mxu0 0.0
        %6410 = vmatpush2.msra.mxu0 0.0
        %6411 = vmatprep.subr.mxu0 0.0
        %6412 = vmatpush2.msra.mxu0 0.0
        %6413 = vmatprep.subr.mxu0 0.0
        %6414 = vmatpush2.msra.mxu0 0.0
        %6415 = vmatprep.subr.mxu0 0.0
        %6416 = vmatpush2.msra.mxu0 0.0
        %6417 = vmatprep.subr.mxu0 0.0
        %6418 = vmatpush2.msra.mxu0 0.0
        %6419 = vmatprep.subr.mxu0 0.0
        %6420 = vmatpush2.msra.mxu0 0.0
        %6421 = vmatprep.mubr.f32.mxu0 0.0
        %6422 = vmatmul.mubr.f32.gmra.mxu0 %v6352
        %v6423 = vpop.f32.mrf.mxu0
        %v6424 = vadd.f32 0.0, %v6423
        %v6425 = vpop.f32.mrf.mxu0
        %6426 = vmatprep.mubr.f32.mxu0 0.0
        %6427 = vmatmul.mubr.f32.gmra.mxu0 %v6355
        %v6428 = vpop.f32.mrf.mxu0
        %v6429 = vadd.f32 0.0, %v6428
        %v6430 = vpop.f32.mrf.mxu0
        %6431 = vdwg.mxu0
        %v6433 = vsel %vm939, %v6424, 0
        %v6436 = vsel %vm939, %v6429, 0
        %6438 = vmatprep.subr.mxu0 0.0
        %6439 = vmatpush1.msra.mxu0 0.0
        %6440 = vmatprep.subr.mxu0 0.0
        %6441 = vmatpush1.msra.mxu0 0.0
        %6442 = vmatprep.subr.mxu0 0.0
        %6443 = vmatpush1.msra.mxu0 0.0
        %6444 = vmatprep.subr.mxu0 0.0
        %6445 = vmatpush1.msra.mxu0 0.0
        %6446 = vmatprep.subr.mxu0 0.0
        %6447 = vmatpush1.msra.mxu0 0.0
        %6448 = vmatprep.subr.mxu0 0.0
        %6449 = vmatpush1.msra.mxu0 0.0
        %6450 = vmatprep.subr.mxu0 0.0
        %6451 = vmatpush1.msra.mxu0 0.0
        %6452 = vmatprep.subr.mxu0 0.0
        %6453 = vmatpush1.msra.mxu0 0.0
        %6454 = vmatprep.subr.mxu0 0.0
        %6455 = vmatpush1.msra.mxu0 0.0
        %6456 = vmatprep.subr.mxu0 0.0
        %6457 = vmatpush1.msra.mxu0 0.0
        %6458 = vmatprep.subr.mxu0 0.0
        %6459 = vmatpush1.msra.mxu0 0.0
        %6460 = vmatprep.subr.mxu0 0.0
        %6461 = vmatpush1.msra.mxu0 0.0
        %6462 = vmatprep.subr.mxu0 0.0
        %6463 = vmatpush1.msra.mxu0 %v5673
        %6464 = vmatprep.subr.mxu0 0.0
        %6465 = vmatpush1.msra.mxu0 %v5672
        %6466 = vmatprep.subr.mxu0 0.0
        %6467 = vmatpush1.msra.mxu0 %v5671
        %6468 = vmatprep.subr.mxu0 0.0
        %6469 = vmatpush1.msra.mxu0 %v5670
        %6470 = vmatprep.subr.mxu0 0.0
        %6471 = vmatpush2.msra.mxu0 0.0
        %6472 = vmatprep.subr.mxu0 0.0
        %6473 = vmatpush2.msra.mxu0 0.0
        %6474 = vmatprep.subr.mxu0 0.0
        %6475 = vmatpush2.msra.mxu0 0.0
        %6476 = vmatprep.subr.mxu0 0.0
        %6477 = vmatpush2.msra.mxu0 0.0
        %6478 = vmatprep.subr.mxu0 0.0
        %6479 = vmatpush2.msra.mxu0 0.0
        %6480 = vmatprep.subr.mxu0 0.0
        %6481 = vmatpush2.msra.mxu0 0.0
        %6482 = vmatprep.subr.mxu0 0.0
        %6483 = vmatpush2.msra.mxu0 0.0
        %6484 = vmatprep.subr.mxu0 0.0
        %6485 = vmatpush2.msra.mxu0 0.0
        %6486 = vmatprep.subr.mxu0 0.0
        %6487 = vmatpush2.msra.mxu0 0.0
        %6488 = vmatprep.subr.mxu0 0.0
        %6489 = vmatpush2.msra.mxu0 0.0
        %6490 = vmatprep.subr.mxu0 0.0
        %6491 = vmatpush2.msra.mxu0 0.0
        %6492 = vmatprep.subr.mxu0 0.0
        %6493 = vmatpush2.msra.mxu0 0.0
        %6494 = vmatprep.subr.mxu0 0.0
        %6495 = vmatpush2.msra.mxu0 0.0
        %6496 = vmatprep.subr.mxu0 0.0
        %6497 = vmatpush2.msra.mxu0 0.0
        %6498 = vmatprep.subr.mxu0 0.0
        %6499 = vmatpush2.msra.mxu0 0.0
        %6500 = vmatprep.subr.mxu0 0.0
        %6501 = vmatpush2.msra.mxu0 0.0
        %6502 = vmatprep.mubr.f32.mxu0 0.0
        %6503 = vmatmul.mubr.f32.gmra.mxu0 %v6433
        %v6504 = vpop.f32.mrf.mxu0
        %v6505 = vadd.f32 0.0, %v6504
        %v6506 = vpop.f32.mrf.mxu0
        %6507 = vmatprep.mubr.f32.mxu0 0.0
        %6508 = vmatmul.mubr.f32.gmra.mxu0 %v6436
        %v6509 = vpop.f32.mrf.mxu0
        %v6510 = vadd.f32 0.0, %v6509
        %v6511 = vpop.f32.mrf.mxu0
        %6512 = vdwg.mxu0
        %v6513 = vadd.f32 %v6235, %v6505
        %v6514 = vadd.f32 %v6236, %v6510
        %6515 = vrot.lane.b32.xlu0 %v5504, 32
        %v6516 = vpop.permute.xlu0 %6515
        %6517 = vrot.lane.b32.xlu0 %v5507, 32
        %v6518 = vpop.permute.xlu0 %6517
        %6519 = vrot.lane.b32.xlu0 %v5655, 32
        %v6520 = vpop.permute.xlu0 %6519
        %v6521 = vsel %vm939, %v6516, 0
        %v6523 = vsel %vm939, %v6518, 0
        %v6525 = vsel %vm939, %v6520, 0
        %6527 = vmatprep.subr.mxu0 0.0
        %6528 = vmatpush1.xpose.msra.mxu0 0.0
        %6529 = vmatprep.subr.mxu0 0.0
        %6530 = vmatpush1.xpose.msra.mxu0 0.0
        %6531 = vmatprep.subr.mxu0 0.0
        %6532 = vmatpush1.xpose.msra.mxu0 0.0
        %6533 = vmatprep.subr.mxu0 0.0
        %6534 = vmatpush1.xpose.msra.mxu0 0.0
        %6535 = vmatprep.subr.mxu0 0.0
        %6536 = vmatpush1.xpose.msra.mxu0 0.0
        %6537 = vmatprep.subr.mxu0 0.0
        %6538 = vmatpush1.xpose.msra.mxu0 0.0
        %6539 = vmatprep.subr.mxu0 0.0
        %6540 = vmatpush1.xpose.msra.mxu0 0.0
        %6541 = vmatprep.subr.mxu0 0.0
        %6542 = vmatpush1.xpose.msra.mxu0 0.0
        %6543 = vmatprep.subr.mxu0 0.0
        %6544 = vmatpush1.xpose.msra.mxu0 0.0
        %6545 = vmatprep.subr.mxu0 0.0
        %6546 = vmatpush1.xpose.msra.mxu0 0.0
        %6547 = vmatprep.subr.mxu0 0.0
        %6548 = vmatpush1.xpose.msra.mxu0 0.0
        %6549 = vmatprep.subr.mxu0 0.0
        %6550 = vmatpush1.xpose.msra.mxu0 0.0
        %6551 = vmatprep.subr.mxu0 0.0
        %6552 = vmatpush1.xpose.msra.mxu0 0.0
        %6553 = vmatprep.subr.mxu0 0.0
        %6554 = vmatpush1.xpose.msra.mxu0 0.0
        %6555 = vmatprep.subr.mxu0 0.0
        %6556 = vmatpush1.xpose.msra.mxu0 0.0
        %6557 = vmatprep.subr.mxu0 0.0
        %6558 = vmatpush1.xpose.msra.mxu0 %v6525
        %6559 = vmatprep.subr.mxu0 0.0
        %6560 = vmatpush2.xpose.msra.mxu0 0.0
        %6561 = vmatprep.subr.mxu0 0.0
        %6562 = vmatpush2.xpose.msra.mxu0 0.0
        %6563 = vmatprep.subr.mxu0 0.0
        %6564 = vmatpush2.xpose.msra.mxu0 0.0
        %6565 = vmatprep.subr.mxu0 0.0
        %6566 = vmatpush2.xpose.msra.mxu0 0.0
        %6567 = vmatprep.subr.mxu0 0.0
        %6568 = vmatpush2.xpose.msra.mxu0 0.0
        %6569 = vmatprep.subr.mxu0 0.0
        %6570 = vmatpush2.xpose.msra.mxu0 0.0
        %6571 = vmatprep.subr.mxu0 0.0
        %6572 = vmatpush2.xpose.msra.mxu0 0.0
        %6573 = vmatprep.subr.mxu0 0.0
        %6574 = vmatpush2.xpose.msra.mxu0 0.0
        %6575 = vmatprep.subr.mxu0 0.0
        %6576 = vmatpush2.xpose.msra.mxu0 0.0
        %6577 = vmatprep.subr.mxu0 0.0
        %6578 = vmatpush2.xpose.msra.mxu0 0.0
        %6579 = vmatprep.subr.mxu0 0.0
        %6580 = vmatpush2.xpose.msra.mxu0 0.0
        %6581 = vmatprep.subr.mxu0 0.0
        %6582 = vmatpush2.xpose.msra.mxu0 0.0
        %6583 = vmatprep.subr.mxu0 0.0
        %6584 = vmatpush2.xpose.msra.mxu0 0.0
        %6585 = vmatprep.subr.mxu0 0.0
        %6586 = vmatpush2.xpose.msra.mxu0 0.0
        %6587 = vmatprep.subr.mxu0 0.0
        %6588 = vmatpush2.xpose.msra.mxu0 0.0
        %6589 = vmatprep.subr.mxu0 0.0
        %6590 = vmatpush2.xpose.msra.mxu0 0.0
        %6591 = vmatprep.mubr.f32.mxu0 0.0
        %6592 = vmatmul.mubr.f32.gmra.mxu0 %v6521
        %v6593 = vpop.f32.mrf.mxu0
        %v6594 = vadd.f32 0.0, %v6593
        %v6595 = vpop.f32.mrf.mxu0
        %6596 = vmatprep.mubr.f32.mxu0 0.0
        %6597 = vmatmul.mubr.f32.gmra.mxu0 %v6523
        %v6598 = vpop.f32.mrf.mxu0
        %v6599 = vadd.f32 0.0, %v6598
        %v6600 = vpop.f32.mrf.mxu0
        %6601 = vdwg.mxu0
        %v6602 = vmul.f32 %v6594, 0.17677669
        %v6603 = vmul.f32 %v6599, 0.17677669
        %v6604 = vsel %vm2490, %v6602, -inf
        %6605 = vmax.xlane.f32.xlu0 %v6604
        %v6606 = vpop.xlane.xlu0 %6605
        %v6607 = vsel %vm2494, %v6603, -inf
        %6608 = vmax.xlane.f32.xlu0 %v6607
        %v6609 = vpop.xlane.xlu0 %6608
        %v6610 = vsub.f32 %v6602, %v6606
        %v6611 = vsub.f32 %v6603, %v6609
        %v6612 = vmul.f32 %v6610, 1.442695
        %v6613 = vpow.pop %v6612
        %v6614 = vmul.f32 %v6611, 1.442695
        %v6615 = vpow.pop %v6614
        %v6616 = vsel %vm2490, %v6613, 0.0
        %6617 = vadd.xlane.f32.xlu0 %v6616
        %v6618 = vpop.xlane.xlu0 %6617
        %v6619 = vsel %vm2494, %v6615, 0.0
        %6620 = vadd.xlane.f32.xlu0 %v6619
        %v6621 = vpop.xlane.xlu0 %6620
        %v6622 = vrcp.pop %v6618
        %v6623 = vmul.f32 %v6613, %v6622
        %v6624 = vrcp.pop %v6621
        %v6625 = vmul.f32 %v6615, %v6624
        %6626 = vrot.lane.b32.xlu0 %v5657, 32
        %v6627 = vpop.permute.xlu0 %6626
        %v6630 = vsel %vm2490, %v6623, 0
        %v6633 = vsel %vm2490, %v6625, 0
        %6635 = vmatprep.subr.mxu0 0.0
        %6636 = vmatpush1.msra.mxu0 0.0
        %6637 = vmatprep.subr.mxu0 0.0
        %6638 = vmatpush1.msra.mxu0 0.0
        %6639 = vmatprep.subr.mxu0 0.0
        %6640 = vmatpush1.msra.mxu0 0.0
        %6641 = vmatprep.subr.mxu0 0.0
        %6642 = vmatpush1.msra.mxu0 0.0
        %6643 = vmatprep.subr.mxu0 0.0
        %6644 = vmatpush1.msra.mxu0 0.0
        %6645 = vmatprep.subr.mxu0 0.0
        %6646 = vmatpush1.msra.mxu0 0.0
        %6647 = vmatprep.subr.mxu0 0.0
        %6648 = vmatpush1.msra.mxu0 0.0
        %6649 = vmatprep.subr.mxu0 0.0
        %6650 = vmatpush1.msra.mxu0 0.0
        %6651 = vmatprep.subr.mxu0 0.0
        %6652 = vmatpush1.msra.mxu0 0.0
        %6653 = vmatprep.subr.mxu0 0.0
        %6654 = vmatpush1.msra.mxu0 0.0
        %6655 = vmatprep.subr.mxu0 0.0
        %6656 = vmatpush1.msra.mxu0 0.0
        %6657 = vmatprep.subr.mxu0 0.0
        %6658 = vmatpush1.msra.mxu0 0.0
        %6659 = vmatprep.subr.mxu0 0.0
        %6660 = vmatpush1.msra.mxu0 0.0
        %6661 = vmatprep.subr.mxu0 0.0
        %6662 = vmatpush1.msra.mxu0 0.0
        %6663 = vmatprep.subr.mxu0 0.0
        %6664 = vmatpush1.msra.mxu0 0.0
        %6665 = vmatprep.subr.mxu0 0.0
        %6666 = vmatpush1.msra.mxu0 %v6627
        %6667 = vmatprep.subr.mxu0 0.0
        %6668 = vmatpush2.msra.mxu0 0.0
        %6669 = vmatprep.subr.mxu0 0.0
        %6670 = vmatpush2.msra.mxu0 0.0
        %6671 = vmatprep.subr.mxu0 0.0
        %6672 = vmatpush2.msra.mxu0 0.0
        %6673 = vmatprep.subr.mxu0 0.0
        %6674 = vmatpush2.msra.mxu0 0.0
        %6675 = vmatprep.subr.mxu0 0.0
        %6676 = vmatpush2.msra.mxu0 0.0
        %6677 = vmatprep.subr.mxu0 0.0
        %6678 = vmatpush2.msra.mxu0 0.0
        %6679 = vmatprep.subr.mxu0 0.0
        %6680 = vmatpush2.msra.mxu0 0.0
        %6681 = vmatprep.subr.mxu0 0.0
        %6682 = vmatpush2.msra.mxu0 0.0
        %6683 = vmatprep.subr.mxu0 0.0
        %6684 = vmatpush2.msra.mxu0 0.0
        %6685 = vmatprep.subr.mxu0 0.0
        %6686 = vmatpush2.msra.mxu0 0.0
        %6687 = vmatprep.subr.mxu0 0.0
        %6688 = vmatpush2.msra.mxu0 0.0
        %6689 = vmatprep.subr.mxu0 0.0
        %6690 = vmatpush2.msra.mxu0 0.0
        %6691 = vmatprep.subr.mxu0 0.0
        %6692 = vmatpush2.msra.mxu0 0.0
        %6693 = vmatprep.subr.mxu0 0.0
        %6694 = vmatpush2.msra.mxu0 0.0
        %6695 = vmatprep.subr.mxu0 0.0
        %6696 = vmatpush2.msra.mxu0 0.0
        %6697 = vmatprep.subr.mxu0 0.0
        %6698 = vmatpush2.msra.mxu0 0.0
        %6699 = vmatprep.mubr.f32.mxu0 0.0
        %6700 = vmatmul.mubr.f32.gmra.mxu0 %v6630
        %v6701 = vpop.f32.mrf.mxu0
        %v6702 = vadd.f32 0.0, %v6701
        %v6703 = vpop.f32.mrf.mxu0
        %6704 = vmatprep.mubr.f32.mxu0 0.0
        %6705 = vmatmul.mubr.f32.gmra.mxu0 %v6633
        %v6706 = vpop.f32.mrf.mxu0
        %v6707 = vadd.f32 0.0, %v6706
        %v6708 = vpop.f32.mrf.mxu0
        %6709 = vdwg.mxu0
        %v6711 = vsel %vm939, %v6702, 0
        %v6714 = vsel %vm939, %v6707, 0
        %6716 = vmatprep.subr.mxu0 0.0
        %6717 = vmatpush1.msra.mxu0 0.0
        %6718 = vmatprep.subr.mxu0 0.0
        %6719 = vmatpush1.msra.mxu0 0.0
        %6720 = vmatprep.subr.mxu0 0.0
        %6721 = vmatpush1.msra.mxu0 0.0
        %6722 = vmatprep.subr.mxu0 0.0
        %6723 = vmatpush1.msra.mxu0 0.0
        %6724 = vmatprep.subr.mxu0 0.0
        %6725 = vmatpush1.msra.mxu0 0.0
        %6726 = vmatprep.subr.mxu0 0.0
        %6727 = vmatpush1.msra.mxu0 0.0
        %6728 = vmatprep.subr.mxu0 0.0
        %6729 = vmatpush1.msra.mxu0 0.0
        %6730 = vmatprep.subr.mxu0 0.0
        %6731 = vmatpush1.msra.mxu0 0.0
        %6732 = vmatprep.subr.mxu0 0.0
        %6733 = vmatpush1.msra.mxu0 0.0
        %6734 = vmatprep.subr.mxu0 0.0
        %6735 = vmatpush1.msra.mxu0 0.0
        %6736 = vmatprep.subr.mxu0 0.0
        %6737 = vmatpush1.msra.mxu0 0.0
        %6738 = vmatprep.subr.mxu0 0.0
        %6739 = vmatpush1.msra.mxu0 0.0
        %6740 = vmatprep.subr.mxu0 0.0
        %6741 = vmatpush1.msra.mxu0 %v5677
        %6742 = vmatprep.subr.mxu0 0.0
        %6743 = vmatpush1.msra.mxu0 %v5676
        %6744 = vmatprep.subr.mxu0 0.0
        %6745 = vmatpush1.msra.mxu0 %v5675
        %6746 = vmatprep.subr.mxu0 0.0
        %6747 = vmatpush1.msra.mxu0 %v5674
        %6748 = vmatprep.subr.mxu0 0.0
        %6749 = vmatpush2.msra.mxu0 0.0
        %6750 = vmatprep.subr.mxu0 0.0
        %6751 = vmatpush2.msra.mxu0 0.0
        %6752 = vmatprep.subr.mxu0 0.0
        %6753 = vmatpush2.msra.mxu0 0.0
        %6754 = vmatprep.subr.mxu0 0.0
        %6755 = vmatpush2.msra.mxu0 0.0
        %6756 = vmatprep.subr.mxu0 0.0
        %6757 = vmatpush2.msra.mxu0 0.0
        %6758 = vmatprep.subr.mxu0 0.0
        %6759 = vmatpush2.msra.mxu0 0.0
        %6760 = vmatprep.subr.mxu0 0.0
        %6761 = vmatpush2.msra.mxu0 0.0
        %6762 = vmatprep.subr.mxu0 0.0
        %6763 = vmatpush2.msra.mxu0 0.0
        %6764 = vmatprep.subr.mxu0 0.0
        %6765 = vmatpush2.msra.mxu0 0.0
        %6766 = vmatprep.subr.mxu0 0.0
        %6767 = vmatpush2.msra.mxu0 0.0
        %6768 = vmatprep.subr.mxu0 0.0
        %6769 = vmatpush2.msra.mxu0 0.0
        %6770 = vmatprep.subr.mxu0 0.0
        %6771 = vmatpush2.msra.mxu0 0.0
        %6772 = vmatprep.subr.mxu0 0.0
        %6773 = vmatpush2.msra.mxu0 0.0
        %6774 = vmatprep.subr.mxu0 0.0
        %6775 = vmatpush2.msra.mxu0 0.0
        %6776 = vmatprep.subr.mxu0 0.0
        %6777 = vmatpush2.msra.mxu0 0.0
        %6778 = vmatprep.subr.mxu0 0.0
        %6779 = vmatpush2.msra.mxu0 0.0
        %6780 = vmatprep.mubr.f32.mxu0 0.0
        %6781 = vmatmul.mubr.f32.gmra.mxu0 %v6711
        %v6782 = vpop.f32.mrf.mxu0
        %v6783 = vadd.f32 0.0, %v6782
        %v6784 = vpop.f32.mrf.mxu0
        %6785 = vmatprep.mubr.f32.mxu0 0.0
        %6786 = vmatmul.mubr.f32.gmra.mxu0 %v6714
        %v6787 = vpop.f32.mrf.mxu0
        %v6788 = vadd.f32 0.0, %v6787
        %v6789 = vpop.f32.mrf.mxu0
        %6790 = vdwg.mxu0
        %v6791 = vadd.f32 %v6513, %v6783
        %v6792 = vadd.f32 %v6514, %v6788
        %v6793 = vadd.f32 %v5393, %v6791
        %v6794 = vadd.f32 %v5394, %v6792
        %6795 = vadd.xlane.f32.xlu0 %v6793
        %v6796 = vpop.xlane.xlu0 %6795
        %v6797 = vsel %vm1059, %v6794, 0.0
        %6798 = vadd.xlane.f32.xlu0 %v6797
        %v6799 = vpop.xlane.xlu0 %6798
        %v6800 = vmul.f32 %v6796, %v2093
        %v6801 = vmul.f32 %v6799, %v2093
        %v6802 = vsub.f32 %v6793, %v6800
        %v6803 = vsub.f32 %v6794, %v6801
        %v6804 = vmul.f32 %v6802, %v6802
        %v6805 = vmul.f32 %v6803, %v6803
        %6806 = vadd.xlane.f32.xlu0 %v6804
        %v6807 = vpop.xlane.xlu0 %6806
        %v6808 = vsel %vm1059, %v6805, 0.0
        %6809 = vadd.xlane.f32.xlu0 %v6808
        %v6810 = vpop.xlane.xlu0 %6809
        %v6811 = vmul.f32 %v6807, %v2093
        %v6812 = vmul.f32 %v6810, %v2093
        %v6813 = vadd.f32 %v6811, 1e-05
        %v6814 = vadd.f32 %v6812, 1e-05
        %v6815 = vrsqrt.pop %v6813
        %v6816 = vrsqrt.pop %v6814
        %v6817 = vmul.f32 %v6802, %v6815
        %v6818 = vmul.f32 %v6803, %v6816
        %v6819 = vlaneseq
        %v6820 = vshrl.u32 %v6819, 7
        %v6821 = vsub.s32 2, %v6820
        %v6822 = vrot.slane %v3930, %v6821
        %v6823 = vmul.f32 %v6817, %v6822
        %v6824 = vmul.f32 %v6818, %v6822
        %v6825 = vlaneseq
        %v6826 = vshrl.u32 %v6825, 7
        %v6827 = vsub.s32 3, %v6826
        %v6828 = vrot.slane %v3930, %v6827
        %v6829 = vadd.f32 %v6823, %v6828
        %v6830 = vadd.f32 %v6824, %v6828
        %v6831 = vpack.c.bf16 %v6830, %v6829
        %s6832 = scalar_lea.vmem [#allocation9], 128
        %v6833 = vld [vmem:[%s6832] sm:$0xff]
        %v6834 = vld [vmem:[%s6832 + $0x8] sm:$0xff]
        %v6835 = vld [vmem:[%s6832 + $0x10] sm:$0xff]
        %v6836 = vld [vmem:[%s6832 + $0x18] sm:$0xff]
        %v6837 = vld [vmem:[%s6832 + $0x20] sm:$0xff]
        %v6838 = vld [vmem:[%s6832 + $0x28] sm:$0xff]
        %v6839 = vld [vmem:[%s6832 + $0x30] sm:$0xff]
        %v6840 = vld [vmem:[%s6832 + $0x38] sm:$0xff]
        %v6841 = vld [vmem:[%s6832 + $0x40] sm:$0xff]
        %v6842 = vld [vmem:[%s6832 + $0x48] sm:$0xff]
        %v6843 = vld [vmem:[%s6832 + $0x50] sm:$0xff]
        %v6844 = vld [vmem:[%s6832 + $0x58] sm:$0xff]
        %v6845 = vld [vmem:[%s6832 + $0x60] sm:$0xff]
        %v6846 = vld [vmem:[%s6832 + $0x68] sm:$0xff]
        %v6847 = vld [vmem:[%s6832 + $0x70] sm:$0xff]
        %v6848 = vld [vmem:[%s6832 + $0x78] sm:$0xff]
        %s6849 = scalar_lea.vmem %s13, 2
        %v6850 = vld [vmem:[%s6849] sm:$0x3]
        %v6852 = vlaneseq
        %v6853 = vshrl.u32 %v6852, 7
        %v6854 = vsub.s32 0, %v6853
        %v6855 = vrot.slane %v6850, %v6854
        %v6856 = vlaneseq
        %v6857 = vshrl.u32 %v6856, 7
        %v6858 = vsub.s32 1, %v6857
        %v6859 = vrot.slane %v6850, %v6858
        %v6878 = vunpack.c.l.b16 %v6833
        %v6879 = vunpack.c.h.b16 %v6833
        %v6880 = vunpack.c.l.b16 %v6834
        %v6881 = vunpack.c.h.b16 %v6834
        %v6882 = vunpack.c.l.b16 %v6835
        %v6883 = vunpack.c.h.b16 %v6835
        %v6884 = vunpack.c.l.b16 %v6836
        %v6885 = vunpack.c.h.b16 %v6836
        %v6886 = vunpack.c.l.b16 %v6837
        %v6887 = vunpack.c.h.b16 %v6837
        %v6888 = vunpack.c.l.b16 %v6838
        %v6889 = vunpack.c.h.b16 %v6838
        %v6890 = vunpack.c.l.b16 %v6839
        %v6891 = vunpack.c.h.b16 %v6839
        %v6892 = vunpack.c.l.b16 %v6840
        %v6893 = vunpack.c.h.b16 %v6840
        %v6894 = vunpack.c.l.b16 %v6841
        %v6895 = vunpack.c.h.b16 %v6841
        %v6896 = vunpack.c.l.b16 %v6842
        %v6897 = vunpack.c.h.b16 %v6842
        %v6898 = vunpack.c.l.b16 %v6843
        %v6899 = vunpack.c.h.b16 %v6843
        %v6900 = vunpack.c.l.b16 %v6844
        %v6901 = vunpack.c.h.b16 %v6844
        %v6902 = vunpack.c.l.b16 %v6845
        %v6903 = vunpack.c.h.b16 %v6845
        %v6904 = vunpack.c.l.b16 %v6846
        %v6905 = vunpack.c.h.b16 %v6846
        %v6906 = vunpack.c.l.b16 %v6847
        %v6907 = vunpack.c.h.b16 %v6847
        %v6908 = vunpack.c.l.b16 %v6848
        %v6909 = vunpack.c.h.b16 %v6848
        %v6910 = vpack.c.b16 %v6880, %v6878
        %v6911 = vpack.c.b16 %v6881, %v6879
        %v6912 = vpack.c.b16 %v6884, %v6882
        %v6913 = vpack.c.b16 %v6885, %v6883
        %v6914 = vpack.c.b16 %v6888, %v6886
        %v6915 = vpack.c.b16 %v6889, %v6887
        %v6916 = vpack.c.b16 %v6892, %v6890
        %v6917 = vpack.c.b16 %v6893, %v6891
        %v6918 = vpack.c.b16 %v6896, %v6894
        %v6919 = vpack.c.b16 %v6897, %v6895
        %v6920 = vpack.c.b16 %v6900, %v6898
        %v6921 = vpack.c.b16 %v6901, %v6899
        %v6922 = vpack.c.b16 %v6904, %v6902
        %v6923 = vpack.c.b16 %v6905, %v6903
        %v6924 = vpack.c.b16 %v6908, %v6906
        %v6925 = vpack.c.b16 %v6909, %v6907
        %6942 = vmatprep.subr.bf16.mxu0 %v6925
        %6943 = vmatpush1.bf16.msra.mxu0 %v6924
        %6944 = vmatprep.subr.bf16.mxu0 %v6923
        %6945 = vmatpush1.bf16.msra.mxu0 %v6922
        %6946 = vmatprep.subr.bf16.mxu0 %v6921
        %6947 = vmatpush1.bf16.msra.mxu0 %v6920
        %6948 = vmatprep.subr.bf16.mxu0 %v6919
        %6949 = vmatpush1.bf16.msra.mxu0 %v6918
        %6950 = vmatprep.subr.bf16.mxu0 %v6917
        %6951 = vmatpush1.bf16.msra.mxu0 %v6916
        %6952 = vmatprep.subr.bf16.mxu0 %v6915
        %6953 = vmatpush1.bf16.msra.mxu0 %v6914
        %6954 = vmatprep.subr.bf16.mxu0 %v6913
        %6955 = vmatpush1.bf16.msra.mxu0 %v6912
        %6956 = vmatprep.subr.bf16.mxu0 %v6911
        %6957 = vmatpush1.bf16.msra.mxu0 %v6910
        %6958 = vmatprep.subr.bf16.mxu0 0
        %6959 = vmatpush2.bf16.msra.mxu0 0
        %6960 = vmatprep.subr.bf16.mxu0 0
        %6961 = vmatpush2.bf16.msra.mxu0 0
        %6962 = vmatprep.subr.bf16.mxu0 0
        %6963 = vmatpush2.bf16.msra.mxu0 0
        %6964 = vmatprep.subr.bf16.mxu0 0
        %6965 = vmatpush2.bf16.msra.mxu0 0
        %6966 = vmatprep.subr.bf16.mxu0 0
        %6967 = vmatpush2.bf16.msra.mxu0 0
        %6968 = vmatprep.subr.bf16.mxu0 0
        %6969 = vmatpush2.bf16.msra.mxu0 0
        %6970 = vmatprep.subr.bf16.mxu0 0
        %6971 = vmatpush2.bf16.msra.mxu0 0
        %6972 = vmatprep.subr.bf16.mxu0 0
        %6973 = vmatpush2.bf16.msra.mxu0 0
        %6974 = vmatprep.mubr.bf16.mxu0 0
        %6975 = vmatmul.mubr.bf16.gmra.mxu0 %v6831
        %v6976 = vpop.f32.mrf.mxu0
        %v6977 = vadd.f32 %v6855, %v6976
        %v6978 = vpop.f32.mrf.mxu0
        %v6979 = vadd.f32 %v6859, %v6978
        %v6980 = vpop.f32.mrf.mxu0
        %v6981 = vadd.f32 %v6855, %v6980
        %v6982 = vpop.f32.mrf.mxu0
        %v6983 = vadd.f32 %v6859, %v6982
        %6984 = vdwg.mxu0
        %v6985 = vmax.f32 %v6977, 0.0
        %v6986 = vmax.f32 %v6979, 0.0
        %v6987 = vmax.f32 %v6981, 0.0
        %v6988 = vmax.f32 %v6983, 0.0
        %v6989 = vpack.c.bf16 %v6987, %v6985
        %v6990 = vpack.c.bf16 %v6988, %v6986
        %s6991 = scalar_lea.vmem [#allocation10], 128
        %v6992 = vld [vmem:[%s6991] sm:$0xf]
        %v6993 = vld [vmem:[%s6991 + $0x4] sm:$0xf]
        %v6994 = vld [vmem:[%s6991 + $0x8] sm:$0xf]
        %v6995 = vld [vmem:[%s6991 + $0xc] sm:$0xf]
        %v6996 = vld [vmem:[%s6991 + $0x10] sm:$0xf]
        %v6997 = vld [vmem:[%s6991 + $0x14] sm:$0xf]
        %v6998 = vld [vmem:[%s6991 + $0x18] sm:$0xf]
        %v6999 = vld [vmem:[%s6991 + $0x1c] sm:$0xf]
        %v7000 = vld [vmem:[%s6991 + $0x20] sm:$0xf]
        %v7001 = vld [vmem:[%s6991 + $0x24] sm:$0xf]
        %v7002 = vld [vmem:[%s6991 + $0x28] sm:$0xf]
        %v7003 = vld [vmem:[%s6991 + $0x2c] sm:$0xf]
        %v7004 = vld [vmem:[%s6991 + $0x30] sm:$0xf]
        %v7005 = vld [vmem:[%s6991 + $0x34] sm:$0xf]
        %v7006 = vld [vmem:[%s6991 + $0x38] sm:$0xf]
        %v7007 = vld [vmem:[%s6991 + $0x3c] sm:$0xf]
        %v7008 = vld [vmem:[%s6991 + $0x40] sm:$0xf]
        %v7009 = vld [vmem:[%s6991 + $0x44] sm:$0xf]
        %v7010 = vld [vmem:[%s6991 + $0x48] sm:$0xf]
        %v7011 = vld [vmem:[%s6991 + $0x4c] sm:$0xf]
        %v7012 = vld [vmem:[%s6991 + $0x50] sm:$0xf]
        %v7013 = vld [vmem:[%s6991 + $0x54] sm:$0xf]
        %v7014 = vld [vmem:[%s6991 + $0x58] sm:$0xf]
        %v7015 = vld [vmem:[%s6991 + $0x5c] sm:$0xf]
        %v7016 = vld [vmem:[%s6991 + $0x60] sm:$0xf]
        %v7017 = vld [vmem:[%s6991 + $0x64] sm:$0xf]
        %v7018 = vld [vmem:[%s6991 + $0x68] sm:$0xf]
        %v7019 = vld [vmem:[%s6991 + $0x6c] sm:$0xf]
        %v7020 = vld [vmem:[%s6991 + $0x70] sm:$0xf]
        %v7021 = vld [vmem:[%s6991 + $0x74] sm:$0xf]
        %v7022 = vld [vmem:[%s6991 + $0x78] sm:$0xf]
        %v7023 = vld [vmem:[%s6991 + $0x7c] sm:$0xf]
        %s7024 = scalar_lea.vmem %s15, 1
        %v7025 = vld [vmem:[%s7024] sm:$0x1]
        %v7027 = vlaneseq
        %v7028 = vshrl.u32 %v7027, 7
        %v7029 = vsub.s32 0, %v7028
        %v7030 = vrot.slane %v7025, %v7029
        %v7064 = vunpack.c.l.b16 %v6992
        %v7065 = vunpack.c.l.b16 %v6993
        %v7066 = vunpack.c.l.b16 %v6994
        %v7067 = vunpack.c.l.b16 %v6995
        %v7068 = vunpack.c.l.b16 %v6996
        %v7069 = vunpack.c.l.b16 %v6997
        %v7070 = vunpack.c.l.b16 %v6998
        %v7071 = vunpack.c.l.b16 %v6999
        %v7072 = vunpack.c.l.b16 %v7000
        %v7073 = vunpack.c.l.b16 %v7001
        %v7074 = vunpack.c.l.b16 %v7002
        %v7075 = vunpack.c.l.b16 %v7003
        %v7076 = vunpack.c.l.b16 %v7004
        %v7077 = vunpack.c.l.b16 %v7005
        %v7078 = vunpack.c.l.b16 %v7006
        %v7079 = vunpack.c.l.b16 %v7007
        %v7080 = vunpack.c.l.b16 %v7008
        %v7081 = vunpack.c.l.b16 %v7009
        %v7082 = vunpack.c.l.b16 %v7010
        %v7083 = vunpack.c.l.b16 %v7011
        %v7084 = vunpack.c.l.b16 %v7012
        %v7085 = vunpack.c.l.b16 %v7013
        %v7086 = vunpack.c.l.b16 %v7014
        %v7087 = vunpack.c.l.b16 %v7015
        %v7088 = vunpack.c.l.b16 %v7016
        %v7089 = vunpack.c.l.b16 %v7017
        %v7090 = vunpack.c.l.b16 %v7018
        %v7091 = vunpack.c.l.b16 %v7019
        %v7092 = vunpack.c.l.b16 %v7020
        %v7093 = vunpack.c.l.b16 %v7021
        %v7094 = vunpack.c.l.b16 %v7022
        %v7095 = vunpack.c.l.b16 %v7023
        %v7096 = vpack.c.b16 %v7065, %v7064
        %v7097 = vpack.c.b16 %v7067, %v7066
        %v7098 = vpack.c.b16 %v7069, %v7068
        %v7099 = vpack.c.b16 %v7071, %v7070
        %v7100 = vpack.c.b16 %v7073, %v7072
        %v7101 = vpack.c.b16 %v7075, %v7074
        %v7102 = vpack.c.b16 %v7077, %v7076
        %v7103 = vpack.c.b16 %v7079, %v7078
        %v7104 = vpack.c.b16 %v7081, %v7080
        %v7105 = vpack.c.b16 %v7083, %v7082
        %v7106 = vpack.c.b16 %v7085, %v7084
        %v7107 = vpack.c.b16 %v7087, %v7086
        %v7108 = vpack.c.b16 %v7089, %v7088
        %v7109 = vpack.c.b16 %v7091, %v7090
        %v7110 = vpack.c.b16 %v7093, %v7092
        %v7111 = vpack.c.b16 %v7095, %v7094
        %7128 = vmatprep.subr.bf16.mxu0 0
        %7129 = vmatpush1.bf16.msra.mxu0 %v7103
        %7130 = vmatprep.subr.bf16.mxu0 0
        %7131 = vmatpush1.bf16.msra.mxu0 %v7102
        %7132 = vmatprep.subr.bf16.mxu0 0
        %7133 = vmatpush1.bf16.msra.mxu0 %v7101
        %7134 = vmatprep.subr.bf16.mxu0 0
        %7135 = vmatpush1.bf16.msra.mxu0 %v7100
        %7136 = vmatprep.subr.bf16.mxu0 0
        %7137 = vmatpush1.bf16.msra.mxu0 %v7099
        %7138 = vmatprep.subr.bf16.mxu0 0
        %7139 = vmatpush1.bf16.msra.mxu0 %v7098
        %7140 = vmatprep.subr.bf16.mxu0 0
        %7141 = vmatpush1.bf16.msra.mxu0 %v7097
        %7142 = vmatprep.subr.bf16.mxu0 0
        %7143 = vmatpush1.bf16.msra.mxu0 %v7096
        %7144 = vmatprep.subr.bf16.mxu0 0
        %7145 = vmatpush2.bf16.msra.mxu0 %v7111
        %7146 = vmatprep.subr.bf16.mxu0 0
        %7147 = vmatpush2.bf16.msra.mxu0 %v7110
        %7148 = vmatprep.subr.bf16.mxu0 0
        %7149 = vmatpush2.bf16.msra.mxu0 %v7109
        %7150 = vmatprep.subr.bf16.mxu0 0
        %7151 = vmatpush2.bf16.msra.mxu0 %v7108
        %7152 = vmatprep.subr.bf16.mxu0 0
        %7153 = vmatpush2.bf16.msra.mxu0 %v7107
        %7154 = vmatprep.subr.bf16.mxu0 0
        %7155 = vmatpush2.bf16.msra.mxu0 %v7106
        %7156 = vmatprep.subr.bf16.mxu0 0
        %7157 = vmatpush2.bf16.msra.mxu0 %v7105
        %7158 = vmatprep.subr.bf16.mxu0 0
        %7159 = vmatpush2.bf16.msra.mxu0 %v7104
        %7160 = vmatprep.mubr.bf16.mxu0 %v6990
        %7161 = vmatmul.mubr.bf16.gmra.mxu0 %v6989
        %v7162 = vpop.f32.mrf.mxu0
        %v7163 = vadd.f32 %v7030, %v7162
        %v7164 = vpop.f32.mrf.mxu0
        %v7165 = vpop.f32.mrf.mxu0
        %v7166 = vadd.f32 %v7030, %v7165
        %v7167 = vpop.f32.mrf.mxu0
        %7168 = vdwg.mxu0
        %v7169 = vadd.f32 %v6829, %v7163
        %v7170 = vadd.f32 %v6830, %v7166
        %7171 = vadd.xlane.f32.xlu0 %v7169
        %v7172 = vpop.xlane.xlu0 %7171
        %v7173 = vsel %vm1059, %v7170, 0.0
        %7174 = vadd.xlane.f32.xlu0 %v7173
        %v7175 = vpop.xlane.xlu0 %7174
        %v7176 = vmul.f32 %v7172, %v2093
        %v7177 = vmul.f32 %v7175, %v2093
        %v7178 = vsub.f32 %v7169, %v7176
        %v7179 = vsub.f32 %v7170, %v7177
        %v7180 = vmul.f32 %v7178, %v7178
        %v7181 = vmul.f32 %v7179, %v7179
        %7182 = vadd.xlane.f32.xlu0 %v7180
        %v7183 = vpop.xlane.xlu0 %7182
        %v7184 = vsel %vm1059, %v7181, 0.0
        %7185 = vadd.xlane.f32.xlu0 %v7184
        %v7186 = vpop.xlane.xlu0 %7185
        %v7187 = vmul.f32 %v7183, %v2093
        %v7188 = vmul.f32 %v7186, %v2093
        %v7189 = vadd.f32 %v7187, 1e-05
        %v7190 = vadd.f32 %v7188, 1e-05
        %v7191 = vrsqrt.pop %v7189
        %v7192 = vrsqrt.pop %v7190
        %v7193 = vmul.f32 %v7178, %v7191
        %v7194 = vmul.f32 %v7179, %v7192
        %v7195 = vlaneseq
        %v7196 = vshrl.u32 %v7195, 7
        %v7197 = vsub.s32 4, %v7196
        %v7198 = vrot.slane %v3930, %v7197
        %v7199 = vmul.f32 %v7193, %v7198
        %v7200 = vmul.f32 %v7194, %v7198
        %v7201 = vlaneseq
        %v7202 = vshrl.u32 %v7201, 7
        %v7203 = vsub.s32 5, %v7202
        %v7204 = vrot.slane %v3930, %v7203
        %v7205 = vadd.f32 %v7199, %v7204
        %v7206 = vadd.f32 %v7200, %v7204
        %7207 = vst [vmem:[%s653] sm:$0xff] %v7205
        %7208 = vst [vmem:[%s653 + $0x8] sm:$0x1] %v7206
        %p7209 = scmp.lt.s32.totalorder %s32, 1
        %s7210 = scalar_select %p7209, %s32, 1
        %s7211 = smul.addr %s7210, 2
        %s7212 = smul.addr %s7211, 8
        %s7213 = scalar_lea.vmem %s17, %s7212
        // Predicated region
        $region113: #{fn_generator_forward.1} parent=87 // pred_check
          %p7214 = pneg %p417
        $region114: #{fn_generator_forward.1} parent=87 // pred_check_branch
          %7216 = sbr.rel (%p7214) target = $region116
        $region115: #{fn_generator_forward.1} parent=87 // pred_region
          _
        $region116: #{fn_generator_forward.1} parent=87 // pred_fallthru
          _
      $region88: #{fn_generator_forward.1} parent=5 // pred_fallthru
        _
      %p7217 = scmp.le.s32.totalorder 2, %s27
      // Predicated region
      $region117: #{fn_generator_forward.1} parent=5 // pred_check
        %p7218 = pneg %p7217
      $region118: #{fn_generator_forward.1} parent=5 // pred_check_branch
        %7220 = sbr.rel (%p7218) target = $region120
      $region119: #{fn_generator_forward.1} parent=5 // pred_region
        %s7221 = ssub.s32 %s27, 2
        // Predicated region
        $region121: #{fn_generator_forward.1} parent=119 // pred_check
          %p7222 = pneg %p423
        $region122: #{fn_generator_forward.1} parent=119 // pred_check_branch
          %7224 = sbr.rel (%p7222) target = $region124
        $region123: #{fn_generator_forward.1} parent=119 // pred_region
          %p7225 = scmp.lt.s32.totalorder %s33, 1
          %s7226 = scalar_select %p7225, %s33, 1
          %s7227 = smul.addr %s7226, 2
          %s7228 = smul.addr %s7227, 8
          %s7229 = scalar_lea.vmem %s17, %s7228
        $region124: #{fn_generator_forward.1} parent=119 // pred_fallthru
          _
      $region120: #{fn_generator_forward.1} parent=5 // pred_fallthru
        _
    $region6: #{fn_generator_forward.1} parent=1 // loop_footer
      %s31 = sadd.s32 1, %s27
    $region7: #{fn_generator_forward.1} parent=1 // loop_footer_branch
      %26 = sbr.rel target = $region3
    $region8: #{fn_generator_forward.1} parent=1 // loop_exit
      _
    %7230 = vsyncpa [#allocation3], 1
    %s7231 = scalar_lea.sflag [#allocation3], 1
    %7232 = vsyncpa %s7231, 1
    %7233 = vsyncpa [#allocation5], 1
    %7234 = vsyncpa [#allocation8], 1
    %7235 = vsyncpa [#allocation11], 1

</llo_original>
